<compile_context>
chip_gen: v6e
topology: v6e:2x2x1
jax: 0.10.0
libtpu: 0.0.40
codegen_flags: <defaults>
</compile_context>

<pallas_src>
import math
from functools import partial

import jax
import jax.numpy as jnp
from jax.experimental import pallas as pl
from jax.experimental.pallas import tpu as pltpu


# ----------------------------------------------------------------------------
# Helpers (plain JAX glue)
# ----------------------------------------------------------------------------
def get_relative_position_index(win_h, win_w):
    coords = jnp.stack(
        jnp.meshgrid(jnp.arange(win_h), jnp.arange(win_w), indexing="ij")
    )                                                              # (2, h, w)
    coords_flatten = coords.reshape(2, -1)                         # (2, N)
    rel = coords_flatten[:, :, None] - coords_flatten[:, None, :]  # (2, N, N)
    rel = rel.transpose(1, 2, 0)                                   # (N, N, 2)
    rel = rel.at[:, :, 0].add(win_h - 1)
    rel = rel.at[:, :, 1].add(win_w - 1)
    rel = rel.at[:, :, 0].multiply(2 * win_w - 1)
    return rel.sum(-1)                                             # (N, N)


def init_params(key, dim, num_heads, window_size, head_dim=None):
    head_dim = head_dim or dim // num_heads
    attn_dim = head_dim * num_heads
    win_h, win_w = window_size, window_size
    k1, k2, k3, k4, k5 = jax.random.split(key, 5)
    return dict(
        dim=dim,
        num_heads=num_heads,
        head_dim=head_dim,
        window_size=(win_h, win_w),
        logit_scale=jnp.log(10.0 * jnp.ones((num_heads, 1, 1), jnp.float32)),
        rel_pos_table=0.02
        * jax.random.truncated_normal(
            k1, -2.0, 2.0, ((2 * win_h - 1) * (2 * win_w - 1), num_heads), jnp.float32
        ),
        rel_pos_index=get_relative_position_index(win_h, win_w),
        # Linear weights stored [in, out] (y = x @ W + b)
        wqkv=0.02 * jax.random.normal(k2, (dim, 3 * attn_dim), jnp.float32),
        bqkv=0.02 * jax.random.normal(k3, (1, 3 * attn_dim), jnp.float32),
        wproj=0.02 * jax.random.normal(k4, (attn_dim, dim), jnp.float32),
        bproj=0.02 * jax.random.normal(k5, (1, dim), jnp.float32),
    )


# ----------------------------------------------------------------------------
# Pallas kernel: processes WB windows (WB*N rows) per grid step
# ----------------------------------------------------------------------------
def _wmsa_kernel(scale_ref, x_ref, wqkv_ref, bqkv_ref, bias_ref, wproj_ref,
                 bproj_ref, o_ref, *, wb, n, num_heads, head_dim, mxu_dtype):
    # x_ref    : (WB*N, C)              (flat window batch, f32)
    # wqkv_ref : (C, 3*A)  bqkv_ref: (1, 3*A)        (A = num_heads*head_dim)
    # bias_ref : (H, WB, N, N)          (rel-pos bias + shift mask, resident)
    # wproj_ref: (A, C)    bproj_ref: (1, C)
    # scale_ref: SMEM (H,)              (clamped exp(logit_scale) per head)
    attn_dim = num_heads * head_dim
    m = wb * n

    # qkv projection on the MXU with a real M dimension.
    x = x_ref[...].astype(mxu_dtype)                                # (M, C)
    qkv = jnp.dot(x, wqkv_ref[...],
                  preferred_element_type=jnp.float32) + bqkv_ref[...]  # (M, 3A) f32

    outs = []
    for h in range(num_heads):
        lo = h * head_dim
        q = qkv[:, lo:lo + head_dim].reshape(wb, n, head_dim)                         # (WB,N,hd)
        k = qkv[:, attn_dim + lo:attn_dim + lo + head_dim].reshape(wb, n, head_dim)
        v = qkv[:, 2 * attn_dim + lo:2 * attn_dim + lo + head_dim].reshape(wb, n, head_dim)

        # F.normalize(., dim=-1): x * rsqrt(max(||x||^2, eps^2)) == x / max(||x||, eps)
        qn = q * jax.lax.rsqrt(jnp.maximum(jnp.sum(q * q, axis=-1, keepdims=True), 1e-24))
        kn = k * jax.lax.rsqrt(jnp.maximum(jnp.sum(k * k, axis=-1, keepdims=True), 1e-24))

        # Fold the per-head logit scale into qn (N*hd multiplies instead of N*N).
        qn = qn * scale_ref[h]

        # cosine attention logits for all WB windows at once (batched over windows)
        attn = jnp.einsum("wqd,wkd->wqk", qn.astype(mxu_dtype), kn.astype(mxu_dtype),
                          preferred_element_type=jnp.float32)       # (WB, N, N)
        attn = attn + bias_ref[h]                                   # (WB, N, N), resident bias

        # numerically stable softmax; denominator reciprocal on the EUP
        attn = attn - jnp.max(attn, axis=-1, keepdims=True)
        p = jnp.exp(attn)
        p = p * pl.reciprocal(jnp.sum(p, axis=-1, keepdims=True), approx=True)

        out_h = jnp.einsum("wqk,wkd->wqd", p.astype(mxu_dtype), v.astype(mxu_dtype),
                           preferred_element_type=jnp.float32)      # (WB, N, hd)
        outs.append(out_h.reshape(m, head_dim))

    hidden = jnp.concatenate(outs, axis=-1).astype(mxu_dtype)        # (M, A)
    o_ref[...] = (
        jnp.dot(hidden, wproj_ref[...], preferred_element_type=jnp.float32)
        + bproj_ref[...]
    ).astype(o_ref.dtype)


# ----------------------------------------------------------------------------
# Wrapper
# ----------------------------------------------------------------------------
def window_attention_forward(x, params, mask=None, *, mxu_dtype=jnp.bfloat16,
                             target_rows=256):
    """x: [B_, N, C]; mask: [num_win, N, N] (0 / -large) or None."""
    B_, N, C = x.shape
    H = params["num_heads"]
    hd = params["head_dim"]
    A = H * hd

    num_win = int(mask.shape[0]) if mask is not None else 1
    if mask is not None and B_ % num_win != 0:
        raise ValueError("B_ must be a multiple of mask.shape[0]")

    # --- choose the window batch WB per grid step ---------------------------
    # constraints: WB % num_win == 0 (bias/mask tiling) and (WB*N) % 8 == 0
    # (sublane-aligned tiles); target ~target_rows rows so the projection
    # matmuls fill the MXU (>=128 rows v5e, >=256 rows v6e/v7x).
    unit = math.lcm(num_win, 8 // math.gcd(8, N))
    wb = max(unit, -(-target_rows // N))
    wb = -(-wb // unit) * unit
    b_cap = -(-B_ // unit) * unit          # smallest valid padded batch
    wb = min(wb, b_cap)
    b_pad = -(-B_ // wb) * wb
    grid = (b_pad // wb,)

    # --- parameter prep (plain JAX glue, runs once per call) ----------------
    scale = jnp.exp(
        jnp.minimum(params["logit_scale"], math.log(1.0 / 0.01))
    ).reshape(H).astype(jnp.float32)                               # (H,)

    rel_bias = params["rel_pos_table"][params["rel_pos_index"].reshape(-1)]  # (N*N, H)
    rel_bias = rel_bias.reshape(N, N, H).transpose(2, 0, 1)                  # (H, N, N)
    if mask is not None:
        bias = rel_bias[:, None] + mask[None]                      # (H, num_win, N, N)
    else:
        bias = rel_bias[:, None]                                   # (H, 1, N, N)
    # tile so window j of a block uses mask index j % num_win (blocks start at
    # multiples of WB, which is a multiple of num_win)
    bias = jnp.tile(bias, (1, wb // num_win, 1, 1)).astype(jnp.float32)  # (H, WB, N, N)

    # --- pad & flatten the window axis so kernel tiles are (WB*N, C) --------
    if b_pad != B_:
        x = jnp.pad(x, ((0, b_pad - B_), (0, 0), (0, 0)))
    x_flat = x.reshape(b_pad * N, C)

    wqkv = params["wqkv"].astype(mxu_dtype)
    wproj = params["wproj"].astype(mxu_dtype)
    bqkv = params["bqkv"].astype(jnp.float32)
    bproj = params["bproj"].astype(jnp.float32)

    kernel = partial(_wmsa_kernel, wb=wb, n=N, num_heads=H, head_dim=hd,
                     mxu_dtype=mxu_dtype)

    out_flat = pl.pallas_call(
        kernel,
        out_shape=jax.ShapeDtypeStruct((b_pad * N, C), x.dtype),
        grid_spec=pltpu.PrefetchScalarGridSpec(
            num_scalar_prefetch=0,
            grid=grid,
            in_specs=[
                pl.BlockSpec(memory_space=pltpu.MemorySpace.SMEM),        # scale (H,)
                pl.BlockSpec((wb * N, C), lambda i: (i, 0)),              # x tile
                pl.BlockSpec((C, 3 * A), lambda i: (0, 0)),               # wqkv (resident)
                pl.BlockSpec((1, 3 * A), lambda i: (0, 0)),               # bqkv (resident)
                pl.BlockSpec((H, wb, N, N), lambda i: (0, 0, 0, 0)),      # bias (resident)
                pl.BlockSpec((A, C), lambda i: (0, 0)),                   # wproj (resident)
                pl.BlockSpec((1, C), lambda i: (0, 0)),                   # bproj (resident)
            ],
            out_specs=pl.BlockSpec((wb * N, C), lambda i: (i, 0)),
        ),
        compiler_params=pltpu.CompilerParams(
            dimension_semantics=("parallel",),
        ),
    )(scale, x_flat, wqkv, bqkv, bias, wproj, bproj)

    return out_flat.reshape(b_pad, N, C)[:B_]


# ----------------------------------------------------------------------------
# Pure-JAX reference (mirrors the PyTorch forward)
# ----------------------------------------------------------------------------
def window_attention_reference(x, params, mask=None):
    B_, N, C = x.shape
    H, hd = params["num_heads"], params["head_dim"]
    attn_dim = H * hd
    qkv = x @ params["wqkv"] + params["bqkv"]                     # (B_, N, 3*attn_dim)
    qkv = qkv.reshape(B_, N, 3, H, hd).transpose(2, 0, 3, 1, 4)   # (3, B_, H, N, hd)
    q, k, v = qkv[0], qkv[1], qkv[2]
    qn = q / jnp.maximum(jnp.linalg.norm(q, axis=-1, keepdims=True), 1e-12)
    kn = k / jnp.maximum(jnp.linalg.norm(k, axis=-1, keepdims=True), 1e-12)
    attn = qn @ jnp.swapaxes(kn, -2, -1)
    scale = jnp.exp(jnp.minimum(params["logit_scale"], math.log(1.0 / 0.01)))  # (H,1,1)
    attn = attn * scale[None]
    rel_bias = params["rel_pos_table"][params["rel_pos_index"].reshape(-1)]
    rel_bias = rel_bias.reshape(N, N, H).transpose(2, 0, 1)
    attn = attn + rel_bias[None]
    if mask is not None:
        num_win = mask.shape[0]
        attn = attn.reshape(B_ // num_win, num_win, H, N, N) + mask[None, :, None]
        attn = attn.reshape(B_, H, N, N)
    attn = jax.nn.softmax(attn, axis=-1)
    out = (attn @ v).transpose(0, 2, 1, 3).reshape(B_, N, attn_dim)
    return out @ params["wproj"] + params["bproj"]


# ----------------------------------------------------------------------------
if __name__ == "__main__":
    key = jax.random.PRNGKey(0)
    kp, kx, km = jax.random.split(key, 3)

    dim, num_heads, window_size = 32, 4, 4
    N = window_size * window_size        # 16
    B, num_win = 2, 4
    B_ = B * num_win                     # 8

    params = init_params(kp, dim, num_heads, window_size)
    x = jax.random.normal(kx, (B_, N, dim), jnp.float32)
    # 0 / -100 shift mask (same convention as Swin's attn_mask)
    mask = jnp.where(
        jax.random.uniform(km, (num_win, N, N)) > 0.5, 0.0, -100.0
    ).astype(jnp.float32)

    ref_nomask = window_attention_reference(x, params, mask=None)
    ref_mask = window_attention_reference(x, params, mask=mask)

    # f32-MXU path: tight check against the PyTorch-equivalent reference
    out0 = jax.block_until_ready(
        window_attention_forward(x, params, mask=None, mxu_dtype=jnp.float32))
    assert out0.shape == (B_, N, dim)
    assert jnp.allclose(out0, ref_nomask, atol=2e-3, rtol=2e-3), "mismatch (f32, no mask)"

    out1 = jax.block_until_ready(
        window_attention_forward(x, params, mask=mask, mxu_dtype=jnp.float32))
    assert jnp.allclose(out1, ref_mask, atol=2e-3, rtol=2e-3), "mismatch (f32, mask)"

    # default bf16-MXU path (f32 accumulation): looser tolerance
    out2 = jax.block_until_ready(window_attention_forward(x, params, mask=mask))
    assert jnp.allclose(out2, ref_mask, atol=1e-2, rtol=1e-1), "mismatch (bf16 MXU, mask)"

    print("KERNEL_OK")
</pallas_src>

<mosaic_0001>
module attributes {stable_mosaic.version = 11 : i64} {
  func.func @_wmsa_kernel(%arg0: i32, %arg1: memref<4xf32, #tpu.memory_space<smem>>, %arg2: memref<128x32xf32, #tpu.memory_space<vmem>>, %arg3: memref<32x96xf32, #tpu.memory_space<vmem>>, %arg4: memref<1x96xf32, #tpu.memory_space<vmem>>, %arg5: memref<4x8x16x16xf32, #tpu.memory_space<vmem>>, %arg6: memref<32x32xf32, #tpu.memory_space<vmem>>, %arg7: memref<1x32xf32, #tpu.memory_space<vmem>>, %arg8: memref<128x32xf32, #tpu.memory_space<vmem>>) attributes {dimension_semantics = [#tpu.dimension_semantics<parallel>], iteration_bounds = array<i64: 1>, scalar_prefetch = 0 : i64, scratch_operands = 0 : i64, tpu.core_type = #tpu.core_type<tc>, window_params = [{transform_indices = @transform_0, window_bounds = array<i64: 4>}, {transform_indices = @transform_1, window_bounds = array<i64: 128, 32>}, {pipeline_mode = #tpu.pipeline_mode<synchronous>, transform_indices = @transform_2, window_bounds = array<i64: 32, 96>}, {pipeline_mode = #tpu.pipeline_mode<synchronous>, transform_indices = @transform_3, window_bounds = array<i64: 1, 96>}, {pipeline_mode = #tpu.pipeline_mode<synchronous>, transform_indices = @transform_4, window_bounds = array<i64: 4, 8, 16, 16>}, {pipeline_mode = #tpu.pipeline_mode<synchronous>, transform_indices = @transform_5, window_bounds = array<i64: 32, 32>}, {pipeline_mode = #tpu.pipeline_mode<synchronous>, transform_indices = @transform_6, window_bounds = array<i64: 1, 32>}, {transform_indices = @transform_7, window_bounds = array<i64: 128, 32>}]} {
    %c0 = arith.constant 0 : index
    %c0_0 = arith.constant 0 : index
    %0 = vector.load %arg2[%c0, %c0_0] : memref<128x32xf32, #tpu.memory_space<vmem>>, vector<128x32xf32>
    %c0_1 = arith.constant 0 : index
    %c0_2 = arith.constant 0 : index
    %1 = vector.load %arg3[%c0_1, %c0_2] : memref<32x96xf32, #tpu.memory_space<vmem>>, vector<32x96xf32>
    %cst = arith.constant dense<0.000000e+00> : vector<128x96xf32>
    %2 = tpu.matmul %0, %1, %cst {dimension_numbers = #tpu.dot_dimension_numbers<[1], [0], [0], [1], [0, 0, 1, 1], [], []>} : vector<128x32xf32>, vector<32x96xf32>, vector<128x96xf32> -> vector<128x96xf32>
    %c0_3 = arith.constant 0 : index
    %c0_4 = arith.constant 0 : index
    %3 = vector.load %arg4[%c0_3, %c0_4] : memref<1x96xf32, #tpu.memory_space<vmem>>, vector<1x96xf32>
    %4 = vector.broadcast %3 : vector<1x96xf32> to vector<128x96xf32>
    %5 = arith.addf %2, %4 : vector<128x96xf32>
    %6 = vector.extract_strided_slice %5 {offsets = [0, 0], sizes = [128, 8], strides = [1, 1]} : vector<128x96xf32> to vector<128x8xf32>
    %7 = vector.shape_cast %6 : vector<128x8xf32> to vector<8x16x8xf32>
    %8 = vector.extract_strided_slice %5 {offsets = [0, 32], sizes = [128, 8], strides = [1, 1]} : vector<128x96xf32> to vector<128x8xf32>
    %9 = vector.shape_cast %8 : vector<128x8xf32> to vector<8x16x8xf32>
    %10 = vector.extract_strided_slice %5 {offsets = [0, 64], sizes = [128, 8], strides = [1, 1]} : vector<128x96xf32> to vector<128x8xf32>
    %11 = vector.shape_cast %10 : vector<128x8xf32> to vector<8x16x8xf32>
    %12 = arith.mulf %7, %7 : vector<8x16x8xf32>
    %cst_5 = arith.constant dense<0.000000e+00> : vector<8x16xf32>
    %13 = vector.multi_reduction <add>, %12, %cst_5 [2] : vector<8x16x8xf32> to vector<8x16xf32>
    %14 = vector.shape_cast %13 : vector<8x16xf32> to vector<8x16x1xf32>
    %cst_6 = arith.constant 1.000000e-24 : f32
    %15 = vector.broadcast %cst_6 : f32 to vector<8x16x1xf32>
    %16 = arith.maximumf %14, %15 : vector<8x16x1xf32>
    %17 = math.rsqrt %16 : vector<8x16x1xf32>
    %18 = vector.broadcast %17 : vector<8x16x1xf32> to vector<8x16x8xf32>
    %19 = arith.mulf %7, %18 : vector<8x16x8xf32>
    %20 = arith.mulf %9, %9 : vector<8x16x8xf32>
    %cst_7 = arith.constant dense<0.000000e+00> : vector<8x16xf32>
    %21 = vector.multi_reduction <add>, %20, %cst_7 [2] : vector<8x16x8xf32> to vector<8x16xf32>
    %22 = vector.shape_cast %21 : vector<8x16xf32> to vector<8x16x1xf32>
    %cst_8 = arith.constant 1.000000e-24 : f32
    %23 = vector.broadcast %cst_8 : f32 to vector<8x16x1xf32>
    %24 = arith.maximumf %22, %23 : vector<8x16x1xf32>
    %25 = math.rsqrt %24 : vector<8x16x1xf32>
    %26 = vector.broadcast %25 : vector<8x16x1xf32> to vector<8x16x8xf32>
    %27 = arith.mulf %9, %26 : vector<8x16x8xf32>
    %c0_9 = arith.constant 0 : index
    %28 = memref.load %arg1[%c0_9] : memref<4xf32, #tpu.memory_space<smem>>
    %29 = vector.broadcast %28 : f32 to vector<8x16x8xf32>
    %30 = arith.mulf %19, %29 : vector<8x16x8xf32>
    "tpu.trace_start"() <{level = 10 : i32, message = "wqd,wkd->wqk"}> : () -> ()
    %cst_10 = arith.constant dense<0.000000e+00> : vector<8x16x16xf32>
    %31 = tpu.matmul %30, %27, %cst_10 {dimension_numbers = #tpu.dot_dimension_numbers<[2], [2], [1], [1], [0, 0, 0, 1, 1, 1], [0], [0]>} : vector<8x16x8xf32>, vector<8x16x8xf32>, vector<8x16x16xf32> -> vector<8x16x16xf32>
    "tpu.trace_stop"() : () -> ()
    %c0_11 = arith.constant 0 : index
    %c0_12 = arith.constant 0 : index
    %c0_13 = arith.constant 0 : index
    %c0_14 = arith.constant 0 : index
    %32 = vector.load %arg5[%c0_11, %c0_12, %c0_13, %c0_14] : memref<4x8x16x16xf32, #tpu.memory_space<vmem>>, vector<1x8x16x16xf32>
    %33 = vector.shape_cast %32 : vector<1x8x16x16xf32> to vector<8x16x16xf32>
    %34 = arith.addf %31, %33 : vector<8x16x16xf32>
    %cst_15 = arith.constant dense<0xFF800000> : vector<8x16xf32>
    %35 = vector.multi_reduction <maximumf>, %34, %cst_15 [2] : vector<8x16x16xf32> to vector<8x16xf32>
    %36 = vector.shape_cast %35 : vector<8x16xf32> to vector<8x16x1xf32>
    %37 = vector.broadcast %36 : vector<8x16x1xf32> to vector<8x16x16xf32>
    %38 = arith.subf %34, %37 : vector<8x16x16xf32>
    %39 = math.exp %38 : vector<8x16x16xf32>
    %cst_16 = arith.constant dense<0.000000e+00> : vector<8x16xf32>
    %40 = vector.multi_reduction <add>, %39, %cst_16 [2] : vector<8x16x16xf32> to vector<8x16xf32>
    %41 = vector.shape_cast %40 : vector<8x16xf32> to vector<8x16x1xf32>
    %42 = tpu.reciprocal %41 {approx = true} : vector<8x16x1xf32> -> vector<8x16x1xf32>
    %43 = vector.broadcast %42 : vector<8x16x1xf32> to vector<8x16x16xf32>
    %44 = arith.mulf %39, %43 : vector<8x16x16xf32>
    "tpu.trace_start"() <{level = 10 : i32, message = "wqk,wkd->wqd"}> : () -> ()
    %cst_17 = arith.constant dense<0.000000e+00> : vector<8x16x8xf32>
    %45 = tpu.matmul %44, %11, %cst_17 {dimension_numbers = #tpu.dot_dimension_numbers<[2], [1], [1], [2], [0, 0, 0, 1, 1, 2], [0], [0]>} : vector<8x16x16xf32>, vector<8x16x8xf32>, vector<8x16x8xf32> -> vector<8x16x8xf32>
    "tpu.trace_stop"() : () -> ()
    %46 = vector.shape_cast %45 : vector<8x16x8xf32> to vector<128x8xf32>
    %47 = vector.extract_strided_slice %5 {offsets = [0, 8], sizes = [128, 8], strides = [1, 1]} : vector<128x96xf32> to vector<128x8xf32>
    %48 = vector.shape_cast %47 : vector<128x8xf32> to vector<8x16x8xf32>
    %49 = vector.extract_strided_slice %5 {offsets = [0, 40], sizes = [128, 8], strides = [1, 1]} : vector<128x96xf32> to vector<128x8xf32>
    %50 = vector.shape_cast %49 : vector<128x8xf32> to vector<8x16x8xf32>
    %51 = vector.extract_strided_slice %5 {offsets = [0, 72], sizes = [128, 8], strides = [1, 1]} : vector<128x96xf32> to vector<128x8xf32>
    %52 = vector.shape_cast %51 : vector<128x8xf32> to vector<8x16x8xf32>
    %53 = arith.mulf %48, %48 : vector<8x16x8xf32>
    %cst_18 = arith.constant dense<0.000000e+00> : vector<8x16xf32>
    %54 = vector.multi_reduction <add>, %53, %cst_18 [2] : vector<8x16x8xf32> to vector<8x16xf32>
    %55 = vector.shape_cast %54 : vector<8x16xf32> to vector<8x16x1xf32>
    %cst_19 = arith.constant 1.000000e-24 : f32
    %56 = vector.broadcast %cst_19 : f32 to vector<8x16x1xf32>
    %57 = arith.maximumf %55, %56 : vector<8x16x1xf32>
    %58 = math.rsqrt %57 : vector<8x16x1xf32>
    %59 = vector.broadcast %58 : vector<8x16x1xf32> to vector<8x16x8xf32>
    %60 = arith.mulf %48, %59 : vector<8x16x8xf32>
    %61 = arith.mulf %50, %50 : vector<8x16x8xf32>
    %cst_20 = arith.constant dense<0.000000e+00> : vector<8x16xf32>
    %62 = vector.multi_reduction <add>, %61, %cst_20 [2] : vector<8x16x8xf32> to vector<8x16xf32>
    %63 = vector.shape_cast %62 : vector<8x16xf32> to vector<8x16x1xf32>
    %cst_21 = arith.constant 1.000000e-24 : f32
    %64 = vector.broadcast %cst_21 : f32 to vector<8x16x1xf32>
    %65 = arith.maximumf %63, %64 : vector<8x16x1xf32>
    %66 = math.rsqrt %65 : vector<8x16x1xf32>
    %67 = vector.broadcast %66 : vector<8x16x1xf32> to vector<8x16x8xf32>
    %68 = arith.mulf %50, %67 : vector<8x16x8xf32>
    %c1 = arith.constant 1 : index
    %69 = memref.load %arg1[%c1] : memref<4xf32, #tpu.memory_space<smem>>
    %70 = vector.broadcast %69 : f32 to vector<8x16x8xf32>
    %71 = arith.mulf %60, %70 : vector<8x16x8xf32>
    "tpu.trace_start"() <{level = 10 : i32, message = "wqd,wkd->wqk"}> : () -> ()
    %cst_22 = arith.constant dense<0.000000e+00> : vector<8x16x16xf32>
    %72 = tpu.matmul %71, %68, %cst_22 {dimension_numbers = #tpu.dot_dimension_numbers<[2], [2], [1], [1], [0, 0, 0, 1, 1, 1], [0], [0]>} : vector<8x16x8xf32>, vector<8x16x8xf32>, vector<8x16x16xf32> -> vector<8x16x16xf32>
    "tpu.trace_stop"() : () -> ()
    %c1_23 = arith.constant 1 : index
    %c0_24 = arith.constant 0 : index
    %c0_25 = arith.constant 0 : index
    %c0_26 = arith.constant 0 : index
    %73 = vector.load %arg5[%c1_23, %c0_24, %c0_25, %c0_26] : memref<4x8x16x16xf32, #tpu.memory_space<vmem>>, vector<1x8x16x16xf32>
    %74 = vector.shape_cast %73 : vector<1x8x16x16xf32> to vector<8x16x16xf32>
    %75 = arith.addf %72, %74 : vector<8x16x16xf32>
    %cst_27 = arith.constant dense<0xFF800000> : vector<8x16xf32>
    %76 = vector.multi_reduction <maximumf>, %75, %cst_27 [2] : vector<8x16x16xf32> to vector<8x16xf32>
    %77 = vector.shape_cast %76 : vector<8x16xf32> to vector<8x16x1xf32>
    %78 = vector.broadcast %77 : vector<8x16x1xf32> to vector<8x16x16xf32>
    %79 = arith.subf %75, %78 : vector<8x16x16xf32>
    %80 = math.exp %79 : vector<8x16x16xf32>
    %cst_28 = arith.constant dense<0.000000e+00> : vector<8x16xf32>
    %81 = vector.multi_reduction <add>, %80, %cst_28 [2] : vector<8x16x16xf32> to vector<8x16xf32>
    %82 = vector.shape_cast %81 : vector<8x16xf32> to vector<8x16x1xf32>
    %83 = tpu.reciprocal %82 {approx = true} : vector<8x16x1xf32> -> vector<8x16x1xf32>
    %84 = vector.broadcast %83 : vector<8x16x1xf32> to vector<8x16x16xf32>
    %85 = arith.mulf %80, %84 : vector<8x16x16xf32>
    "tpu.trace_start"() <{level = 10 : i32, message = "wqk,wkd->wqd"}> : () -> ()
    %cst_29 = arith.constant dense<0.000000e+00> : vector<8x16x8xf32>
    %86 = tpu.matmul %85, %52, %cst_29 {dimension_numbers = #tpu.dot_dimension_numbers<[2], [1], [1], [2], [0, 0, 0, 1, 1, 2], [0], [0]>} : vector<8x16x16xf32>, vector<8x16x8xf32>, vector<8x16x8xf32> -> vector<8x16x8xf32>
    "tpu.trace_stop"() : () -> ()
    %87 = vector.shape_cast %86 : vector<8x16x8xf32> to vector<128x8xf32>
    %88 = vector.extract_strided_slice %5 {offsets = [0, 16], sizes = [128, 8], strides = [1, 1]} : vector<128x96xf32> to vector<128x8xf32>
    %89 = vector.shape_cast %88 : vector<128x8xf32> to vector<8x16x8xf32>
    %90 = vector.extract_strided_slice %5 {offsets = [0, 48], sizes = [128, 8], strides = [1, 1]} : vector<128x96xf32> to vector<128x8xf32>
    %91 = vector.shape_cast %90 : vector<128x8xf32> to vector<8x16x8xf32>
    %92 = vector.extract_strided_slice %5 {offsets = [0, 80], sizes = [128, 8], strides = [1, 1]} : vector<128x96xf32> to vector<128x8xf32>
    %93 = vector.shape_cast %92 : vector<128x8xf32> to vector<8x16x8xf32>
    %94 = arith.mulf %89, %89 : vector<8x16x8xf32>
    %cst_30 = arith.constant dense<0.000000e+00> : vector<8x16xf32>
    %95 = vector.multi_reduction <add>, %94, %cst_30 [2] : vector<8x16x8xf32> to vector<8x16xf32>
    %96 = vector.shape_cast %95 : vector<8x16xf32> to vector<8x16x1xf32>
    %cst_31 = arith.constant 1.000000e-24 : f32
    %97 = vector.broadcast %cst_31 : f32 to vector<8x16x1xf32>
    %98 = arith.maximumf %96, %97 : vector<8x16x1xf32>
    %99 = math.rsqrt %98 : vector<8x16x1xf32>
    %100 = vector.broadcast %99 : vector<8x16x1xf32> to vector<8x16x8xf32>
    %101 = arith.mulf %89, %100 : vector<8x16x8xf32>
    %102 = arith.mulf %91, %91 : vector<8x16x8xf32>
    %cst_32 = arith.constant dense<0.000000e+00> : vector<8x16xf32>
    %103 = vector.multi_reduction <add>, %102, %cst_32 [2] : vector<8x16x8xf32> to vector<8x16xf32>
    %104 = vector.shape_cast %103 : vector<8x16xf32> to vector<8x16x1xf32>
    %cst_33 = arith.constant 1.000000e-24 : f32
    %105 = vector.broadcast %cst_33 : f32 to vector<8x16x1xf32>
    %106 = arith.maximumf %104, %105 : vector<8x16x1xf32>
    %107 = math.rsqrt %106 : vector<8x16x1xf32>
    %108 = vector.broadcast %107 : vector<8x16x1xf32> to vector<8x16x8xf32>
    %109 = arith.mulf %91, %108 : vector<8x16x8xf32>
    %c2 = arith.constant 2 : index
    %110 = memref.load %arg1[%c2] : memref<4xf32, #tpu.memory_space<smem>>
    %111 = vector.broadcast %110 : f32 to vector<8x16x8xf32>
    %112 = arith.mulf %101, %111 : vector<8x16x8xf32>
    "tpu.trace_start"() <{level = 10 : i32, message = "wqd,wkd->wqk"}> : () -> ()
    %cst_34 = arith.constant dense<0.000000e+00> : vector<8x16x16xf32>
    %113 = tpu.matmul %112, %109, %cst_34 {dimension_numbers = #tpu.dot_dimension_numbers<[2], [2], [1], [1], [0, 0, 0, 1, 1, 1], [0], [0]>} : vector<8x16x8xf32>, vector<8x16x8xf32>, vector<8x16x16xf32> -> vector<8x16x16xf32>
    "tpu.trace_stop"() : () -> ()
    %c2_35 = arith.constant 2 : index
    %c0_36 = arith.constant 0 : index
    %c0_37 = arith.constant 0 : index
    %c0_38 = arith.constant 0 : index
    %114 = vector.load %arg5[%c2_35, %c0_36, %c0_37, %c0_38] : memref<4x8x16x16xf32, #tpu.memory_space<vmem>>, vector<1x8x16x16xf32>
    %115 = vector.shape_cast %114 : vector<1x8x16x16xf32> to vector<8x16x16xf32>
    %116 = arith.addf %113, %115 : vector<8x16x16xf32>
    %cst_39 = arith.constant dense<0xFF800000> : vector<8x16xf32>
    %117 = vector.multi_reduction <maximumf>, %116, %cst_39 [2] : vector<8x16x16xf32> to vector<8x16xf32>
    %118 = vector.shape_cast %117 : vector<8x16xf32> to vector<8x16x1xf32>
    %119 = vector.broadcast %118 : vector<8x16x1xf32> to vector<8x16x16xf32>
    %120 = arith.subf %116, %119 : vector<8x16x16xf32>
    %121 = math.exp %120 : vector<8x16x16xf32>
    %cst_40 = arith.constant dense<0.000000e+00> : vector<8x16xf32>
    %122 = vector.multi_reduction <add>, %121, %cst_40 [2] : vector<8x16x16xf32> to vector<8x16xf32>
    %123 = vector.shape_cast %122 : vector<8x16xf32> to vector<8x16x1xf32>
    %124 = tpu.reciprocal %123 {approx = true} : vector<8x16x1xf32> -> vector<8x16x1xf32>
    %125 = vector.broadcast %124 : vector<8x16x1xf32> to vector<8x16x16xf32>
    %126 = arith.mulf %121, %125 : vector<8x16x16xf32>
    "tpu.trace_start"() <{level = 10 : i32, message = "wqk,wkd->wqd"}> : () -> ()
    %cst_41 = arith.constant dense<0.000000e+00> : vector<8x16x8xf32>
    %127 = tpu.matmul %126, %93, %cst_41 {dimension_numbers = #tpu.dot_dimension_numbers<[2], [1], [1], [2], [0, 0, 0, 1, 1, 2], [0], [0]>} : vector<8x16x16xf32>, vector<8x16x8xf32>, vector<8x16x8xf32> -> vector<8x16x8xf32>
    "tpu.trace_stop"() : () -> ()
    %128 = vector.shape_cast %127 : vector<8x16x8xf32> to vector<128x8xf32>
    %129 = vector.extract_strided_slice %5 {offsets = [0, 24], sizes = [128, 8], strides = [1, 1]} : vector<128x96xf32> to vector<128x8xf32>
    %130 = vector.shape_cast %129 : vector<128x8xf32> to vector<8x16x8xf32>
    %131 = vector.extract_strided_slice %5 {offsets = [0, 56], sizes = [128, 8], strides = [1, 1]} : vector<128x96xf32> to vector<128x8xf32>
    %132 = vector.shape_cast %131 : vector<128x8xf32> to vector<8x16x8xf32>
    %133 = vector.extract_strided_slice %5 {offsets = [0, 88], sizes = [128, 8], strides = [1, 1]} : vector<128x96xf32> to vector<128x8xf32>
    %134 = vector.shape_cast %133 : vector<128x8xf32> to vector<8x16x8xf32>
    %135 = arith.mulf %130, %130 : vector<8x16x8xf32>
    %cst_42 = arith.constant dense<0.000000e+00> : vector<8x16xf32>
    %136 = vector.multi_reduction <add>, %135, %cst_42 [2] : vector<8x16x8xf32> to vector<8x16xf32>
    %137 = vector.shape_cast %136 : vector<8x16xf32> to vector<8x16x1xf32>
    %cst_43 = arith.constant 1.000000e-24 : f32
    %138 = vector.broadcast %cst_43 : f32 to vector<8x16x1xf32>
    %139 = arith.maximumf %137, %138 : vector<8x16x1xf32>
    %140 = math.rsqrt %139 : vector<8x16x1xf32>
    %141 = vector.broadcast %140 : vector<8x16x1xf32> to vector<8x16x8xf32>
    %142 = arith.mulf %130, %141 : vector<8x16x8xf32>
    %143 = arith.mulf %132, %132 : vector<8x16x8xf32>
    %cst_44 = arith.constant dense<0.000000e+00> : vector<8x16xf32>
    %144 = vector.multi_reduction <add>, %143, %cst_44 [2] : vector<8x16x8xf32> to vector<8x16xf32>
    %145 = vector.shape_cast %144 : vector<8x16xf32> to vector<8x16x1xf32>
    %cst_45 = arith.constant 1.000000e-24 : f32
    %146 = vector.broadcast %cst_45 : f32 to vector<8x16x1xf32>
    %147 = arith.maximumf %145, %146 : vector<8x16x1xf32>
    %148 = math.rsqrt %147 : vector<8x16x1xf32>
    %149 = vector.broadcast %148 : vector<8x16x1xf32> to vector<8x16x8xf32>
    %150 = arith.mulf %132, %149 : vector<8x16x8xf32>
    %c3 = arith.constant 3 : index
    %151 = memref.load %arg1[%c3] : memref<4xf32, #tpu.memory_space<smem>>
    %152 = vector.broadcast %151 : f32 to vector<8x16x8xf32>
    %153 = arith.mulf %142, %152 : vector<8x16x8xf32>
    "tpu.trace_start"() <{level = 10 : i32, message = "wqd,wkd->wqk"}> : () -> ()
    %cst_46 = arith.constant dense<0.000000e+00> : vector<8x16x16xf32>
    %154 = tpu.matmul %153, %150, %cst_46 {dimension_numbers = #tpu.dot_dimension_numbers<[2], [2], [1], [1], [0, 0, 0, 1, 1, 1], [0], [0]>} : vector<8x16x8xf32>, vector<8x16x8xf32>, vector<8x16x16xf32> -> vector<8x16x16xf32>
    "tpu.trace_stop"() : () -> ()
    %c3_47 = arith.constant 3 : index
    %c0_48 = arith.constant 0 : index
    %c0_49 = arith.constant 0 : index
    %c0_50 = arith.constant 0 : index
    %155 = vector.load %arg5[%c3_47, %c0_48, %c0_49, %c0_50] : memref<4x8x16x16xf32, #tpu.memory_space<vmem>>, vector<1x8x16x16xf32>
    %156 = vector.shape_cast %155 : vector<1x8x16x16xf32> to vector<8x16x16xf32>
    %157 = arith.addf %154, %156 : vector<8x16x16xf32>
    %cst_51 = arith.constant dense<0xFF800000> : vector<8x16xf32>
    %158 = vector.multi_reduction <maximumf>, %157, %cst_51 [2] : vector<8x16x16xf32> to vector<8x16xf32>
    %159 = vector.shape_cast %158 : vector<8x16xf32> to vector<8x16x1xf32>
    %160 = vector.broadcast %159 : vector<8x16x1xf32> to vector<8x16x16xf32>
    %161 = arith.subf %157, %160 : vector<8x16x16xf32>
    %162 = math.exp %161 : vector<8x16x16xf32>
    %cst_52 = arith.constant dense<0.000000e+00> : vector<8x16xf32>
    %163 = vector.multi_reduction <add>, %162, %cst_52 [2] : vector<8x16x16xf32> to vector<8x16xf32>
    %164 = vector.shape_cast %163 : vector<8x16xf32> to vector<8x16x1xf32>
    %165 = tpu.reciprocal %164 {approx = true} : vector<8x16x1xf32> -> vector<8x16x1xf32>
    %166 = vector.broadcast %165 : vector<8x16x1xf32> to vector<8x16x16xf32>
    %167 = arith.mulf %162, %166 : vector<8x16x16xf32>
    "tpu.trace_start"() <{level = 10 : i32, message = "wqk,wkd->wqd"}> : () -> ()
    %cst_53 = arith.constant dense<0.000000e+00> : vector<8x16x8xf32>
    %168 = tpu.matmul %167, %134, %cst_53 {dimension_numbers = #tpu.dot_dimension_numbers<[2], [1], [1], [2], [0, 0, 0, 1, 1, 2], [0], [0]>} : vector<8x16x16xf32>, vector<8x16x8xf32>, vector<8x16x8xf32> -> vector<8x16x8xf32>
    "tpu.trace_stop"() : () -> ()
    %169 = vector.shape_cast %168 : vector<8x16x8xf32> to vector<128x8xf32>
    %170 = tpu.concatenate %46, %87, %128, %169 in 1 : vector<128x8xf32>, vector<128x8xf32>, vector<128x8xf32>, vector<128x8xf32> -> vector<128x32xf32>
    %c0_54 = arith.constant 0 : index
    %c0_55 = arith.constant 0 : index
    %171 = vector.load %arg6[%c0_54, %c0_55] : memref<32x32xf32, #tpu.memory_space<vmem>>, vector<32x32xf32>
    %cst_56 = arith.constant dense<0.000000e+00> : vector<128x32xf32>
    %172 = tpu.matmul %170, %171, %cst_56 {dimension_numbers = #tpu.dot_dimension_numbers<[1], [0], [0], [1], [0, 0, 1, 1], [], []>} : vector<128x32xf32>, vector<32x32xf32>, vector<128x32xf32> -> vector<128x32xf32>
    %c0_57 = arith.constant 0 : index
    %c0_58 = arith.constant 0 : index
    %173 = vector.load %arg7[%c0_57, %c0_58] : memref<1x32xf32, #tpu.memory_space<vmem>>, vector<1x32xf32>
    %174 = vector.broadcast %173 : vector<1x32xf32> to vector<128x32xf32>
    %175 = arith.addf %172, %174 : vector<128x32xf32>
    %c0_59 = arith.constant 0 : index
    %c0_60 = arith.constant 0 : index
    %176 = vector.load %arg8[%c0_59, %c0_60] : memref<128x32xf32, #tpu.memory_space<vmem>>, vector<128x32xf32>
    tpu.vector_store %arg8[%c0_59, %c0_60], %175 {strides = array<i32>} : memref<128x32xf32, #tpu.memory_space<vmem>>, vector<128x32xf32>,
    return
  }
  func.func @transform_0(%arg0: i32) -> i32 {
    %c0_i32 = arith.constant 0 : i32
    %c0_i32_0 = arith.constant 0 : i32
    return %c0_i32 : i32
  }
  func.func @transform_1(%arg0: i32) -> (i32, i32) {
    %c0_i32 = arith.constant 0 : i32
    %c0_i32_0 = arith.constant 0 : i32
    return %arg0, %c0_i32 : i32, i32
  }
  func.func @transform_2(%arg0: i32) -> (i32, i32) {
    %c0_i32 = arith.constant 0 : i32
    %c0_i32_0 = arith.constant 0 : i32
    %c0_i32_1 = arith.constant 0 : i32
    return %c0_i32, %c0_i32_0 : i32, i32
  }
  func.func @transform_3(%arg0: i32) -> (i32, i32) {
    %c0_i32 = arith.constant 0 : i32
    %c0_i32_0 = arith.constant 0 : i32
    %c0_i32_1 = arith.constant 0 : i32
    return %c0_i32, %c0_i32_0 : i32, i32
  }
  func.func @transform_4(%arg0: i32) -> (i32, i32, i32, i32) {
    %c0_i32 = arith.constant 0 : i32
    %c0_i32_0 = arith.constant 0 : i32
    %c0_i32_1 = arith.constant 0 : i32
    %c0_i32_2 = arith.constant 0 : i32
    %c0_i32_3 = arith.constant 0 : i32
    return %c0_i32, %c0_i32_0, %c0_i32_1, %c0_i32_2 : i32, i32, i32, i32
  }
  func.func @transform_5(%arg0: i32) -> (i32, i32) {
    %c0_i32 = arith.constant 0 : i32
    %c0_i32_0 = arith.constant 0 : i32
    %c0_i32_1 = arith.constant 0 : i32
    return %c0_i32, %c0_i32_0 : i32, i32
  }
  func.func @transform_6(%arg0: i32) -> (i32, i32) {
    %c0_i32 = arith.constant 0 : i32
    %c0_i32_0 = arith.constant 0 : i32
    %c0_i32_1 = arith.constant 0 : i32
    return %c0_i32, %c0_i32_0 : i32, i32
  }
  func.func @transform_7(%arg0: i32) -> (i32, i32) {
    %c0_i32 = arith.constant 0 : i32
    %c0_i32_0 = arith.constant 0 : i32
    return %arg0, %c0_i32 : i32, i32
  }
}

</mosaic_0001>

<llo_original>
// kernel: tpu_custom_call.1
$region0: #{tpu_custom_call.1}
  #allocation0 [shape = 'u32[]', space=smem, size = 0x4, offset = 0x4, fixed_abs, tag = 'smem constant byte address 0x4 - core index']
  #allocation1 [shape = 'u32[144,128]{1,0:T(1,128)}', space=vmem, size = 0x12000, scoped, tag = 'internal scratch']
  %s0 = inlined_call_operand.vmem [shape: f32[4], index: 0, kind: input, shape index: {}]
  %s1 = inlined_call_operand.vmem [shape: f32[128,32], index: 1, kind: input, shape index: {}]
  %s2 = inlined_call_operand.vmem [shape: f32[32,96], index: 2, kind: input, shape index: {}]
  %s3 = inlined_call_operand.vmem [shape: f32[1,96], index: 3, kind: input, shape index: {}]
  %s4 = inlined_call_operand.hbm [shape: f32[4,8,16,16], index: 4, kind: input, shape index: {}]
  %s5 = inlined_call_operand.vmem [shape: f32[32,32], index: 5, kind: input, shape index: {}]
  %s6 = inlined_call_operand.vmem [shape: f32[1,32], index: 6, kind: input, shape index: {}]
  %s7 = inlined_call_operand.vmem [shape: f32[128,32], index: 7, kind: output, shape index: {}]
  %s8 = sld [smem:[#allocation0]]
  $region46: #{tpu_custom_call.1} parent=0
    _
  %s10 = ssub.s32 1, %s8
  %s11 = scalar_select 0, %s10, %s8
  $region1: #{tpu_custom_call.1} parent=0
    #allocation2 [shape = 'u8[512]{0}', space=smem, size = 0x200, scoped, tag = 'input window, operand 0, single buffered']
    #allocation3 [shape = 's32[1]{0}', space=sflag, size = 0x4, scoped, tag = 'scoped memory for tpu_custom_call.1']
    #allocation4 [shape = 's32[1]{0}', space=sflag, size = 0x4, scoped, tag = 'scoped memory for tpu_custom_call.1']
    #allocation5 [shape = 'u8[262144]{0}', space=vmem, size = 0x40000, scoped, tag = 'input window, operand 4, single buffered']
    %12 = vsyncpa [#allocation4], 0
    %13 = vsyncpa [#allocation3], 0
    // Predicated region
    $region2: #{tpu_custom_call.1} parent=1 // pred_check
      _
    $region3: #{tpu_custom_call.1} parent=1 // pred_check_branch
      %15 = sbr.rel (0) target = $region5
    $region4: #{tpu_custom_call.1} parent=1 // pred_region
      %s17 = ssub.s32 16, 16
      %18 = vsyncadd [#allocation4], %s17
      %s20 = sshll.u32 %s0, 4
      %s21 = int_to_ptr.vmem [resolvable:$true] %s20
      %23 = dma.vmem_to_smem %s21, 16, [#allocation2], [#allocation4]
    $region5: #{tpu_custom_call.1} parent=1 // pred_fallthru
      _
    // Predicated region
    $region6: #{tpu_custom_call.1} parent=1 // pred_check
      _
    $region7: #{tpu_custom_call.1} parent=1 // pred_check_branch
      %25 = sbr.rel (0) target = $region9
    $region8: #{tpu_custom_call.1} parent=1 // pred_region
      _
    $region9: #{tpu_custom_call.1} parent=1 // pred_fallthru
      _
    // Predicated region
    $region10: #{tpu_custom_call.1} parent=1 // pred_check
      _
    $region11: #{tpu_custom_call.1} parent=1 // pred_check_branch
      %27 = sbr.rel (0) target = $region13
    $region12: #{tpu_custom_call.1} parent=1 // pred_region
      _
    $region13: #{tpu_custom_call.1} parent=1 // pred_fallthru
      _
    // Predicated region
    $region14: #{tpu_custom_call.1} parent=1 // pred_check
      _
    $region15: #{tpu_custom_call.1} parent=1 // pred_check_branch
      %29 = sbr.rel (0) target = $region17
    $region16: #{tpu_custom_call.1} parent=1 // pred_region
      _
    $region17: #{tpu_custom_call.1} parent=1 // pred_fallthru
      _
    // Predicated region
    $region18: #{tpu_custom_call.1} parent=1 // pred_check
      _
    $region19: #{tpu_custom_call.1} parent=1 // pred_check_branch
      %31 = sbr.rel (0) target = $region21
    $region20: #{tpu_custom_call.1} parent=1 // pred_region
      %s33 = ssub.s32 8192, 8192
      %34 = vsyncadd [#allocation3], %s33
      %s35 = sshll.u32 [#allocation5], 4
      %s36 = int_to_ptr.vmem [resolvable:$true] %s35
      %41 = dma.hbm_to_vmem [thread:$0]  %s4, 8192, %s36, [#allocation3], 128, 128, 8
    $region21: #{tpu_custom_call.1} parent=1 // pred_fallthru
      _
    // Predicated region
    $region22: #{tpu_custom_call.1} parent=1 // pred_check
      _
    $region23: #{tpu_custom_call.1} parent=1 // pred_check_branch
      %43 = sbr.rel (0) target = $region25
    $region24: #{tpu_custom_call.1} parent=1 // pred_region
      _
    $region25: #{tpu_custom_call.1} parent=1 // pred_fallthru
      _
    // Predicated region
    $region26: #{tpu_custom_call.1} parent=1 // pred_check
      _
    $region27: #{tpu_custom_call.1} parent=1 // pred_check_branch
      %45 = sbr.rel (0) target = $region29
    $region28: #{tpu_custom_call.1} parent=1 // pred_region
      _
    $region29: #{tpu_custom_call.1} parent=1 // pred_fallthru
      _
    // Predicated region
    $region30: #{tpu_custom_call.1} parent=1 // pred_check
      _
    $region31: #{tpu_custom_call.1} parent=1 // pred_check_branch
      %47 = sbr.rel (0) target = $region33
    $region32: #{tpu_custom_call.1} parent=1 // pred_region
      %48 = dma.done [#allocation4], 16
    $region33: #{tpu_custom_call.1} parent=1 // pred_fallthru
      _
    // Predicated region
    $region34: #{tpu_custom_call.1} parent=1 // pred_check
      _
    $region35: #{tpu_custom_call.1} parent=1 // pred_check_branch
      %50 = sbr.rel (0) target = $region37
    $region36: #{tpu_custom_call.1} parent=1 // pred_region
      %51 = dma.done [#allocation3], 8192
    $region37: #{tpu_custom_call.1} parent=1 // pred_fallthru
      _
    %52 = sfence
    %v53 = vld [vmem:[%s1] sm:$0xff]
    %v54 = vld [vmem:[%s1 + $0x8] sm:$0xff]
    %v55 = vld [vmem:[%s1 + $0x10] sm:$0xff]
    %v56 = vld [vmem:[%s1 + $0x18] sm:$0xff]
    %v57 = vld [vmem:[%s1 + $0x20] sm:$0xff]
    %v58 = vld [vmem:[%s1 + $0x28] sm:$0xff]
    %v59 = vld [vmem:[%s1 + $0x30] sm:$0xff]
    %v60 = vld [vmem:[%s1 + $0x38] sm:$0xff]
    %v61 = vld [vmem:[%s1 + $0x40] sm:$0xff]
    %v62 = vld [vmem:[%s1 + $0x48] sm:$0xff]
    %v63 = vld [vmem:[%s1 + $0x50] sm:$0xff]
    %v64 = vld [vmem:[%s1 + $0x58] sm:$0xff]
    %v65 = vld [vmem:[%s1 + $0x60] sm:$0xff]
    %v66 = vld [vmem:[%s1 + $0x68] sm:$0xff]
    %v67 = vld [vmem:[%s1 + $0x70] sm:$0xff]
    %v68 = vld [vmem:[%s1 + $0x78] sm:$0xff]
    %v69 = vld [vmem:[%s2] sm:$0xff]
    %v70 = vld [vmem:[%s2 + $0x8] sm:$0xff]
    %v71 = vld [vmem:[%s2 + $0x10] sm:$0xff]
    %v72 = vld [vmem:[%s2 + $0x18] sm:$0xff]
    %v73 = vld [vmem:[%s3] sm:$0x1]
    %v75 = vlaneseq
    %v76 = vshrl.u32 %v75, 7
    %v77 = vsub.s32 0, %v76
    %v78 = vrot.slane %v73, %v77
    %vm80 = vcmask 261120
    %v82 = vsel %vm80, %v53, 0
    %v85 = vsel %vm80, %v54, 0
    %v88 = vsel %vm80, %v55, 0
    %v91 = vsel %vm80, %v56, 0
    %v94 = vsel %vm80, %v57, 0
    %v97 = vsel %vm80, %v58, 0
    %v100 = vsel %vm80, %v59, 0
    %v103 = vsel %vm80, %v60, 0
    %v106 = vsel %vm80, %v61, 0
    %v109 = vsel %vm80, %v62, 0
    %v112 = vsel %vm80, %v63, 0
    %v115 = vsel %vm80, %v64, 0
    %v118 = vsel %vm80, %v65, 0
    %v121 = vsel %vm80, %v66, 0
    %v124 = vsel %vm80, %v67, 0
    %v127 = vsel %vm80, %v68, 0
    %129 = vmatprep.subr.mxu0 0.0
    %130 = vmatpush1.msra.mxu0 0.0
    %131 = vmatprep.subr.mxu0 0.0
    %132 = vmatpush1.msra.mxu0 0.0
    %133 = vmatprep.subr.mxu0 0.0
    %134 = vmatpush1.msra.mxu0 0.0
    %135 = vmatprep.subr.mxu0 0.0
    %136 = vmatpush1.msra.mxu0 0.0
    %137 = vmatprep.subr.mxu0 0.0
    %138 = vmatpush1.msra.mxu0 0.0
    %139 = vmatprep.subr.mxu0 0.0
    %140 = vmatpush1.msra.mxu0 0.0
    %141 = vmatprep.subr.mxu0 0.0
    %142 = vmatpush1.msra.mxu0 0.0
    %143 = vmatprep.subr.mxu0 0.0
    %144 = vmatpush1.msra.mxu0 0.0
    %145 = vmatprep.subr.mxu0 0.0
    %146 = vmatpush1.msra.mxu0 0.0
    %147 = vmatprep.subr.mxu0 0.0
    %148 = vmatpush1.msra.mxu0 0.0
    %149 = vmatprep.subr.mxu0 0.0
    %150 = vmatpush1.msra.mxu0 0.0
    %151 = vmatprep.subr.mxu0 0.0
    %152 = vmatpush1.msra.mxu0 0.0
    %153 = vmatprep.subr.mxu0 0.0
    %154 = vmatpush1.msra.mxu0 %v72
    %155 = vmatprep.subr.mxu0 0.0
    %156 = vmatpush1.msra.mxu0 %v71
    %157 = vmatprep.subr.mxu0 0.0
    %158 = vmatpush1.msra.mxu0 %v70
    %159 = vmatprep.subr.mxu0 0.0
    %160 = vmatpush1.msra.mxu0 %v69
    %161 = vmatprep.subr.mxu0 0.0
    %162 = vmatpush2.msra.mxu0 0.0
    %163 = vmatprep.subr.mxu0 0.0
    %164 = vmatpush2.msra.mxu0 0.0
    %165 = vmatprep.subr.mxu0 0.0
    %166 = vmatpush2.msra.mxu0 0.0
    %167 = vmatprep.subr.mxu0 0.0
    %168 = vmatpush2.msra.mxu0 0.0
    %169 = vmatprep.subr.mxu0 0.0
    %170 = vmatpush2.msra.mxu0 0.0
    %171 = vmatprep.subr.mxu0 0.0
    %172 = vmatpush2.msra.mxu0 0.0
    %173 = vmatprep.subr.mxu0 0.0
    %174 = vmatpush2.msra.mxu0 0.0
    %175 = vmatprep.subr.mxu0 0.0
    %176 = vmatpush2.msra.mxu0 0.0
    %177 = vmatprep.subr.mxu0 0.0
    %178 = vmatpush2.msra.mxu0 0.0
    %179 = vmatprep.subr.mxu0 0.0
    %180 = vmatpush2.msra.mxu0 0.0
    %181 = vmatprep.subr.mxu0 0.0
    %182 = vmatpush2.msra.mxu0 0.0
    %183 = vmatprep.subr.mxu0 0.0
    %184 = vmatpush2.msra.mxu0 0.0
    %185 = vmatprep.subr.mxu0 0.0
    %186 = vmatpush2.msra.mxu0 0.0
    %187 = vmatprep.subr.mxu0 0.0
    %188 = vmatpush2.msra.mxu0 0.0
    %189 = vmatprep.subr.mxu0 0.0
    %190 = vmatpush2.msra.mxu0 0.0
    %191 = vmatprep.subr.mxu0 0.0
    %192 = vmatpush2.msra.mxu0 0.0
    %193 = vmatprep.mubr.f32.mxu0 0.0
    %194 = vmatmul.mubr.f32.gmra.mxu0 %v82
    %v195 = vpop.f32.mrf.mxu0
    %v196 = vadd.f32 %v78, %v195
    %v197 = vpop.f32.mrf.mxu0
    %198 = vmatprep.mubr.f32.mxu0 0.0
    %199 = vmatmul.mubr.f32.gmra.mxu0 %v85
    %v200 = vpop.f32.mrf.mxu0
    %v201 = vadd.f32 %v78, %v200
    %v202 = vpop.f32.mrf.mxu0
    %203 = vmatprep.mubr.f32.mxu0 0.0
    %204 = vmatmul.mubr.f32.gmra.mxu0 %v88
    %v205 = vpop.f32.mrf.mxu0
    %v206 = vadd.f32 %v78, %v205
    %v207 = vpop.f32.mrf.mxu0
    %208 = vmatprep.mubr.f32.mxu0 0.0
    %209 = vmatmul.mubr.f32.gmra.mxu0 %v91
    %v210 = vpop.f32.mrf.mxu0
    %v211 = vadd.f32 %v78, %v210
    %v212 = vpop.f32.mrf.mxu0
    %213 = vmatprep.mubr.f32.mxu0 0.0
    %214 = vmatmul.mubr.f32.gmra.mxu0 %v94
    %v215 = vpop.f32.mrf.mxu0
    %v216 = vadd.f32 %v78, %v215
    %v217 = vpop.f32.mrf.mxu0
    %218 = vmatprep.mubr.f32.mxu0 0.0
    %219 = vmatmul.mubr.f32.gmra.mxu0 %v97
    %v220 = vpop.f32.mrf.mxu0
    %v221 = vadd.f32 %v78, %v220
    %v222 = vpop.f32.mrf.mxu0
    %223 = vmatprep.mubr.f32.mxu0 0.0
    %224 = vmatmul.mubr.f32.gmra.mxu0 %v100
    %v225 = vpop.f32.mrf.mxu0
    %v226 = vadd.f32 %v78, %v225
    %v227 = vpop.f32.mrf.mxu0
    %228 = vmatprep.mubr.f32.mxu0 0.0
    %229 = vmatmul.mubr.f32.gmra.mxu0 %v103
    %v230 = vpop.f32.mrf.mxu0
    %v231 = vadd.f32 %v78, %v230
    %v232 = vpop.f32.mrf.mxu0
    %233 = vmatprep.mubr.f32.mxu0 0.0
    %234 = vmatmul.mubr.f32.gmra.mxu0 %v106
    %v235 = vpop.f32.mrf.mxu0
    %v236 = vadd.f32 %v78, %v235
    %v237 = vpop.f32.mrf.mxu0
    %238 = vmatprep.mubr.f32.mxu0 0.0
    %239 = vmatmul.mubr.f32.gmra.mxu0 %v109
    %v240 = vpop.f32.mrf.mxu0
    %v241 = vadd.f32 %v78, %v240
    %v242 = vpop.f32.mrf.mxu0
    %243 = vmatprep.mubr.f32.mxu0 0.0
    %244 = vmatmul.mubr.f32.gmra.mxu0 %v112
    %v245 = vpop.f32.mrf.mxu0
    %v246 = vadd.f32 %v78, %v245
    %v247 = vpop.f32.mrf.mxu0
    %248 = vmatprep.mubr.f32.mxu0 0.0
    %249 = vmatmul.mubr.f32.gmra.mxu0 %v115
    %v250 = vpop.f32.mrf.mxu0
    %v251 = vadd.f32 %v78, %v250
    %v252 = vpop.f32.mrf.mxu0
    %253 = vmatprep.mubr.f32.mxu0 0.0
    %254 = vmatmul.mubr.f32.gmra.mxu0 %v118
    %v255 = vpop.f32.mrf.mxu0
    %v256 = vadd.f32 %v78, %v255
    %v257 = vpop.f32.mrf.mxu0
    %258 = vmatprep.mubr.f32.mxu0 0.0
    %259 = vmatmul.mubr.f32.gmra.mxu0 %v121
    %v260 = vpop.f32.mrf.mxu0
    %v261 = vadd.f32 %v78, %v260
    %v262 = vpop.f32.mrf.mxu0
    %263 = vmatprep.mubr.f32.mxu0 0.0
    %264 = vmatmul.mubr.f32.gmra.mxu0 %v124
    %v265 = vpop.f32.mrf.mxu0
    %v266 = vadd.f32 %v78, %v265
    %v267 = vpop.f32.mrf.mxu0
    %268 = vmatprep.mubr.f32.mxu0 0.0
    %269 = vmatmul.mubr.f32.gmra.mxu0 %v127
    %v270 = vpop.f32.mrf.mxu0
    %v271 = vadd.f32 %v78, %v270
    %v272 = vpop.f32.mrf.mxu0
    %273 = vdwg.mxu0
    %v274 = vmul.f32 %v196, %v196
    %v275 = vmul.f32 %v201, %v201
    %v276 = vmul.f32 %v206, %v206
    %v277 = vmul.f32 %v211, %v211
    %v278 = vmul.f32 %v216, %v216
    %v279 = vmul.f32 %v221, %v221
    %v280 = vmul.f32 %v226, %v226
    %v281 = vmul.f32 %v231, %v231
    %v282 = vmul.f32 %v236, %v236
    %v283 = vmul.f32 %v241, %v241
    %v284 = vmul.f32 %v246, %v246
    %v285 = vmul.f32 %v251, %v251
    %v286 = vmul.f32 %v256, %v256
    %v287 = vmul.f32 %v261, %v261
    %v288 = vmul.f32 %v266, %v266
    %v289 = vmul.f32 %v271, %v271
    %vm290 = vcmask 64512
    %v291 = vsel %vm290, %v274, 0.0
    %292 = vadd.xlane.f32.xlu0 %v291
    %v293 = vpop.xlane.xlu0 %292
    %v294 = vsel %vm290, %v275, 0.0
    %295 = vadd.xlane.f32.xlu0 %v294
    %v296 = vpop.xlane.xlu0 %295
    %v297 = vsel %vm290, %v276, 0.0
    %298 = vadd.xlane.f32.xlu0 %v297
    %v299 = vpop.xlane.xlu0 %298
    %v300 = vsel %vm290, %v277, 0.0
    %301 = vadd.xlane.f32.xlu0 %v300
    %v302 = vpop.xlane.xlu0 %301
    %v303 = vsel %vm290, %v278, 0.0
    %304 = vadd.xlane.f32.xlu0 %v303
    %v305 = vpop.xlane.xlu0 %304
    %v306 = vsel %vm290, %v279, 0.0
    %307 = vadd.xlane.f32.xlu0 %v306
    %v308 = vpop.xlane.xlu0 %307
    %v309 = vsel %vm290, %v280, 0.0
    %310 = vadd.xlane.f32.xlu0 %v309
    %v311 = vpop.xlane.xlu0 %310
    %v312 = vsel %vm290, %v281, 0.0
    %313 = vadd.xlane.f32.xlu0 %v312
    %v314 = vpop.xlane.xlu0 %313
    %v315 = vsel %vm290, %v282, 0.0
    %316 = vadd.xlane.f32.xlu0 %v315
    %v317 = vpop.xlane.xlu0 %316
    %v318 = vsel %vm290, %v283, 0.0
    %319 = vadd.xlane.f32.xlu0 %v318
    %v320 = vpop.xlane.xlu0 %319
    %v321 = vsel %vm290, %v284, 0.0
    %322 = vadd.xlane.f32.xlu0 %v321
    %v323 = vpop.xlane.xlu0 %322
    %v324 = vsel %vm290, %v285, 0.0
    %325 = vadd.xlane.f32.xlu0 %v324
    %v326 = vpop.xlane.xlu0 %325
    %v327 = vsel %vm290, %v286, 0.0
    %328 = vadd.xlane.f32.xlu0 %v327
    %v329 = vpop.xlane.xlu0 %328
    %v330 = vsel %vm290, %v287, 0.0
    %331 = vadd.xlane.f32.xlu0 %v330
    %v332 = vpop.xlane.xlu0 %331
    %v333 = vsel %vm290, %v288, 0.0
    %334 = vadd.xlane.f32.xlu0 %v333
    %v335 = vpop.xlane.xlu0 %334
    %v336 = vsel %vm290, %v289, 0.0
    %337 = vadd.xlane.f32.xlu0 %v336
    %v338 = vpop.xlane.xlu0 %337
    %v339 = vmax.f32 %v293, 1e-24
    %v340 = vmax.f32 %v296, 1e-24
    %v341 = vmax.f32 %v299, 1e-24
    %v342 = vmax.f32 %v302, 1e-24
    %v343 = vmax.f32 %v305, 1e-24
    %v344 = vmax.f32 %v308, 1e-24
    %v345 = vmax.f32 %v311, 1e-24
    %v346 = vmax.f32 %v314, 1e-24
    %v347 = vmax.f32 %v317, 1e-24
    %v348 = vmax.f32 %v320, 1e-24
    %v349 = vmax.f32 %v323, 1e-24
    %v350 = vmax.f32 %v326, 1e-24
    %v351 = vmax.f32 %v329, 1e-24
    %v352 = vmax.f32 %v332, 1e-24
    %v353 = vmax.f32 %v335, 1e-24
    %v354 = vmax.f32 %v338, 1e-24
    %v355 = vrsqrt.pop %v339
    %v356 = vrsqrt.pop %v340
    %v357 = vrsqrt.pop %v341
    %v358 = vrsqrt.pop %v342
    %v359 = vrsqrt.pop %v343
    %v360 = vrsqrt.pop %v344
    %v361 = vrsqrt.pop %v345
    %v362 = vrsqrt.pop %v346
    %v363 = vrsqrt.pop %v347
    %v364 = vrsqrt.pop %v348
    %v365 = vrsqrt.pop %v349
    %v366 = vrsqrt.pop %v350
    %v367 = vrsqrt.pop %v351
    %v368 = vrsqrt.pop %v352
    %v369 = vrsqrt.pop %v353
    %v370 = vrsqrt.pop %v354
    %v371 = vmul.f32 %v196, %v355
    %v372 = vmul.f32 %v201, %v356
    %v373 = vmul.f32 %v206, %v357
    %v374 = vmul.f32 %v211, %v358
    %v375 = vmul.f32 %v216, %v359
    %v376 = vmul.f32 %v221, %v360
    %v377 = vmul.f32 %v226, %v361
    %v378 = vmul.f32 %v231, %v362
    %v379 = vmul.f32 %v236, %v363
    %v380 = vmul.f32 %v241, %v364
    %v381 = vmul.f32 %v246, %v365
    %v382 = vmul.f32 %v251, %v366
    %v383 = vmul.f32 %v256, %v367
    %v384 = vmul.f32 %v261, %v368
    %v385 = vmul.f32 %v266, %v369
    %v386 = vmul.f32 %v271, %v370
    %403 = vrot.lane.b32.xlu0 %v274, 96
    %v404 = vpop.permute.xlu0 %403
    %405 = vrot.lane.b32.xlu0 %v275, 96
    %v406 = vpop.permute.xlu0 %405
    %407 = vrot.lane.b32.xlu0 %v276, 96
    %v408 = vpop.permute.xlu0 %407
    %409 = vrot.lane.b32.xlu0 %v277, 96
    %v410 = vpop.permute.xlu0 %409
    %411 = vrot.lane.b32.xlu0 %v278, 96
    %v412 = vpop.permute.xlu0 %411
    %413 = vrot.lane.b32.xlu0 %v279, 96
    %v414 = vpop.permute.xlu0 %413
    %415 = vrot.lane.b32.xlu0 %v280, 96
    %v416 = vpop.permute.xlu0 %415
    %417 = vrot.lane.b32.xlu0 %v281, 96
    %v418 = vpop.permute.xlu0 %417
    %419 = vrot.lane.b32.xlu0 %v282, 96
    %v420 = vpop.permute.xlu0 %419
    %421 = vrot.lane.b32.xlu0 %v283, 96
    %v422 = vpop.permute.xlu0 %421
    %423 = vrot.lane.b32.xlu0 %v284, 96
    %v424 = vpop.permute.xlu0 %423
    %425 = vrot.lane.b32.xlu0 %v285, 96
    %v426 = vpop.permute.xlu0 %425
    %427 = vrot.lane.b32.xlu0 %v286, 96
    %v428 = vpop.permute.xlu0 %427
    %429 = vrot.lane.b32.xlu0 %v287, 96
    %v430 = vpop.permute.xlu0 %429
    %431 = vrot.lane.b32.xlu0 %v288, 96
    %v432 = vpop.permute.xlu0 %431
    %433 = vrot.lane.b32.xlu0 %v289, 96
    %v434 = vpop.permute.xlu0 %433
    %v451 = vsel %vm290, %v404, 0.0
    %452 = vadd.xlane.f32.xlu0 %v451
    %v453 = vpop.xlane.xlu0 %452
    %v454 = vsel %vm290, %v406, 0.0
    %455 = vadd.xlane.f32.xlu0 %v454
    %v456 = vpop.xlane.xlu0 %455
    %v457 = vsel %vm290, %v408, 0.0
    %458 = vadd.xlane.f32.xlu0 %v457
    %v459 = vpop.xlane.xlu0 %458
    %v460 = vsel %vm290, %v410, 0.0
    %461 = vadd.xlane.f32.xlu0 %v460
    %v462 = vpop.xlane.xlu0 %461
    %v463 = vsel %vm290, %v412, 0.0
    %464 = vadd.xlane.f32.xlu0 %v463
    %v465 = vpop.xlane.xlu0 %464
    %v466 = vsel %vm290, %v414, 0.0
    %467 = vadd.xlane.f32.xlu0 %v466
    %v468 = vpop.xlane.xlu0 %467
    %v469 = vsel %vm290, %v416, 0.0
    %470 = vadd.xlane.f32.xlu0 %v469
    %v471 = vpop.xlane.xlu0 %470
    %v472 = vsel %vm290, %v418, 0.0
    %473 = vadd.xlane.f32.xlu0 %v472
    %v474 = vpop.xlane.xlu0 %473
    %v475 = vsel %vm290, %v420, 0.0
    %476 = vadd.xlane.f32.xlu0 %v475
    %v477 = vpop.xlane.xlu0 %476
    %v478 = vsel %vm290, %v422, 0.0
    %479 = vadd.xlane.f32.xlu0 %v478
    %v480 = vpop.xlane.xlu0 %479
    %v481 = vsel %vm290, %v424, 0.0
    %482 = vadd.xlane.f32.xlu0 %v481
    %v483 = vpop.xlane.xlu0 %482
    %v484 = vsel %vm290, %v426, 0.0
    %485 = vadd.xlane.f32.xlu0 %v484
    %v486 = vpop.xlane.xlu0 %485
    %v487 = vsel %vm290, %v428, 0.0
    %488 = vadd.xlane.f32.xlu0 %v487
    %v489 = vpop.xlane.xlu0 %488
    %v490 = vsel %vm290, %v430, 0.0
    %491 = vadd.xlane.f32.xlu0 %v490
    %v492 = vpop.xlane.xlu0 %491
    %v493 = vsel %vm290, %v432, 0.0
    %494 = vadd.xlane.f32.xlu0 %v493
    %v495 = vpop.xlane.xlu0 %494
    %v496 = vsel %vm290, %v434, 0.0
    %497 = vadd.xlane.f32.xlu0 %v496
    %v498 = vpop.xlane.xlu0 %497
    %v499 = vmax.f32 %v453, 1e-24
    %v500 = vmax.f32 %v456, 1e-24
    %v501 = vmax.f32 %v459, 1e-24
    %v502 = vmax.f32 %v462, 1e-24
    %v503 = vmax.f32 %v465, 1e-24
    %v504 = vmax.f32 %v468, 1e-24
    %v505 = vmax.f32 %v471, 1e-24
    %v506 = vmax.f32 %v474, 1e-24
    %v507 = vmax.f32 %v477, 1e-24
    %v508 = vmax.f32 %v480, 1e-24
    %v509 = vmax.f32 %v483, 1e-24
    %v510 = vmax.f32 %v486, 1e-24
    %v511 = vmax.f32 %v489, 1e-24
    %v512 = vmax.f32 %v492, 1e-24
    %v513 = vmax.f32 %v495, 1e-24
    %v514 = vmax.f32 %v498, 1e-24
    %v515 = vrsqrt.pop %v499
    %v516 = vrsqrt.pop %v500
    %v517 = vrsqrt.pop %v501
    %v518 = vrsqrt.pop %v502
    %v519 = vrsqrt.pop %v503
    %v520 = vrsqrt.pop %v504
    %v521 = vrsqrt.pop %v505
    %v522 = vrsqrt.pop %v506
    %v523 = vrsqrt.pop %v507
    %v524 = vrsqrt.pop %v508
    %v525 = vrsqrt.pop %v509
    %v526 = vrsqrt.pop %v510
    %v527 = vrsqrt.pop %v511
    %v528 = vrsqrt.pop %v512
    %v529 = vrsqrt.pop %v513
    %v530 = vrsqrt.pop %v514
    %v531 = vmul.f32 %v196, %v515
    %v532 = vmul.f32 %v201, %v516
    %v533 = vmul.f32 %v206, %v517
    %v534 = vmul.f32 %v211, %v518
    %v535 = vmul.f32 %v216, %v519
    %v536 = vmul.f32 %v221, %v520
    %v537 = vmul.f32 %v226, %v521
    %v538 = vmul.f32 %v231, %v522
    %v539 = vmul.f32 %v236, %v523
    %v540 = vmul.f32 %v241, %v524
    %v541 = vmul.f32 %v246, %v525
    %v542 = vmul.f32 %v251, %v526
    %v543 = vmul.f32 %v256, %v527
    %v544 = vmul.f32 %v261, %v528
    %v545 = vmul.f32 %v266, %v529
    %v546 = vmul.f32 %v271, %v530
    %s547 = sld [smem:[#allocation2]]
    %v548 = vstv %s547
    %v549 = vmul.f32 %v371, %v548
    %v550 = vmul.f32 %v372, %v548
    %v551 = vmul.f32 %v373, %v548
    %v552 = vmul.f32 %v374, %v548
    %v553 = vmul.f32 %v375, %v548
    %v554 = vmul.f32 %v376, %v548
    %v555 = vmul.f32 %v377, %v548
    %v556 = vmul.f32 %v378, %v548
    %v557 = vmul.f32 %v379, %v548
    %v558 = vmul.f32 %v380, %v548
    %v559 = vmul.f32 %v381, %v548
    %v560 = vmul.f32 %v382, %v548
    %v561 = vmul.f32 %v383, %v548
    %v562 = vmul.f32 %v384, %v548
    %v563 = vmul.f32 %v385, %v548
    %v564 = vmul.f32 %v386, %v548
    %v565 = vld [vmem:[#allocation5] sm:$0xff]
    %v566 = vld [vmem:[#allocation5 + $0x8] sm:$0xff]
    %v567 = vld [vmem:[#allocation5 + $0x10] sm:$0xff]
    %v568 = vld [vmem:[#allocation5 + $0x18] sm:$0xff]
    %v569 = vld [vmem:[#allocation5 + $0x20] sm:$0xff]
    %v570 = vld [vmem:[#allocation5 + $0x28] sm:$0xff]
    %v571 = vld [vmem:[#allocation5 + $0x30] sm:$0xff]
    %v572 = vld [vmem:[#allocation5 + $0x38] sm:$0xff]
    %v573 = vld [vmem:[#allocation5 + $0x40] sm:$0xff]
    %v574 = vld [vmem:[#allocation5 + $0x48] sm:$0xff]
    %v575 = vld [vmem:[#allocation5 + $0x50] sm:$0xff]
    %v576 = vld [vmem:[#allocation5 + $0x58] sm:$0xff]
    %v577 = vld [vmem:[#allocation5 + $0x60] sm:$0xff]
    %v578 = vld [vmem:[#allocation5 + $0x68] sm:$0xff]
    %v579 = vld [vmem:[#allocation5 + $0x70] sm:$0xff]
    %v580 = vld [vmem:[#allocation5 + $0x78] sm:$0xff]
    %583 = vrot.lane.b32.xlu0 %v531, 96
    %v584 = vpop.permute.xlu0 %583
    %585 = vrot.lane.b32.xlu0 %v532, 96
    %v586 = vpop.permute.xlu0 %585
    %v588 = vsel %vm290, %v549, 0
    %v591 = vsel %vm290, %v550, 0
    %v593 = vsel %vm290, %v584, 0
    %v595 = vsel %vm290, %v586, 0
    %597 = vmatprep.subr.mxu0 0.0
    %598 = vmatpush1.xpose.msra.mxu0 0.0
    %599 = vmatprep.subr.mxu0 0.0
    %600 = vmatpush1.xpose.msra.mxu0 0.0
    %601 = vmatprep.subr.mxu0 0.0
    %602 = vmatpush1.xpose.msra.mxu0 0.0
    %603 = vmatprep.subr.mxu0 0.0
    %604 = vmatpush1.xpose.msra.mxu0 0.0
    %605 = vmatprep.subr.mxu0 0.0
    %606 = vmatpush1.xpose.msra.mxu0 0.0
    %607 = vmatprep.subr.mxu0 0.0
    %608 = vmatpush1.xpose.msra.mxu0 0.0
    %609 = vmatprep.subr.mxu0 0.0
    %610 = vmatpush1.xpose.msra.mxu0 0.0
    %611 = vmatprep.subr.mxu0 0.0
    %612 = vmatpush1.xpose.msra.mxu0 0.0
    %613 = vmatprep.subr.mxu0 0.0
    %614 = vmatpush1.xpose.msra.mxu0 0.0
    %615 = vmatprep.subr.mxu0 0.0
    %616 = vmatpush1.xpose.msra.mxu0 0.0
    %617 = vmatprep.subr.mxu0 0.0
    %618 = vmatpush1.xpose.msra.mxu0 0.0
    %619 = vmatprep.subr.mxu0 0.0
    %620 = vmatpush1.xpose.msra.mxu0 0.0
    %621 = vmatprep.subr.mxu0 0.0
    %622 = vmatpush1.xpose.msra.mxu0 0.0
    %623 = vmatprep.subr.mxu0 0.0
    %624 = vmatpush1.xpose.msra.mxu0 0.0
    %625 = vmatprep.subr.mxu0 0.0
    %626 = vmatpush1.xpose.msra.mxu0 %v595
    %627 = vmatprep.subr.mxu0 0.0
    %628 = vmatpush1.xpose.msra.mxu0 %v593
    %629 = vmatprep.subr.mxu0 0.0
    %630 = vmatpush2.xpose.msra.mxu0 0.0
    %631 = vmatprep.subr.mxu0 0.0
    %632 = vmatpush2.xpose.msra.mxu0 0.0
    %633 = vmatprep.subr.mxu0 0.0
    %634 = vmatpush2.xpose.msra.mxu0 0.0
    %635 = vmatprep.subr.mxu0 0.0
    %636 = vmatpush2.xpose.msra.mxu0 0.0
    %637 = vmatprep.subr.mxu0 0.0
    %638 = vmatpush2.xpose.msra.mxu0 0.0
    %639 = vmatprep.subr.mxu0 0.0
    %640 = vmatpush2.xpose.msra.mxu0 0.0
    %641 = vmatprep.subr.mxu0 0.0
    %642 = vmatpush2.xpose.msra.mxu0 0.0
    %643 = vmatprep.subr.mxu0 0.0
    %644 = vmatpush2.xpose.msra.mxu0 0.0
    %645 = vmatprep.subr.mxu0 0.0
    %646 = vmatpush2.xpose.msra.mxu0 0.0
    %647 = vmatprep.subr.mxu0 0.0
    %648 = vmatpush2.xpose.msra.mxu0 0.0
    %649 = vmatprep.subr.mxu0 0.0
    %650 = vmatpush2.xpose.msra.mxu0 0.0
    %651 = vmatprep.subr.mxu0 0.0
    %652 = vmatpush2.xpose.msra.mxu0 0.0
    %653 = vmatprep.subr.mxu0 0.0
    %654 = vmatpush2.xpose.msra.mxu0 0.0
    %655 = vmatprep.subr.mxu0 0.0
    %656 = vmatpush2.xpose.msra.mxu0 0.0
    %657 = vmatprep.subr.mxu0 0.0
    %658 = vmatpush2.xpose.msra.mxu0 0.0
    %659 = vmatprep.subr.mxu0 0.0
    %660 = vmatpush2.xpose.msra.mxu0 0.0
    %661 = vmatprep.mubr.f32.mxu0 0.0
    %662 = vmatmul.mubr.f32.gmra.mxu0 %v588
    %v663 = vpop.f32.mrf.mxu0
    %v664 = vadd.f32 %v565, %v663
    %v665 = vpop.f32.mrf.mxu0
    %666 = vmatprep.mubr.f32.mxu0 0.0
    %667 = vmatmul.mubr.f32.gmra.mxu0 %v591
    %v668 = vpop.f32.mrf.mxu0
    %v669 = vadd.f32 %v566, %v668
    %v670 = vpop.f32.mrf.mxu0
    %671 = vdwg.mxu0
    %674 = vrot.lane.b32.xlu0 %v533, 96
    %v675 = vpop.permute.xlu0 %674
    %676 = vrot.lane.b32.xlu0 %v534, 96
    %v677 = vpop.permute.xlu0 %676
    %v679 = vsel %vm290, %v551, 0
    %v682 = vsel %vm290, %v552, 0
    %v684 = vsel %vm290, %v675, 0
    %v686 = vsel %vm290, %v677, 0
    %688 = vmatprep.subr.mxu0 0.0
    %689 = vmatpush1.xpose.msra.mxu0 0.0
    %690 = vmatprep.subr.mxu0 0.0
    %691 = vmatpush1.xpose.msra.mxu0 0.0
    %692 = vmatprep.subr.mxu0 0.0
    %693 = vmatpush1.xpose.msra.mxu0 0.0
    %694 = vmatprep.subr.mxu0 0.0
    %695 = vmatpush1.xpose.msra.mxu0 0.0
    %696 = vmatprep.subr.mxu0 0.0
    %697 = vmatpush1.xpose.msra.mxu0 0.0
    %698 = vmatprep.subr.mxu0 0.0
    %699 = vmatpush1.xpose.msra.mxu0 0.0
    %700 = vmatprep.subr.mxu0 0.0
    %701 = vmatpush1.xpose.msra.mxu0 0.0
    %702 = vmatprep.subr.mxu0 0.0
    %703 = vmatpush1.xpose.msra.mxu0 0.0
    %704 = vmatprep.subr.mxu0 0.0
    %705 = vmatpush1.xpose.msra.mxu0 0.0
    %706 = vmatprep.subr.mxu0 0.0
    %707 = vmatpush1.xpose.msra.mxu0 0.0
    %708 = vmatprep.subr.mxu0 0.0
    %709 = vmatpush1.xpose.msra.mxu0 0.0
    %710 = vmatprep.subr.mxu0 0.0
    %711 = vmatpush1.xpose.msra.mxu0 0.0
    %712 = vmatprep.subr.mxu0 0.0
    %713 = vmatpush1.xpose.msra.mxu0 0.0
    %714 = vmatprep.subr.mxu0 0.0
    %715 = vmatpush1.xpose.msra.mxu0 0.0
    %716 = vmatprep.subr.mxu0 0.0
    %717 = vmatpush1.xpose.msra.mxu0 %v686
    %718 = vmatprep.subr.mxu0 0.0
    %719 = vmatpush1.xpose.msra.mxu0 %v684
    %720 = vmatprep.subr.mxu0 0.0
    %721 = vmatpush2.xpose.msra.mxu0 0.0
    %722 = vmatprep.subr.mxu0 0.0
    %723 = vmatpush2.xpose.msra.mxu0 0.0
    %724 = vmatprep.subr.mxu0 0.0
    %725 = vmatpush2.xpose.msra.mxu0 0.0
    %726 = vmatprep.subr.mxu0 0.0
    %727 = vmatpush2.xpose.msra.mxu0 0.0
    %728 = vmatprep.subr.mxu0 0.0
    %729 = vmatpush2.xpose.msra.mxu0 0.0
    %730 = vmatprep.subr.mxu0 0.0
    %731 = vmatpush2.xpose.msra.mxu0 0.0
    %732 = vmatprep.subr.mxu0 0.0
    %733 = vmatpush2.xpose.msra.mxu0 0.0
    %734 = vmatprep.subr.mxu0 0.0
    %735 = vmatpush2.xpose.msra.mxu0 0.0
    %736 = vmatprep.subr.mxu0 0.0
    %737 = vmatpush2.xpose.msra.mxu0 0.0
    %738 = vmatprep.subr.mxu0 0.0
    %739 = vmatpush2.xpose.msra.mxu0 0.0
    %740 = vmatprep.subr.mxu0 0.0
    %741 = vmatpush2.xpose.msra.mxu0 0.0
    %742 = vmatprep.subr.mxu0 0.0
    %743 = vmatpush2.xpose.msra.mxu0 0.0
    %744 = vmatprep.subr.mxu0 0.0
    %745 = vmatpush2.xpose.msra.mxu0 0.0
    %746 = vmatprep.subr.mxu0 0.0
    %747 = vmatpush2.xpose.msra.mxu0 0.0
    %748 = vmatprep.subr.mxu0 0.0
    %749 = vmatpush2.xpose.msra.mxu0 0.0
    %750 = vmatprep.subr.mxu0 0.0
    %751 = vmatpush2.xpose.msra.mxu0 0.0
    %752 = vmatprep.mubr.f32.mxu0 0.0
    %753 = vmatmul.mubr.f32.gmra.mxu0 %v679
    %v754 = vpop.f32.mrf.mxu0
    %v755 = vadd.f32 %v567, %v754
    %v756 = vpop.f32.mrf.mxu0
    %757 = vmatprep.mubr.f32.mxu0 0.0
    %758 = vmatmul.mubr.f32.gmra.mxu0 %v682
    %v759 = vpop.f32.mrf.mxu0
    %v760 = vadd.f32 %v568, %v759
    %v761 = vpop.f32.mrf.mxu0
    %762 = vdwg.mxu0
    %765 = vrot.lane.b32.xlu0 %v535, 96
    %v766 = vpop.permute.xlu0 %765
    %767 = vrot.lane.b32.xlu0 %v536, 96
    %v768 = vpop.permute.xlu0 %767
    %v770 = vsel %vm290, %v553, 0
    %v773 = vsel %vm290, %v554, 0
    %v775 = vsel %vm290, %v766, 0
    %v777 = vsel %vm290, %v768, 0
    %779 = vmatprep.subr.mxu0 0.0
    %780 = vmatpush1.xpose.msra.mxu0 0.0
    %781 = vmatprep.subr.mxu0 0.0
    %782 = vmatpush1.xpose.msra.mxu0 0.0
    %783 = vmatprep.subr.mxu0 0.0
    %784 = vmatpush1.xpose.msra.mxu0 0.0
    %785 = vmatprep.subr.mxu0 0.0
    %786 = vmatpush1.xpose.msra.mxu0 0.0
    %787 = vmatprep.subr.mxu0 0.0
    %788 = vmatpush1.xpose.msra.mxu0 0.0
    %789 = vmatprep.subr.mxu0 0.0
    %790 = vmatpush1.xpose.msra.mxu0 0.0
    %791 = vmatprep.subr.mxu0 0.0
    %792 = vmatpush1.xpose.msra.mxu0 0.0
    %793 = vmatprep.subr.mxu0 0.0
    %794 = vmatpush1.xpose.msra.mxu0 0.0
    %795 = vmatprep.subr.mxu0 0.0
    %796 = vmatpush1.xpose.msra.mxu0 0.0
    %797 = vmatprep.subr.mxu0 0.0
    %798 = vmatpush1.xpose.msra.mxu0 0.0
    %799 = vmatprep.subr.mxu0 0.0
    %800 = vmatpush1.xpose.msra.mxu0 0.0
    %801 = vmatprep.subr.mxu0 0.0
    %802 = vmatpush1.xpose.msra.mxu0 0.0
    %803 = vmatprep.subr.mxu0 0.0
    %804 = vmatpush1.xpose.msra.mxu0 0.0
    %805 = vmatprep.subr.mxu0 0.0
    %806 = vmatpush1.xpose.msra.mxu0 0.0
    %807 = vmatprep.subr.mxu0 0.0
    %808 = vmatpush1.xpose.msra.mxu0 %v777
    %809 = vmatprep.subr.mxu0 0.0
    %810 = vmatpush1.xpose.msra.mxu0 %v775
    %811 = vmatprep.subr.mxu0 0.0
    %812 = vmatpush2.xpose.msra.mxu0 0.0
    %813 = vmatprep.subr.mxu0 0.0
    %814 = vmatpush2.xpose.msra.mxu0 0.0
    %815 = vmatprep.subr.mxu0 0.0
    %816 = vmatpush2.xpose.msra.mxu0 0.0
    %817 = vmatprep.subr.mxu0 0.0
    %818 = vmatpush2.xpose.msra.mxu0 0.0
    %819 = vmatprep.subr.mxu0 0.0
    %820 = vmatpush2.xpose.msra.mxu0 0.0
    %821 = vmatprep.subr.mxu0 0.0
    %822 = vmatpush2.xpose.msra.mxu0 0.0
    %823 = vmatprep.subr.mxu0 0.0
    %824 = vmatpush2.xpose.msra.mxu0 0.0
    %825 = vmatprep.subr.mxu0 0.0
    %826 = vmatpush2.xpose.msra.mxu0 0.0
    %827 = vmatprep.subr.mxu0 0.0
    %828 = vmatpush2.xpose.msra.mxu0 0.0
    %829 = vmatprep.subr.mxu0 0.0
    %830 = vmatpush2.xpose.msra.mxu0 0.0
    %831 = vmatprep.subr.mxu0 0.0
    %832 = vmatpush2.xpose.msra.mxu0 0.0
    %833 = vmatprep.subr.mxu0 0.0
    %834 = vmatpush2.xpose.msra.mxu0 0.0
    %835 = vmatprep.subr.mxu0 0.0
    %836 = vmatpush2.xpose.msra.mxu0 0.0
    %837 = vmatprep.subr.mxu0 0.0
    %838 = vmatpush2.xpose.msra.mxu0 0.0
    %839 = vmatprep.subr.mxu0 0.0
    %840 = vmatpush2.xpose.msra.mxu0 0.0
    %841 = vmatprep.subr.mxu0 0.0
    %842 = vmatpush2.xpose.msra.mxu0 0.0
    %843 = vmatprep.mubr.f32.mxu0 0.0
    %844 = vmatmul.mubr.f32.gmra.mxu0 %v770
    %v845 = vpop.f32.mrf.mxu0
    %v846 = vadd.f32 %v569, %v845
    %v847 = vpop.f32.mrf.mxu0
    %848 = vmatprep.mubr.f32.mxu0 0.0
    %849 = vmatmul.mubr.f32.gmra.mxu0 %v773
    %v850 = vpop.f32.mrf.mxu0
    %v851 = vadd.f32 %v570, %v850
    %v852 = vpop.f32.mrf.mxu0
    %853 = vdwg.mxu0
    %856 = vrot.lane.b32.xlu0 %v537, 96
    %v857 = vpop.permute.xlu0 %856
    %858 = vrot.lane.b32.xlu0 %v538, 96
    %v859 = vpop.permute.xlu0 %858
    %v861 = vsel %vm290, %v555, 0
    %v864 = vsel %vm290, %v556, 0
    %v866 = vsel %vm290, %v857, 0
    %v868 = vsel %vm290, %v859, 0
    %870 = vmatprep.subr.mxu0 0.0
    %871 = vmatpush1.xpose.msra.mxu0 0.0
    %872 = vmatprep.subr.mxu0 0.0
    %873 = vmatpush1.xpose.msra.mxu0 0.0
    %874 = vmatprep.subr.mxu0 0.0
    %875 = vmatpush1.xpose.msra.mxu0 0.0
    %876 = vmatprep.subr.mxu0 0.0
    %877 = vmatpush1.xpose.msra.mxu0 0.0
    %878 = vmatprep.subr.mxu0 0.0
    %879 = vmatpush1.xpose.msra.mxu0 0.0
    %880 = vmatprep.subr.mxu0 0.0
    %881 = vmatpush1.xpose.msra.mxu0 0.0
    %882 = vmatprep.subr.mxu0 0.0
    %883 = vmatpush1.xpose.msra.mxu0 0.0
    %884 = vmatprep.subr.mxu0 0.0
    %885 = vmatpush1.xpose.msra.mxu0 0.0
    %886 = vmatprep.subr.mxu0 0.0
    %887 = vmatpush1.xpose.msra.mxu0 0.0
    %888 = vmatprep.subr.mxu0 0.0
    %889 = vmatpush1.xpose.msra.mxu0 0.0
    %890 = vmatprep.subr.mxu0 0.0
    %891 = vmatpush1.xpose.msra.mxu0 0.0
    %892 = vmatprep.subr.mxu0 0.0
    %893 = vmatpush1.xpose.msra.mxu0 0.0
    %894 = vmatprep.subr.mxu0 0.0
    %895 = vmatpush1.xpose.msra.mxu0 0.0
    %896 = vmatprep.subr.mxu0 0.0
    %897 = vmatpush1.xpose.msra.mxu0 0.0
    %898 = vmatprep.subr.mxu0 0.0
    %899 = vmatpush1.xpose.msra.mxu0 %v868
    %900 = vmatprep.subr.mxu0 0.0
    %901 = vmatpush1.xpose.msra.mxu0 %v866
    %902 = vmatprep.subr.mxu0 0.0
    %903 = vmatpush2.xpose.msra.mxu0 0.0
    %904 = vmatprep.subr.mxu0 0.0
    %905 = vmatpush2.xpose.msra.mxu0 0.0
    %906 = vmatprep.subr.mxu0 0.0
    %907 = vmatpush2.xpose.msra.mxu0 0.0
    %908 = vmatprep.subr.mxu0 0.0
    %909 = vmatpush2.xpose.msra.mxu0 0.0
    %910 = vmatprep.subr.mxu0 0.0
    %911 = vmatpush2.xpose.msra.mxu0 0.0
    %912 = vmatprep.subr.mxu0 0.0
    %913 = vmatpush2.xpose.msra.mxu0 0.0
    %914 = vmatprep.subr.mxu0 0.0
    %915 = vmatpush2.xpose.msra.mxu0 0.0
    %916 = vmatprep.subr.mxu0 0.0
    %917 = vmatpush2.xpose.msra.mxu0 0.0
    %918 = vmatprep.subr.mxu0 0.0
    %919 = vmatpush2.xpose.msra.mxu0 0.0
    %920 = vmatprep.subr.mxu0 0.0
    %921 = vmatpush2.xpose.msra.mxu0 0.0
    %922 = vmatprep.subr.mxu0 0.0
    %923 = vmatpush2.xpose.msra.mxu0 0.0
    %924 = vmatprep.subr.mxu0 0.0
    %925 = vmatpush2.xpose.msra.mxu0 0.0
    %926 = vmatprep.subr.mxu0 0.0
    %927 = vmatpush2.xpose.msra.mxu0 0.0
    %928 = vmatprep.subr.mxu0 0.0
    %929 = vmatpush2.xpose.msra.mxu0 0.0
    %930 = vmatprep.subr.mxu0 0.0
    %931 = vmatpush2.xpose.msra.mxu0 0.0
    %932 = vmatprep.subr.mxu0 0.0
    %933 = vmatpush2.xpose.msra.mxu0 0.0
    %934 = vmatprep.mubr.f32.mxu0 0.0
    %935 = vmatmul.mubr.f32.gmra.mxu0 %v861
    %v936 = vpop.f32.mrf.mxu0
    %v937 = vadd.f32 %v571, %v936
    %v938 = vpop.f32.mrf.mxu0
    %939 = vmatprep.mubr.f32.mxu0 0.0
    %940 = vmatmul.mubr.f32.gmra.mxu0 %v864
    %v941 = vpop.f32.mrf.mxu0
    %v942 = vadd.f32 %v572, %v941
    %v943 = vpop.f32.mrf.mxu0
    %944 = vdwg.mxu0
    %947 = vrot.lane.b32.xlu0 %v539, 96
    %v948 = vpop.permute.xlu0 %947
    %949 = vrot.lane.b32.xlu0 %v540, 96
    %v950 = vpop.permute.xlu0 %949
    %v952 = vsel %vm290, %v557, 0
    %v955 = vsel %vm290, %v558, 0
    %v957 = vsel %vm290, %v948, 0
    %v959 = vsel %vm290, %v950, 0
    %961 = vmatprep.subr.mxu0 0.0
    %962 = vmatpush1.xpose.msra.mxu0 0.0
    %963 = vmatprep.subr.mxu0 0.0
    %964 = vmatpush1.xpose.msra.mxu0 0.0
    %965 = vmatprep.subr.mxu0 0.0
    %966 = vmatpush1.xpose.msra.mxu0 0.0
    %967 = vmatprep.subr.mxu0 0.0
    %968 = vmatpush1.xpose.msra.mxu0 0.0
    %969 = vmatprep.subr.mxu0 0.0
    %970 = vmatpush1.xpose.msra.mxu0 0.0
    %971 = vmatprep.subr.mxu0 0.0
    %972 = vmatpush1.xpose.msra.mxu0 0.0
    %973 = vmatprep.subr.mxu0 0.0
    %974 = vmatpush1.xpose.msra.mxu0 0.0
    %975 = vmatprep.subr.mxu0 0.0
    %976 = vmatpush1.xpose.msra.mxu0 0.0
    %977 = vmatprep.subr.mxu0 0.0
    %978 = vmatpush1.xpose.msra.mxu0 0.0
    %979 = vmatprep.subr.mxu0 0.0
    %980 = vmatpush1.xpose.msra.mxu0 0.0
    %981 = vmatprep.subr.mxu0 0.0
    %982 = vmatpush1.xpose.msra.mxu0 0.0
    %983 = vmatprep.subr.mxu0 0.0
    %984 = vmatpush1.xpose.msra.mxu0 0.0
    %985 = vmatprep.subr.mxu0 0.0
    %986 = vmatpush1.xpose.msra.mxu0 0.0
    %987 = vmatprep.subr.mxu0 0.0
    %988 = vmatpush1.xpose.msra.mxu0 0.0
    %989 = vmatprep.subr.mxu0 0.0
    %990 = vmatpush1.xpose.msra.mxu0 %v959
    %991 = vmatprep.subr.mxu0 0.0
    %992 = vmatpush1.xpose.msra.mxu0 %v957
    %993 = vmatprep.subr.mxu0 0.0
    %994 = vmatpush2.xpose.msra.mxu0 0.0
    %995 = vmatprep.subr.mxu0 0.0
    %996 = vmatpush2.xpose.msra.mxu0 0.0
    %997 = vmatprep.subr.mxu0 0.0
    %998 = vmatpush2.xpose.msra.mxu0 0.0
    %999 = vmatprep.subr.mxu0 0.0
    %1000 = vmatpush2.xpose.msra.mxu0 0.0
    %1001 = vmatprep.subr.mxu0 0.0
    %1002 = vmatpush2.xpose.msra.mxu0 0.0
    %1003 = vmatprep.subr.mxu0 0.0
    %1004 = vmatpush2.xpose.msra.mxu0 0.0
    %1005 = vmatprep.subr.mxu0 0.0
    %1006 = vmatpush2.xpose.msra.mxu0 0.0
    %1007 = vmatprep.subr.mxu0 0.0
    %1008 = vmatpush2.xpose.msra.mxu0 0.0
    %1009 = vmatprep.subr.mxu0 0.0
    %1010 = vmatpush2.xpose.msra.mxu0 0.0
    %1011 = vmatprep.subr.mxu0 0.0
    %1012 = vmatpush2.xpose.msra.mxu0 0.0
    %1013 = vmatprep.subr.mxu0 0.0
    %1014 = vmatpush2.xpose.msra.mxu0 0.0
    %1015 = vmatprep.subr.mxu0 0.0
    %1016 = vmatpush2.xpose.msra.mxu0 0.0
    %1017 = vmatprep.subr.mxu0 0.0
    %1018 = vmatpush2.xpose.msra.mxu0 0.0
    %1019 = vmatprep.subr.mxu0 0.0
    %1020 = vmatpush2.xpose.msra.mxu0 0.0
    %1021 = vmatprep.subr.mxu0 0.0
    %1022 = vmatpush2.xpose.msra.mxu0 0.0
    %1023 = vmatprep.subr.mxu0 0.0
    %1024 = vmatpush2.xpose.msra.mxu0 0.0
    %1025 = vmatprep.mubr.f32.mxu0 0.0
    %1026 = vmatmul.mubr.f32.gmra.mxu0 %v952
    %v1027 = vpop.f32.mrf.mxu0
    %v1028 = vadd.f32 %v573, %v1027
    %v1029 = vpop.f32.mrf.mxu0
    %1030 = vmatprep.mubr.f32.mxu0 0.0
    %1031 = vmatmul.mubr.f32.gmra.mxu0 %v955
    %v1032 = vpop.f32.mrf.mxu0
    %v1033 = vadd.f32 %v574, %v1032
    %v1034 = vpop.f32.mrf.mxu0
    %1035 = vdwg.mxu0
    %1038 = vrot.lane.b32.xlu0 %v541, 96
    %v1039 = vpop.permute.xlu0 %1038
    %1040 = vrot.lane.b32.xlu0 %v542, 96
    %v1041 = vpop.permute.xlu0 %1040
    %v1043 = vsel %vm290, %v559, 0
    %v1046 = vsel %vm290, %v560, 0
    %v1048 = vsel %vm290, %v1039, 0
    %v1050 = vsel %vm290, %v1041, 0
    %1052 = vmatprep.subr.mxu0 0.0
    %1053 = vmatpush1.xpose.msra.mxu0 0.0
    %1054 = vmatprep.subr.mxu0 0.0
    %1055 = vmatpush1.xpose.msra.mxu0 0.0
    %1056 = vmatprep.subr.mxu0 0.0
    %1057 = vmatpush1.xpose.msra.mxu0 0.0
    %1058 = vmatprep.subr.mxu0 0.0
    %1059 = vmatpush1.xpose.msra.mxu0 0.0
    %1060 = vmatprep.subr.mxu0 0.0
    %1061 = vmatpush1.xpose.msra.mxu0 0.0
    %1062 = vmatprep.subr.mxu0 0.0
    %1063 = vmatpush1.xpose.msra.mxu0 0.0
    %1064 = vmatprep.subr.mxu0 0.0
    %1065 = vmatpush1.xpose.msra.mxu0 0.0
    %1066 = vmatprep.subr.mxu0 0.0
    %1067 = vmatpush1.xpose.msra.mxu0 0.0
    %1068 = vmatprep.subr.mxu0 0.0
    %1069 = vmatpush1.xpose.msra.mxu0 0.0
    %1070 = vmatprep.subr.mxu0 0.0
    %1071 = vmatpush1.xpose.msra.mxu0 0.0
    %1072 = vmatprep.subr.mxu0 0.0
    %1073 = vmatpush1.xpose.msra.mxu0 0.0
    %1074 = vmatprep.subr.mxu0 0.0
    %1075 = vmatpush1.xpose.msra.mxu0 0.0
    %1076 = vmatprep.subr.mxu0 0.0
    %1077 = vmatpush1.xpose.msra.mxu0 0.0
    %1078 = vmatprep.subr.mxu0 0.0
    %1079 = vmatpush1.xpose.msra.mxu0 0.0
    %1080 = vmatprep.subr.mxu0 0.0
    %1081 = vmatpush1.xpose.msra.mxu0 %v1050
    %1082 = vmatprep.subr.mxu0 0.0
    %1083 = vmatpush1.xpose.msra.mxu0 %v1048
    %1084 = vmatprep.subr.mxu0 0.0
    %1085 = vmatpush2.xpose.msra.mxu0 0.0
    %1086 = vmatprep.subr.mxu0 0.0
    %1087 = vmatpush2.xpose.msra.mxu0 0.0
    %1088 = vmatprep.subr.mxu0 0.0
    %1089 = vmatpush2.xpose.msra.mxu0 0.0
    %1090 = vmatprep.subr.mxu0 0.0
    %1091 = vmatpush2.xpose.msra.mxu0 0.0
    %1092 = vmatprep.subr.mxu0 0.0
    %1093 = vmatpush2.xpose.msra.mxu0 0.0
    %1094 = vmatprep.subr.mxu0 0.0
    %1095 = vmatpush2.xpose.msra.mxu0 0.0
    %1096 = vmatprep.subr.mxu0 0.0
    %1097 = vmatpush2.xpose.msra.mxu0 0.0
    %1098 = vmatprep.subr.mxu0 0.0
    %1099 = vmatpush2.xpose.msra.mxu0 0.0
    %1100 = vmatprep.subr.mxu0 0.0
    %1101 = vmatpush2.xpose.msra.mxu0 0.0
    %1102 = vmatprep.subr.mxu0 0.0
    %1103 = vmatpush2.xpose.msra.mxu0 0.0
    %1104 = vmatprep.subr.mxu0 0.0
    %1105 = vmatpush2.xpose.msra.mxu0 0.0
    %1106 = vmatprep.subr.mxu0 0.0
    %1107 = vmatpush2.xpose.msra.mxu0 0.0
    %1108 = vmatprep.subr.mxu0 0.0
    %1109 = vmatpush2.xpose.msra.mxu0 0.0
    %1110 = vmatprep.subr.mxu0 0.0
    %1111 = vmatpush2.xpose.msra.mxu0 0.0
    %1112 = vmatprep.subr.mxu0 0.0
    %1113 = vmatpush2.xpose.msra.mxu0 0.0
    %1114 = vmatprep.subr.mxu0 0.0
    %1115 = vmatpush2.xpose.msra.mxu0 0.0
    %1116 = vmatprep.mubr.f32.mxu0 0.0
    %1117 = vmatmul.mubr.f32.gmra.mxu0 %v1043
    %v1118 = vpop.f32.mrf.mxu0
    %v1119 = vadd.f32 %v575, %v1118
    %v1120 = vpop.f32.mrf.mxu0
    %1121 = vmatprep.mubr.f32.mxu0 0.0
    %1122 = vmatmul.mubr.f32.gmra.mxu0 %v1046
    %v1123 = vpop.f32.mrf.mxu0
    %v1124 = vadd.f32 %v576, %v1123
    %v1125 = vpop.f32.mrf.mxu0
    %1126 = vdwg.mxu0
    %1129 = vrot.lane.b32.xlu0 %v543, 96
    %v1130 = vpop.permute.xlu0 %1129
    %1131 = vrot.lane.b32.xlu0 %v544, 96
    %v1132 = vpop.permute.xlu0 %1131
    %v1134 = vsel %vm290, %v561, 0
    %v1137 = vsel %vm290, %v562, 0
    %v1139 = vsel %vm290, %v1130, 0
    %v1141 = vsel %vm290, %v1132, 0
    %1143 = vmatprep.subr.mxu0 0.0
    %1144 = vmatpush1.xpose.msra.mxu0 0.0
    %1145 = vmatprep.subr.mxu0 0.0
    %1146 = vmatpush1.xpose.msra.mxu0 0.0
    %1147 = vmatprep.subr.mxu0 0.0
    %1148 = vmatpush1.xpose.msra.mxu0 0.0
    %1149 = vmatprep.subr.mxu0 0.0
    %1150 = vmatpush1.xpose.msra.mxu0 0.0
    %1151 = vmatprep.subr.mxu0 0.0
    %1152 = vmatpush1.xpose.msra.mxu0 0.0
    %1153 = vmatprep.subr.mxu0 0.0
    %1154 = vmatpush1.xpose.msra.mxu0 0.0
    %1155 = vmatprep.subr.mxu0 0.0
    %1156 = vmatpush1.xpose.msra.mxu0 0.0
    %1157 = vmatprep.subr.mxu0 0.0
    %1158 = vmatpush1.xpose.msra.mxu0 0.0
    %1159 = vmatprep.subr.mxu0 0.0
    %1160 = vmatpush1.xpose.msra.mxu0 0.0
    %1161 = vmatprep.subr.mxu0 0.0
    %1162 = vmatpush1.xpose.msra.mxu0 0.0
    %1163 = vmatprep.subr.mxu0 0.0
    %1164 = vmatpush1.xpose.msra.mxu0 0.0
    %1165 = vmatprep.subr.mxu0 0.0
    %1166 = vmatpush1.xpose.msra.mxu0 0.0
    %1167 = vmatprep.subr.mxu0 0.0
    %1168 = vmatpush1.xpose.msra.mxu0 0.0
    %1169 = vmatprep.subr.mxu0 0.0
    %1170 = vmatpush1.xpose.msra.mxu0 0.0
    %1171 = vmatprep.subr.mxu0 0.0
    %1172 = vmatpush1.xpose.msra.mxu0 %v1141
    %1173 = vmatprep.subr.mxu0 0.0
    %1174 = vmatpush1.xpose.msra.mxu0 %v1139
    %1175 = vmatprep.subr.mxu0 0.0
    %1176 = vmatpush2.xpose.msra.mxu0 0.0
    %1177 = vmatprep.subr.mxu0 0.0
    %1178 = vmatpush2.xpose.msra.mxu0 0.0
    %1179 = vmatprep.subr.mxu0 0.0
    %1180 = vmatpush2.xpose.msra.mxu0 0.0
    %1181 = vmatprep.subr.mxu0 0.0
    %1182 = vmatpush2.xpose.msra.mxu0 0.0
    %1183 = vmatprep.subr.mxu0 0.0
    %1184 = vmatpush2.xpose.msra.mxu0 0.0
    %1185 = vmatprep.subr.mxu0 0.0
    %1186 = vmatpush2.xpose.msra.mxu0 0.0
    %1187 = vmatprep.subr.mxu0 0.0
    %1188 = vmatpush2.xpose.msra.mxu0 0.0
    %1189 = vmatprep.subr.mxu0 0.0
    %1190 = vmatpush2.xpose.msra.mxu0 0.0
    %1191 = vmatprep.subr.mxu0 0.0
    %1192 = vmatpush2.xpose.msra.mxu0 0.0
    %1193 = vmatprep.subr.mxu0 0.0
    %1194 = vmatpush2.xpose.msra.mxu0 0.0
    %1195 = vmatprep.subr.mxu0 0.0
    %1196 = vmatpush2.xpose.msra.mxu0 0.0
    %1197 = vmatprep.subr.mxu0 0.0
    %1198 = vmatpush2.xpose.msra.mxu0 0.0
    %1199 = vmatprep.subr.mxu0 0.0
    %1200 = vmatpush2.xpose.msra.mxu0 0.0
    %1201 = vmatprep.subr.mxu0 0.0
    %1202 = vmatpush2.xpose.msra.mxu0 0.0
    %1203 = vmatprep.subr.mxu0 0.0
    %1204 = vmatpush2.xpose.msra.mxu0 0.0
    %1205 = vmatprep.subr.mxu0 0.0
    %1206 = vmatpush2.xpose.msra.mxu0 0.0
    %1207 = vmatprep.mubr.f32.mxu0 0.0
    %1208 = vmatmul.mubr.f32.gmra.mxu0 %v1134
    %v1209 = vpop.f32.mrf.mxu0
    %v1210 = vadd.f32 %v577, %v1209
    %v1211 = vpop.f32.mrf.mxu0
    %1212 = vmatprep.mubr.f32.mxu0 0.0
    %1213 = vmatmul.mubr.f32.gmra.mxu0 %v1137
    %v1214 = vpop.f32.mrf.mxu0
    %v1215 = vadd.f32 %v578, %v1214
    %v1216 = vpop.f32.mrf.mxu0
    %1217 = vdwg.mxu0
    %1220 = vrot.lane.b32.xlu0 %v545, 96
    %v1221 = vpop.permute.xlu0 %1220
    %1222 = vrot.lane.b32.xlu0 %v546, 96
    %v1223 = vpop.permute.xlu0 %1222
    %v1225 = vsel %vm290, %v563, 0
    %v1228 = vsel %vm290, %v564, 0
    %v1230 = vsel %vm290, %v1221, 0
    %v1232 = vsel %vm290, %v1223, 0
    %1234 = vmatprep.subr.mxu0 0.0
    %1235 = vmatpush1.xpose.msra.mxu0 0.0
    %1236 = vmatprep.subr.mxu0 0.0
    %1237 = vmatpush1.xpose.msra.mxu0 0.0
    %1238 = vmatprep.subr.mxu0 0.0
    %1239 = vmatpush1.xpose.msra.mxu0 0.0
    %1240 = vmatprep.subr.mxu0 0.0
    %1241 = vmatpush1.xpose.msra.mxu0 0.0
    %1242 = vmatprep.subr.mxu0 0.0
    %1243 = vmatpush1.xpose.msra.mxu0 0.0
    %1244 = vmatprep.subr.mxu0 0.0
    %1245 = vmatpush1.xpose.msra.mxu0 0.0
    %1246 = vmatprep.subr.mxu0 0.0
    %1247 = vmatpush1.xpose.msra.mxu0 0.0
    %1248 = vmatprep.subr.mxu0 0.0
    %1249 = vmatpush1.xpose.msra.mxu0 0.0
    %1250 = vmatprep.subr.mxu0 0.0
    %1251 = vmatpush1.xpose.msra.mxu0 0.0
    %1252 = vmatprep.subr.mxu0 0.0
    %1253 = vmatpush1.xpose.msra.mxu0 0.0
    %1254 = vmatprep.subr.mxu0 0.0
    %1255 = vmatpush1.xpose.msra.mxu0 0.0
    %1256 = vmatprep.subr.mxu0 0.0
    %1257 = vmatpush1.xpose.msra.mxu0 0.0
    %1258 = vmatprep.subr.mxu0 0.0
    %1259 = vmatpush1.xpose.msra.mxu0 0.0
    %1260 = vmatprep.subr.mxu0 0.0
    %1261 = vmatpush1.xpose.msra.mxu0 0.0
    %1262 = vmatprep.subr.mxu0 0.0
    %1263 = vmatpush1.xpose.msra.mxu0 %v1232
    %1264 = vmatprep.subr.mxu0 0.0
    %1265 = vmatpush1.xpose.msra.mxu0 %v1230
    %1266 = vmatprep.subr.mxu0 0.0
    %1267 = vmatpush2.xpose.msra.mxu0 0.0
    %1268 = vmatprep.subr.mxu0 0.0
    %1269 = vmatpush2.xpose.msra.mxu0 0.0
    %1270 = vmatprep.subr.mxu0 0.0
    %1271 = vmatpush2.xpose.msra.mxu0 0.0
    %1272 = vmatprep.subr.mxu0 0.0
    %1273 = vmatpush2.xpose.msra.mxu0 0.0
    %1274 = vmatprep.subr.mxu0 0.0
    %1275 = vmatpush2.xpose.msra.mxu0 0.0
    %1276 = vmatprep.subr.mxu0 0.0
    %1277 = vmatpush2.xpose.msra.mxu0 0.0
    %1278 = vmatprep.subr.mxu0 0.0
    %1279 = vmatpush2.xpose.msra.mxu0 0.0
    %1280 = vmatprep.subr.mxu0 0.0
    %1281 = vmatpush2.xpose.msra.mxu0 0.0
    %1282 = vmatprep.subr.mxu0 0.0
    %1283 = vmatpush2.xpose.msra.mxu0 0.0
    %1284 = vmatprep.subr.mxu0 0.0
    %1285 = vmatpush2.xpose.msra.mxu0 0.0
    %1286 = vmatprep.subr.mxu0 0.0
    %1287 = vmatpush2.xpose.msra.mxu0 0.0
    %1288 = vmatprep.subr.mxu0 0.0
    %1289 = vmatpush2.xpose.msra.mxu0 0.0
    %1290 = vmatprep.subr.mxu0 0.0
    %1291 = vmatpush2.xpose.msra.mxu0 0.0
    %1292 = vmatprep.subr.mxu0 0.0
    %1293 = vmatpush2.xpose.msra.mxu0 0.0
    %1294 = vmatprep.subr.mxu0 0.0
    %1295 = vmatpush2.xpose.msra.mxu0 0.0
    %1296 = vmatprep.subr.mxu0 0.0
    %1297 = vmatpush2.xpose.msra.mxu0 0.0
    %1298 = vmatprep.mubr.f32.mxu0 0.0
    %1299 = vmatmul.mubr.f32.gmra.mxu0 %v1225
    %v1300 = vpop.f32.mrf.mxu0
    %v1301 = vadd.f32 %v579, %v1300
    %v1302 = vpop.f32.mrf.mxu0
    %1303 = vmatprep.mubr.f32.mxu0 0.0
    %1304 = vmatmul.mubr.f32.gmra.mxu0 %v1228
    %v1305 = vpop.f32.mrf.mxu0
    %v1306 = vadd.f32 %v580, %v1305
    %v1307 = vpop.f32.mrf.mxu0
    %1308 = vdwg.mxu0
    %vm1309 = vcmask 130048
    %v1310 = vsel %vm1309, %v664, -inf
    %1311 = vmax.xlane.f32.xlu0 %v1310
    %v1312 = vpop.xlane.xlu0 %1311
    %v1313 = vsel %vm1309, %v669, -inf
    %1314 = vmax.xlane.f32.xlu0 %v1313
    %v1315 = vpop.xlane.xlu0 %1314
    %v1316 = vsel %vm1309, %v755, -inf
    %1317 = vmax.xlane.f32.xlu0 %v1316
    %v1318 = vpop.xlane.xlu0 %1317
    %v1319 = vsel %vm1309, %v760, -inf
    %1320 = vmax.xlane.f32.xlu0 %v1319
    %v1321 = vpop.xlane.xlu0 %1320
    %v1322 = vsel %vm1309, %v846, -inf
    %1323 = vmax.xlane.f32.xlu0 %v1322
    %v1324 = vpop.xlane.xlu0 %1323
    %v1325 = vsel %vm1309, %v851, -inf
    %1326 = vmax.xlane.f32.xlu0 %v1325
    %v1327 = vpop.xlane.xlu0 %1326
    %v1328 = vsel %vm1309, %v937, -inf
    %1329 = vmax.xlane.f32.xlu0 %v1328
    %v1330 = vpop.xlane.xlu0 %1329
    %v1331 = vsel %vm1309, %v942, -inf
    %1332 = vmax.xlane.f32.xlu0 %v1331
    %v1333 = vpop.xlane.xlu0 %1332
    %v1334 = vsel %vm1309, %v1028, -inf
    %1335 = vmax.xlane.f32.xlu0 %v1334
    %v1336 = vpop.xlane.xlu0 %1335
    %v1337 = vsel %vm1309, %v1033, -inf
    %1338 = vmax.xlane.f32.xlu0 %v1337
    %v1339 = vpop.xlane.xlu0 %1338
    %v1340 = vsel %vm1309, %v1119, -inf
    %1341 = vmax.xlane.f32.xlu0 %v1340
    %v1342 = vpop.xlane.xlu0 %1341
    %v1343 = vsel %vm1309, %v1124, -inf
    %1344 = vmax.xlane.f32.xlu0 %v1343
    %v1345 = vpop.xlane.xlu0 %1344
    %v1346 = vsel %vm1309, %v1210, -inf
    %1347 = vmax.xlane.f32.xlu0 %v1346
    %v1348 = vpop.xlane.xlu0 %1347
    %v1349 = vsel %vm1309, %v1215, -inf
    %1350 = vmax.xlane.f32.xlu0 %v1349
    %v1351 = vpop.xlane.xlu0 %1350
    %v1352 = vsel %vm1309, %v1301, -inf
    %1353 = vmax.xlane.f32.xlu0 %v1352
    %v1354 = vpop.xlane.xlu0 %1353
    %v1355 = vsel %vm1309, %v1306, -inf
    %1356 = vmax.xlane.f32.xlu0 %v1355
    %v1357 = vpop.xlane.xlu0 %1356
    %v1358 = vsub.f32 %v664, %v1312
    %v1359 = vsub.f32 %v669, %v1315
    %v1360 = vsub.f32 %v755, %v1318
    %v1361 = vsub.f32 %v760, %v1321
    %v1362 = vsub.f32 %v846, %v1324
    %v1363 = vsub.f32 %v851, %v1327
    %v1364 = vsub.f32 %v937, %v1330
    %v1365 = vsub.f32 %v942, %v1333
    %v1366 = vsub.f32 %v1028, %v1336
    %v1367 = vsub.f32 %v1033, %v1339
    %v1368 = vsub.f32 %v1119, %v1342
    %v1369 = vsub.f32 %v1124, %v1345
    %v1370 = vsub.f32 %v1210, %v1348
    %v1371 = vsub.f32 %v1215, %v1351
    %v1372 = vsub.f32 %v1301, %v1354
    %v1373 = vsub.f32 %v1306, %v1357
    %v1374 = vmul.f32 %v1358, 1.442695
    %v1375 = vpow.pop %v1374
    %v1376 = vmul.f32 %v1359, 1.442695
    %v1377 = vpow.pop %v1376
    %v1378 = vmul.f32 %v1360, 1.442695
    %v1379 = vpow.pop %v1378
    %v1380 = vmul.f32 %v1361, 1.442695
    %v1381 = vpow.pop %v1380
    %v1382 = vmul.f32 %v1362, 1.442695
    %v1383 = vpow.pop %v1382
    %v1384 = vmul.f32 %v1363, 1.442695
    %v1385 = vpow.pop %v1384
    %v1386 = vmul.f32 %v1364, 1.442695
    %v1387 = vpow.pop %v1386
    %v1388 = vmul.f32 %v1365, 1.442695
    %v1389 = vpow.pop %v1388
    %v1390 = vmul.f32 %v1366, 1.442695
    %v1391 = vpow.pop %v1390
    %v1392 = vmul.f32 %v1367, 1.442695
    %v1393 = vpow.pop %v1392
    %v1394 = vmul.f32 %v1368, 1.442695
    %v1395 = vpow.pop %v1394
    %v1396 = vmul.f32 %v1369, 1.442695
    %v1397 = vpow.pop %v1396
    %v1398 = vmul.f32 %v1370, 1.442695
    %v1399 = vpow.pop %v1398
    %v1400 = vmul.f32 %v1371, 1.442695
    %v1401 = vpow.pop %v1400
    %v1402 = vmul.f32 %v1372, 1.442695
    %v1403 = vpow.pop %v1402
    %v1404 = vmul.f32 %v1373, 1.442695
    %v1405 = vpow.pop %v1404
    %v1406 = vsel %vm1309, %v1375, 0.0
    %1407 = vadd.xlane.f32.xlu0 %v1406
    %v1408 = vpop.xlane.xlu0 %1407
    %v1409 = vsel %vm1309, %v1377, 0.0
    %1410 = vadd.xlane.f32.xlu0 %v1409
    %v1411 = vpop.xlane.xlu0 %1410
    %v1412 = vsel %vm1309, %v1379, 0.0
    %1413 = vadd.xlane.f32.xlu0 %v1412
    %v1414 = vpop.xlane.xlu0 %1413
    %v1415 = vsel %vm1309, %v1381, 0.0
    %1416 = vadd.xlane.f32.xlu0 %v1415
    %v1417 = vpop.xlane.xlu0 %1416
    %v1418 = vsel %vm1309, %v1383, 0.0
    %1419 = vadd.xlane.f32.xlu0 %v1418
    %v1420 = vpop.xlane.xlu0 %1419
    %v1421 = vsel %vm1309, %v1385, 0.0
    %1422 = vadd.xlane.f32.xlu0 %v1421
    %v1423 = vpop.xlane.xlu0 %1422
    %v1424 = vsel %vm1309, %v1387, 0.0
    %1425 = vadd.xlane.f32.xlu0 %v1424
    %v1426 = vpop.xlane.xlu0 %1425
    %v1427 = vsel %vm1309, %v1389, 0.0
    %1428 = vadd.xlane.f32.xlu0 %v1427
    %v1429 = vpop.xlane.xlu0 %1428
    %v1430 = vsel %vm1309, %v1391, 0.0
    %1431 = vadd.xlane.f32.xlu0 %v1430
    %v1432 = vpop.xlane.xlu0 %1431
    %v1433 = vsel %vm1309, %v1393, 0.0
    %1434 = vadd.xlane.f32.xlu0 %v1433
    %v1435 = vpop.xlane.xlu0 %1434
    %v1436 = vsel %vm1309, %v1395, 0.0
    %1437 = vadd.xlane.f32.xlu0 %v1436
    %v1438 = vpop.xlane.xlu0 %1437
    %v1439 = vsel %vm1309, %v1397, 0.0
    %1440 = vadd.xlane.f32.xlu0 %v1439
    %v1441 = vpop.xlane.xlu0 %1440
    %v1442 = vsel %vm1309, %v1399, 0.0
    %1443 = vadd.xlane.f32.xlu0 %v1442
    %v1444 = vpop.xlane.xlu0 %1443
    %v1445 = vsel %vm1309, %v1401, 0.0
    %1446 = vadd.xlane.f32.xlu0 %v1445
    %v1447 = vpop.xlane.xlu0 %1446
    %v1448 = vsel %vm1309, %v1403, 0.0
    %1449 = vadd.xlane.f32.xlu0 %v1448
    %v1450 = vpop.xlane.xlu0 %1449
    %v1451 = vsel %vm1309, %v1405, 0.0
    %1452 = vadd.xlane.f32.xlu0 %v1451
    %v1453 = vpop.xlane.xlu0 %1452
    %v1454 = vrcp.pop %v1408
    %v1455 = vrcp.pop %v1411
    %v1456 = vrcp.pop %v1414
    %v1457 = vrcp.pop %v1417
    %v1458 = vrcp.pop %v1420
    %v1459 = vrcp.pop %v1423
    %v1460 = vrcp.pop %v1426
    %v1461 = vrcp.pop %v1429
    %v1462 = vrcp.pop %v1432
    %v1463 = vrcp.pop %v1435
    %v1464 = vrcp.pop %v1438
    %v1465 = vrcp.pop %v1441
    %v1466 = vrcp.pop %v1444
    %v1467 = vrcp.pop %v1447
    %v1468 = vrcp.pop %v1450
    %v1469 = vrcp.pop %v1453
    %v1470 = vmul.f32 %v1375, %v1454
    %v1471 = vmul.f32 %v1377, %v1455
    %v1472 = vmul.f32 %v1379, %v1456
    %v1473 = vmul.f32 %v1381, %v1457
    %v1474 = vmul.f32 %v1383, %v1458
    %v1475 = vmul.f32 %v1385, %v1459
    %v1476 = vmul.f32 %v1387, %v1460
    %v1477 = vmul.f32 %v1389, %v1461
    %v1478 = vmul.f32 %v1391, %v1462
    %v1479 = vmul.f32 %v1393, %v1463
    %v1480 = vmul.f32 %v1395, %v1464
    %v1481 = vmul.f32 %v1397, %v1465
    %v1482 = vmul.f32 %v1399, %v1466
    %v1483 = vmul.f32 %v1401, %v1467
    %v1484 = vmul.f32 %v1403, %v1468
    %v1485 = vmul.f32 %v1405, %v1469
    %1488 = vrot.lane.b32.xlu0 %v196, 64
    %v1489 = vpop.permute.xlu0 %1488
    %1490 = vrot.lane.b32.xlu0 %v201, 64
    %v1491 = vpop.permute.xlu0 %1490
    %v1495 = vsel %vm1309, %v1470, 0
    %v1498 = vsel %vm1309, %v1471, 0
    %1500 = vmatprep.subr.mxu0 0.0
    %1501 = vmatpush1.msra.mxu0 0.0
    %1502 = vmatprep.subr.mxu0 0.0
    %1503 = vmatpush1.msra.mxu0 0.0
    %1504 = vmatprep.subr.mxu0 0.0
    %1505 = vmatpush1.msra.mxu0 0.0
    %1506 = vmatprep.subr.mxu0 0.0
    %1507 = vmatpush1.msra.mxu0 0.0
    %1508 = vmatprep.subr.mxu0 0.0
    %1509 = vmatpush1.msra.mxu0 0.0
    %1510 = vmatprep.subr.mxu0 0.0
    %1511 = vmatpush1.msra.mxu0 0.0
    %1512 = vmatprep.subr.mxu0 0.0
    %1513 = vmatpush1.msra.mxu0 0.0
    %1514 = vmatprep.subr.mxu0 0.0
    %1515 = vmatpush1.msra.mxu0 0.0
    %1516 = vmatprep.subr.mxu0 0.0
    %1517 = vmatpush1.msra.mxu0 0.0
    %1518 = vmatprep.subr.mxu0 0.0
    %1519 = vmatpush1.msra.mxu0 0.0
    %1520 = vmatprep.subr.mxu0 0.0
    %1521 = vmatpush1.msra.mxu0 0.0
    %1522 = vmatprep.subr.mxu0 0.0
    %1523 = vmatpush1.msra.mxu0 0.0
    %1524 = vmatprep.subr.mxu0 0.0
    %1525 = vmatpush1.msra.mxu0 0.0
    %1526 = vmatprep.subr.mxu0 0.0
    %1527 = vmatpush1.msra.mxu0 0.0
    %1528 = vmatprep.subr.mxu0 0.0
    %1529 = vmatpush1.msra.mxu0 %v1491
    %1530 = vmatprep.subr.mxu0 0.0
    %1531 = vmatpush1.msra.mxu0 %v1489
    %1532 = vmatprep.subr.mxu0 0.0
    %1533 = vmatpush2.msra.mxu0 0.0
    %1534 = vmatprep.subr.mxu0 0.0
    %1535 = vmatpush2.msra.mxu0 0.0
    %1536 = vmatprep.subr.mxu0 0.0
    %1537 = vmatpush2.msra.mxu0 0.0
    %1538 = vmatprep.subr.mxu0 0.0
    %1539 = vmatpush2.msra.mxu0 0.0
    %1540 = vmatprep.subr.mxu0 0.0
    %1541 = vmatpush2.msra.mxu0 0.0
    %1542 = vmatprep.subr.mxu0 0.0
    %1543 = vmatpush2.msra.mxu0 0.0
    %1544 = vmatprep.subr.mxu0 0.0
    %1545 = vmatpush2.msra.mxu0 0.0
    %1546 = vmatprep.subr.mxu0 0.0
    %1547 = vmatpush2.msra.mxu0 0.0
    %1548 = vmatprep.subr.mxu0 0.0
    %1549 = vmatpush2.msra.mxu0 0.0
    %1550 = vmatprep.subr.mxu0 0.0
    %1551 = vmatpush2.msra.mxu0 0.0
    %1552 = vmatprep.subr.mxu0 0.0
    %1553 = vmatpush2.msra.mxu0 0.0
    %1554 = vmatprep.subr.mxu0 0.0
    %1555 = vmatpush2.msra.mxu0 0.0
    %1556 = vmatprep.subr.mxu0 0.0
    %1557 = vmatpush2.msra.mxu0 0.0
    %1558 = vmatprep.subr.mxu0 0.0
    %1559 = vmatpush2.msra.mxu0 0.0
    %1560 = vmatprep.subr.mxu0 0.0
    %1561 = vmatpush2.msra.mxu0 0.0
    %1562 = vmatprep.subr.mxu0 0.0
    %1563 = vmatpush2.msra.mxu0 0.0
    %1564 = vmatprep.mubr.f32.mxu0 0.0
    %1565 = vmatmul.mubr.f32.gmra.mxu0 %v1495
    %v1566 = vpop.f32.mrf.mxu0
    %v1567 = vadd.f32 0.0, %v1566
    %v1568 = vpop.f32.mrf.mxu0
    %1569 = vmatprep.mubr.f32.mxu0 0.0
    %1570 = vmatmul.mubr.f32.gmra.mxu0 %v1498
    %v1571 = vpop.f32.mrf.mxu0
    %v1572 = vadd.f32 0.0, %v1571
    %v1573 = vpop.f32.mrf.mxu0
    %1574 = vdwg.mxu0
    %1577 = vrot.lane.b32.xlu0 %v206, 64
    %v1578 = vpop.permute.xlu0 %1577
    %1579 = vrot.lane.b32.xlu0 %v211, 64
    %v1580 = vpop.permute.xlu0 %1579
    %v1584 = vsel %vm1309, %v1472, 0
    %v1587 = vsel %vm1309, %v1473, 0
    %1589 = vmatprep.subr.mxu0 0.0
    %1590 = vmatpush1.msra.mxu0 0.0
    %1591 = vmatprep.subr.mxu0 0.0
    %1592 = vmatpush1.msra.mxu0 0.0
    %1593 = vmatprep.subr.mxu0 0.0
    %1594 = vmatpush1.msra.mxu0 0.0
    %1595 = vmatprep.subr.mxu0 0.0
    %1596 = vmatpush1.msra.mxu0 0.0
    %1597 = vmatprep.subr.mxu0 0.0
    %1598 = vmatpush1.msra.mxu0 0.0
    %1599 = vmatprep.subr.mxu0 0.0
    %1600 = vmatpush1.msra.mxu0 0.0
    %1601 = vmatprep.subr.mxu0 0.0
    %1602 = vmatpush1.msra.mxu0 0.0
    %1603 = vmatprep.subr.mxu0 0.0
    %1604 = vmatpush1.msra.mxu0 0.0
    %1605 = vmatprep.subr.mxu0 0.0
    %1606 = vmatpush1.msra.mxu0 0.0
    %1607 = vmatprep.subr.mxu0 0.0
    %1608 = vmatpush1.msra.mxu0 0.0
    %1609 = vmatprep.subr.mxu0 0.0
    %1610 = vmatpush1.msra.mxu0 0.0
    %1611 = vmatprep.subr.mxu0 0.0
    %1612 = vmatpush1.msra.mxu0 0.0
    %1613 = vmatprep.subr.mxu0 0.0
    %1614 = vmatpush1.msra.mxu0 0.0
    %1615 = vmatprep.subr.mxu0 0.0
    %1616 = vmatpush1.msra.mxu0 0.0
    %1617 = vmatprep.subr.mxu0 0.0
    %1618 = vmatpush1.msra.mxu0 %v1580
    %1619 = vmatprep.subr.mxu0 0.0
    %1620 = vmatpush1.msra.mxu0 %v1578
    %1621 = vmatprep.subr.mxu0 0.0
    %1622 = vmatpush2.msra.mxu0 0.0
    %1623 = vmatprep.subr.mxu0 0.0
    %1624 = vmatpush2.msra.mxu0 0.0
    %1625 = vmatprep.subr.mxu0 0.0
    %1626 = vmatpush2.msra.mxu0 0.0
    %1627 = vmatprep.subr.mxu0 0.0
    %1628 = vmatpush2.msra.mxu0 0.0
    %1629 = vmatprep.subr.mxu0 0.0
    %1630 = vmatpush2.msra.mxu0 0.0
    %1631 = vmatprep.subr.mxu0 0.0
    %1632 = vmatpush2.msra.mxu0 0.0
    %1633 = vmatprep.subr.mxu0 0.0
    %1634 = vmatpush2.msra.mxu0 0.0
    %1635 = vmatprep.subr.mxu0 0.0
    %1636 = vmatpush2.msra.mxu0 0.0
    %1637 = vmatprep.subr.mxu0 0.0
    %1638 = vmatpush2.msra.mxu0 0.0
    %1639 = vmatprep.subr.mxu0 0.0
    %1640 = vmatpush2.msra.mxu0 0.0
    %1641 = vmatprep.subr.mxu0 0.0
    %1642 = vmatpush2.msra.mxu0 0.0
    %1643 = vmatprep.subr.mxu0 0.0
    %1644 = vmatpush2.msra.mxu0 0.0
    %1645 = vmatprep.subr.mxu0 0.0
    %1646 = vmatpush2.msra.mxu0 0.0
    %1647 = vmatprep.subr.mxu0 0.0
    %1648 = vmatpush2.msra.mxu0 0.0
    %1649 = vmatprep.subr.mxu0 0.0
    %1650 = vmatpush2.msra.mxu0 0.0
    %1651 = vmatprep.subr.mxu0 0.0
    %1652 = vmatpush2.msra.mxu0 0.0
    %1653 = vmatprep.mubr.f32.mxu0 0.0
    %1654 = vmatmul.mubr.f32.gmra.mxu0 %v1584
    %v1655 = vpop.f32.mrf.mxu0
    %v1656 = vadd.f32 0.0, %v1655
    %v1657 = vpop.f32.mrf.mxu0
    %1658 = vmatprep.mubr.f32.mxu0 0.0
    %1659 = vmatmul.mubr.f32.gmra.mxu0 %v1587
    %v1660 = vpop.f32.mrf.mxu0
    %v1661 = vadd.f32 0.0, %v1660
    %v1662 = vpop.f32.mrf.mxu0
    %1663 = vdwg.mxu0
    %1666 = vrot.lane.b32.xlu0 %v216, 64
    %v1667 = vpop.permute.xlu0 %1666
    %1668 = vrot.lane.b32.xlu0 %v221, 64
    %v1669 = vpop.permute.xlu0 %1668
    %v1673 = vsel %vm1309, %v1474, 0
    %v1676 = vsel %vm1309, %v1475, 0
    %1678 = vmatprep.subr.mxu0 0.0
    %1679 = vmatpush1.msra.mxu0 0.0
    %1680 = vmatprep.subr.mxu0 0.0
    %1681 = vmatpush1.msra.mxu0 0.0
    %1682 = vmatprep.subr.mxu0 0.0
    %1683 = vmatpush1.msra.mxu0 0.0
    %1684 = vmatprep.subr.mxu0 0.0
    %1685 = vmatpush1.msra.mxu0 0.0
    %1686 = vmatprep.subr.mxu0 0.0
    %1687 = vmatpush1.msra.mxu0 0.0
    %1688 = vmatprep.subr.mxu0 0.0
    %1689 = vmatpush1.msra.mxu0 0.0
    %1690 = vmatprep.subr.mxu0 0.0
    %1691 = vmatpush1.msra.mxu0 0.0
    %1692 = vmatprep.subr.mxu0 0.0
    %1693 = vmatpush1.msra.mxu0 0.0
    %1694 = vmatprep.subr.mxu0 0.0
    %1695 = vmatpush1.msra.mxu0 0.0
    %1696 = vmatprep.subr.mxu0 0.0
    %1697 = vmatpush1.msra.mxu0 0.0
    %1698 = vmatprep.subr.mxu0 0.0
    %1699 = vmatpush1.msra.mxu0 0.0
    %1700 = vmatprep.subr.mxu0 0.0
    %1701 = vmatpush1.msra.mxu0 0.0
    %1702 = vmatprep.subr.mxu0 0.0
    %1703 = vmatpush1.msra.mxu0 0.0
    %1704 = vmatprep.subr.mxu0 0.0
    %1705 = vmatpush1.msra.mxu0 0.0
    %1706 = vmatprep.subr.mxu0 0.0
    %1707 = vmatpush1.msra.mxu0 %v1669
    %1708 = vmatprep.subr.mxu0 0.0
    %1709 = vmatpush1.msra.mxu0 %v1667
    %1710 = vmatprep.subr.mxu0 0.0
    %1711 = vmatpush2.msra.mxu0 0.0
    %1712 = vmatprep.subr.mxu0 0.0
    %1713 = vmatpush2.msra.mxu0 0.0
    %1714 = vmatprep.subr.mxu0 0.0
    %1715 = vmatpush2.msra.mxu0 0.0
    %1716 = vmatprep.subr.mxu0 0.0
    %1717 = vmatpush2.msra.mxu0 0.0
    %1718 = vmatprep.subr.mxu0 0.0
    %1719 = vmatpush2.msra.mxu0 0.0
    %1720 = vmatprep.subr.mxu0 0.0
    %1721 = vmatpush2.msra.mxu0 0.0
    %1722 = vmatprep.subr.mxu0 0.0
    %1723 = vmatpush2.msra.mxu0 0.0
    %1724 = vmatprep.subr.mxu0 0.0
    %1725 = vmatpush2.msra.mxu0 0.0
    %1726 = vmatprep.subr.mxu0 0.0
    %1727 = vmatpush2.msra.mxu0 0.0
    %1728 = vmatprep.subr.mxu0 0.0
    %1729 = vmatpush2.msra.mxu0 0.0
    %1730 = vmatprep.subr.mxu0 0.0
    %1731 = vmatpush2.msra.mxu0 0.0
    %1732 = vmatprep.subr.mxu0 0.0
    %1733 = vmatpush2.msra.mxu0 0.0
    %1734 = vmatprep.subr.mxu0 0.0
    %1735 = vmatpush2.msra.mxu0 0.0
    %1736 = vmatprep.subr.mxu0 0.0
    %1737 = vmatpush2.msra.mxu0 0.0
    %1738 = vmatprep.subr.mxu0 0.0
    %1739 = vmatpush2.msra.mxu0 0.0
    %1740 = vmatprep.subr.mxu0 0.0
    %1741 = vmatpush2.msra.mxu0 0.0
    %1742 = vmatprep.mubr.f32.mxu0 0.0
    %1743 = vmatmul.mubr.f32.gmra.mxu0 %v1673
    %v1744 = vpop.f32.mrf.mxu0
    %v1745 = vadd.f32 0.0, %v1744
    %v1746 = vpop.f32.mrf.mxu0
    %1747 = vmatprep.mubr.f32.mxu0 0.0
    %1748 = vmatmul.mubr.f32.gmra.mxu0 %v1676
    %v1749 = vpop.f32.mrf.mxu0
    %v1750 = vadd.f32 0.0, %v1749
    %v1751 = vpop.f32.mrf.mxu0
    %1752 = vdwg.mxu0
    %1755 = vrot.lane.b32.xlu0 %v226, 64
    %v1756 = vpop.permute.xlu0 %1755
    %1757 = vrot.lane.b32.xlu0 %v231, 64
    %v1758 = vpop.permute.xlu0 %1757
    %v1762 = vsel %vm1309, %v1476, 0
    %v1765 = vsel %vm1309, %v1477, 0
    %1767 = vmatprep.subr.mxu0 0.0
    %1768 = vmatpush1.msra.mxu0 0.0
    %1769 = vmatprep.subr.mxu0 0.0
    %1770 = vmatpush1.msra.mxu0 0.0
    %1771 = vmatprep.subr.mxu0 0.0
    %1772 = vmatpush1.msra.mxu0 0.0
    %1773 = vmatprep.subr.mxu0 0.0
    %1774 = vmatpush1.msra.mxu0 0.0
    %1775 = vmatprep.subr.mxu0 0.0
    %1776 = vmatpush1.msra.mxu0 0.0
    %1777 = vmatprep.subr.mxu0 0.0
    %1778 = vmatpush1.msra.mxu0 0.0
    %1779 = vmatprep.subr.mxu0 0.0
    %1780 = vmatpush1.msra.mxu0 0.0
    %1781 = vmatprep.subr.mxu0 0.0
    %1782 = vmatpush1.msra.mxu0 0.0
    %1783 = vmatprep.subr.mxu0 0.0
    %1784 = vmatpush1.msra.mxu0 0.0
    %1785 = vmatprep.subr.mxu0 0.0
    %1786 = vmatpush1.msra.mxu0 0.0
    %1787 = vmatprep.subr.mxu0 0.0
    %1788 = vmatpush1.msra.mxu0 0.0
    %1789 = vmatprep.subr.mxu0 0.0
    %1790 = vmatpush1.msra.mxu0 0.0
    %1791 = vmatprep.subr.mxu0 0.0
    %1792 = vmatpush1.msra.mxu0 0.0
    %1793 = vmatprep.subr.mxu0 0.0
    %1794 = vmatpush1.msra.mxu0 0.0
    %1795 = vmatprep.subr.mxu0 0.0
    %1796 = vmatpush1.msra.mxu0 %v1758
    %1797 = vmatprep.subr.mxu0 0.0
    %1798 = vmatpush1.msra.mxu0 %v1756
    %1799 = vmatprep.subr.mxu0 0.0
    %1800 = vmatpush2.msra.mxu0 0.0
    %1801 = vmatprep.subr.mxu0 0.0
    %1802 = vmatpush2.msra.mxu0 0.0
    %1803 = vmatprep.subr.mxu0 0.0
    %1804 = vmatpush2.msra.mxu0 0.0
    %1805 = vmatprep.subr.mxu0 0.0
    %1806 = vmatpush2.msra.mxu0 0.0
    %1807 = vmatprep.subr.mxu0 0.0
    %1808 = vmatpush2.msra.mxu0 0.0
    %1809 = vmatprep.subr.mxu0 0.0
    %1810 = vmatpush2.msra.mxu0 0.0
    %1811 = vmatprep.subr.mxu0 0.0
    %1812 = vmatpush2.msra.mxu0 0.0
    %1813 = vmatprep.subr.mxu0 0.0
    %1814 = vmatpush2.msra.mxu0 0.0
    %1815 = vmatprep.subr.mxu0 0.0
    %1816 = vmatpush2.msra.mxu0 0.0
    %1817 = vmatprep.subr.mxu0 0.0
    %1818 = vmatpush2.msra.mxu0 0.0
    %1819 = vmatprep.subr.mxu0 0.0
    %1820 = vmatpush2.msra.mxu0 0.0
    %1821 = vmatprep.subr.mxu0 0.0
    %1822 = vmatpush2.msra.mxu0 0.0
    %1823 = vmatprep.subr.mxu0 0.0
    %1824 = vmatpush2.msra.mxu0 0.0
    %1825 = vmatprep.subr.mxu0 0.0
    %1826 = vmatpush2.msra.mxu0 0.0
    %1827 = vmatprep.subr.mxu0 0.0
    %1828 = vmatpush2.msra.mxu0 0.0
    %1829 = vmatprep.subr.mxu0 0.0
    %1830 = vmatpush2.msra.mxu0 0.0
    %1831 = vmatprep.mubr.f32.mxu0 0.0
    %1832 = vmatmul.mubr.f32.gmra.mxu0 %v1762
    %v1833 = vpop.f32.mrf.mxu0
    %v1834 = vadd.f32 0.0, %v1833
    %v1835 = vpop.f32.mrf.mxu0
    %1836 = vmatprep.mubr.f32.mxu0 0.0
    %1837 = vmatmul.mubr.f32.gmra.mxu0 %v1765
    %v1838 = vpop.f32.mrf.mxu0
    %v1839 = vadd.f32 0.0, %v1838
    %v1840 = vpop.f32.mrf.mxu0
    %1841 = vdwg.mxu0
    %1844 = vrot.lane.b32.xlu0 %v236, 64
    %v1845 = vpop.permute.xlu0 %1844
    %1846 = vrot.lane.b32.xlu0 %v241, 64
    %v1847 = vpop.permute.xlu0 %1846
    %v1851 = vsel %vm1309, %v1478, 0
    %v1854 = vsel %vm1309, %v1479, 0
    %1856 = vmatprep.subr.mxu0 0.0
    %1857 = vmatpush1.msra.mxu0 0.0
    %1858 = vmatprep.subr.mxu0 0.0
    %1859 = vmatpush1.msra.mxu0 0.0
    %1860 = vmatprep.subr.mxu0 0.0
    %1861 = vmatpush1.msra.mxu0 0.0
    %1862 = vmatprep.subr.mxu0 0.0
    %1863 = vmatpush1.msra.mxu0 0.0
    %1864 = vmatprep.subr.mxu0 0.0
    %1865 = vmatpush1.msra.mxu0 0.0
    %1866 = vmatprep.subr.mxu0 0.0
    %1867 = vmatpush1.msra.mxu0 0.0
    %1868 = vmatprep.subr.mxu0 0.0
    %1869 = vmatpush1.msra.mxu0 0.0
    %1870 = vmatprep.subr.mxu0 0.0
    %1871 = vmatpush1.msra.mxu0 0.0
    %1872 = vmatprep.subr.mxu0 0.0
    %1873 = vmatpush1.msra.mxu0 0.0
    %1874 = vmatprep.subr.mxu0 0.0
    %1875 = vmatpush1.msra.mxu0 0.0
    %1876 = vmatprep.subr.mxu0 0.0
    %1877 = vmatpush1.msra.mxu0 0.0
    %1878 = vmatprep.subr.mxu0 0.0
    %1879 = vmatpush1.msra.mxu0 0.0
    %1880 = vmatprep.subr.mxu0 0.0
    %1881 = vmatpush1.msra.mxu0 0.0
    %1882 = vmatprep.subr.mxu0 0.0
    %1883 = vmatpush1.msra.mxu0 0.0
    %1884 = vmatprep.subr.mxu0 0.0
    %1885 = vmatpush1.msra.mxu0 %v1847
    %1886 = vmatprep.subr.mxu0 0.0
    %1887 = vmatpush1.msra.mxu0 %v1845
    %1888 = vmatprep.subr.mxu0 0.0
    %1889 = vmatpush2.msra.mxu0 0.0
    %1890 = vmatprep.subr.mxu0 0.0
    %1891 = vmatpush2.msra.mxu0 0.0
    %1892 = vmatprep.subr.mxu0 0.0
    %1893 = vmatpush2.msra.mxu0 0.0
    %1894 = vmatprep.subr.mxu0 0.0
    %1895 = vmatpush2.msra.mxu0 0.0
    %1896 = vmatprep.subr.mxu0 0.0
    %1897 = vmatpush2.msra.mxu0 0.0
    %1898 = vmatprep.subr.mxu0 0.0
    %1899 = vmatpush2.msra.mxu0 0.0
    %1900 = vmatprep.subr.mxu0 0.0
    %1901 = vmatpush2.msra.mxu0 0.0
    %1902 = vmatprep.subr.mxu0 0.0
    %1903 = vmatpush2.msra.mxu0 0.0
    %1904 = vmatprep.subr.mxu0 0.0
    %1905 = vmatpush2.msra.mxu0 0.0
    %1906 = vmatprep.subr.mxu0 0.0
    %1907 = vmatpush2.msra.mxu0 0.0
    %1908 = vmatprep.subr.mxu0 0.0
    %1909 = vmatpush2.msra.mxu0 0.0
    %1910 = vmatprep.subr.mxu0 0.0
    %1911 = vmatpush2.msra.mxu0 0.0
    %1912 = vmatprep.subr.mxu0 0.0
    %1913 = vmatpush2.msra.mxu0 0.0
    %1914 = vmatprep.subr.mxu0 0.0
    %1915 = vmatpush2.msra.mxu0 0.0
    %1916 = vmatprep.subr.mxu0 0.0
    %1917 = vmatpush2.msra.mxu0 0.0
    %1918 = vmatprep.subr.mxu0 0.0
    %1919 = vmatpush2.msra.mxu0 0.0
    %1920 = vmatprep.mubr.f32.mxu0 0.0
    %1921 = vmatmul.mubr.f32.gmra.mxu0 %v1851
    %v1922 = vpop.f32.mrf.mxu0
    %v1923 = vadd.f32 0.0, %v1922
    %v1924 = vpop.f32.mrf.mxu0
    %1925 = vmatprep.mubr.f32.mxu0 0.0
    %1926 = vmatmul.mubr.f32.gmra.mxu0 %v1854
    %v1927 = vpop.f32.mrf.mxu0
    %v1928 = vadd.f32 0.0, %v1927
    %v1929 = vpop.f32.mrf.mxu0
    %1930 = vdwg.mxu0
    %1933 = vrot.lane.b32.xlu0 %v246, 64
    %v1934 = vpop.permute.xlu0 %1933
    %1935 = vrot.lane.b32.xlu0 %v251, 64
    %v1936 = vpop.permute.xlu0 %1935
    %v1940 = vsel %vm1309, %v1480, 0
    %v1943 = vsel %vm1309, %v1481, 0
    %1945 = vmatprep.subr.mxu0 0.0
    %1946 = vmatpush1.msra.mxu0 0.0
    %1947 = vmatprep.subr.mxu0 0.0
    %1948 = vmatpush1.msra.mxu0 0.0
    %1949 = vmatprep.subr.mxu0 0.0
    %1950 = vmatpush1.msra.mxu0 0.0
    %1951 = vmatprep.subr.mxu0 0.0
    %1952 = vmatpush1.msra.mxu0 0.0
    %1953 = vmatprep.subr.mxu0 0.0
    %1954 = vmatpush1.msra.mxu0 0.0
    %1955 = vmatprep.subr.mxu0 0.0
    %1956 = vmatpush1.msra.mxu0 0.0
    %1957 = vmatprep.subr.mxu0 0.0
    %1958 = vmatpush1.msra.mxu0 0.0
    %1959 = vmatprep.subr.mxu0 0.0
    %1960 = vmatpush1.msra.mxu0 0.0
    %1961 = vmatprep.subr.mxu0 0.0
    %1962 = vmatpush1.msra.mxu0 0.0
    %1963 = vmatprep.subr.mxu0 0.0
    %1964 = vmatpush1.msra.mxu0 0.0
    %1965 = vmatprep.subr.mxu0 0.0
    %1966 = vmatpush1.msra.mxu0 0.0
    %1967 = vmatprep.subr.mxu0 0.0
    %1968 = vmatpush1.msra.mxu0 0.0
    %1969 = vmatprep.subr.mxu0 0.0
    %1970 = vmatpush1.msra.mxu0 0.0
    %1971 = vmatprep.subr.mxu0 0.0
    %1972 = vmatpush1.msra.mxu0 0.0
    %1973 = vmatprep.subr.mxu0 0.0
    %1974 = vmatpush1.msra.mxu0 %v1936
    %1975 = vmatprep.subr.mxu0 0.0
    %1976 = vmatpush1.msra.mxu0 %v1934
    %1977 = vmatprep.subr.mxu0 0.0
    %1978 = vmatpush2.msra.mxu0 0.0
    %1979 = vmatprep.subr.mxu0 0.0
    %1980 = vmatpush2.msra.mxu0 0.0
    %1981 = vmatprep.subr.mxu0 0.0
    %1982 = vmatpush2.msra.mxu0 0.0
    %1983 = vmatprep.subr.mxu0 0.0
    %1984 = vmatpush2.msra.mxu0 0.0
    %1985 = vmatprep.subr.mxu0 0.0
    %1986 = vmatpush2.msra.mxu0 0.0
    %1987 = vmatprep.subr.mxu0 0.0
    %1988 = vmatpush2.msra.mxu0 0.0
    %1989 = vmatprep.subr.mxu0 0.0
    %1990 = vmatpush2.msra.mxu0 0.0
    %1991 = vmatprep.subr.mxu0 0.0
    %1992 = vmatpush2.msra.mxu0 0.0
    %1993 = vmatprep.subr.mxu0 0.0
    %1994 = vmatpush2.msra.mxu0 0.0
    %1995 = vmatprep.subr.mxu0 0.0
    %1996 = vmatpush2.msra.mxu0 0.0
    %1997 = vmatprep.subr.mxu0 0.0
    %1998 = vmatpush2.msra.mxu0 0.0
    %1999 = vmatprep.subr.mxu0 0.0
    %2000 = vmatpush2.msra.mxu0 0.0
    %2001 = vmatprep.subr.mxu0 0.0
    %2002 = vmatpush2.msra.mxu0 0.0
    %2003 = vmatprep.subr.mxu0 0.0
    %2004 = vmatpush2.msra.mxu0 0.0
    %2005 = vmatprep.subr.mxu0 0.0
    %2006 = vmatpush2.msra.mxu0 0.0
    %2007 = vmatprep.subr.mxu0 0.0
    %2008 = vmatpush2.msra.mxu0 0.0
    %2009 = vmatprep.mubr.f32.mxu0 0.0
    %2010 = vmatmul.mubr.f32.gmra.mxu0 %v1940
    %v2011 = vpop.f32.mrf.mxu0
    %v2012 = vadd.f32 0.0, %v2011
    %v2013 = vpop.f32.mrf.mxu0
    %2014 = vmatprep.mubr.f32.mxu0 0.0
    %2015 = vmatmul.mubr.f32.gmra.mxu0 %v1943
    %v2016 = vpop.f32.mrf.mxu0
    %v2017 = vadd.f32 0.0, %v2016
    %v2018 = vpop.f32.mrf.mxu0
    %2019 = vdwg.mxu0
    %2022 = vrot.lane.b32.xlu0 %v256, 64
    %v2023 = vpop.permute.xlu0 %2022
    %2024 = vrot.lane.b32.xlu0 %v261, 64
    %v2025 = vpop.permute.xlu0 %2024
    %v2029 = vsel %vm1309, %v1482, 0
    %v2032 = vsel %vm1309, %v1483, 0
    %2034 = vmatprep.subr.mxu0 0.0
    %2035 = vmatpush1.msra.mxu0 0.0
    %2036 = vmatprep.subr.mxu0 0.0
    %2037 = vmatpush1.msra.mxu0 0.0
    %2038 = vmatprep.subr.mxu0 0.0
    %2039 = vmatpush1.msra.mxu0 0.0
    %2040 = vmatprep.subr.mxu0 0.0
    %2041 = vmatpush1.msra.mxu0 0.0
    %2042 = vmatprep.subr.mxu0 0.0
    %2043 = vmatpush1.msra.mxu0 0.0
    %2044 = vmatprep.subr.mxu0 0.0
    %2045 = vmatpush1.msra.mxu0 0.0
    %2046 = vmatprep.subr.mxu0 0.0
    %2047 = vmatpush1.msra.mxu0 0.0
    %2048 = vmatprep.subr.mxu0 0.0
    %2049 = vmatpush1.msra.mxu0 0.0
    %2050 = vmatprep.subr.mxu0 0.0
    %2051 = vmatpush1.msra.mxu0 0.0
    %2052 = vmatprep.subr.mxu0 0.0
    %2053 = vmatpush1.msra.mxu0 0.0
    %2054 = vmatprep.subr.mxu0 0.0
    %2055 = vmatpush1.msra.mxu0 0.0
    %2056 = vmatprep.subr.mxu0 0.0
    %2057 = vmatpush1.msra.mxu0 0.0
    %2058 = vmatprep.subr.mxu0 0.0
    %2059 = vmatpush1.msra.mxu0 0.0
    %2060 = vmatprep.subr.mxu0 0.0
    %2061 = vmatpush1.msra.mxu0 0.0
    %2062 = vmatprep.subr.mxu0 0.0
    %2063 = vmatpush1.msra.mxu0 %v2025
    %2064 = vmatprep.subr.mxu0 0.0
    %2065 = vmatpush1.msra.mxu0 %v2023
    %2066 = vmatprep.subr.mxu0 0.0
    %2067 = vmatpush2.msra.mxu0 0.0
    %2068 = vmatprep.subr.mxu0 0.0
    %2069 = vmatpush2.msra.mxu0 0.0
    %2070 = vmatprep.subr.mxu0 0.0
    %2071 = vmatpush2.msra.mxu0 0.0
    %2072 = vmatprep.subr.mxu0 0.0
    %2073 = vmatpush2.msra.mxu0 0.0
    %2074 = vmatprep.subr.mxu0 0.0
    %2075 = vmatpush2.msra.mxu0 0.0
    %2076 = vmatprep.subr.mxu0 0.0
    %2077 = vmatpush2.msra.mxu0 0.0
    %2078 = vmatprep.subr.mxu0 0.0
    %2079 = vmatpush2.msra.mxu0 0.0
    %2080 = vmatprep.subr.mxu0 0.0
    %2081 = vmatpush2.msra.mxu0 0.0
    %2082 = vmatprep.subr.mxu0 0.0
    %2083 = vmatpush2.msra.mxu0 0.0
    %2084 = vmatprep.subr.mxu0 0.0
    %2085 = vmatpush2.msra.mxu0 0.0
    %2086 = vmatprep.subr.mxu0 0.0
    %2087 = vmatpush2.msra.mxu0 0.0
    %2088 = vmatprep.subr.mxu0 0.0
    %2089 = vmatpush2.msra.mxu0 0.0
    %2090 = vmatprep.subr.mxu0 0.0
    %2091 = vmatpush2.msra.mxu0 0.0
    %2092 = vmatprep.subr.mxu0 0.0
    %2093 = vmatpush2.msra.mxu0 0.0
    %2094 = vmatprep.subr.mxu0 0.0
    %2095 = vmatpush2.msra.mxu0 0.0
    %2096 = vmatprep.subr.mxu0 0.0
    %2097 = vmatpush2.msra.mxu0 0.0
    %2098 = vmatprep.mubr.f32.mxu0 0.0
    %2099 = vmatmul.mubr.f32.gmra.mxu0 %v2029
    %v2100 = vpop.f32.mrf.mxu0
    %v2101 = vadd.f32 0.0, %v2100
    %v2102 = vpop.f32.mrf.mxu0
    %2103 = vmatprep.mubr.f32.mxu0 0.0
    %2104 = vmatmul.mubr.f32.gmra.mxu0 %v2032
    %v2105 = vpop.f32.mrf.mxu0
    %v2106 = vadd.f32 0.0, %v2105
    %v2107 = vpop.f32.mrf.mxu0
    %2108 = vdwg.mxu0
    %2111 = vrot.lane.b32.xlu0 %v266, 64
    %v2112 = vpop.permute.xlu0 %2111
    %2113 = vrot.lane.b32.xlu0 %v271, 64
    %v2114 = vpop.permute.xlu0 %2113
    %v2118 = vsel %vm1309, %v1484, 0
    %v2121 = vsel %vm1309, %v1485, 0
    %2123 = vmatprep.subr.mxu0 0.0
    %2124 = vmatpush1.msra.mxu0 0.0
    %2125 = vmatprep.subr.mxu0 0.0
    %2126 = vmatpush1.msra.mxu0 0.0
    %2127 = vmatprep.subr.mxu0 0.0
    %2128 = vmatpush1.msra.mxu0 0.0
    %2129 = vmatprep.subr.mxu0 0.0
    %2130 = vmatpush1.msra.mxu0 0.0
    %2131 = vmatprep.subr.mxu0 0.0
    %2132 = vmatpush1.msra.mxu0 0.0
    %2133 = vmatprep.subr.mxu0 0.0
    %2134 = vmatpush1.msra.mxu0 0.0
    %2135 = vmatprep.subr.mxu0 0.0
    %2136 = vmatpush1.msra.mxu0 0.0
    %2137 = vmatprep.subr.mxu0 0.0
    %2138 = vmatpush1.msra.mxu0 0.0
    %2139 = vmatprep.subr.mxu0 0.0
    %2140 = vmatpush1.msra.mxu0 0.0
    %2141 = vmatprep.subr.mxu0 0.0
    %2142 = vmatpush1.msra.mxu0 0.0
    %2143 = vmatprep.subr.mxu0 0.0
    %2144 = vmatpush1.msra.mxu0 0.0
    %2145 = vmatprep.subr.mxu0 0.0
    %2146 = vmatpush1.msra.mxu0 0.0
    %2147 = vmatprep.subr.mxu0 0.0
    %2148 = vmatpush1.msra.mxu0 0.0
    %2149 = vmatprep.subr.mxu0 0.0
    %2150 = vmatpush1.msra.mxu0 0.0
    %2151 = vmatprep.subr.mxu0 0.0
    %2152 = vmatpush1.msra.mxu0 %v2114
    %2153 = vmatprep.subr.mxu0 0.0
    %2154 = vmatpush1.msra.mxu0 %v2112
    %2155 = vmatprep.subr.mxu0 0.0
    %2156 = vmatpush2.msra.mxu0 0.0
    %2157 = vmatprep.subr.mxu0 0.0
    %2158 = vmatpush2.msra.mxu0 0.0
    %2159 = vmatprep.subr.mxu0 0.0
    %2160 = vmatpush2.msra.mxu0 0.0
    %2161 = vmatprep.subr.mxu0 0.0
    %2162 = vmatpush2.msra.mxu0 0.0
    %2163 = vmatprep.subr.mxu0 0.0
    %2164 = vmatpush2.msra.mxu0 0.0
    %2165 = vmatprep.subr.mxu0 0.0
    %2166 = vmatpush2.msra.mxu0 0.0
    %2167 = vmatprep.subr.mxu0 0.0
    %2168 = vmatpush2.msra.mxu0 0.0
    %2169 = vmatprep.subr.mxu0 0.0
    %2170 = vmatpush2.msra.mxu0 0.0
    %2171 = vmatprep.subr.mxu0 0.0
    %2172 = vmatpush2.msra.mxu0 0.0
    %2173 = vmatprep.subr.mxu0 0.0
    %2174 = vmatpush2.msra.mxu0 0.0
    %2175 = vmatprep.subr.mxu0 0.0
    %2176 = vmatpush2.msra.mxu0 0.0
    %2177 = vmatprep.subr.mxu0 0.0
    %2178 = vmatpush2.msra.mxu0 0.0
    %2179 = vmatprep.subr.mxu0 0.0
    %2180 = vmatpush2.msra.mxu0 0.0
    %2181 = vmatprep.subr.mxu0 0.0
    %2182 = vmatpush2.msra.mxu0 0.0
    %2183 = vmatprep.subr.mxu0 0.0
    %2184 = vmatpush2.msra.mxu0 0.0
    %2185 = vmatprep.subr.mxu0 0.0
    %2186 = vmatpush2.msra.mxu0 0.0
    %2187 = vmatprep.mubr.f32.mxu0 0.0
    %2188 = vmatmul.mubr.f32.gmra.mxu0 %v2118
    %v2189 = vpop.f32.mrf.mxu0
    %v2190 = vadd.f32 0.0, %v2189
    %v2191 = vpop.f32.mrf.mxu0
    %2192 = vmatprep.mubr.f32.mxu0 0.0
    %2193 = vmatmul.mubr.f32.gmra.mxu0 %v2121
    %v2194 = vpop.f32.mrf.mxu0
    %v2195 = vadd.f32 0.0, %v2194
    %v2196 = vpop.f32.mrf.mxu0
    %2197 = vdwg.mxu0
    %2198 = vrot.lane.b32.xlu0 %v274, 120
    %v2199 = vpop.permute.xlu0 %2198
    %2200 = vrot.lane.b32.xlu0 %v275, 120
    %v2201 = vpop.permute.xlu0 %2200
    %2202 = vrot.lane.b32.xlu0 %v276, 120
    %v2203 = vpop.permute.xlu0 %2202
    %2204 = vrot.lane.b32.xlu0 %v277, 120
    %v2205 = vpop.permute.xlu0 %2204
    %2206 = vrot.lane.b32.xlu0 %v278, 120
    %v2207 = vpop.permute.xlu0 %2206
    %2208 = vrot.lane.b32.xlu0 %v279, 120
    %v2209 = vpop.permute.xlu0 %2208
    %2210 = vrot.lane.b32.xlu0 %v280, 120
    %v2211 = vpop.permute.xlu0 %2210
    %2212 = vrot.lane.b32.xlu0 %v281, 120
    %v2213 = vpop.permute.xlu0 %2212
    %2214 = vrot.lane.b32.xlu0 %v282, 120
    %v2215 = vpop.permute.xlu0 %2214
    %2216 = vrot.lane.b32.xlu0 %v283, 120
    %v2217 = vpop.permute.xlu0 %2216
    %2218 = vrot.lane.b32.xlu0 %v284, 120
    %v2219 = vpop.permute.xlu0 %2218
    %2220 = vrot.lane.b32.xlu0 %v285, 120
    %v2221 = vpop.permute.xlu0 %2220
    %2222 = vrot.lane.b32.xlu0 %v286, 120
    %v2223 = vpop.permute.xlu0 %2222
    %2224 = vrot.lane.b32.xlu0 %v287, 120
    %v2225 = vpop.permute.xlu0 %2224
    %2226 = vrot.lane.b32.xlu0 %v288, 120
    %v2227 = vpop.permute.xlu0 %2226
    %2228 = vrot.lane.b32.xlu0 %v289, 120
    %v2229 = vpop.permute.xlu0 %2228
    %v2246 = vsel %vm290, %v2199, 0.0
    %2247 = vadd.xlane.f32.xlu0 %v2246
    %v2248 = vpop.xlane.xlu0 %2247
    %v2249 = vsel %vm290, %v2201, 0.0
    %2250 = vadd.xlane.f32.xlu0 %v2249
    %v2251 = vpop.xlane.xlu0 %2250
    %v2252 = vsel %vm290, %v2203, 0.0
    %2253 = vadd.xlane.f32.xlu0 %v2252
    %v2254 = vpop.xlane.xlu0 %2253
    %v2255 = vsel %vm290, %v2205, 0.0
    %2256 = vadd.xlane.f32.xlu0 %v2255
    %v2257 = vpop.xlane.xlu0 %2256
    %v2258 = vsel %vm290, %v2207, 0.0
    %2259 = vadd.xlane.f32.xlu0 %v2258
    %v2260 = vpop.xlane.xlu0 %2259
    %v2261 = vsel %vm290, %v2209, 0.0
    %2262 = vadd.xlane.f32.xlu0 %v2261
    %v2263 = vpop.xlane.xlu0 %2262
    %v2264 = vsel %vm290, %v2211, 0.0
    %2265 = vadd.xlane.f32.xlu0 %v2264
    %v2266 = vpop.xlane.xlu0 %2265
    %v2267 = vsel %vm290, %v2213, 0.0
    %2268 = vadd.xlane.f32.xlu0 %v2267
    %v2269 = vpop.xlane.xlu0 %2268
    %v2270 = vsel %vm290, %v2215, 0.0
    %2271 = vadd.xlane.f32.xlu0 %v2270
    %v2272 = vpop.xlane.xlu0 %2271
    %v2273 = vsel %vm290, %v2217, 0.0
    %2274 = vadd.xlane.f32.xlu0 %v2273
    %v2275 = vpop.xlane.xlu0 %2274
    %v2276 = vsel %vm290, %v2219, 0.0
    %2277 = vadd.xlane.f32.xlu0 %v2276
    %v2278 = vpop.xlane.xlu0 %2277
    %v2279 = vsel %vm290, %v2221, 0.0
    %2280 = vadd.xlane.f32.xlu0 %v2279
    %v2281 = vpop.xlane.xlu0 %2280
    %v2282 = vsel %vm290, %v2223, 0.0
    %2283 = vadd.xlane.f32.xlu0 %v2282
    %v2284 = vpop.xlane.xlu0 %2283
    %v2285 = vsel %vm290, %v2225, 0.0
    %2286 = vadd.xlane.f32.xlu0 %v2285
    %v2287 = vpop.xlane.xlu0 %2286
    %v2288 = vsel %vm290, %v2227, 0.0
    %2289 = vadd.xlane.f32.xlu0 %v2288
    %v2290 = vpop.xlane.xlu0 %2289
    %v2291 = vsel %vm290, %v2229, 0.0
    %2292 = vadd.xlane.f32.xlu0 %v2291
    %v2293 = vpop.xlane.xlu0 %2292
    %v2294 = vmax.f32 %v2248, 1e-24
    %v2295 = vmax.f32 %v2251, 1e-24
    %v2296 = vmax.f32 %v2254, 1e-24
    %v2297 = vmax.f32 %v2257, 1e-24
    %v2298 = vmax.f32 %v2260, 1e-24
    %v2299 = vmax.f32 %v2263, 1e-24
    %v2300 = vmax.f32 %v2266, 1e-24
    %v2301 = vmax.f32 %v2269, 1e-24
    %v2302 = vmax.f32 %v2272, 1e-24
    %v2303 = vmax.f32 %v2275, 1e-24
    %v2304 = vmax.f32 %v2278, 1e-24
    %v2305 = vmax.f32 %v2281, 1e-24
    %v2306 = vmax.f32 %v2284, 1e-24
    %v2307 = vmax.f32 %v2287, 1e-24
    %v2308 = vmax.f32 %v2290, 1e-24
    %v2309 = vmax.f32 %v2293, 1e-24
    %v2310 = vrsqrt.pop %v2294
    %v2311 = vrsqrt.pop %v2295
    %v2312 = vrsqrt.pop %v2296
    %v2313 = vrsqrt.pop %v2297
    %v2314 = vrsqrt.pop %v2298
    %v2315 = vrsqrt.pop %v2299
    %v2316 = vrsqrt.pop %v2300
    %v2317 = vrsqrt.pop %v2301
    %v2318 = vrsqrt.pop %v2302
    %v2319 = vrsqrt.pop %v2303
    %v2320 = vrsqrt.pop %v2304
    %v2321 = vrsqrt.pop %v2305
    %v2322 = vrsqrt.pop %v2306
    %v2323 = vrsqrt.pop %v2307
    %v2324 = vrsqrt.pop %v2308
    %v2325 = vrsqrt.pop %v2309
    %v2326 = vmul.f32 %v196, %v2310
    %v2327 = vmul.f32 %v201, %v2311
    %v2328 = vmul.f32 %v206, %v2312
    %v2329 = vmul.f32 %v211, %v2313
    %v2330 = vmul.f32 %v216, %v2314
    %v2331 = vmul.f32 %v221, %v2315
    %v2332 = vmul.f32 %v226, %v2316
    %v2333 = vmul.f32 %v231, %v2317
    %v2334 = vmul.f32 %v236, %v2318
    %v2335 = vmul.f32 %v241, %v2319
    %v2336 = vmul.f32 %v246, %v2320
    %v2337 = vmul.f32 %v251, %v2321
    %v2338 = vmul.f32 %v256, %v2322
    %v2339 = vmul.f32 %v261, %v2323
    %v2340 = vmul.f32 %v266, %v2324
    %v2341 = vmul.f32 %v271, %v2325
    %2342 = vrot.lane.b32.xlu0 %v274, 88
    %v2343 = vpop.permute.xlu0 %2342
    %2344 = vrot.lane.b32.xlu0 %v275, 88
    %v2345 = vpop.permute.xlu0 %2344
    %2346 = vrot.lane.b32.xlu0 %v276, 88
    %v2347 = vpop.permute.xlu0 %2346
    %2348 = vrot.lane.b32.xlu0 %v277, 88
    %v2349 = vpop.permute.xlu0 %2348
    %2350 = vrot.lane.b32.xlu0 %v278, 88
    %v2351 = vpop.permute.xlu0 %2350
    %2352 = vrot.lane.b32.xlu0 %v279, 88
    %v2353 = vpop.permute.xlu0 %2352
    %2354 = vrot.lane.b32.xlu0 %v280, 88
    %v2355 = vpop.permute.xlu0 %2354
    %2356 = vrot.lane.b32.xlu0 %v281, 88
    %v2357 = vpop.permute.xlu0 %2356
    %2358 = vrot.lane.b32.xlu0 %v282, 88
    %v2359 = vpop.permute.xlu0 %2358
    %2360 = vrot.lane.b32.xlu0 %v283, 88
    %v2361 = vpop.permute.xlu0 %2360
    %2362 = vrot.lane.b32.xlu0 %v284, 88
    %v2363 = vpop.permute.xlu0 %2362
    %2364 = vrot.lane.b32.xlu0 %v285, 88
    %v2365 = vpop.permute.xlu0 %2364
    %2366 = vrot.lane.b32.xlu0 %v286, 88
    %v2367 = vpop.permute.xlu0 %2366
    %2368 = vrot.lane.b32.xlu0 %v287, 88
    %v2369 = vpop.permute.xlu0 %2368
    %2370 = vrot.lane.b32.xlu0 %v288, 88
    %v2371 = vpop.permute.xlu0 %2370
    %2372 = vrot.lane.b32.xlu0 %v289, 88
    %v2373 = vpop.permute.xlu0 %2372
    %v2390 = vsel %vm290, %v2343, 0.0
    %2391 = vadd.xlane.f32.xlu0 %v2390
    %v2392 = vpop.xlane.xlu0 %2391
    %v2393 = vsel %vm290, %v2345, 0.0
    %2394 = vadd.xlane.f32.xlu0 %v2393
    %v2395 = vpop.xlane.xlu0 %2394
    %v2396 = vsel %vm290, %v2347, 0.0
    %2397 = vadd.xlane.f32.xlu0 %v2396
    %v2398 = vpop.xlane.xlu0 %2397
    %v2399 = vsel %vm290, %v2349, 0.0
    %2400 = vadd.xlane.f32.xlu0 %v2399
    %v2401 = vpop.xlane.xlu0 %2400
    %v2402 = vsel %vm290, %v2351, 0.0
    %2403 = vadd.xlane.f32.xlu0 %v2402
    %v2404 = vpop.xlane.xlu0 %2403
    %v2405 = vsel %vm290, %v2353, 0.0
    %2406 = vadd.xlane.f32.xlu0 %v2405
    %v2407 = vpop.xlane.xlu0 %2406
    %v2408 = vsel %vm290, %v2355, 0.0
    %2409 = vadd.xlane.f32.xlu0 %v2408
    %v2410 = vpop.xlane.xlu0 %2409
    %v2411 = vsel %vm290, %v2357, 0.0
    %2412 = vadd.xlane.f32.xlu0 %v2411
    %v2413 = vpop.xlane.xlu0 %2412
    %v2414 = vsel %vm290, %v2359, 0.0
    %2415 = vadd.xlane.f32.xlu0 %v2414
    %v2416 = vpop.xlane.xlu0 %2415
    %v2417 = vsel %vm290, %v2361, 0.0
    %2418 = vadd.xlane.f32.xlu0 %v2417
    %v2419 = vpop.xlane.xlu0 %2418
    %v2420 = vsel %vm290, %v2363, 0.0
    %2421 = vadd.xlane.f32.xlu0 %v2420
    %v2422 = vpop.xlane.xlu0 %2421
    %v2423 = vsel %vm290, %v2365, 0.0
    %2424 = vadd.xlane.f32.xlu0 %v2423
    %v2425 = vpop.xlane.xlu0 %2424
    %v2426 = vsel %vm290, %v2367, 0.0
    %2427 = vadd.xlane.f32.xlu0 %v2426
    %v2428 = vpop.xlane.xlu0 %2427
    %v2429 = vsel %vm290, %v2369, 0.0
    %2430 = vadd.xlane.f32.xlu0 %v2429
    %v2431 = vpop.xlane.xlu0 %2430
    %v2432 = vsel %vm290, %v2371, 0.0
    %2433 = vadd.xlane.f32.xlu0 %v2432
    %v2434 = vpop.xlane.xlu0 %2433
    %v2435 = vsel %vm290, %v2373, 0.0
    %2436 = vadd.xlane.f32.xlu0 %v2435
    %v2437 = vpop.xlane.xlu0 %2436
    %v2438 = vmax.f32 %v2392, 1e-24
    %v2439 = vmax.f32 %v2395, 1e-24
    %v2440 = vmax.f32 %v2398, 1e-24
    %v2441 = vmax.f32 %v2401, 1e-24
    %v2442 = vmax.f32 %v2404, 1e-24
    %v2443 = vmax.f32 %v2407, 1e-24
    %v2444 = vmax.f32 %v2410, 1e-24
    %v2445 = vmax.f32 %v2413, 1e-24
    %v2446 = vmax.f32 %v2416, 1e-24
    %v2447 = vmax.f32 %v2419, 1e-24
    %v2448 = vmax.f32 %v2422, 1e-24
    %v2449 = vmax.f32 %v2425, 1e-24
    %v2450 = vmax.f32 %v2428, 1e-24
    %v2451 = vmax.f32 %v2431, 1e-24
    %v2452 = vmax.f32 %v2434, 1e-24
    %v2453 = vmax.f32 %v2437, 1e-24
    %v2454 = vrsqrt.pop %v2438
    %v2455 = vrsqrt.pop %v2439
    %v2456 = vrsqrt.pop %v2440
    %v2457 = vrsqrt.pop %v2441
    %v2458 = vrsqrt.pop %v2442
    %v2459 = vrsqrt.pop %v2443
    %v2460 = vrsqrt.pop %v2444
    %v2461 = vrsqrt.pop %v2445
    %v2462 = vrsqrt.pop %v2446
    %v2463 = vrsqrt.pop %v2447
    %v2464 = vrsqrt.pop %v2448
    %v2465 = vrsqrt.pop %v2449
    %v2466 = vrsqrt.pop %v2450
    %v2467 = vrsqrt.pop %v2451
    %v2468 = vrsqrt.pop %v2452
    %v2469 = vrsqrt.pop %v2453
    %v2470 = vmul.f32 %v196, %v2454
    %v2471 = vmul.f32 %v201, %v2455
    %v2472 = vmul.f32 %v206, %v2456
    %v2473 = vmul.f32 %v211, %v2457
    %v2474 = vmul.f32 %v216, %v2458
    %v2475 = vmul.f32 %v221, %v2459
    %v2476 = vmul.f32 %v226, %v2460
    %v2477 = vmul.f32 %v231, %v2461
    %v2478 = vmul.f32 %v236, %v2462
    %v2479 = vmul.f32 %v241, %v2463
    %v2480 = vmul.f32 %v246, %v2464
    %v2481 = vmul.f32 %v251, %v2465
    %v2482 = vmul.f32 %v256, %v2466
    %v2483 = vmul.f32 %v261, %v2467
    %v2484 = vmul.f32 %v266, %v2468
    %v2485 = vmul.f32 %v271, %v2469
    %s2486 = sld [smem:[#allocation2 + $0x1]]
    %v2487 = vstv %s2486
    %v2488 = vmul.f32 %v2326, %v2487
    %v2489 = vmul.f32 %v2327, %v2487
    %v2490 = vmul.f32 %v2328, %v2487
    %v2491 = vmul.f32 %v2329, %v2487
    %v2492 = vmul.f32 %v2330, %v2487
    %v2493 = vmul.f32 %v2331, %v2487
    %v2494 = vmul.f32 %v2332, %v2487
    %v2495 = vmul.f32 %v2333, %v2487
    %v2496 = vmul.f32 %v2334, %v2487
    %v2497 = vmul.f32 %v2335, %v2487
    %v2498 = vmul.f32 %v2336, %v2487
    %v2499 = vmul.f32 %v2337, %v2487
    %v2500 = vmul.f32 %v2338, %v2487
    %v2501 = vmul.f32 %v2339, %v2487
    %v2502 = vmul.f32 %v2340, %v2487
    %v2503 = vmul.f32 %v2341, %v2487
    %s2504 = scalar_lea.vmem [#allocation5], 128
    %v2505 = vld [vmem:[%s2504] sm:$0xff]
    %v2506 = vld [vmem:[%s2504 + $0x8] sm:$0xff]
    %v2507 = vld [vmem:[%s2504 + $0x10] sm:$0xff]
    %v2508 = vld [vmem:[%s2504 + $0x18] sm:$0xff]
    %v2509 = vld [vmem:[%s2504 + $0x20] sm:$0xff]
    %v2510 = vld [vmem:[%s2504 + $0x28] sm:$0xff]
    %v2511 = vld [vmem:[%s2504 + $0x30] sm:$0xff]
    %v2512 = vld [vmem:[%s2504 + $0x38] sm:$0xff]
    %v2513 = vld [vmem:[%s2504 + $0x40] sm:$0xff]
    %v2514 = vld [vmem:[%s2504 + $0x48] sm:$0xff]
    %v2515 = vld [vmem:[%s2504 + $0x50] sm:$0xff]
    %v2516 = vld [vmem:[%s2504 + $0x58] sm:$0xff]
    %v2517 = vld [vmem:[%s2504 + $0x60] sm:$0xff]
    %v2518 = vld [vmem:[%s2504 + $0x68] sm:$0xff]
    %v2519 = vld [vmem:[%s2504 + $0x70] sm:$0xff]
    %v2520 = vld [vmem:[%s2504 + $0x78] sm:$0xff]
    %2523 = vrot.lane.b32.xlu0 %v2488, 120
    %v2524 = vpop.permute.xlu0 %2523
    %2525 = vrot.lane.b32.xlu0 %v2489, 120
    %v2526 = vpop.permute.xlu0 %2525
    %2529 = vrot.lane.b32.xlu0 %v2470, 88
    %v2530 = vpop.permute.xlu0 %2529
    %2531 = vrot.lane.b32.xlu0 %v2471, 88
    %v2532 = vpop.permute.xlu0 %2531
    %v2533 = vsel %vm290, %v2524, 0
    %v2535 = vsel %vm290, %v2526, 0
    %v2537 = vsel %vm290, %v2530, 0
    %v2539 = vsel %vm290, %v2532, 0
    %2541 = vmatprep.subr.mxu0 0.0
    %2542 = vmatpush1.xpose.msra.mxu0 0.0
    %2543 = vmatprep.subr.mxu0 0.0
    %2544 = vmatpush1.xpose.msra.mxu0 0.0
    %2545 = vmatprep.subr.mxu0 0.0
    %2546 = vmatpush1.xpose.msra.mxu0 0.0
    %2547 = vmatprep.subr.mxu0 0.0
    %2548 = vmatpush1.xpose.msra.mxu0 0.0
    %2549 = vmatprep.subr.mxu0 0.0
    %2550 = vmatpush1.xpose.msra.mxu0 0.0
    %2551 = vmatprep.subr.mxu0 0.0
    %2552 = vmatpush1.xpose.msra.mxu0 0.0
    %2553 = vmatprep.subr.mxu0 0.0
    %2554 = vmatpush1.xpose.msra.mxu0 0.0
    %2555 = vmatprep.subr.mxu0 0.0
    %2556 = vmatpush1.xpose.msra.mxu0 0.0
    %2557 = vmatprep.subr.mxu0 0.0
    %2558 = vmatpush1.xpose.msra.mxu0 0.0
    %2559 = vmatprep.subr.mxu0 0.0
    %2560 = vmatpush1.xpose.msra.mxu0 0.0
    %2561 = vmatprep.subr.mxu0 0.0
    %2562 = vmatpush1.xpose.msra.mxu0 0.0
    %2563 = vmatprep.subr.mxu0 0.0
    %2564 = vmatpush1.xpose.msra.mxu0 0.0
    %2565 = vmatprep.subr.mxu0 0.0
    %2566 = vmatpush1.xpose.msra.mxu0 0.0
    %2567 = vmatprep.subr.mxu0 0.0
    %2568 = vmatpush1.xpose.msra.mxu0 0.0
    %2569 = vmatprep.subr.mxu0 0.0
    %2570 = vmatpush1.xpose.msra.mxu0 %v2539
    %2571 = vmatprep.subr.mxu0 0.0
    %2572 = vmatpush1.xpose.msra.mxu0 %v2537
    %2573 = vmatprep.subr.mxu0 0.0
    %2574 = vmatpush2.xpose.msra.mxu0 0.0
    %2575 = vmatprep.subr.mxu0 0.0
    %2576 = vmatpush2.xpose.msra.mxu0 0.0
    %2577 = vmatprep.subr.mxu0 0.0
    %2578 = vmatpush2.xpose.msra.mxu0 0.0
    %2579 = vmatprep.subr.mxu0 0.0
    %2580 = vmatpush2.xpose.msra.mxu0 0.0
    %2581 = vmatprep.subr.mxu0 0.0
    %2582 = vmatpush2.xpose.msra.mxu0 0.0
    %2583 = vmatprep.subr.mxu0 0.0
    %2584 = vmatpush2.xpose.msra.mxu0 0.0
    %2585 = vmatprep.subr.mxu0 0.0
    %2586 = vmatpush2.xpose.msra.mxu0 0.0
    %2587 = vmatprep.subr.mxu0 0.0
    %2588 = vmatpush2.xpose.msra.mxu0 0.0
    %2589 = vmatprep.subr.mxu0 0.0
    %2590 = vmatpush2.xpose.msra.mxu0 0.0
    %2591 = vmatprep.subr.mxu0 0.0
    %2592 = vmatpush2.xpose.msra.mxu0 0.0
    %2593 = vmatprep.subr.mxu0 0.0
    %2594 = vmatpush2.xpose.msra.mxu0 0.0
    %2595 = vmatprep.subr.mxu0 0.0
    %2596 = vmatpush2.xpose.msra.mxu0 0.0
    %2597 = vmatprep.subr.mxu0 0.0
    %2598 = vmatpush2.xpose.msra.mxu0 0.0
    %2599 = vmatprep.subr.mxu0 0.0
    %2600 = vmatpush2.xpose.msra.mxu0 0.0
    %2601 = vmatprep.subr.mxu0 0.0
    %2602 = vmatpush2.xpose.msra.mxu0 0.0
    %2603 = vmatprep.subr.mxu0 0.0
    %2604 = vmatpush2.xpose.msra.mxu0 0.0
    %2605 = vmatprep.mubr.f32.mxu0 0.0
    %2606 = vmatmul.mubr.f32.gmra.mxu0 %v2533
    %v2607 = vpop.f32.mrf.mxu0
    %v2608 = vadd.f32 %v2505, %v2607
    %v2609 = vpop.f32.mrf.mxu0
    %2610 = vmatprep.mubr.f32.mxu0 0.0
    %2611 = vmatmul.mubr.f32.gmra.mxu0 %v2535
    %v2612 = vpop.f32.mrf.mxu0
    %v2613 = vadd.f32 %v2506, %v2612
    %v2614 = vpop.f32.mrf.mxu0
    %2615 = vdwg.mxu0
    %2618 = vrot.lane.b32.xlu0 %v2490, 120
    %v2619 = vpop.permute.xlu0 %2618
    %2620 = vrot.lane.b32.xlu0 %v2491, 120
    %v2621 = vpop.permute.xlu0 %2620
    %2624 = vrot.lane.b32.xlu0 %v2472, 88
    %v2625 = vpop.permute.xlu0 %2624
    %2626 = vrot.lane.b32.xlu0 %v2473, 88
    %v2627 = vpop.permute.xlu0 %2626
    %v2628 = vsel %vm290, %v2619, 0
    %v2630 = vsel %vm290, %v2621, 0
    %v2632 = vsel %vm290, %v2625, 0
    %v2634 = vsel %vm290, %v2627, 0
    %2636 = vmatprep.subr.mxu0 0.0
    %2637 = vmatpush1.xpose.msra.mxu0 0.0
    %2638 = vmatprep.subr.mxu0 0.0
    %2639 = vmatpush1.xpose.msra.mxu0 0.0
    %2640 = vmatprep.subr.mxu0 0.0
    %2641 = vmatpush1.xpose.msra.mxu0 0.0
    %2642 = vmatprep.subr.mxu0 0.0
    %2643 = vmatpush1.xpose.msra.mxu0 0.0
    %2644 = vmatprep.subr.mxu0 0.0
    %2645 = vmatpush1.xpose.msra.mxu0 0.0
    %2646 = vmatprep.subr.mxu0 0.0
    %2647 = vmatpush1.xpose.msra.mxu0 0.0
    %2648 = vmatprep.subr.mxu0 0.0
    %2649 = vmatpush1.xpose.msra.mxu0 0.0
    %2650 = vmatprep.subr.mxu0 0.0
    %2651 = vmatpush1.xpose.msra.mxu0 0.0
    %2652 = vmatprep.subr.mxu0 0.0
    %2653 = vmatpush1.xpose.msra.mxu0 0.0
    %2654 = vmatprep.subr.mxu0 0.0
    %2655 = vmatpush1.xpose.msra.mxu0 0.0
    %2656 = vmatprep.subr.mxu0 0.0
    %2657 = vmatpush1.xpose.msra.mxu0 0.0
    %2658 = vmatprep.subr.mxu0 0.0
    %2659 = vmatpush1.xpose.msra.mxu0 0.0
    %2660 = vmatprep.subr.mxu0 0.0
    %2661 = vmatpush1.xpose.msra.mxu0 0.0
    %2662 = vmatprep.subr.mxu0 0.0
    %2663 = vmatpush1.xpose.msra.mxu0 0.0
    %2664 = vmatprep.subr.mxu0 0.0
    %2665 = vmatpush1.xpose.msra.mxu0 %v2634
    %2666 = vmatprep.subr.mxu0 0.0
    %2667 = vmatpush1.xpose.msra.mxu0 %v2632
    %2668 = vmatprep.subr.mxu0 0.0
    %2669 = vmatpush2.xpose.msra.mxu0 0.0
    %2670 = vmatprep.subr.mxu0 0.0
    %2671 = vmatpush2.xpose.msra.mxu0 0.0
    %2672 = vmatprep.subr.mxu0 0.0
    %2673 = vmatpush2.xpose.msra.mxu0 0.0
    %2674 = vmatprep.subr.mxu0 0.0
    %2675 = vmatpush2.xpose.msra.mxu0 0.0
    %2676 = vmatprep.subr.mxu0 0.0
    %2677 = vmatpush2.xpose.msra.mxu0 0.0
    %2678 = vmatprep.subr.mxu0 0.0
    %2679 = vmatpush2.xpose.msra.mxu0 0.0
    %2680 = vmatprep.subr.mxu0 0.0
    %2681 = vmatpush2.xpose.msra.mxu0 0.0
    %2682 = vmatprep.subr.mxu0 0.0
    %2683 = vmatpush2.xpose.msra.mxu0 0.0
    %2684 = vmatprep.subr.mxu0 0.0
    %2685 = vmatpush2.xpose.msra.mxu0 0.0
    %2686 = vmatprep.subr.mxu0 0.0
    %2687 = vmatpush2.xpose.msra.mxu0 0.0
    %2688 = vmatprep.subr.mxu0 0.0
    %2689 = vmatpush2.xpose.msra.mxu0 0.0
    %2690 = vmatprep.subr.mxu0 0.0
    %2691 = vmatpush2.xpose.msra.mxu0 0.0
    %2692 = vmatprep.subr.mxu0 0.0
    %2693 = vmatpush2.xpose.msra.mxu0 0.0
    %2694 = vmatprep.subr.mxu0 0.0
    %2695 = vmatpush2.xpose.msra.mxu0 0.0
    %2696 = vmatprep.subr.mxu0 0.0
    %2697 = vmatpush2.xpose.msra.mxu0 0.0
    %2698 = vmatprep.subr.mxu0 0.0
    %2699 = vmatpush2.xpose.msra.mxu0 0.0
    %2700 = vmatprep.mubr.f32.mxu0 0.0
    %2701 = vmatmul.mubr.f32.gmra.mxu0 %v2628
    %v2702 = vpop.f32.mrf.mxu0
    %v2703 = vadd.f32 %v2507, %v2702
    %v2704 = vpop.f32.mrf.mxu0
    %2705 = vmatprep.mubr.f32.mxu0 0.0
    %2706 = vmatmul.mubr.f32.gmra.mxu0 %v2630
    %v2707 = vpop.f32.mrf.mxu0
    %v2708 = vadd.f32 %v2508, %v2707
    %v2709 = vpop.f32.mrf.mxu0
    %2710 = vdwg.mxu0
    %2713 = vrot.lane.b32.xlu0 %v2492, 120
    %v2714 = vpop.permute.xlu0 %2713
    %2715 = vrot.lane.b32.xlu0 %v2493, 120
    %v2716 = vpop.permute.xlu0 %2715
    %2719 = vrot.lane.b32.xlu0 %v2474, 88
    %v2720 = vpop.permute.xlu0 %2719
    %2721 = vrot.lane.b32.xlu0 %v2475, 88
    %v2722 = vpop.permute.xlu0 %2721
    %v2723 = vsel %vm290, %v2714, 0
    %v2725 = vsel %vm290, %v2716, 0
    %v2727 = vsel %vm290, %v2720, 0
    %v2729 = vsel %vm290, %v2722, 0
    %2731 = vmatprep.subr.mxu0 0.0
    %2732 = vmatpush1.xpose.msra.mxu0 0.0
    %2733 = vmatprep.subr.mxu0 0.0
    %2734 = vmatpush1.xpose.msra.mxu0 0.0
    %2735 = vmatprep.subr.mxu0 0.0
    %2736 = vmatpush1.xpose.msra.mxu0 0.0
    %2737 = vmatprep.subr.mxu0 0.0
    %2738 = vmatpush1.xpose.msra.mxu0 0.0
    %2739 = vmatprep.subr.mxu0 0.0
    %2740 = vmatpush1.xpose.msra.mxu0 0.0
    %2741 = vmatprep.subr.mxu0 0.0
    %2742 = vmatpush1.xpose.msra.mxu0 0.0
    %2743 = vmatprep.subr.mxu0 0.0
    %2744 = vmatpush1.xpose.msra.mxu0 0.0
    %2745 = vmatprep.subr.mxu0 0.0
    %2746 = vmatpush1.xpose.msra.mxu0 0.0
    %2747 = vmatprep.subr.mxu0 0.0
    %2748 = vmatpush1.xpose.msra.mxu0 0.0
    %2749 = vmatprep.subr.mxu0 0.0
    %2750 = vmatpush1.xpose.msra.mxu0 0.0
    %2751 = vmatprep.subr.mxu0 0.0
    %2752 = vmatpush1.xpose.msra.mxu0 0.0
    %2753 = vmatprep.subr.mxu0 0.0
    %2754 = vmatpush1.xpose.msra.mxu0 0.0
    %2755 = vmatprep.subr.mxu0 0.0
    %2756 = vmatpush1.xpose.msra.mxu0 0.0
    %2757 = vmatprep.subr.mxu0 0.0
    %2758 = vmatpush1.xpose.msra.mxu0 0.0
    %2759 = vmatprep.subr.mxu0 0.0
    %2760 = vmatpush1.xpose.msra.mxu0 %v2729
    %2761 = vmatprep.subr.mxu0 0.0
    %2762 = vmatpush1.xpose.msra.mxu0 %v2727
    %2763 = vmatprep.subr.mxu0 0.0
    %2764 = vmatpush2.xpose.msra.mxu0 0.0
    %2765 = vmatprep.subr.mxu0 0.0
    %2766 = vmatpush2.xpose.msra.mxu0 0.0
    %2767 = vmatprep.subr.mxu0 0.0
    %2768 = vmatpush2.xpose.msra.mxu0 0.0
    %2769 = vmatprep.subr.mxu0 0.0
    %2770 = vmatpush2.xpose.msra.mxu0 0.0
    %2771 = vmatprep.subr.mxu0 0.0
    %2772 = vmatpush2.xpose.msra.mxu0 0.0
    %2773 = vmatprep.subr.mxu0 0.0
    %2774 = vmatpush2.xpose.msra.mxu0 0.0
    %2775 = vmatprep.subr.mxu0 0.0
    %2776 = vmatpush2.xpose.msra.mxu0 0.0
    %2777 = vmatprep.subr.mxu0 0.0
    %2778 = vmatpush2.xpose.msra.mxu0 0.0
    %2779 = vmatprep.subr.mxu0 0.0
    %2780 = vmatpush2.xpose.msra.mxu0 0.0
    %2781 = vmatprep.subr.mxu0 0.0
    %2782 = vmatpush2.xpose.msra.mxu0 0.0
    %2783 = vmatprep.subr.mxu0 0.0
    %2784 = vmatpush2.xpose.msra.mxu0 0.0
    %2785 = vmatprep.subr.mxu0 0.0
    %2786 = vmatpush2.xpose.msra.mxu0 0.0
    %2787 = vmatprep.subr.mxu0 0.0
    %2788 = vmatpush2.xpose.msra.mxu0 0.0
    %2789 = vmatprep.subr.mxu0 0.0
    %2790 = vmatpush2.xpose.msra.mxu0 0.0
    %2791 = vmatprep.subr.mxu0 0.0
    %2792 = vmatpush2.xpose.msra.mxu0 0.0
    %2793 = vmatprep.subr.mxu0 0.0
    %2794 = vmatpush2.xpose.msra.mxu0 0.0
    %2795 = vmatprep.mubr.f32.mxu0 0.0
    %2796 = vmatmul.mubr.f32.gmra.mxu0 %v2723
    %v2797 = vpop.f32.mrf.mxu0
    %v2798 = vadd.f32 %v2509, %v2797
    %v2799 = vpop.f32.mrf.mxu0
    %2800 = vmatprep.mubr.f32.mxu0 0.0
    %2801 = vmatmul.mubr.f32.gmra.mxu0 %v2725
    %v2802 = vpop.f32.mrf.mxu0
    %v2803 = vadd.f32 %v2510, %v2802
    %v2804 = vpop.f32.mrf.mxu0
    %2805 = vdwg.mxu0
    %2808 = vrot.lane.b32.xlu0 %v2494, 120
    %v2809 = vpop.permute.xlu0 %2808
    %2810 = vrot.lane.b32.xlu0 %v2495, 120
    %v2811 = vpop.permute.xlu0 %2810
    %2814 = vrot.lane.b32.xlu0 %v2476, 88
    %v2815 = vpop.permute.xlu0 %2814
    %2816 = vrot.lane.b32.xlu0 %v2477, 88
    %v2817 = vpop.permute.xlu0 %2816
    %v2818 = vsel %vm290, %v2809, 0
    %v2820 = vsel %vm290, %v2811, 0
    %v2822 = vsel %vm290, %v2815, 0
    %v2824 = vsel %vm290, %v2817, 0
    %2826 = vmatprep.subr.mxu0 0.0
    %2827 = vmatpush1.xpose.msra.mxu0 0.0
    %2828 = vmatprep.subr.mxu0 0.0
    %2829 = vmatpush1.xpose.msra.mxu0 0.0
    %2830 = vmatprep.subr.mxu0 0.0
    %2831 = vmatpush1.xpose.msra.mxu0 0.0
    %2832 = vmatprep.subr.mxu0 0.0
    %2833 = vmatpush1.xpose.msra.mxu0 0.0
    %2834 = vmatprep.subr.mxu0 0.0
    %2835 = vmatpush1.xpose.msra.mxu0 0.0
    %2836 = vmatprep.subr.mxu0 0.0
    %2837 = vmatpush1.xpose.msra.mxu0 0.0
    %2838 = vmatprep.subr.mxu0 0.0
    %2839 = vmatpush1.xpose.msra.mxu0 0.0
    %2840 = vmatprep.subr.mxu0 0.0
    %2841 = vmatpush1.xpose.msra.mxu0 0.0
    %2842 = vmatprep.subr.mxu0 0.0
    %2843 = vmatpush1.xpose.msra.mxu0 0.0
    %2844 = vmatprep.subr.mxu0 0.0
    %2845 = vmatpush1.xpose.msra.mxu0 0.0
    %2846 = vmatprep.subr.mxu0 0.0
    %2847 = vmatpush1.xpose.msra.mxu0 0.0
    %2848 = vmatprep.subr.mxu0 0.0
    %2849 = vmatpush1.xpose.msra.mxu0 0.0
    %2850 = vmatprep.subr.mxu0 0.0
    %2851 = vmatpush1.xpose.msra.mxu0 0.0
    %2852 = vmatprep.subr.mxu0 0.0
    %2853 = vmatpush1.xpose.msra.mxu0 0.0
    %2854 = vmatprep.subr.mxu0 0.0
    %2855 = vmatpush1.xpose.msra.mxu0 %v2824
    %2856 = vmatprep.subr.mxu0 0.0
    %2857 = vmatpush1.xpose.msra.mxu0 %v2822
    %2858 = vmatprep.subr.mxu0 0.0
    %2859 = vmatpush2.xpose.msra.mxu0 0.0
    %2860 = vmatprep.subr.mxu0 0.0
    %2861 = vmatpush2.xpose.msra.mxu0 0.0
    %2862 = vmatprep.subr.mxu0 0.0
    %2863 = vmatpush2.xpose.msra.mxu0 0.0
    %2864 = vmatprep.subr.mxu0 0.0
    %2865 = vmatpush2.xpose.msra.mxu0 0.0
    %2866 = vmatprep.subr.mxu0 0.0
    %2867 = vmatpush2.xpose.msra.mxu0 0.0
    %2868 = vmatprep.subr.mxu0 0.0
    %2869 = vmatpush2.xpose.msra.mxu0 0.0
    %2870 = vmatprep.subr.mxu0 0.0
    %2871 = vmatpush2.xpose.msra.mxu0 0.0
    %2872 = vmatprep.subr.mxu0 0.0
    %2873 = vmatpush2.xpose.msra.mxu0 0.0
    %2874 = vmatprep.subr.mxu0 0.0
    %2875 = vmatpush2.xpose.msra.mxu0 0.0
    %2876 = vmatprep.subr.mxu0 0.0
    %2877 = vmatpush2.xpose.msra.mxu0 0.0
    %2878 = vmatprep.subr.mxu0 0.0
    %2879 = vmatpush2.xpose.msra.mxu0 0.0
    %2880 = vmatprep.subr.mxu0 0.0
    %2881 = vmatpush2.xpose.msra.mxu0 0.0
    %2882 = vmatprep.subr.mxu0 0.0
    %2883 = vmatpush2.xpose.msra.mxu0 0.0
    %2884 = vmatprep.subr.mxu0 0.0
    %2885 = vmatpush2.xpose.msra.mxu0 0.0
    %2886 = vmatprep.subr.mxu0 0.0
    %2887 = vmatpush2.xpose.msra.mxu0 0.0
    %2888 = vmatprep.subr.mxu0 0.0
    %2889 = vmatpush2.xpose.msra.mxu0 0.0
    %2890 = vmatprep.mubr.f32.mxu0 0.0
    %2891 = vmatmul.mubr.f32.gmra.mxu0 %v2818
    %v2892 = vpop.f32.mrf.mxu0
    %v2893 = vadd.f32 %v2511, %v2892
    %v2894 = vpop.f32.mrf.mxu0
    %2895 = vmatprep.mubr.f32.mxu0 0.0
    %2896 = vmatmul.mubr.f32.gmra.mxu0 %v2820
    %v2897 = vpop.f32.mrf.mxu0
    %v2898 = vadd.f32 %v2512, %v2897
    %v2899 = vpop.f32.mrf.mxu0
    %2900 = vdwg.mxu0
    %2903 = vrot.lane.b32.xlu0 %v2496, 120
    %v2904 = vpop.permute.xlu0 %2903
    %2905 = vrot.lane.b32.xlu0 %v2497, 120
    %v2906 = vpop.permute.xlu0 %2905
    %2909 = vrot.lane.b32.xlu0 %v2478, 88
    %v2910 = vpop.permute.xlu0 %2909
    %2911 = vrot.lane.b32.xlu0 %v2479, 88
    %v2912 = vpop.permute.xlu0 %2911
    %v2913 = vsel %vm290, %v2904, 0
    %v2915 = vsel %vm290, %v2906, 0
    %v2917 = vsel %vm290, %v2910, 0
    %v2919 = vsel %vm290, %v2912, 0
    %2921 = vmatprep.subr.mxu0 0.0
    %2922 = vmatpush1.xpose.msra.mxu0 0.0
    %2923 = vmatprep.subr.mxu0 0.0
    %2924 = vmatpush1.xpose.msra.mxu0 0.0
    %2925 = vmatprep.subr.mxu0 0.0
    %2926 = vmatpush1.xpose.msra.mxu0 0.0
    %2927 = vmatprep.subr.mxu0 0.0
    %2928 = vmatpush1.xpose.msra.mxu0 0.0
    %2929 = vmatprep.subr.mxu0 0.0
    %2930 = vmatpush1.xpose.msra.mxu0 0.0
    %2931 = vmatprep.subr.mxu0 0.0
    %2932 = vmatpush1.xpose.msra.mxu0 0.0
    %2933 = vmatprep.subr.mxu0 0.0
    %2934 = vmatpush1.xpose.msra.mxu0 0.0
    %2935 = vmatprep.subr.mxu0 0.0
    %2936 = vmatpush1.xpose.msra.mxu0 0.0
    %2937 = vmatprep.subr.mxu0 0.0
    %2938 = vmatpush1.xpose.msra.mxu0 0.0
    %2939 = vmatprep.subr.mxu0 0.0
    %2940 = vmatpush1.xpose.msra.mxu0 0.0
    %2941 = vmatprep.subr.mxu0 0.0
    %2942 = vmatpush1.xpose.msra.mxu0 0.0
    %2943 = vmatprep.subr.mxu0 0.0
    %2944 = vmatpush1.xpose.msra.mxu0 0.0
    %2945 = vmatprep.subr.mxu0 0.0
    %2946 = vmatpush1.xpose.msra.mxu0 0.0
    %2947 = vmatprep.subr.mxu0 0.0
    %2948 = vmatpush1.xpose.msra.mxu0 0.0
    %2949 = vmatprep.subr.mxu0 0.0
    %2950 = vmatpush1.xpose.msra.mxu0 %v2919
    %2951 = vmatprep.subr.mxu0 0.0
    %2952 = vmatpush1.xpose.msra.mxu0 %v2917
    %2953 = vmatprep.subr.mxu0 0.0
    %2954 = vmatpush2.xpose.msra.mxu0 0.0
    %2955 = vmatprep.subr.mxu0 0.0
    %2956 = vmatpush2.xpose.msra.mxu0 0.0
    %2957 = vmatprep.subr.mxu0 0.0
    %2958 = vmatpush2.xpose.msra.mxu0 0.0
    %2959 = vmatprep.subr.mxu0 0.0
    %2960 = vmatpush2.xpose.msra.mxu0 0.0
    %2961 = vmatprep.subr.mxu0 0.0
    %2962 = vmatpush2.xpose.msra.mxu0 0.0
    %2963 = vmatprep.subr.mxu0 0.0
    %2964 = vmatpush2.xpose.msra.mxu0 0.0
    %2965 = vmatprep.subr.mxu0 0.0
    %2966 = vmatpush2.xpose.msra.mxu0 0.0
    %2967 = vmatprep.subr.mxu0 0.0
    %2968 = vmatpush2.xpose.msra.mxu0 0.0
    %2969 = vmatprep.subr.mxu0 0.0
    %2970 = vmatpush2.xpose.msra.mxu0 0.0
    %2971 = vmatprep.subr.mxu0 0.0
    %2972 = vmatpush2.xpose.msra.mxu0 0.0
    %2973 = vmatprep.subr.mxu0 0.0
    %2974 = vmatpush2.xpose.msra.mxu0 0.0
    %2975 = vmatprep.subr.mxu0 0.0
    %2976 = vmatpush2.xpose.msra.mxu0 0.0
    %2977 = vmatprep.subr.mxu0 0.0
    %2978 = vmatpush2.xpose.msra.mxu0 0.0
    %2979 = vmatprep.subr.mxu0 0.0
    %2980 = vmatpush2.xpose.msra.mxu0 0.0
    %2981 = vmatprep.subr.mxu0 0.0
    %2982 = vmatpush2.xpose.msra.mxu0 0.0
    %2983 = vmatprep.subr.mxu0 0.0
    %2984 = vmatpush2.xpose.msra.mxu0 0.0
    %2985 = vmatprep.mubr.f32.mxu0 0.0
    %2986 = vmatmul.mubr.f32.gmra.mxu0 %v2913
    %v2987 = vpop.f32.mrf.mxu0
    %v2988 = vadd.f32 %v2513, %v2987
    %v2989 = vpop.f32.mrf.mxu0
    %2990 = vmatprep.mubr.f32.mxu0 0.0
    %2991 = vmatmul.mubr.f32.gmra.mxu0 %v2915
    %v2992 = vpop.f32.mrf.mxu0
    %v2993 = vadd.f32 %v2514, %v2992
    %v2994 = vpop.f32.mrf.mxu0
    %2995 = vdwg.mxu0
    %2998 = vrot.lane.b32.xlu0 %v2498, 120
    %v2999 = vpop.permute.xlu0 %2998
    %3000 = vrot.lane.b32.xlu0 %v2499, 120
    %v3001 = vpop.permute.xlu0 %3000
    %3004 = vrot.lane.b32.xlu0 %v2480, 88
    %v3005 = vpop.permute.xlu0 %3004
    %3006 = vrot.lane.b32.xlu0 %v2481, 88
    %v3007 = vpop.permute.xlu0 %3006
    %v3008 = vsel %vm290, %v2999, 0
    %v3010 = vsel %vm290, %v3001, 0
    %v3012 = vsel %vm290, %v3005, 0
    %v3014 = vsel %vm290, %v3007, 0
    %3016 = vmatprep.subr.mxu0 0.0
    %3017 = vmatpush1.xpose.msra.mxu0 0.0
    %3018 = vmatprep.subr.mxu0 0.0
    %3019 = vmatpush1.xpose.msra.mxu0 0.0
    %3020 = vmatprep.subr.mxu0 0.0
    %3021 = vmatpush1.xpose.msra.mxu0 0.0
    %3022 = vmatprep.subr.mxu0 0.0
    %3023 = vmatpush1.xpose.msra.mxu0 0.0
    %3024 = vmatprep.subr.mxu0 0.0
    %3025 = vmatpush1.xpose.msra.mxu0 0.0
    %3026 = vmatprep.subr.mxu0 0.0
    %3027 = vmatpush1.xpose.msra.mxu0 0.0
    %3028 = vmatprep.subr.mxu0 0.0
    %3029 = vmatpush1.xpose.msra.mxu0 0.0
    %3030 = vmatprep.subr.mxu0 0.0
    %3031 = vmatpush1.xpose.msra.mxu0 0.0
    %3032 = vmatprep.subr.mxu0 0.0
    %3033 = vmatpush1.xpose.msra.mxu0 0.0
    %3034 = vmatprep.subr.mxu0 0.0
    %3035 = vmatpush1.xpose.msra.mxu0 0.0
    %3036 = vmatprep.subr.mxu0 0.0
    %3037 = vmatpush1.xpose.msra.mxu0 0.0
    %3038 = vmatprep.subr.mxu0 0.0
    %3039 = vmatpush1.xpose.msra.mxu0 0.0
    %3040 = vmatprep.subr.mxu0 0.0
    %3041 = vmatpush1.xpose.msra.mxu0 0.0
    %3042 = vmatprep.subr.mxu0 0.0
    %3043 = vmatpush1.xpose.msra.mxu0 0.0
    %3044 = vmatprep.subr.mxu0 0.0
    %3045 = vmatpush1.xpose.msra.mxu0 %v3014
    %3046 = vmatprep.subr.mxu0 0.0
    %3047 = vmatpush1.xpose.msra.mxu0 %v3012
    %3048 = vmatprep.subr.mxu0 0.0
    %3049 = vmatpush2.xpose.msra.mxu0 0.0
    %3050 = vmatprep.subr.mxu0 0.0
    %3051 = vmatpush2.xpose.msra.mxu0 0.0
    %3052 = vmatprep.subr.mxu0 0.0
    %3053 = vmatpush2.xpose.msra.mxu0 0.0
    %3054 = vmatprep.subr.mxu0 0.0
    %3055 = vmatpush2.xpose.msra.mxu0 0.0
    %3056 = vmatprep.subr.mxu0 0.0
    %3057 = vmatpush2.xpose.msra.mxu0 0.0
    %3058 = vmatprep.subr.mxu0 0.0
    %3059 = vmatpush2.xpose.msra.mxu0 0.0
    %3060 = vmatprep.subr.mxu0 0.0
    %3061 = vmatpush2.xpose.msra.mxu0 0.0
    %3062 = vmatprep.subr.mxu0 0.0
    %3063 = vmatpush2.xpose.msra.mxu0 0.0
    %3064 = vmatprep.subr.mxu0 0.0
    %3065 = vmatpush2.xpose.msra.mxu0 0.0
    %3066 = vmatprep.subr.mxu0 0.0
    %3067 = vmatpush2.xpose.msra.mxu0 0.0
    %3068 = vmatprep.subr.mxu0 0.0
    %3069 = vmatpush2.xpose.msra.mxu0 0.0
    %3070 = vmatprep.subr.mxu0 0.0
    %3071 = vmatpush2.xpose.msra.mxu0 0.0
    %3072 = vmatprep.subr.mxu0 0.0
    %3073 = vmatpush2.xpose.msra.mxu0 0.0
    %3074 = vmatprep.subr.mxu0 0.0
    %3075 = vmatpush2.xpose.msra.mxu0 0.0
    %3076 = vmatprep.subr.mxu0 0.0
    %3077 = vmatpush2.xpose.msra.mxu0 0.0
    %3078 = vmatprep.subr.mxu0 0.0
    %3079 = vmatpush2.xpose.msra.mxu0 0.0
    %3080 = vmatprep.mubr.f32.mxu0 0.0
    %3081 = vmatmul.mubr.f32.gmra.mxu0 %v3008
    %v3082 = vpop.f32.mrf.mxu0
    %v3083 = vadd.f32 %v2515, %v3082
    %v3084 = vpop.f32.mrf.mxu0
    %3085 = vmatprep.mubr.f32.mxu0 0.0
    %3086 = vmatmul.mubr.f32.gmra.mxu0 %v3010
    %v3087 = vpop.f32.mrf.mxu0
    %v3088 = vadd.f32 %v2516, %v3087
    %v3089 = vpop.f32.mrf.mxu0
    %3090 = vdwg.mxu0
    %3093 = vrot.lane.b32.xlu0 %v2500, 120
    %v3094 = vpop.permute.xlu0 %3093
    %3095 = vrot.lane.b32.xlu0 %v2501, 120
    %v3096 = vpop.permute.xlu0 %3095
    %3099 = vrot.lane.b32.xlu0 %v2482, 88
    %v3100 = vpop.permute.xlu0 %3099
    %3101 = vrot.lane.b32.xlu0 %v2483, 88
    %v3102 = vpop.permute.xlu0 %3101
    %v3103 = vsel %vm290, %v3094, 0
    %v3105 = vsel %vm290, %v3096, 0
    %v3107 = vsel %vm290, %v3100, 0
    %v3109 = vsel %vm290, %v3102, 0
    %3111 = vmatprep.subr.mxu0 0.0
    %3112 = vmatpush1.xpose.msra.mxu0 0.0
    %3113 = vmatprep.subr.mxu0 0.0
    %3114 = vmatpush1.xpose.msra.mxu0 0.0
    %3115 = vmatprep.subr.mxu0 0.0
    %3116 = vmatpush1.xpose.msra.mxu0 0.0
    %3117 = vmatprep.subr.mxu0 0.0
    %3118 = vmatpush1.xpose.msra.mxu0 0.0
    %3119 = vmatprep.subr.mxu0 0.0
    %3120 = vmatpush1.xpose.msra.mxu0 0.0
    %3121 = vmatprep.subr.mxu0 0.0
    %3122 = vmatpush1.xpose.msra.mxu0 0.0
    %3123 = vmatprep.subr.mxu0 0.0
    %3124 = vmatpush1.xpose.msra.mxu0 0.0
    %3125 = vmatprep.subr.mxu0 0.0
    %3126 = vmatpush1.xpose.msra.mxu0 0.0
    %3127 = vmatprep.subr.mxu0 0.0
    %3128 = vmatpush1.xpose.msra.mxu0 0.0
    %3129 = vmatprep.subr.mxu0 0.0
    %3130 = vmatpush1.xpose.msra.mxu0 0.0
    %3131 = vmatprep.subr.mxu0 0.0
    %3132 = vmatpush1.xpose.msra.mxu0 0.0
    %3133 = vmatprep.subr.mxu0 0.0
    %3134 = vmatpush1.xpose.msra.mxu0 0.0
    %3135 = vmatprep.subr.mxu0 0.0
    %3136 = vmatpush1.xpose.msra.mxu0 0.0
    %3137 = vmatprep.subr.mxu0 0.0
    %3138 = vmatpush1.xpose.msra.mxu0 0.0
    %3139 = vmatprep.subr.mxu0 0.0
    %3140 = vmatpush1.xpose.msra.mxu0 %v3109
    %3141 = vmatprep.subr.mxu0 0.0
    %3142 = vmatpush1.xpose.msra.mxu0 %v3107
    %3143 = vmatprep.subr.mxu0 0.0
    %3144 = vmatpush2.xpose.msra.mxu0 0.0
    %3145 = vmatprep.subr.mxu0 0.0
    %3146 = vmatpush2.xpose.msra.mxu0 0.0
    %3147 = vmatprep.subr.mxu0 0.0
    %3148 = vmatpush2.xpose.msra.mxu0 0.0
    %3149 = vmatprep.subr.mxu0 0.0
    %3150 = vmatpush2.xpose.msra.mxu0 0.0
    %3151 = vmatprep.subr.mxu0 0.0
    %3152 = vmatpush2.xpose.msra.mxu0 0.0
    %3153 = vmatprep.subr.mxu0 0.0
    %3154 = vmatpush2.xpose.msra.mxu0 0.0
    %3155 = vmatprep.subr.mxu0 0.0
    %3156 = vmatpush2.xpose.msra.mxu0 0.0
    %3157 = vmatprep.subr.mxu0 0.0
    %3158 = vmatpush2.xpose.msra.mxu0 0.0
    %3159 = vmatprep.subr.mxu0 0.0
    %3160 = vmatpush2.xpose.msra.mxu0 0.0
    %3161 = vmatprep.subr.mxu0 0.0
    %3162 = vmatpush2.xpose.msra.mxu0 0.0
    %3163 = vmatprep.subr.mxu0 0.0
    %3164 = vmatpush2.xpose.msra.mxu0 0.0
    %3165 = vmatprep.subr.mxu0 0.0
    %3166 = vmatpush2.xpose.msra.mxu0 0.0
    %3167 = vmatprep.subr.mxu0 0.0
    %3168 = vmatpush2.xpose.msra.mxu0 0.0
    %3169 = vmatprep.subr.mxu0 0.0
    %3170 = vmatpush2.xpose.msra.mxu0 0.0
    %3171 = vmatprep.subr.mxu0 0.0
    %3172 = vmatpush2.xpose.msra.mxu0 0.0
    %3173 = vmatprep.subr.mxu0 0.0
    %3174 = vmatpush2.xpose.msra.mxu0 0.0
    %3175 = vmatprep.mubr.f32.mxu0 0.0
    %3176 = vmatmul.mubr.f32.gmra.mxu0 %v3103
    %v3177 = vpop.f32.mrf.mxu0
    %v3178 = vadd.f32 %v2517, %v3177
    %v3179 = vpop.f32.mrf.mxu0
    %3180 = vmatprep.mubr.f32.mxu0 0.0
    %3181 = vmatmul.mubr.f32.gmra.mxu0 %v3105
    %v3182 = vpop.f32.mrf.mxu0
    %v3183 = vadd.f32 %v2518, %v3182
    %v3184 = vpop.f32.mrf.mxu0
    %3185 = vdwg.mxu0
    %3188 = vrot.lane.b32.xlu0 %v2502, 120
    %v3189 = vpop.permute.xlu0 %3188
    %3190 = vrot.lane.b32.xlu0 %v2503, 120
    %v3191 = vpop.permute.xlu0 %3190
    %3194 = vrot.lane.b32.xlu0 %v2484, 88
    %v3195 = vpop.permute.xlu0 %3194
    %3196 = vrot.lane.b32.xlu0 %v2485, 88
    %v3197 = vpop.permute.xlu0 %3196
    %v3198 = vsel %vm290, %v3189, 0
    %v3200 = vsel %vm290, %v3191, 0
    %v3202 = vsel %vm290, %v3195, 0
    %v3204 = vsel %vm290, %v3197, 0
    %3206 = vmatprep.subr.mxu0 0.0
    %3207 = vmatpush1.xpose.msra.mxu0 0.0
    %3208 = vmatprep.subr.mxu0 0.0
    %3209 = vmatpush1.xpose.msra.mxu0 0.0
    %3210 = vmatprep.subr.mxu0 0.0
    %3211 = vmatpush1.xpose.msra.mxu0 0.0
    %3212 = vmatprep.subr.mxu0 0.0
    %3213 = vmatpush1.xpose.msra.mxu0 0.0
    %3214 = vmatprep.subr.mxu0 0.0
    %3215 = vmatpush1.xpose.msra.mxu0 0.0
    %3216 = vmatprep.subr.mxu0 0.0
    %3217 = vmatpush1.xpose.msra.mxu0 0.0
    %3218 = vmatprep.subr.mxu0 0.0
    %3219 = vmatpush1.xpose.msra.mxu0 0.0
    %3220 = vmatprep.subr.mxu0 0.0
    %3221 = vmatpush1.xpose.msra.mxu0 0.0
    %3222 = vmatprep.subr.mxu0 0.0
    %3223 = vmatpush1.xpose.msra.mxu0 0.0
    %3224 = vmatprep.subr.mxu0 0.0
    %3225 = vmatpush1.xpose.msra.mxu0 0.0
    %3226 = vmatprep.subr.mxu0 0.0
    %3227 = vmatpush1.xpose.msra.mxu0 0.0
    %3228 = vmatprep.subr.mxu0 0.0
    %3229 = vmatpush1.xpose.msra.mxu0 0.0
    %3230 = vmatprep.subr.mxu0 0.0
    %3231 = vmatpush1.xpose.msra.mxu0 0.0
    %3232 = vmatprep.subr.mxu0 0.0
    %3233 = vmatpush1.xpose.msra.mxu0 0.0
    %3234 = vmatprep.subr.mxu0 0.0
    %3235 = vmatpush1.xpose.msra.mxu0 %v3204
    %3236 = vmatprep.subr.mxu0 0.0
    %3237 = vmatpush1.xpose.msra.mxu0 %v3202
    %3238 = vmatprep.subr.mxu0 0.0
    %3239 = vmatpush2.xpose.msra.mxu0 0.0
    %3240 = vmatprep.subr.mxu0 0.0
    %3241 = vmatpush2.xpose.msra.mxu0 0.0
    %3242 = vmatprep.subr.mxu0 0.0
    %3243 = vmatpush2.xpose.msra.mxu0 0.0
    %3244 = vmatprep.subr.mxu0 0.0
    %3245 = vmatpush2.xpose.msra.mxu0 0.0
    %3246 = vmatprep.subr.mxu0 0.0
    %3247 = vmatpush2.xpose.msra.mxu0 0.0
    %3248 = vmatprep.subr.mxu0 0.0
    %3249 = vmatpush2.xpose.msra.mxu0 0.0
    %3250 = vmatprep.subr.mxu0 0.0
    %3251 = vmatpush2.xpose.msra.mxu0 0.0
    %3252 = vmatprep.subr.mxu0 0.0
    %3253 = vmatpush2.xpose.msra.mxu0 0.0
    %3254 = vmatprep.subr.mxu0 0.0
    %3255 = vmatpush2.xpose.msra.mxu0 0.0
    %3256 = vmatprep.subr.mxu0 0.0
    %3257 = vmatpush2.xpose.msra.mxu0 0.0
    %3258 = vmatprep.subr.mxu0 0.0
    %3259 = vmatpush2.xpose.msra.mxu0 0.0
    %3260 = vmatprep.subr.mxu0 0.0
    %3261 = vmatpush2.xpose.msra.mxu0 0.0
    %3262 = vmatprep.subr.mxu0 0.0
    %3263 = vmatpush2.xpose.msra.mxu0 0.0
    %3264 = vmatprep.subr.mxu0 0.0
    %3265 = vmatpush2.xpose.msra.mxu0 0.0
    %3266 = vmatprep.subr.mxu0 0.0
    %3267 = vmatpush2.xpose.msra.mxu0 0.0
    %3268 = vmatprep.subr.mxu0 0.0
    %3269 = vmatpush2.xpose.msra.mxu0 0.0
    %3270 = vmatprep.mubr.f32.mxu0 0.0
    %3271 = vmatmul.mubr.f32.gmra.mxu0 %v3198
    %v3272 = vpop.f32.mrf.mxu0
    %v3273 = vadd.f32 %v2519, %v3272
    %v3274 = vpop.f32.mrf.mxu0
    %3275 = vmatprep.mubr.f32.mxu0 0.0
    %3276 = vmatmul.mubr.f32.gmra.mxu0 %v3200
    %v3277 = vpop.f32.mrf.mxu0
    %v3278 = vadd.f32 %v2520, %v3277
    %v3279 = vpop.f32.mrf.mxu0
    %3280 = vdwg.mxu0
    %v3281 = vsel %vm1309, %v2608, -inf
    %3282 = vmax.xlane.f32.xlu0 %v3281
    %v3283 = vpop.xlane.xlu0 %3282
    %v3284 = vsel %vm1309, %v2613, -inf
    %3285 = vmax.xlane.f32.xlu0 %v3284
    %v3286 = vpop.xlane.xlu0 %3285
    %v3287 = vsel %vm1309, %v2703, -inf
    %3288 = vmax.xlane.f32.xlu0 %v3287
    %v3289 = vpop.xlane.xlu0 %3288
    %v3290 = vsel %vm1309, %v2708, -inf
    %3291 = vmax.xlane.f32.xlu0 %v3290
    %v3292 = vpop.xlane.xlu0 %3291
    %v3293 = vsel %vm1309, %v2798, -inf
    %3294 = vmax.xlane.f32.xlu0 %v3293
    %v3295 = vpop.xlane.xlu0 %3294
    %v3296 = vsel %vm1309, %v2803, -inf
    %3297 = vmax.xlane.f32.xlu0 %v3296
    %v3298 = vpop.xlane.xlu0 %3297
    %v3299 = vsel %vm1309, %v2893, -inf
    %3300 = vmax.xlane.f32.xlu0 %v3299
    %v3301 = vpop.xlane.xlu0 %3300
    %v3302 = vsel %vm1309, %v2898, -inf
    %3303 = vmax.xlane.f32.xlu0 %v3302
    %v3304 = vpop.xlane.xlu0 %3303
    %v3305 = vsel %vm1309, %v2988, -inf
    %3306 = vmax.xlane.f32.xlu0 %v3305
    %v3307 = vpop.xlane.xlu0 %3306
    %v3308 = vsel %vm1309, %v2993, -inf
    %3309 = vmax.xlane.f32.xlu0 %v3308
    %v3310 = vpop.xlane.xlu0 %3309
    %v3311 = vsel %vm1309, %v3083, -inf
    %3312 = vmax.xlane.f32.xlu0 %v3311
    %v3313 = vpop.xlane.xlu0 %3312
    %v3314 = vsel %vm1309, %v3088, -inf
    %3315 = vmax.xlane.f32.xlu0 %v3314
    %v3316 = vpop.xlane.xlu0 %3315
    %v3317 = vsel %vm1309, %v3178, -inf
    %3318 = vmax.xlane.f32.xlu0 %v3317
    %v3319 = vpop.xlane.xlu0 %3318
    %v3320 = vsel %vm1309, %v3183, -inf
    %3321 = vmax.xlane.f32.xlu0 %v3320
    %v3322 = vpop.xlane.xlu0 %3321
    %v3323 = vsel %vm1309, %v3273, -inf
    %3324 = vmax.xlane.f32.xlu0 %v3323
    %v3325 = vpop.xlane.xlu0 %3324
    %v3326 = vsel %vm1309, %v3278, -inf
    %3327 = vmax.xlane.f32.xlu0 %v3326
    %v3328 = vpop.xlane.xlu0 %3327
    %v3329 = vsub.f32 %v2608, %v3283
    %v3330 = vsub.f32 %v2613, %v3286
    %v3331 = vsub.f32 %v2703, %v3289
    %v3332 = vsub.f32 %v2708, %v3292
    %v3333 = vsub.f32 %v2798, %v3295
    %v3334 = vsub.f32 %v2803, %v3298
    %v3335 = vsub.f32 %v2893, %v3301
    %v3336 = vsub.f32 %v2898, %v3304
    %v3337 = vsub.f32 %v2988, %v3307
    %v3338 = vsub.f32 %v2993, %v3310
    %v3339 = vsub.f32 %v3083, %v3313
    %v3340 = vsub.f32 %v3088, %v3316
    %v3341 = vsub.f32 %v3178, %v3319
    %v3342 = vsub.f32 %v3183, %v3322
    %v3343 = vsub.f32 %v3273, %v3325
    %v3344 = vsub.f32 %v3278, %v3328
    %v3345 = vmul.f32 %v3329, 1.442695
    %v3346 = vpow.pop %v3345
    %v3347 = vmul.f32 %v3330, 1.442695
    %v3348 = vpow.pop %v3347
    %v3349 = vmul.f32 %v3331, 1.442695
    %v3350 = vpow.pop %v3349
    %v3351 = vmul.f32 %v3332, 1.442695
    %v3352 = vpow.pop %v3351
    %v3353 = vmul.f32 %v3333, 1.442695
    %v3354 = vpow.pop %v3353
    %v3355 = vmul.f32 %v3334, 1.442695
    %v3356 = vpow.pop %v3355
    %v3357 = vmul.f32 %v3335, 1.442695
    %v3358 = vpow.pop %v3357
    %v3359 = vmul.f32 %v3336, 1.442695
    %v3360 = vpow.pop %v3359
    %v3361 = vmul.f32 %v3337, 1.442695
    %v3362 = vpow.pop %v3361
    %v3363 = vmul.f32 %v3338, 1.442695
    %v3364 = vpow.pop %v3363
    %v3365 = vmul.f32 %v3339, 1.442695
    %v3366 = vpow.pop %v3365
    %v3367 = vmul.f32 %v3340, 1.442695
    %v3368 = vpow.pop %v3367
    %v3369 = vmul.f32 %v3341, 1.442695
    %v3370 = vpow.pop %v3369
    %v3371 = vmul.f32 %v3342, 1.442695
    %v3372 = vpow.pop %v3371
    %v3373 = vmul.f32 %v3343, 1.442695
    %v3374 = vpow.pop %v3373
    %v3375 = vmul.f32 %v3344, 1.442695
    %v3376 = vpow.pop %v3375
    %v3377 = vsel %vm1309, %v3346, 0.0
    %3378 = vadd.xlane.f32.xlu0 %v3377
    %v3379 = vpop.xlane.xlu0 %3378
    %v3380 = vsel %vm1309, %v3348, 0.0
    %3381 = vadd.xlane.f32.xlu0 %v3380
    %v3382 = vpop.xlane.xlu0 %3381
    %v3383 = vsel %vm1309, %v3350, 0.0
    %3384 = vadd.xlane.f32.xlu0 %v3383
    %v3385 = vpop.xlane.xlu0 %3384
    %v3386 = vsel %vm1309, %v3352, 0.0
    %3387 = vadd.xlane.f32.xlu0 %v3386
    %v3388 = vpop.xlane.xlu0 %3387
    %v3389 = vsel %vm1309, %v3354, 0.0
    %3390 = vadd.xlane.f32.xlu0 %v3389
    %v3391 = vpop.xlane.xlu0 %3390
    %v3392 = vsel %vm1309, %v3356, 0.0
    %3393 = vadd.xlane.f32.xlu0 %v3392
    %v3394 = vpop.xlane.xlu0 %3393
    %v3395 = vsel %vm1309, %v3358, 0.0
    %3396 = vadd.xlane.f32.xlu0 %v3395
    %v3397 = vpop.xlane.xlu0 %3396
    %v3398 = vsel %vm1309, %v3360, 0.0
    %3399 = vadd.xlane.f32.xlu0 %v3398
    %v3400 = vpop.xlane.xlu0 %3399
    %v3401 = vsel %vm1309, %v3362, 0.0
    %3402 = vadd.xlane.f32.xlu0 %v3401
    %v3403 = vpop.xlane.xlu0 %3402
    %v3404 = vsel %vm1309, %v3364, 0.0
    %3405 = vadd.xlane.f32.xlu0 %v3404
    %v3406 = vpop.xlane.xlu0 %3405
    %v3407 = vsel %vm1309, %v3366, 0.0
    %3408 = vadd.xlane.f32.xlu0 %v3407
    %v3409 = vpop.xlane.xlu0 %3408
    %v3410 = vsel %vm1309, %v3368, 0.0
    %3411 = vadd.xlane.f32.xlu0 %v3410
    %v3412 = vpop.xlane.xlu0 %3411
    %v3413 = vsel %vm1309, %v3370, 0.0
    %3414 = vadd.xlane.f32.xlu0 %v3413
    %v3415 = vpop.xlane.xlu0 %3414
    %v3416 = vsel %vm1309, %v3372, 0.0
    %3417 = vadd.xlane.f32.xlu0 %v3416
    %v3418 = vpop.xlane.xlu0 %3417
    %v3419 = vsel %vm1309, %v3374, 0.0
    %3420 = vadd.xlane.f32.xlu0 %v3419
    %v3421 = vpop.xlane.xlu0 %3420
    %v3422 = vsel %vm1309, %v3376, 0.0
    %3423 = vadd.xlane.f32.xlu0 %v3422
    %v3424 = vpop.xlane.xlu0 %3423
    %v3425 = vrcp.pop %v3379
    %v3426 = vrcp.pop %v3382
    %v3427 = vrcp.pop %v3385
    %v3428 = vrcp.pop %v3388
    %v3429 = vrcp.pop %v3391
    %v3430 = vrcp.pop %v3394
    %v3431 = vrcp.pop %v3397
    %v3432 = vrcp.pop %v3400
    %v3433 = vrcp.pop %v3403
    %v3434 = vrcp.pop %v3406
    %v3435 = vrcp.pop %v3409
    %v3436 = vrcp.pop %v3412
    %v3437 = vrcp.pop %v3415
    %v3438 = vrcp.pop %v3418
    %v3439 = vrcp.pop %v3421
    %v3440 = vrcp.pop %v3424
    %v3441 = vmul.f32 %v3346, %v3425
    %v3442 = vmul.f32 %v3348, %v3426
    %v3443 = vmul.f32 %v3350, %v3427
    %v3444 = vmul.f32 %v3352, %v3428
    %v3445 = vmul.f32 %v3354, %v3429
    %v3446 = vmul.f32 %v3356, %v3430
    %v3447 = vmul.f32 %v3358, %v3431
    %v3448 = vmul.f32 %v3360, %v3432
    %v3449 = vmul.f32 %v3362, %v3433
    %v3450 = vmul.f32 %v3364, %v3434
    %v3451 = vmul.f32 %v3366, %v3435
    %v3452 = vmul.f32 %v3368, %v3436
    %v3453 = vmul.f32 %v3370, %v3437
    %v3454 = vmul.f32 %v3372, %v3438
    %v3455 = vmul.f32 %v3374, %v3439
    %v3456 = vmul.f32 %v3376, %v3440
    %3457 = vrot.lane.b32.xlu0 %v196, 56
    %v3458 = vpop.permute.xlu0 %3457
    %3459 = vrot.lane.b32.xlu0 %v201, 56
    %v3460 = vpop.permute.xlu0 %3459
    %v3464 = vsel %vm1309, %v3441, 0
    %v3467 = vsel %vm1309, %v3442, 0
    %3469 = vmatprep.subr.mxu0 0.0
    %3470 = vmatpush1.msra.mxu0 0.0
    %3471 = vmatprep.subr.mxu0 0.0
    %3472 = vmatpush1.msra.mxu0 0.0
    %3473 = vmatprep.subr.mxu0 0.0
    %3474 = vmatpush1.msra.mxu0 0.0
    %3475 = vmatprep.subr.mxu0 0.0
    %3476 = vmatpush1.msra.mxu0 0.0
    %3477 = vmatprep.subr.mxu0 0.0
    %3478 = vmatpush1.msra.mxu0 0.0
    %3479 = vmatprep.subr.mxu0 0.0
    %3480 = vmatpush1.msra.mxu0 0.0
    %3481 = vmatprep.subr.mxu0 0.0
    %3482 = vmatpush1.msra.mxu0 0.0
    %3483 = vmatprep.subr.mxu0 0.0
    %3484 = vmatpush1.msra.mxu0 0.0
    %3485 = vmatprep.subr.mxu0 0.0
    %3486 = vmatpush1.msra.mxu0 0.0
    %3487 = vmatprep.subr.mxu0 0.0
    %3488 = vmatpush1.msra.mxu0 0.0
    %3489 = vmatprep.subr.mxu0 0.0
    %3490 = vmatpush1.msra.mxu0 0.0
    %3491 = vmatprep.subr.mxu0 0.0
    %3492 = vmatpush1.msra.mxu0 0.0
    %3493 = vmatprep.subr.mxu0 0.0
    %3494 = vmatpush1.msra.mxu0 0.0
    %3495 = vmatprep.subr.mxu0 0.0
    %3496 = vmatpush1.msra.mxu0 0.0
    %3497 = vmatprep.subr.mxu0 0.0
    %3498 = vmatpush1.msra.mxu0 %v3460
    %3499 = vmatprep.subr.mxu0 0.0
    %3500 = vmatpush1.msra.mxu0 %v3458
    %3501 = vmatprep.subr.mxu0 0.0
    %3502 = vmatpush2.msra.mxu0 0.0
    %3503 = vmatprep.subr.mxu0 0.0
    %3504 = vmatpush2.msra.mxu0 0.0
    %3505 = vmatprep.subr.mxu0 0.0
    %3506 = vmatpush2.msra.mxu0 0.0
    %3507 = vmatprep.subr.mxu0 0.0
    %3508 = vmatpush2.msra.mxu0 0.0
    %3509 = vmatprep.subr.mxu0 0.0
    %3510 = vmatpush2.msra.mxu0 0.0
    %3511 = vmatprep.subr.mxu0 0.0
    %3512 = vmatpush2.msra.mxu0 0.0
    %3513 = vmatprep.subr.mxu0 0.0
    %3514 = vmatpush2.msra.mxu0 0.0
    %3515 = vmatprep.subr.mxu0 0.0
    %3516 = vmatpush2.msra.mxu0 0.0
    %3517 = vmatprep.subr.mxu0 0.0
    %3518 = vmatpush2.msra.mxu0 0.0
    %3519 = vmatprep.subr.mxu0 0.0
    %3520 = vmatpush2.msra.mxu0 0.0
    %3521 = vmatprep.subr.mxu0 0.0
    %3522 = vmatpush2.msra.mxu0 0.0
    %3523 = vmatprep.subr.mxu0 0.0
    %3524 = vmatpush2.msra.mxu0 0.0
    %3525 = vmatprep.subr.mxu0 0.0
    %3526 = vmatpush2.msra.mxu0 0.0
    %3527 = vmatprep.subr.mxu0 0.0
    %3528 = vmatpush2.msra.mxu0 0.0
    %3529 = vmatprep.subr.mxu0 0.0
    %3530 = vmatpush2.msra.mxu0 0.0
    %3531 = vmatprep.subr.mxu0 0.0
    %3532 = vmatpush2.msra.mxu0 0.0
    %3533 = vmatprep.mubr.f32.mxu0 0.0
    %3534 = vmatmul.mubr.f32.gmra.mxu0 %v3464
    %v3535 = vpop.f32.mrf.mxu0
    %v3536 = vadd.f32 0.0, %v3535
    %v3537 = vpop.f32.mrf.mxu0
    %3538 = vmatprep.mubr.f32.mxu0 0.0
    %3539 = vmatmul.mubr.f32.gmra.mxu0 %v3467
    %v3540 = vpop.f32.mrf.mxu0
    %v3541 = vadd.f32 0.0, %v3540
    %v3542 = vpop.f32.mrf.mxu0
    %3543 = vdwg.mxu0
    %3544 = vrot.lane.b32.xlu0 %v206, 56
    %v3545 = vpop.permute.xlu0 %3544
    %3546 = vrot.lane.b32.xlu0 %v211, 56
    %v3547 = vpop.permute.xlu0 %3546
    %v3551 = vsel %vm1309, %v3443, 0
    %v3554 = vsel %vm1309, %v3444, 0
    %3556 = vmatprep.subr.mxu0 0.0
    %3557 = vmatpush1.msra.mxu0 0.0
    %3558 = vmatprep.subr.mxu0 0.0
    %3559 = vmatpush1.msra.mxu0 0.0
    %3560 = vmatprep.subr.mxu0 0.0
    %3561 = vmatpush1.msra.mxu0 0.0
    %3562 = vmatprep.subr.mxu0 0.0
    %3563 = vmatpush1.msra.mxu0 0.0
    %3564 = vmatprep.subr.mxu0 0.0
    %3565 = vmatpush1.msra.mxu0 0.0
    %3566 = vmatprep.subr.mxu0 0.0
    %3567 = vmatpush1.msra.mxu0 0.0
    %3568 = vmatprep.subr.mxu0 0.0
    %3569 = vmatpush1.msra.mxu0 0.0
    %3570 = vmatprep.subr.mxu0 0.0
    %3571 = vmatpush1.msra.mxu0 0.0
    %3572 = vmatprep.subr.mxu0 0.0
    %3573 = vmatpush1.msra.mxu0 0.0
    %3574 = vmatprep.subr.mxu0 0.0
    %3575 = vmatpush1.msra.mxu0 0.0
    %3576 = vmatprep.subr.mxu0 0.0
    %3577 = vmatpush1.msra.mxu0 0.0
    %3578 = vmatprep.subr.mxu0 0.0
    %3579 = vmatpush1.msra.mxu0 0.0
    %3580 = vmatprep.subr.mxu0 0.0
    %3581 = vmatpush1.msra.mxu0 0.0
    %3582 = vmatprep.subr.mxu0 0.0
    %3583 = vmatpush1.msra.mxu0 0.0
    %3584 = vmatprep.subr.mxu0 0.0
    %3585 = vmatpush1.msra.mxu0 %v3547
    %3586 = vmatprep.subr.mxu0 0.0
    %3587 = vmatpush1.msra.mxu0 %v3545
    %3588 = vmatprep.subr.mxu0 0.0
    %3589 = vmatpush2.msra.mxu0 0.0
    %3590 = vmatprep.subr.mxu0 0.0
    %3591 = vmatpush2.msra.mxu0 0.0
    %3592 = vmatprep.subr.mxu0 0.0
    %3593 = vmatpush2.msra.mxu0 0.0
    %3594 = vmatprep.subr.mxu0 0.0
    %3595 = vmatpush2.msra.mxu0 0.0
    %3596 = vmatprep.subr.mxu0 0.0
    %3597 = vmatpush2.msra.mxu0 0.0
    %3598 = vmatprep.subr.mxu0 0.0
    %3599 = vmatpush2.msra.mxu0 0.0
    %3600 = vmatprep.subr.mxu0 0.0
    %3601 = vmatpush2.msra.mxu0 0.0
    %3602 = vmatprep.subr.mxu0 0.0
    %3603 = vmatpush2.msra.mxu0 0.0
    %3604 = vmatprep.subr.mxu0 0.0
    %3605 = vmatpush2.msra.mxu0 0.0
    %3606 = vmatprep.subr.mxu0 0.0
    %3607 = vmatpush2.msra.mxu0 0.0
    %3608 = vmatprep.subr.mxu0 0.0
    %3609 = vmatpush2.msra.mxu0 0.0
    %3610 = vmatprep.subr.mxu0 0.0
    %3611 = vmatpush2.msra.mxu0 0.0
    %3612 = vmatprep.subr.mxu0 0.0
    %3613 = vmatpush2.msra.mxu0 0.0
    %3614 = vmatprep.subr.mxu0 0.0
    %3615 = vmatpush2.msra.mxu0 0.0
    %3616 = vmatprep.subr.mxu0 0.0
    %3617 = vmatpush2.msra.mxu0 0.0
    %3618 = vmatprep.subr.mxu0 0.0
    %3619 = vmatpush2.msra.mxu0 0.0
    %3620 = vmatprep.mubr.f32.mxu0 0.0
    %3621 = vmatmul.mubr.f32.gmra.mxu0 %v3551
    %v3622 = vpop.f32.mrf.mxu0
    %v3623 = vadd.f32 0.0, %v3622
    %v3624 = vpop.f32.mrf.mxu0
    %3625 = vmatprep.mubr.f32.mxu0 0.0
    %3626 = vmatmul.mubr.f32.gmra.mxu0 %v3554
    %v3627 = vpop.f32.mrf.mxu0
    %v3628 = vadd.f32 0.0, %v3627
    %v3629 = vpop.f32.mrf.mxu0
    %3630 = vdwg.mxu0
    %3631 = vrot.lane.b32.xlu0 %v216, 56
    %v3632 = vpop.permute.xlu0 %3631
    %3633 = vrot.lane.b32.xlu0 %v221, 56
    %v3634 = vpop.permute.xlu0 %3633
    %v3638 = vsel %vm1309, %v3445, 0
    %v3641 = vsel %vm1309, %v3446, 0
    %3643 = vmatprep.subr.mxu0 0.0
    %3644 = vmatpush1.msra.mxu0 0.0
    %3645 = vmatprep.subr.mxu0 0.0
    %3646 = vmatpush1.msra.mxu0 0.0
    %3647 = vmatprep.subr.mxu0 0.0
    %3648 = vmatpush1.msra.mxu0 0.0
    %3649 = vmatprep.subr.mxu0 0.0
    %3650 = vmatpush1.msra.mxu0 0.0
    %3651 = vmatprep.subr.mxu0 0.0
    %3652 = vmatpush1.msra.mxu0 0.0
    %3653 = vmatprep.subr.mxu0 0.0
    %3654 = vmatpush1.msra.mxu0 0.0
    %3655 = vmatprep.subr.mxu0 0.0
    %3656 = vmatpush1.msra.mxu0 0.0
    %3657 = vmatprep.subr.mxu0 0.0
    %3658 = vmatpush1.msra.mxu0 0.0
    %3659 = vmatprep.subr.mxu0 0.0
    %3660 = vmatpush1.msra.mxu0 0.0
    %3661 = vmatprep.subr.mxu0 0.0
    %3662 = vmatpush1.msra.mxu0 0.0
    %3663 = vmatprep.subr.mxu0 0.0
    %3664 = vmatpush1.msra.mxu0 0.0
    %3665 = vmatprep.subr.mxu0 0.0
    %3666 = vmatpush1.msra.mxu0 0.0
    %3667 = vmatprep.subr.mxu0 0.0
    %3668 = vmatpush1.msra.mxu0 0.0
    %3669 = vmatprep.subr.mxu0 0.0
    %3670 = vmatpush1.msra.mxu0 0.0
    %3671 = vmatprep.subr.mxu0 0.0
    %3672 = vmatpush1.msra.mxu0 %v3634
    %3673 = vmatprep.subr.mxu0 0.0
    %3674 = vmatpush1.msra.mxu0 %v3632
    %3675 = vmatprep.subr.mxu0 0.0
    %3676 = vmatpush2.msra.mxu0 0.0
    %3677 = vmatprep.subr.mxu0 0.0
    %3678 = vmatpush2.msra.mxu0 0.0
    %3679 = vmatprep.subr.mxu0 0.0
    %3680 = vmatpush2.msra.mxu0 0.0
    %3681 = vmatprep.subr.mxu0 0.0
    %3682 = vmatpush2.msra.mxu0 0.0
    %3683 = vmatprep.subr.mxu0 0.0
    %3684 = vmatpush2.msra.mxu0 0.0
    %3685 = vmatprep.subr.mxu0 0.0
    %3686 = vmatpush2.msra.mxu0 0.0
    %3687 = vmatprep.subr.mxu0 0.0
    %3688 = vmatpush2.msra.mxu0 0.0
    %3689 = vmatprep.subr.mxu0 0.0
    %3690 = vmatpush2.msra.mxu0 0.0
    %3691 = vmatprep.subr.mxu0 0.0
    %3692 = vmatpush2.msra.mxu0 0.0
    %3693 = vmatprep.subr.mxu0 0.0
    %3694 = vmatpush2.msra.mxu0 0.0
    %3695 = vmatprep.subr.mxu0 0.0
    %3696 = vmatpush2.msra.mxu0 0.0
    %3697 = vmatprep.subr.mxu0 0.0
    %3698 = vmatpush2.msra.mxu0 0.0
    %3699 = vmatprep.subr.mxu0 0.0
    %3700 = vmatpush2.msra.mxu0 0.0
    %3701 = vmatprep.subr.mxu0 0.0
    %3702 = vmatpush2.msra.mxu0 0.0
    %3703 = vmatprep.subr.mxu0 0.0
    %3704 = vmatpush2.msra.mxu0 0.0
    %3705 = vmatprep.subr.mxu0 0.0
    %3706 = vmatpush2.msra.mxu0 0.0
    %3707 = vmatprep.mubr.f32.mxu0 0.0
    %3708 = vmatmul.mubr.f32.gmra.mxu0 %v3638
    %v3709 = vpop.f32.mrf.mxu0
    %v3710 = vadd.f32 0.0, %v3709
    %v3711 = vpop.f32.mrf.mxu0
    %3712 = vmatprep.mubr.f32.mxu0 0.0
    %3713 = vmatmul.mubr.f32.gmra.mxu0 %v3641
    %v3714 = vpop.f32.mrf.mxu0
    %v3715 = vadd.f32 0.0, %v3714
    %v3716 = vpop.f32.mrf.mxu0
    %3717 = vdwg.mxu0
    %3718 = vrot.lane.b32.xlu0 %v226, 56
    %v3719 = vpop.permute.xlu0 %3718
    %3720 = vrot.lane.b32.xlu0 %v231, 56
    %v3721 = vpop.permute.xlu0 %3720
    %v3725 = vsel %vm1309, %v3447, 0
    %v3728 = vsel %vm1309, %v3448, 0
    %3730 = vmatprep.subr.mxu0 0.0
    %3731 = vmatpush1.msra.mxu0 0.0
    %3732 = vmatprep.subr.mxu0 0.0
    %3733 = vmatpush1.msra.mxu0 0.0
    %3734 = vmatprep.subr.mxu0 0.0
    %3735 = vmatpush1.msra.mxu0 0.0
    %3736 = vmatprep.subr.mxu0 0.0
    %3737 = vmatpush1.msra.mxu0 0.0
    %3738 = vmatprep.subr.mxu0 0.0
    %3739 = vmatpush1.msra.mxu0 0.0
    %3740 = vmatprep.subr.mxu0 0.0
    %3741 = vmatpush1.msra.mxu0 0.0
    %3742 = vmatprep.subr.mxu0 0.0
    %3743 = vmatpush1.msra.mxu0 0.0
    %3744 = vmatprep.subr.mxu0 0.0
    %3745 = vmatpush1.msra.mxu0 0.0
    %3746 = vmatprep.subr.mxu0 0.0
    %3747 = vmatpush1.msra.mxu0 0.0
    %3748 = vmatprep.subr.mxu0 0.0
    %3749 = vmatpush1.msra.mxu0 0.0
    %3750 = vmatprep.subr.mxu0 0.0
    %3751 = vmatpush1.msra.mxu0 0.0
    %3752 = vmatprep.subr.mxu0 0.0
    %3753 = vmatpush1.msra.mxu0 0.0
    %3754 = vmatprep.subr.mxu0 0.0
    %3755 = vmatpush1.msra.mxu0 0.0
    %3756 = vmatprep.subr.mxu0 0.0
    %3757 = vmatpush1.msra.mxu0 0.0
    %3758 = vmatprep.subr.mxu0 0.0
    %3759 = vmatpush1.msra.mxu0 %v3721
    %3760 = vmatprep.subr.mxu0 0.0
    %3761 = vmatpush1.msra.mxu0 %v3719
    %3762 = vmatprep.subr.mxu0 0.0
    %3763 = vmatpush2.msra.mxu0 0.0
    %3764 = vmatprep.subr.mxu0 0.0
    %3765 = vmatpush2.msra.mxu0 0.0
    %3766 = vmatprep.subr.mxu0 0.0
    %3767 = vmatpush2.msra.mxu0 0.0
    %3768 = vmatprep.subr.mxu0 0.0
    %3769 = vmatpush2.msra.mxu0 0.0
    %3770 = vmatprep.subr.mxu0 0.0
    %3771 = vmatpush2.msra.mxu0 0.0
    %3772 = vmatprep.subr.mxu0 0.0
    %3773 = vmatpush2.msra.mxu0 0.0
    %3774 = vmatprep.subr.mxu0 0.0
    %3775 = vmatpush2.msra.mxu0 0.0
    %3776 = vmatprep.subr.mxu0 0.0
    %3777 = vmatpush2.msra.mxu0 0.0
    %3778 = vmatprep.subr.mxu0 0.0
    %3779 = vmatpush2.msra.mxu0 0.0
    %3780 = vmatprep.subr.mxu0 0.0
    %3781 = vmatpush2.msra.mxu0 0.0
    %3782 = vmatprep.subr.mxu0 0.0
    %3783 = vmatpush2.msra.mxu0 0.0
    %3784 = vmatprep.subr.mxu0 0.0
    %3785 = vmatpush2.msra.mxu0 0.0
    %3786 = vmatprep.subr.mxu0 0.0
    %3787 = vmatpush2.msra.mxu0 0.0
    %3788 = vmatprep.subr.mxu0 0.0
    %3789 = vmatpush2.msra.mxu0 0.0
    %3790 = vmatprep.subr.mxu0 0.0
    %3791 = vmatpush2.msra.mxu0 0.0
    %3792 = vmatprep.subr.mxu0 0.0
    %3793 = vmatpush2.msra.mxu0 0.0
    %3794 = vmatprep.mubr.f32.mxu0 0.0
    %3795 = vmatmul.mubr.f32.gmra.mxu0 %v3725
    %v3796 = vpop.f32.mrf.mxu0
    %v3797 = vadd.f32 0.0, %v3796
    %v3798 = vpop.f32.mrf.mxu0
    %3799 = vmatprep.mubr.f32.mxu0 0.0
    %3800 = vmatmul.mubr.f32.gmra.mxu0 %v3728
    %v3801 = vpop.f32.mrf.mxu0
    %v3802 = vadd.f32 0.0, %v3801
    %v3803 = vpop.f32.mrf.mxu0
    %3804 = vdwg.mxu0
    %3805 = vrot.lane.b32.xlu0 %v236, 56
    %v3806 = vpop.permute.xlu0 %3805
    %3807 = vrot.lane.b32.xlu0 %v241, 56
    %v3808 = vpop.permute.xlu0 %3807
    %v3812 = vsel %vm1309, %v3449, 0
    %v3815 = vsel %vm1309, %v3450, 0
    %3817 = vmatprep.subr.mxu0 0.0
    %3818 = vmatpush1.msra.mxu0 0.0
    %3819 = vmatprep.subr.mxu0 0.0
    %3820 = vmatpush1.msra.mxu0 0.0
    %3821 = vmatprep.subr.mxu0 0.0
    %3822 = vmatpush1.msra.mxu0 0.0
    %3823 = vmatprep.subr.mxu0 0.0
    %3824 = vmatpush1.msra.mxu0 0.0
    %3825 = vmatprep.subr.mxu0 0.0
    %3826 = vmatpush1.msra.mxu0 0.0
    %3827 = vmatprep.subr.mxu0 0.0
    %3828 = vmatpush1.msra.mxu0 0.0
    %3829 = vmatprep.subr.mxu0 0.0
    %3830 = vmatpush1.msra.mxu0 0.0
    %3831 = vmatprep.subr.mxu0 0.0
    %3832 = vmatpush1.msra.mxu0 0.0
    %3833 = vmatprep.subr.mxu0 0.0
    %3834 = vmatpush1.msra.mxu0 0.0
    %3835 = vmatprep.subr.mxu0 0.0
    %3836 = vmatpush1.msra.mxu0 0.0
    %3837 = vmatprep.subr.mxu0 0.0
    %3838 = vmatpush1.msra.mxu0 0.0
    %3839 = vmatprep.subr.mxu0 0.0
    %3840 = vmatpush1.msra.mxu0 0.0
    %3841 = vmatprep.subr.mxu0 0.0
    %3842 = vmatpush1.msra.mxu0 0.0
    %3843 = vmatprep.subr.mxu0 0.0
    %3844 = vmatpush1.msra.mxu0 0.0
    %3845 = vmatprep.subr.mxu0 0.0
    %3846 = vmatpush1.msra.mxu0 %v3808
    %3847 = vmatprep.subr.mxu0 0.0
    %3848 = vmatpush1.msra.mxu0 %v3806
    %3849 = vmatprep.subr.mxu0 0.0
    %3850 = vmatpush2.msra.mxu0 0.0
    %3851 = vmatprep.subr.mxu0 0.0
    %3852 = vmatpush2.msra.mxu0 0.0
    %3853 = vmatprep.subr.mxu0 0.0
    %3854 = vmatpush2.msra.mxu0 0.0
    %3855 = vmatprep.subr.mxu0 0.0
    %3856 = vmatpush2.msra.mxu0 0.0
    %3857 = vmatprep.subr.mxu0 0.0
    %3858 = vmatpush2.msra.mxu0 0.0
    %3859 = vmatprep.subr.mxu0 0.0
    %3860 = vmatpush2.msra.mxu0 0.0
    %3861 = vmatprep.subr.mxu0 0.0
    %3862 = vmatpush2.msra.mxu0 0.0
    %3863 = vmatprep.subr.mxu0 0.0
    %3864 = vmatpush2.msra.mxu0 0.0
    %3865 = vmatprep.subr.mxu0 0.0
    %3866 = vmatpush2.msra.mxu0 0.0
    %3867 = vmatprep.subr.mxu0 0.0
    %3868 = vmatpush2.msra.mxu0 0.0
    %3869 = vmatprep.subr.mxu0 0.0
    %3870 = vmatpush2.msra.mxu0 0.0
    %3871 = vmatprep.subr.mxu0 0.0
    %3872 = vmatpush2.msra.mxu0 0.0
    %3873 = vmatprep.subr.mxu0 0.0
    %3874 = vmatpush2.msra.mxu0 0.0
    %3875 = vmatprep.subr.mxu0 0.0
    %3876 = vmatpush2.msra.mxu0 0.0
    %3877 = vmatprep.subr.mxu0 0.0
    %3878 = vmatpush2.msra.mxu0 0.0
    %3879 = vmatprep.subr.mxu0 0.0
    %3880 = vmatpush2.msra.mxu0 0.0
    %3881 = vmatprep.mubr.f32.mxu0 0.0
    %3882 = vmatmul.mubr.f32.gmra.mxu0 %v3812
    %v3883 = vpop.f32.mrf.mxu0
    %v3884 = vadd.f32 0.0, %v3883
    %v3885 = vpop.f32.mrf.mxu0
    %3886 = vmatprep.mubr.f32.mxu0 0.0
    %3887 = vmatmul.mubr.f32.gmra.mxu0 %v3815
    %v3888 = vpop.f32.mrf.mxu0
    %v3889 = vadd.f32 0.0, %v3888
    %v3890 = vpop.f32.mrf.mxu0
    %3891 = vdwg.mxu0
    %3892 = vrot.lane.b32.xlu0 %v246, 56
    %v3893 = vpop.permute.xlu0 %3892
    %3894 = vrot.lane.b32.xlu0 %v251, 56
    %v3895 = vpop.permute.xlu0 %3894
    %v3899 = vsel %vm1309, %v3451, 0
    %v3902 = vsel %vm1309, %v3452, 0
    %3904 = vmatprep.subr.mxu0 0.0
    %3905 = vmatpush1.msra.mxu0 0.0
    %3906 = vmatprep.subr.mxu0 0.0
    %3907 = vmatpush1.msra.mxu0 0.0
    %3908 = vmatprep.subr.mxu0 0.0
    %3909 = vmatpush1.msra.mxu0 0.0
    %3910 = vmatprep.subr.mxu0 0.0
    %3911 = vmatpush1.msra.mxu0 0.0
    %3912 = vmatprep.subr.mxu0 0.0
    %3913 = vmatpush1.msra.mxu0 0.0
    %3914 = vmatprep.subr.mxu0 0.0
    %3915 = vmatpush1.msra.mxu0 0.0
    %3916 = vmatprep.subr.mxu0 0.0
    %3917 = vmatpush1.msra.mxu0 0.0
    %3918 = vmatprep.subr.mxu0 0.0
    %3919 = vmatpush1.msra.mxu0 0.0
    %3920 = vmatprep.subr.mxu0 0.0
    %3921 = vmatpush1.msra.mxu0 0.0
    %3922 = vmatprep.subr.mxu0 0.0
    %3923 = vmatpush1.msra.mxu0 0.0
    %3924 = vmatprep.subr.mxu0 0.0
    %3925 = vmatpush1.msra.mxu0 0.0
    %3926 = vmatprep.subr.mxu0 0.0
    %3927 = vmatpush1.msra.mxu0 0.0
    %3928 = vmatprep.subr.mxu0 0.0
    %3929 = vmatpush1.msra.mxu0 0.0
    %3930 = vmatprep.subr.mxu0 0.0
    %3931 = vmatpush1.msra.mxu0 0.0
    %3932 = vmatprep.subr.mxu0 0.0
    %3933 = vmatpush1.msra.mxu0 %v3895
    %3934 = vmatprep.subr.mxu0 0.0
    %3935 = vmatpush1.msra.mxu0 %v3893
    %3936 = vmatprep.subr.mxu0 0.0
    %3937 = vmatpush2.msra.mxu0 0.0
    %3938 = vmatprep.subr.mxu0 0.0
    %3939 = vmatpush2.msra.mxu0 0.0
    %3940 = vmatprep.subr.mxu0 0.0
    %3941 = vmatpush2.msra.mxu0 0.0
    %3942 = vmatprep.subr.mxu0 0.0
    %3943 = vmatpush2.msra.mxu0 0.0
    %3944 = vmatprep.subr.mxu0 0.0
    %3945 = vmatpush2.msra.mxu0 0.0
    %3946 = vmatprep.subr.mxu0 0.0
    %3947 = vmatpush2.msra.mxu0 0.0
    %3948 = vmatprep.subr.mxu0 0.0
    %3949 = vmatpush2.msra.mxu0 0.0
    %3950 = vmatprep.subr.mxu0 0.0
    %3951 = vmatpush2.msra.mxu0 0.0
    %3952 = vmatprep.subr.mxu0 0.0
    %3953 = vmatpush2.msra.mxu0 0.0
    %3954 = vmatprep.subr.mxu0 0.0
    %3955 = vmatpush2.msra.mxu0 0.0
    %3956 = vmatprep.subr.mxu0 0.0
    %3957 = vmatpush2.msra.mxu0 0.0
    %3958 = vmatprep.subr.mxu0 0.0
    %3959 = vmatpush2.msra.mxu0 0.0
    %3960 = vmatprep.subr.mxu0 0.0
    %3961 = vmatpush2.msra.mxu0 0.0
    %3962 = vmatprep.subr.mxu0 0.0
    %3963 = vmatpush2.msra.mxu0 0.0
    %3964 = vmatprep.subr.mxu0 0.0
    %3965 = vmatpush2.msra.mxu0 0.0
    %3966 = vmatprep.subr.mxu0 0.0
    %3967 = vmatpush2.msra.mxu0 0.0
    %3968 = vmatprep.mubr.f32.mxu0 0.0
    %3969 = vmatmul.mubr.f32.gmra.mxu0 %v3899
    %v3970 = vpop.f32.mrf.mxu0
    %v3971 = vadd.f32 0.0, %v3970
    %v3972 = vpop.f32.mrf.mxu0
    %3973 = vmatprep.mubr.f32.mxu0 0.0
    %3974 = vmatmul.mubr.f32.gmra.mxu0 %v3902
    %v3975 = vpop.f32.mrf.mxu0
    %v3976 = vadd.f32 0.0, %v3975
    %v3977 = vpop.f32.mrf.mxu0
    %3978 = vdwg.mxu0
    %3979 = vrot.lane.b32.xlu0 %v256, 56
    %v3980 = vpop.permute.xlu0 %3979
    %3981 = vrot.lane.b32.xlu0 %v261, 56
    %v3982 = vpop.permute.xlu0 %3981
    %v3986 = vsel %vm1309, %v3453, 0
    %v3989 = vsel %vm1309, %v3454, 0
    %3991 = vmatprep.subr.mxu0 0.0
    %3992 = vmatpush1.msra.mxu0 0.0
    %3993 = vmatprep.subr.mxu0 0.0
    %3994 = vmatpush1.msra.mxu0 0.0
    %3995 = vmatprep.subr.mxu0 0.0
    %3996 = vmatpush1.msra.mxu0 0.0
    %3997 = vmatprep.subr.mxu0 0.0
    %3998 = vmatpush1.msra.mxu0 0.0
    %3999 = vmatprep.subr.mxu0 0.0
    %4000 = vmatpush1.msra.mxu0 0.0
    %4001 = vmatprep.subr.mxu0 0.0
    %4002 = vmatpush1.msra.mxu0 0.0
    %4003 = vmatprep.subr.mxu0 0.0
    %4004 = vmatpush1.msra.mxu0 0.0
    %4005 = vmatprep.subr.mxu0 0.0
    %4006 = vmatpush1.msra.mxu0 0.0
    %4007 = vmatprep.subr.mxu0 0.0
    %4008 = vmatpush1.msra.mxu0 0.0
    %4009 = vmatprep.subr.mxu0 0.0
    %4010 = vmatpush1.msra.mxu0 0.0
    %4011 = vmatprep.subr.mxu0 0.0
    %4012 = vmatpush1.msra.mxu0 0.0
    %4013 = vmatprep.subr.mxu0 0.0
    %4014 = vmatpush1.msra.mxu0 0.0
    %4015 = vmatprep.subr.mxu0 0.0
    %4016 = vmatpush1.msra.mxu0 0.0
    %4017 = vmatprep.subr.mxu0 0.0
    %4018 = vmatpush1.msra.mxu0 0.0
    %4019 = vmatprep.subr.mxu0 0.0
    %4020 = vmatpush1.msra.mxu0 %v3982
    %4021 = vmatprep.subr.mxu0 0.0
    %4022 = vmatpush1.msra.mxu0 %v3980
    %4023 = vmatprep.subr.mxu0 0.0
    %4024 = vmatpush2.msra.mxu0 0.0
    %4025 = vmatprep.subr.mxu0 0.0
    %4026 = vmatpush2.msra.mxu0 0.0
    %4027 = vmatprep.subr.mxu0 0.0
    %4028 = vmatpush2.msra.mxu0 0.0
    %4029 = vmatprep.subr.mxu0 0.0
    %4030 = vmatpush2.msra.mxu0 0.0
    %4031 = vmatprep.subr.mxu0 0.0
    %4032 = vmatpush2.msra.mxu0 0.0
    %4033 = vmatprep.subr.mxu0 0.0
    %4034 = vmatpush2.msra.mxu0 0.0
    %4035 = vmatprep.subr.mxu0 0.0
    %4036 = vmatpush2.msra.mxu0 0.0
    %4037 = vmatprep.subr.mxu0 0.0
    %4038 = vmatpush2.msra.mxu0 0.0
    %4039 = vmatprep.subr.mxu0 0.0
    %4040 = vmatpush2.msra.mxu0 0.0
    %4041 = vmatprep.subr.mxu0 0.0
    %4042 = vmatpush2.msra.mxu0 0.0
    %4043 = vmatprep.subr.mxu0 0.0
    %4044 = vmatpush2.msra.mxu0 0.0
    %4045 = vmatprep.subr.mxu0 0.0
    %4046 = vmatpush2.msra.mxu0 0.0
    %4047 = vmatprep.subr.mxu0 0.0
    %4048 = vmatpush2.msra.mxu0 0.0
    %4049 = vmatprep.subr.mxu0 0.0
    %4050 = vmatpush2.msra.mxu0 0.0
    %4051 = vmatprep.subr.mxu0 0.0
    %4052 = vmatpush2.msra.mxu0 0.0
    %4053 = vmatprep.subr.mxu0 0.0
    %4054 = vmatpush2.msra.mxu0 0.0
    %4055 = vmatprep.mubr.f32.mxu0 0.0
    %4056 = vmatmul.mubr.f32.gmra.mxu0 %v3986
    %v4057 = vpop.f32.mrf.mxu0
    %v4058 = vadd.f32 0.0, %v4057
    %v4059 = vpop.f32.mrf.mxu0
    %4060 = vmatprep.mubr.f32.mxu0 0.0
    %4061 = vmatmul.mubr.f32.gmra.mxu0 %v3989
    %v4062 = vpop.f32.mrf.mxu0
    %v4063 = vadd.f32 0.0, %v4062
    %v4064 = vpop.f32.mrf.mxu0
    %4065 = vdwg.mxu0
    %4066 = vrot.lane.b32.xlu0 %v266, 56
    %v4067 = vpop.permute.xlu0 %4066
    %4068 = vrot.lane.b32.xlu0 %v271, 56
    %v4069 = vpop.permute.xlu0 %4068
    %v4073 = vsel %vm1309, %v3455, 0
    %v4076 = vsel %vm1309, %v3456, 0
    %4078 = vmatprep.subr.mxu0 0.0
    %4079 = vmatpush1.msra.mxu0 0.0
    %4080 = vmatprep.subr.mxu0 0.0
    %4081 = vmatpush1.msra.mxu0 0.0
    %4082 = vmatprep.subr.mxu0 0.0
    %4083 = vmatpush1.msra.mxu0 0.0
    %4084 = vmatprep.subr.mxu0 0.0
    %4085 = vmatpush1.msra.mxu0 0.0
    %4086 = vmatprep.subr.mxu0 0.0
    %4087 = vmatpush1.msra.mxu0 0.0
    %4088 = vmatprep.subr.mxu0 0.0
    %4089 = vmatpush1.msra.mxu0 0.0
    %4090 = vmatprep.subr.mxu0 0.0
    %4091 = vmatpush1.msra.mxu0 0.0
    %4092 = vmatprep.subr.mxu0 0.0
    %4093 = vmatpush1.msra.mxu0 0.0
    %4094 = vmatprep.subr.mxu0 0.0
    %4095 = vmatpush1.msra.mxu0 0.0
    %4096 = vmatprep.subr.mxu0 0.0
    %4097 = vmatpush1.msra.mxu0 0.0
    %4098 = vmatprep.subr.mxu0 0.0
    %4099 = vmatpush1.msra.mxu0 0.0
    %4100 = vmatprep.subr.mxu0 0.0
    %4101 = vmatpush1.msra.mxu0 0.0
    %4102 = vmatprep.subr.mxu0 0.0
    %4103 = vmatpush1.msra.mxu0 0.0
    %4104 = vmatprep.subr.mxu0 0.0
    %4105 = vmatpush1.msra.mxu0 0.0
    %4106 = vmatprep.subr.mxu0 0.0
    %4107 = vmatpush1.msra.mxu0 %v4069
    %4108 = vmatprep.subr.mxu0 0.0
    %4109 = vmatpush1.msra.mxu0 %v4067
    %4110 = vmatprep.subr.mxu0 0.0
    %4111 = vmatpush2.msra.mxu0 0.0
    %4112 = vmatprep.subr.mxu0 0.0
    %4113 = vmatpush2.msra.mxu0 0.0
    %4114 = vmatprep.subr.mxu0 0.0
    %4115 = vmatpush2.msra.mxu0 0.0
    %4116 = vmatprep.subr.mxu0 0.0
    %4117 = vmatpush2.msra.mxu0 0.0
    %4118 = vmatprep.subr.mxu0 0.0
    %4119 = vmatpush2.msra.mxu0 0.0
    %4120 = vmatprep.subr.mxu0 0.0
    %4121 = vmatpush2.msra.mxu0 0.0
    %4122 = vmatprep.subr.mxu0 0.0
    %4123 = vmatpush2.msra.mxu0 0.0
    %4124 = vmatprep.subr.mxu0 0.0
    %4125 = vmatpush2.msra.mxu0 0.0
    %4126 = vmatprep.subr.mxu0 0.0
    %4127 = vmatpush2.msra.mxu0 0.0
    %4128 = vmatprep.subr.mxu0 0.0
    %4129 = vmatpush2.msra.mxu0 0.0
    %4130 = vmatprep.subr.mxu0 0.0
    %4131 = vmatpush2.msra.mxu0 0.0
    %4132 = vmatprep.subr.mxu0 0.0
    %4133 = vmatpush2.msra.mxu0 0.0
    %4134 = vmatprep.subr.mxu0 0.0
    %4135 = vmatpush2.msra.mxu0 0.0
    %4136 = vmatprep.subr.mxu0 0.0
    %4137 = vmatpush2.msra.mxu0 0.0
    %4138 = vmatprep.subr.mxu0 0.0
    %4139 = vmatpush2.msra.mxu0 0.0
    %4140 = vmatprep.subr.mxu0 0.0
    %4141 = vmatpush2.msra.mxu0 0.0
    %4142 = vmatprep.mubr.f32.mxu0 0.0
    %4143 = vmatmul.mubr.f32.gmra.mxu0 %v4073
    %v4144 = vpop.f32.mrf.mxu0
    %v4145 = vadd.f32 0.0, %v4144
    %v4146 = vpop.f32.mrf.mxu0
    %4147 = vmatprep.mubr.f32.mxu0 0.0
    %4148 = vmatmul.mubr.f32.gmra.mxu0 %v4076
    %v4149 = vpop.f32.mrf.mxu0
    %v4150 = vadd.f32 0.0, %v4149
    %v4151 = vpop.f32.mrf.mxu0
    %4152 = vdwg.mxu0
    %4153 = vrot.lane.b32.xlu0 %v274, 112
    %v4154 = vpop.permute.xlu0 %4153
    %4155 = vrot.lane.b32.xlu0 %v275, 112
    %v4156 = vpop.permute.xlu0 %4155
    %4157 = vrot.lane.b32.xlu0 %v276, 112
    %v4158 = vpop.permute.xlu0 %4157
    %4159 = vrot.lane.b32.xlu0 %v277, 112
    %v4160 = vpop.permute.xlu0 %4159
    %4161 = vrot.lane.b32.xlu0 %v278, 112
    %v4162 = vpop.permute.xlu0 %4161
    %4163 = vrot.lane.b32.xlu0 %v279, 112
    %v4164 = vpop.permute.xlu0 %4163
    %4165 = vrot.lane.b32.xlu0 %v280, 112
    %v4166 = vpop.permute.xlu0 %4165
    %4167 = vrot.lane.b32.xlu0 %v281, 112
    %v4168 = vpop.permute.xlu0 %4167
    %4169 = vrot.lane.b32.xlu0 %v282, 112
    %v4170 = vpop.permute.xlu0 %4169
    %4171 = vrot.lane.b32.xlu0 %v283, 112
    %v4172 = vpop.permute.xlu0 %4171
    %4173 = vrot.lane.b32.xlu0 %v284, 112
    %v4174 = vpop.permute.xlu0 %4173
    %4175 = vrot.lane.b32.xlu0 %v285, 112
    %v4176 = vpop.permute.xlu0 %4175
    %4177 = vrot.lane.b32.xlu0 %v286, 112
    %v4178 = vpop.permute.xlu0 %4177
    %4179 = vrot.lane.b32.xlu0 %v287, 112
    %v4180 = vpop.permute.xlu0 %4179
    %4181 = vrot.lane.b32.xlu0 %v288, 112
    %v4182 = vpop.permute.xlu0 %4181
    %4183 = vrot.lane.b32.xlu0 %v289, 112
    %v4184 = vpop.permute.xlu0 %4183
    %v4201 = vsel %vm290, %v4154, 0.0
    %4202 = vadd.xlane.f32.xlu0 %v4201
    %v4203 = vpop.xlane.xlu0 %4202
    %v4204 = vsel %vm290, %v4156, 0.0
    %4205 = vadd.xlane.f32.xlu0 %v4204
    %v4206 = vpop.xlane.xlu0 %4205
    %v4207 = vsel %vm290, %v4158, 0.0
    %4208 = vadd.xlane.f32.xlu0 %v4207
    %v4209 = vpop.xlane.xlu0 %4208
    %v4210 = vsel %vm290, %v4160, 0.0
    %4211 = vadd.xlane.f32.xlu0 %v4210
    %v4212 = vpop.xlane.xlu0 %4211
    %v4213 = vsel %vm290, %v4162, 0.0
    %4214 = vadd.xlane.f32.xlu0 %v4213
    %v4215 = vpop.xlane.xlu0 %4214
    %v4216 = vsel %vm290, %v4164, 0.0
    %4217 = vadd.xlane.f32.xlu0 %v4216
    %v4218 = vpop.xlane.xlu0 %4217
    %v4219 = vsel %vm290, %v4166, 0.0
    %4220 = vadd.xlane.f32.xlu0 %v4219
    %v4221 = vpop.xlane.xlu0 %4220
    %v4222 = vsel %vm290, %v4168, 0.0
    %4223 = vadd.xlane.f32.xlu0 %v4222
    %v4224 = vpop.xlane.xlu0 %4223
    %v4225 = vsel %vm290, %v4170, 0.0
    %4226 = vadd.xlane.f32.xlu0 %v4225
    %v4227 = vpop.xlane.xlu0 %4226
    %v4228 = vsel %vm290, %v4172, 0.0
    %4229 = vadd.xlane.f32.xlu0 %v4228
    %v4230 = vpop.xlane.xlu0 %4229
    %v4231 = vsel %vm290, %v4174, 0.0
    %4232 = vadd.xlane.f32.xlu0 %v4231
    %v4233 = vpop.xlane.xlu0 %4232
    %v4234 = vsel %vm290, %v4176, 0.0
    %4235 = vadd.xlane.f32.xlu0 %v4234
    %v4236 = vpop.xlane.xlu0 %4235
    %v4237 = vsel %vm290, %v4178, 0.0
    %4238 = vadd.xlane.f32.xlu0 %v4237
    %v4239 = vpop.xlane.xlu0 %4238
    %v4240 = vsel %vm290, %v4180, 0.0
    %4241 = vadd.xlane.f32.xlu0 %v4240
    %v4242 = vpop.xlane.xlu0 %4241
    %v4243 = vsel %vm290, %v4182, 0.0
    %4244 = vadd.xlane.f32.xlu0 %v4243
    %v4245 = vpop.xlane.xlu0 %4244
    %v4246 = vsel %vm290, %v4184, 0.0
    %4247 = vadd.xlane.f32.xlu0 %v4246
    %v4248 = vpop.xlane.xlu0 %4247
    %v4249 = vmax.f32 %v4203, 1e-24
    %v4250 = vmax.f32 %v4206, 1e-24
    %v4251 = vmax.f32 %v4209, 1e-24
    %v4252 = vmax.f32 %v4212, 1e-24
    %v4253 = vmax.f32 %v4215, 1e-24
    %v4254 = vmax.f32 %v4218, 1e-24
    %v4255 = vmax.f32 %v4221, 1e-24
    %v4256 = vmax.f32 %v4224, 1e-24
    %v4257 = vmax.f32 %v4227, 1e-24
    %v4258 = vmax.f32 %v4230, 1e-24
    %v4259 = vmax.f32 %v4233, 1e-24
    %v4260 = vmax.f32 %v4236, 1e-24
    %v4261 = vmax.f32 %v4239, 1e-24
    %v4262 = vmax.f32 %v4242, 1e-24
    %v4263 = vmax.f32 %v4245, 1e-24
    %v4264 = vmax.f32 %v4248, 1e-24
    %v4265 = vrsqrt.pop %v4249
    %v4266 = vrsqrt.pop %v4250
    %v4267 = vrsqrt.pop %v4251
    %v4268 = vrsqrt.pop %v4252
    %v4269 = vrsqrt.pop %v4253
    %v4270 = vrsqrt.pop %v4254
    %v4271 = vrsqrt.pop %v4255
    %v4272 = vrsqrt.pop %v4256
    %v4273 = vrsqrt.pop %v4257
    %v4274 = vrsqrt.pop %v4258
    %v4275 = vrsqrt.pop %v4259
    %v4276 = vrsqrt.pop %v4260
    %v4277 = vrsqrt.pop %v4261
    %v4278 = vrsqrt.pop %v4262
    %v4279 = vrsqrt.pop %v4263
    %v4280 = vrsqrt.pop %v4264
    %v4281 = vmul.f32 %v196, %v4265
    %v4282 = vmul.f32 %v201, %v4266
    %v4283 = vmul.f32 %v206, %v4267
    %v4284 = vmul.f32 %v211, %v4268
    %v4285 = vmul.f32 %v216, %v4269
    %v4286 = vmul.f32 %v221, %v4270
    %v4287 = vmul.f32 %v226, %v4271
    %v4288 = vmul.f32 %v231, %v4272
    %v4289 = vmul.f32 %v236, %v4273
    %v4290 = vmul.f32 %v241, %v4274
    %v4291 = vmul.f32 %v246, %v4275
    %v4292 = vmul.f32 %v251, %v4276
    %v4293 = vmul.f32 %v256, %v4277
    %v4294 = vmul.f32 %v261, %v4278
    %v4295 = vmul.f32 %v266, %v4279
    %v4296 = vmul.f32 %v271, %v4280
    %4297 = vrot.lane.b32.xlu0 %v274, 80
    %v4298 = vpop.permute.xlu0 %4297
    %4299 = vrot.lane.b32.xlu0 %v275, 80
    %v4300 = vpop.permute.xlu0 %4299
    %4301 = vrot.lane.b32.xlu0 %v276, 80
    %v4302 = vpop.permute.xlu0 %4301
    %4303 = vrot.lane.b32.xlu0 %v277, 80
    %v4304 = vpop.permute.xlu0 %4303
    %4305 = vrot.lane.b32.xlu0 %v278, 80
    %v4306 = vpop.permute.xlu0 %4305
    %4307 = vrot.lane.b32.xlu0 %v279, 80
    %v4308 = vpop.permute.xlu0 %4307
    %4309 = vrot.lane.b32.xlu0 %v280, 80
    %v4310 = vpop.permute.xlu0 %4309
    %4311 = vrot.lane.b32.xlu0 %v281, 80
    %v4312 = vpop.permute.xlu0 %4311
    %4313 = vrot.lane.b32.xlu0 %v282, 80
    %v4314 = vpop.permute.xlu0 %4313
    %4315 = vrot.lane.b32.xlu0 %v283, 80
    %v4316 = vpop.permute.xlu0 %4315
    %4317 = vrot.lane.b32.xlu0 %v284, 80
    %v4318 = vpop.permute.xlu0 %4317
    %4319 = vrot.lane.b32.xlu0 %v285, 80
    %v4320 = vpop.permute.xlu0 %4319
    %4321 = vrot.lane.b32.xlu0 %v286, 80
    %v4322 = vpop.permute.xlu0 %4321
    %4323 = vrot.lane.b32.xlu0 %v287, 80
    %v4324 = vpop.permute.xlu0 %4323
    %4325 = vrot.lane.b32.xlu0 %v288, 80
    %v4326 = vpop.permute.xlu0 %4325
    %4327 = vrot.lane.b32.xlu0 %v289, 80
    %v4328 = vpop.permute.xlu0 %4327
    %v4345 = vsel %vm290, %v4298, 0.0
    %4346 = vadd.xlane.f32.xlu0 %v4345
    %v4347 = vpop.xlane.xlu0 %4346
    %v4348 = vsel %vm290, %v4300, 0.0
    %4349 = vadd.xlane.f32.xlu0 %v4348
    %v4350 = vpop.xlane.xlu0 %4349
    %v4351 = vsel %vm290, %v4302, 0.0
    %4352 = vadd.xlane.f32.xlu0 %v4351
    %v4353 = vpop.xlane.xlu0 %4352
    %v4354 = vsel %vm290, %v4304, 0.0
    %4355 = vadd.xlane.f32.xlu0 %v4354
    %v4356 = vpop.xlane.xlu0 %4355
    %v4357 = vsel %vm290, %v4306, 0.0
    %4358 = vadd.xlane.f32.xlu0 %v4357
    %v4359 = vpop.xlane.xlu0 %4358
    %v4360 = vsel %vm290, %v4308, 0.0
    %4361 = vadd.xlane.f32.xlu0 %v4360
    %v4362 = vpop.xlane.xlu0 %4361
    %v4363 = vsel %vm290, %v4310, 0.0
    %4364 = vadd.xlane.f32.xlu0 %v4363
    %v4365 = vpop.xlane.xlu0 %4364
    %v4366 = vsel %vm290, %v4312, 0.0
    %4367 = vadd.xlane.f32.xlu0 %v4366
    %v4368 = vpop.xlane.xlu0 %4367
    %v4369 = vsel %vm290, %v4314, 0.0
    %4370 = vadd.xlane.f32.xlu0 %v4369
    %v4371 = vpop.xlane.xlu0 %4370
    %v4372 = vsel %vm290, %v4316, 0.0
    %4373 = vadd.xlane.f32.xlu0 %v4372
    %v4374 = vpop.xlane.xlu0 %4373
    %v4375 = vsel %vm290, %v4318, 0.0
    %4376 = vadd.xlane.f32.xlu0 %v4375
    %v4377 = vpop.xlane.xlu0 %4376
    %v4378 = vsel %vm290, %v4320, 0.0
    %4379 = vadd.xlane.f32.xlu0 %v4378
    %v4380 = vpop.xlane.xlu0 %4379
    %v4381 = vsel %vm290, %v4322, 0.0
    %4382 = vadd.xlane.f32.xlu0 %v4381
    %v4383 = vpop.xlane.xlu0 %4382
    %v4384 = vsel %vm290, %v4324, 0.0
    %4385 = vadd.xlane.f32.xlu0 %v4384
    %v4386 = vpop.xlane.xlu0 %4385
    %v4387 = vsel %vm290, %v4326, 0.0
    %4388 = vadd.xlane.f32.xlu0 %v4387
    %v4389 = vpop.xlane.xlu0 %4388
    %v4390 = vsel %vm290, %v4328, 0.0
    %4391 = vadd.xlane.f32.xlu0 %v4390
    %v4392 = vpop.xlane.xlu0 %4391
    %v4393 = vmax.f32 %v4347, 1e-24
    %v4394 = vmax.f32 %v4350, 1e-24
    %v4395 = vmax.f32 %v4353, 1e-24
    %v4396 = vmax.f32 %v4356, 1e-24
    %v4397 = vmax.f32 %v4359, 1e-24
    %v4398 = vmax.f32 %v4362, 1e-24
    %v4399 = vmax.f32 %v4365, 1e-24
    %v4400 = vmax.f32 %v4368, 1e-24
    %v4401 = vmax.f32 %v4371, 1e-24
    %v4402 = vmax.f32 %v4374, 1e-24
    %v4403 = vmax.f32 %v4377, 1e-24
    %v4404 = vmax.f32 %v4380, 1e-24
    %v4405 = vmax.f32 %v4383, 1e-24
    %v4406 = vmax.f32 %v4386, 1e-24
    %v4407 = vmax.f32 %v4389, 1e-24
    %v4408 = vmax.f32 %v4392, 1e-24
    %v4409 = vrsqrt.pop %v4393
    %v4410 = vrsqrt.pop %v4394
    %v4411 = vrsqrt.pop %v4395
    %v4412 = vrsqrt.pop %v4396
    %v4413 = vrsqrt.pop %v4397
    %v4414 = vrsqrt.pop %v4398
    %v4415 = vrsqrt.pop %v4399
    %v4416 = vrsqrt.pop %v4400
    %v4417 = vrsqrt.pop %v4401
    %v4418 = vrsqrt.pop %v4402
    %v4419 = vrsqrt.pop %v4403
    %v4420 = vrsqrt.pop %v4404
    %v4421 = vrsqrt.pop %v4405
    %v4422 = vrsqrt.pop %v4406
    %v4423 = vrsqrt.pop %v4407
    %v4424 = vrsqrt.pop %v4408
    %v4425 = vmul.f32 %v196, %v4409
    %v4426 = vmul.f32 %v201, %v4410
    %v4427 = vmul.f32 %v206, %v4411
    %v4428 = vmul.f32 %v211, %v4412
    %v4429 = vmul.f32 %v216, %v4413
    %v4430 = vmul.f32 %v221, %v4414
    %v4431 = vmul.f32 %v226, %v4415
    %v4432 = vmul.f32 %v231, %v4416
    %v4433 = vmul.f32 %v236, %v4417
    %v4434 = vmul.f32 %v241, %v4418
    %v4435 = vmul.f32 %v246, %v4419
    %v4436 = vmul.f32 %v251, %v4420
    %v4437 = vmul.f32 %v256, %v4421
    %v4438 = vmul.f32 %v261, %v4422
    %v4439 = vmul.f32 %v266, %v4423
    %v4440 = vmul.f32 %v271, %v4424
    %s4441 = sld [smem:[#allocation2 + $0x2]]
    %v4442 = vstv %s4441
    %v4443 = vmul.f32 %v4281, %v4442
    %v4444 = vmul.f32 %v4282, %v4442
    %v4445 = vmul.f32 %v4283, %v4442
    %v4446 = vmul.f32 %v4284, %v4442
    %v4447 = vmul.f32 %v4285, %v4442
    %v4448 = vmul.f32 %v4286, %v4442
    %v4449 = vmul.f32 %v4287, %v4442
    %v4450 = vmul.f32 %v4288, %v4442
    %v4451 = vmul.f32 %v4289, %v4442
    %v4452 = vmul.f32 %v4290, %v4442
    %v4453 = vmul.f32 %v4291, %v4442
    %v4454 = vmul.f32 %v4292, %v4442
    %v4455 = vmul.f32 %v4293, %v4442
    %v4456 = vmul.f32 %v4294, %v4442
    %v4457 = vmul.f32 %v4295, %v4442
    %v4458 = vmul.f32 %v4296, %v4442
    %s4459 = scalar_lea.vmem [#allocation5], 256
    %v4460 = vld [vmem:[%s4459] sm:$0xff]
    %v4461 = vld [vmem:[%s4459 + $0x8] sm:$0xff]
    %v4462 = vld [vmem:[%s4459 + $0x10] sm:$0xff]
    %v4463 = vld [vmem:[%s4459 + $0x18] sm:$0xff]
    %v4464 = vld [vmem:[%s4459 + $0x20] sm:$0xff]
    %v4465 = vld [vmem:[%s4459 + $0x28] sm:$0xff]
    %v4466 = vld [vmem:[%s4459 + $0x30] sm:$0xff]
    %v4467 = vld [vmem:[%s4459 + $0x38] sm:$0xff]
    %v4468 = vld [vmem:[%s4459 + $0x40] sm:$0xff]
    %v4469 = vld [vmem:[%s4459 + $0x48] sm:$0xff]
    %v4470 = vld [vmem:[%s4459 + $0x50] sm:$0xff]
    %v4471 = vld [vmem:[%s4459 + $0x58] sm:$0xff]
    %v4472 = vld [vmem:[%s4459 + $0x60] sm:$0xff]
    %v4473 = vld [vmem:[%s4459 + $0x68] sm:$0xff]
    %v4474 = vld [vmem:[%s4459 + $0x70] sm:$0xff]
    %v4475 = vld [vmem:[%s4459 + $0x78] sm:$0xff]
    %4478 = vrot.lane.b32.xlu0 %v4443, 112
    %v4479 = vpop.permute.xlu0 %4478
    %4480 = vrot.lane.b32.xlu0 %v4444, 112
    %v4481 = vpop.permute.xlu0 %4480
    %4484 = vrot.lane.b32.xlu0 %v4425, 80
    %v4485 = vpop.permute.xlu0 %4484
    %4486 = vrot.lane.b32.xlu0 %v4426, 80
    %v4487 = vpop.permute.xlu0 %4486
    %v4488 = vsel %vm290, %v4479, 0
    %v4490 = vsel %vm290, %v4481, 0
    %v4492 = vsel %vm290, %v4485, 0
    %v4494 = vsel %vm290, %v4487, 0
    %4496 = vmatprep.subr.mxu0 0.0
    %4497 = vmatpush1.xpose.msra.mxu0 0.0
    %4498 = vmatprep.subr.mxu0 0.0
    %4499 = vmatpush1.xpose.msra.mxu0 0.0
    %4500 = vmatprep.subr.mxu0 0.0
    %4501 = vmatpush1.xpose.msra.mxu0 0.0
    %4502 = vmatprep.subr.mxu0 0.0
    %4503 = vmatpush1.xpose.msra.mxu0 0.0
    %4504 = vmatprep.subr.mxu0 0.0
    %4505 = vmatpush1.xpose.msra.mxu0 0.0
    %4506 = vmatprep.subr.mxu0 0.0
    %4507 = vmatpush1.xpose.msra.mxu0 0.0
    %4508 = vmatprep.subr.mxu0 0.0
    %4509 = vmatpush1.xpose.msra.mxu0 0.0
    %4510 = vmatprep.subr.mxu0 0.0
    %4511 = vmatpush1.xpose.msra.mxu0 0.0
    %4512 = vmatprep.subr.mxu0 0.0
    %4513 = vmatpush1.xpose.msra.mxu0 0.0
    %4514 = vmatprep.subr.mxu0 0.0
    %4515 = vmatpush1.xpose.msra.mxu0 0.0
    %4516 = vmatprep.subr.mxu0 0.0
    %4517 = vmatpush1.xpose.msra.mxu0 0.0
    %4518 = vmatprep.subr.mxu0 0.0
    %4519 = vmatpush1.xpose.msra.mxu0 0.0
    %4520 = vmatprep.subr.mxu0 0.0
    %4521 = vmatpush1.xpose.msra.mxu0 0.0
    %4522 = vmatprep.subr.mxu0 0.0
    %4523 = vmatpush1.xpose.msra.mxu0 0.0
    %4524 = vmatprep.subr.mxu0 0.0
    %4525 = vmatpush1.xpose.msra.mxu0 %v4494
    %4526 = vmatprep.subr.mxu0 0.0
    %4527 = vmatpush1.xpose.msra.mxu0 %v4492
    %4528 = vmatprep.subr.mxu0 0.0
    %4529 = vmatpush2.xpose.msra.mxu0 0.0
    %4530 = vmatprep.subr.mxu0 0.0
    %4531 = vmatpush2.xpose.msra.mxu0 0.0
    %4532 = vmatprep.subr.mxu0 0.0
    %4533 = vmatpush2.xpose.msra.mxu0 0.0
    %4534 = vmatprep.subr.mxu0 0.0
    %4535 = vmatpush2.xpose.msra.mxu0 0.0
    %4536 = vmatprep.subr.mxu0 0.0
    %4537 = vmatpush2.xpose.msra.mxu0 0.0
    %4538 = vmatprep.subr.mxu0 0.0
    %4539 = vmatpush2.xpose.msra.mxu0 0.0
    %4540 = vmatprep.subr.mxu0 0.0
    %4541 = vmatpush2.xpose.msra.mxu0 0.0
    %4542 = vmatprep.subr.mxu0 0.0
    %4543 = vmatpush2.xpose.msra.mxu0 0.0
    %4544 = vmatprep.subr.mxu0 0.0
    %4545 = vmatpush2.xpose.msra.mxu0 0.0
    %4546 = vmatprep.subr.mxu0 0.0
    %4547 = vmatpush2.xpose.msra.mxu0 0.0
    %4548 = vmatprep.subr.mxu0 0.0
    %4549 = vmatpush2.xpose.msra.mxu0 0.0
    %4550 = vmatprep.subr.mxu0 0.0
    %4551 = vmatpush2.xpose.msra.mxu0 0.0
    %4552 = vmatprep.subr.mxu0 0.0
    %4553 = vmatpush2.xpose.msra.mxu0 0.0
    %4554 = vmatprep.subr.mxu0 0.0
    %4555 = vmatpush2.xpose.msra.mxu0 0.0
    %4556 = vmatprep.subr.mxu0 0.0
    %4557 = vmatpush2.xpose.msra.mxu0 0.0
    %4558 = vmatprep.subr.mxu0 0.0
    %4559 = vmatpush2.xpose.msra.mxu0 0.0
    %4560 = vmatprep.mubr.f32.mxu0 0.0
    %4561 = vmatmul.mubr.f32.gmra.mxu0 %v4488
    %v4562 = vpop.f32.mrf.mxu0
    %v4563 = vadd.f32 %v4460, %v4562
    %v4564 = vpop.f32.mrf.mxu0
    %4565 = vmatprep.mubr.f32.mxu0 0.0
    %4566 = vmatmul.mubr.f32.gmra.mxu0 %v4490
    %v4567 = vpop.f32.mrf.mxu0
    %v4568 = vadd.f32 %v4461, %v4567
    %v4569 = vpop.f32.mrf.mxu0
    %4570 = vdwg.mxu0
    %4573 = vrot.lane.b32.xlu0 %v4445, 112
    %v4574 = vpop.permute.xlu0 %4573
    %4575 = vrot.lane.b32.xlu0 %v4446, 112
    %v4576 = vpop.permute.xlu0 %4575
    %4579 = vrot.lane.b32.xlu0 %v4427, 80
    %v4580 = vpop.permute.xlu0 %4579
    %4581 = vrot.lane.b32.xlu0 %v4428, 80
    %v4582 = vpop.permute.xlu0 %4581
    %v4583 = vsel %vm290, %v4574, 0
    %v4585 = vsel %vm290, %v4576, 0
    %v4587 = vsel %vm290, %v4580, 0
    %v4589 = vsel %vm290, %v4582, 0
    %4591 = vmatprep.subr.mxu0 0.0
    %4592 = vmatpush1.xpose.msra.mxu0 0.0
    %4593 = vmatprep.subr.mxu0 0.0
    %4594 = vmatpush1.xpose.msra.mxu0 0.0
    %4595 = vmatprep.subr.mxu0 0.0
    %4596 = vmatpush1.xpose.msra.mxu0 0.0
    %4597 = vmatprep.subr.mxu0 0.0
    %4598 = vmatpush1.xpose.msra.mxu0 0.0
    %4599 = vmatprep.subr.mxu0 0.0
    %4600 = vmatpush1.xpose.msra.mxu0 0.0
    %4601 = vmatprep.subr.mxu0 0.0
    %4602 = vmatpush1.xpose.msra.mxu0 0.0
    %4603 = vmatprep.subr.mxu0 0.0
    %4604 = vmatpush1.xpose.msra.mxu0 0.0
    %4605 = vmatprep.subr.mxu0 0.0
    %4606 = vmatpush1.xpose.msra.mxu0 0.0
    %4607 = vmatprep.subr.mxu0 0.0
    %4608 = vmatpush1.xpose.msra.mxu0 0.0
    %4609 = vmatprep.subr.mxu0 0.0
    %4610 = vmatpush1.xpose.msra.mxu0 0.0
    %4611 = vmatprep.subr.mxu0 0.0
    %4612 = vmatpush1.xpose.msra.mxu0 0.0
    %4613 = vmatprep.subr.mxu0 0.0
    %4614 = vmatpush1.xpose.msra.mxu0 0.0
    %4615 = vmatprep.subr.mxu0 0.0
    %4616 = vmatpush1.xpose.msra.mxu0 0.0
    %4617 = vmatprep.subr.mxu0 0.0
    %4618 = vmatpush1.xpose.msra.mxu0 0.0
    %4619 = vmatprep.subr.mxu0 0.0
    %4620 = vmatpush1.xpose.msra.mxu0 %v4589
    %4621 = vmatprep.subr.mxu0 0.0
    %4622 = vmatpush1.xpose.msra.mxu0 %v4587
    %4623 = vmatprep.subr.mxu0 0.0
    %4624 = vmatpush2.xpose.msra.mxu0 0.0
    %4625 = vmatprep.subr.mxu0 0.0
    %4626 = vmatpush2.xpose.msra.mxu0 0.0
    %4627 = vmatprep.subr.mxu0 0.0
    %4628 = vmatpush2.xpose.msra.mxu0 0.0
    %4629 = vmatprep.subr.mxu0 0.0
    %4630 = vmatpush2.xpose.msra.mxu0 0.0
    %4631 = vmatprep.subr.mxu0 0.0
    %4632 = vmatpush2.xpose.msra.mxu0 0.0
    %4633 = vmatprep.subr.mxu0 0.0
    %4634 = vmatpush2.xpose.msra.mxu0 0.0
    %4635 = vmatprep.subr.mxu0 0.0
    %4636 = vmatpush2.xpose.msra.mxu0 0.0
    %4637 = vmatprep.subr.mxu0 0.0
    %4638 = vmatpush2.xpose.msra.mxu0 0.0
    %4639 = vmatprep.subr.mxu0 0.0
    %4640 = vmatpush2.xpose.msra.mxu0 0.0
    %4641 = vmatprep.subr.mxu0 0.0
    %4642 = vmatpush2.xpose.msra.mxu0 0.0
    %4643 = vmatprep.subr.mxu0 0.0
    %4644 = vmatpush2.xpose.msra.mxu0 0.0
    %4645 = vmatprep.subr.mxu0 0.0
    %4646 = vmatpush2.xpose.msra.mxu0 0.0
    %4647 = vmatprep.subr.mxu0 0.0
    %4648 = vmatpush2.xpose.msra.mxu0 0.0
    %4649 = vmatprep.subr.mxu0 0.0
    %4650 = vmatpush2.xpose.msra.mxu0 0.0
    %4651 = vmatprep.subr.mxu0 0.0
    %4652 = vmatpush2.xpose.msra.mxu0 0.0
    %4653 = vmatprep.subr.mxu0 0.0
    %4654 = vmatpush2.xpose.msra.mxu0 0.0
    %4655 = vmatprep.mubr.f32.mxu0 0.0
    %4656 = vmatmul.mubr.f32.gmra.mxu0 %v4583
    %v4657 = vpop.f32.mrf.mxu0
    %v4658 = vadd.f32 %v4462, %v4657
    %v4659 = vpop.f32.mrf.mxu0
    %4660 = vmatprep.mubr.f32.mxu0 0.0
    %4661 = vmatmul.mubr.f32.gmra.mxu0 %v4585
    %v4662 = vpop.f32.mrf.mxu0
    %v4663 = vadd.f32 %v4463, %v4662
    %v4664 = vpop.f32.mrf.mxu0
    %4665 = vdwg.mxu0
    %4668 = vrot.lane.b32.xlu0 %v4447, 112
    %v4669 = vpop.permute.xlu0 %4668
    %4670 = vrot.lane.b32.xlu0 %v4448, 112
    %v4671 = vpop.permute.xlu0 %4670
    %4674 = vrot.lane.b32.xlu0 %v4429, 80
    %v4675 = vpop.permute.xlu0 %4674
    %4676 = vrot.lane.b32.xlu0 %v4430, 80
    %v4677 = vpop.permute.xlu0 %4676
    %v4678 = vsel %vm290, %v4669, 0
    %v4680 = vsel %vm290, %v4671, 0
    %v4682 = vsel %vm290, %v4675, 0
    %v4684 = vsel %vm290, %v4677, 0
    %4686 = vmatprep.subr.mxu0 0.0
    %4687 = vmatpush1.xpose.msra.mxu0 0.0
    %4688 = vmatprep.subr.mxu0 0.0
    %4689 = vmatpush1.xpose.msra.mxu0 0.0
    %4690 = vmatprep.subr.mxu0 0.0
    %4691 = vmatpush1.xpose.msra.mxu0 0.0
    %4692 = vmatprep.subr.mxu0 0.0
    %4693 = vmatpush1.xpose.msra.mxu0 0.0
    %4694 = vmatprep.subr.mxu0 0.0
    %4695 = vmatpush1.xpose.msra.mxu0 0.0
    %4696 = vmatprep.subr.mxu0 0.0
    %4697 = vmatpush1.xpose.msra.mxu0 0.0
    %4698 = vmatprep.subr.mxu0 0.0
    %4699 = vmatpush1.xpose.msra.mxu0 0.0
    %4700 = vmatprep.subr.mxu0 0.0
    %4701 = vmatpush1.xpose.msra.mxu0 0.0
    %4702 = vmatprep.subr.mxu0 0.0
    %4703 = vmatpush1.xpose.msra.mxu0 0.0
    %4704 = vmatprep.subr.mxu0 0.0
    %4705 = vmatpush1.xpose.msra.mxu0 0.0
    %4706 = vmatprep.subr.mxu0 0.0
    %4707 = vmatpush1.xpose.msra.mxu0 0.0
    %4708 = vmatprep.subr.mxu0 0.0
    %4709 = vmatpush1.xpose.msra.mxu0 0.0
    %4710 = vmatprep.subr.mxu0 0.0
    %4711 = vmatpush1.xpose.msra.mxu0 0.0
    %4712 = vmatprep.subr.mxu0 0.0
    %4713 = vmatpush1.xpose.msra.mxu0 0.0
    %4714 = vmatprep.subr.mxu0 0.0
    %4715 = vmatpush1.xpose.msra.mxu0 %v4684
    %4716 = vmatprep.subr.mxu0 0.0
    %4717 = vmatpush1.xpose.msra.mxu0 %v4682
    %4718 = vmatprep.subr.mxu0 0.0
    %4719 = vmatpush2.xpose.msra.mxu0 0.0
    %4720 = vmatprep.subr.mxu0 0.0
    %4721 = vmatpush2.xpose.msra.mxu0 0.0
    %4722 = vmatprep.subr.mxu0 0.0
    %4723 = vmatpush2.xpose.msra.mxu0 0.0
    %4724 = vmatprep.subr.mxu0 0.0
    %4725 = vmatpush2.xpose.msra.mxu0 0.0
    %4726 = vmatprep.subr.mxu0 0.0
    %4727 = vmatpush2.xpose.msra.mxu0 0.0
    %4728 = vmatprep.subr.mxu0 0.0
    %4729 = vmatpush2.xpose.msra.mxu0 0.0
    %4730 = vmatprep.subr.mxu0 0.0
    %4731 = vmatpush2.xpose.msra.mxu0 0.0
    %4732 = vmatprep.subr.mxu0 0.0
    %4733 = vmatpush2.xpose.msra.mxu0 0.0
    %4734 = vmatprep.subr.mxu0 0.0
    %4735 = vmatpush2.xpose.msra.mxu0 0.0
    %4736 = vmatprep.subr.mxu0 0.0
    %4737 = vmatpush2.xpose.msra.mxu0 0.0
    %4738 = vmatprep.subr.mxu0 0.0
    %4739 = vmatpush2.xpose.msra.mxu0 0.0
    %4740 = vmatprep.subr.mxu0 0.0
    %4741 = vmatpush2.xpose.msra.mxu0 0.0
    %4742 = vmatprep.subr.mxu0 0.0
    %4743 = vmatpush2.xpose.msra.mxu0 0.0
    %4744 = vmatprep.subr.mxu0 0.0
    %4745 = vmatpush2.xpose.msra.mxu0 0.0
    %4746 = vmatprep.subr.mxu0 0.0
    %4747 = vmatpush2.xpose.msra.mxu0 0.0
    %4748 = vmatprep.subr.mxu0 0.0
    %4749 = vmatpush2.xpose.msra.mxu0 0.0
    %4750 = vmatprep.mubr.f32.mxu0 0.0
    %4751 = vmatmul.mubr.f32.gmra.mxu0 %v4678
    %v4752 = vpop.f32.mrf.mxu0
    %v4753 = vadd.f32 %v4464, %v4752
    %v4754 = vpop.f32.mrf.mxu0
    %4755 = vmatprep.mubr.f32.mxu0 0.0
    %4756 = vmatmul.mubr.f32.gmra.mxu0 %v4680
    %v4757 = vpop.f32.mrf.mxu0
    %v4758 = vadd.f32 %v4465, %v4757
    %v4759 = vpop.f32.mrf.mxu0
    %4760 = vdwg.mxu0
    %4763 = vrot.lane.b32.xlu0 %v4449, 112
    %v4764 = vpop.permute.xlu0 %4763
    %4765 = vrot.lane.b32.xlu0 %v4450, 112
    %v4766 = vpop.permute.xlu0 %4765
    %4769 = vrot.lane.b32.xlu0 %v4431, 80
    %v4770 = vpop.permute.xlu0 %4769
    %4771 = vrot.lane.b32.xlu0 %v4432, 80
    %v4772 = vpop.permute.xlu0 %4771
    %v4773 = vsel %vm290, %v4764, 0
    %v4775 = vsel %vm290, %v4766, 0
    %v4777 = vsel %vm290, %v4770, 0
    %v4779 = vsel %vm290, %v4772, 0
    %4781 = vmatprep.subr.mxu0 0.0
    %4782 = vmatpush1.xpose.msra.mxu0 0.0
    %4783 = vmatprep.subr.mxu0 0.0
    %4784 = vmatpush1.xpose.msra.mxu0 0.0
    %4785 = vmatprep.subr.mxu0 0.0
    %4786 = vmatpush1.xpose.msra.mxu0 0.0
    %4787 = vmatprep.subr.mxu0 0.0
    %4788 = vmatpush1.xpose.msra.mxu0 0.0
    %4789 = vmatprep.subr.mxu0 0.0
    %4790 = vmatpush1.xpose.msra.mxu0 0.0
    %4791 = vmatprep.subr.mxu0 0.0
    %4792 = vmatpush1.xpose.msra.mxu0 0.0
    %4793 = vmatprep.subr.mxu0 0.0
    %4794 = vmatpush1.xpose.msra.mxu0 0.0
    %4795 = vmatprep.subr.mxu0 0.0
    %4796 = vmatpush1.xpose.msra.mxu0 0.0
    %4797 = vmatprep.subr.mxu0 0.0
    %4798 = vmatpush1.xpose.msra.mxu0 0.0
    %4799 = vmatprep.subr.mxu0 0.0
    %4800 = vmatpush1.xpose.msra.mxu0 0.0
    %4801 = vmatprep.subr.mxu0 0.0
    %4802 = vmatpush1.xpose.msra.mxu0 0.0
    %4803 = vmatprep.subr.mxu0 0.0
    %4804 = vmatpush1.xpose.msra.mxu0 0.0
    %4805 = vmatprep.subr.mxu0 0.0
    %4806 = vmatpush1.xpose.msra.mxu0 0.0
    %4807 = vmatprep.subr.mxu0 0.0
    %4808 = vmatpush1.xpose.msra.mxu0 0.0
    %4809 = vmatprep.subr.mxu0 0.0
    %4810 = vmatpush1.xpose.msra.mxu0 %v4779
    %4811 = vmatprep.subr.mxu0 0.0
    %4812 = vmatpush1.xpose.msra.mxu0 %v4777
    %4813 = vmatprep.subr.mxu0 0.0
    %4814 = vmatpush2.xpose.msra.mxu0 0.0
    %4815 = vmatprep.subr.mxu0 0.0
    %4816 = vmatpush2.xpose.msra.mxu0 0.0
    %4817 = vmatprep.subr.mxu0 0.0
    %4818 = vmatpush2.xpose.msra.mxu0 0.0
    %4819 = vmatprep.subr.mxu0 0.0
    %4820 = vmatpush2.xpose.msra.mxu0 0.0
    %4821 = vmatprep.subr.mxu0 0.0
    %4822 = vmatpush2.xpose.msra.mxu0 0.0
    %4823 = vmatprep.subr.mxu0 0.0
    %4824 = vmatpush2.xpose.msra.mxu0 0.0
    %4825 = vmatprep.subr.mxu0 0.0
    %4826 = vmatpush2.xpose.msra.mxu0 0.0
    %4827 = vmatprep.subr.mxu0 0.0
    %4828 = vmatpush2.xpose.msra.mxu0 0.0
    %4829 = vmatprep.subr.mxu0 0.0
    %4830 = vmatpush2.xpose.msra.mxu0 0.0
    %4831 = vmatprep.subr.mxu0 0.0
    %4832 = vmatpush2.xpose.msra.mxu0 0.0
    %4833 = vmatprep.subr.mxu0 0.0
    %4834 = vmatpush2.xpose.msra.mxu0 0.0
    %4835 = vmatprep.subr.mxu0 0.0
    %4836 = vmatpush2.xpose.msra.mxu0 0.0
    %4837 = vmatprep.subr.mxu0 0.0
    %4838 = vmatpush2.xpose.msra.mxu0 0.0
    %4839 = vmatprep.subr.mxu0 0.0
    %4840 = vmatpush2.xpose.msra.mxu0 0.0
    %4841 = vmatprep.subr.mxu0 0.0
    %4842 = vmatpush2.xpose.msra.mxu0 0.0
    %4843 = vmatprep.subr.mxu0 0.0
    %4844 = vmatpush2.xpose.msra.mxu0 0.0
    %4845 = vmatprep.mubr.f32.mxu0 0.0
    %4846 = vmatmul.mubr.f32.gmra.mxu0 %v4773
    %v4847 = vpop.f32.mrf.mxu0
    %v4848 = vadd.f32 %v4466, %v4847
    %v4849 = vpop.f32.mrf.mxu0
    %4850 = vmatprep.mubr.f32.mxu0 0.0
    %4851 = vmatmul.mubr.f32.gmra.mxu0 %v4775
    %v4852 = vpop.f32.mrf.mxu0
    %v4853 = vadd.f32 %v4467, %v4852
    %v4854 = vpop.f32.mrf.mxu0
    %4855 = vdwg.mxu0
    %4858 = vrot.lane.b32.xlu0 %v4451, 112
    %v4859 = vpop.permute.xlu0 %4858
    %4860 = vrot.lane.b32.xlu0 %v4452, 112
    %v4861 = vpop.permute.xlu0 %4860
    %4864 = vrot.lane.b32.xlu0 %v4433, 80
    %v4865 = vpop.permute.xlu0 %4864
    %4866 = vrot.lane.b32.xlu0 %v4434, 80
    %v4867 = vpop.permute.xlu0 %4866
    %v4868 = vsel %vm290, %v4859, 0
    %v4870 = vsel %vm290, %v4861, 0
    %v4872 = vsel %vm290, %v4865, 0
    %v4874 = vsel %vm290, %v4867, 0
    %4876 = vmatprep.subr.mxu0 0.0
    %4877 = vmatpush1.xpose.msra.mxu0 0.0
    %4878 = vmatprep.subr.mxu0 0.0
    %4879 = vmatpush1.xpose.msra.mxu0 0.0
    %4880 = vmatprep.subr.mxu0 0.0
    %4881 = vmatpush1.xpose.msra.mxu0 0.0
    %4882 = vmatprep.subr.mxu0 0.0
    %4883 = vmatpush1.xpose.msra.mxu0 0.0
    %4884 = vmatprep.subr.mxu0 0.0
    %4885 = vmatpush1.xpose.msra.mxu0 0.0
    %4886 = vmatprep.subr.mxu0 0.0
    %4887 = vmatpush1.xpose.msra.mxu0 0.0
    %4888 = vmatprep.subr.mxu0 0.0
    %4889 = vmatpush1.xpose.msra.mxu0 0.0
    %4890 = vmatprep.subr.mxu0 0.0
    %4891 = vmatpush1.xpose.msra.mxu0 0.0
    %4892 = vmatprep.subr.mxu0 0.0
    %4893 = vmatpush1.xpose.msra.mxu0 0.0
    %4894 = vmatprep.subr.mxu0 0.0
    %4895 = vmatpush1.xpose.msra.mxu0 0.0
    %4896 = vmatprep.subr.mxu0 0.0
    %4897 = vmatpush1.xpose.msra.mxu0 0.0
    %4898 = vmatprep.subr.mxu0 0.0
    %4899 = vmatpush1.xpose.msra.mxu0 0.0
    %4900 = vmatprep.subr.mxu0 0.0
    %4901 = vmatpush1.xpose.msra.mxu0 0.0
    %4902 = vmatprep.subr.mxu0 0.0
    %4903 = vmatpush1.xpose.msra.mxu0 0.0
    %4904 = vmatprep.subr.mxu0 0.0
    %4905 = vmatpush1.xpose.msra.mxu0 %v4874
    %4906 = vmatprep.subr.mxu0 0.0
    %4907 = vmatpush1.xpose.msra.mxu0 %v4872
    %4908 = vmatprep.subr.mxu0 0.0
    %4909 = vmatpush2.xpose.msra.mxu0 0.0
    %4910 = vmatprep.subr.mxu0 0.0
    %4911 = vmatpush2.xpose.msra.mxu0 0.0
    %4912 = vmatprep.subr.mxu0 0.0
    %4913 = vmatpush2.xpose.msra.mxu0 0.0
    %4914 = vmatprep.subr.mxu0 0.0
    %4915 = vmatpush2.xpose.msra.mxu0 0.0
    %4916 = vmatprep.subr.mxu0 0.0
    %4917 = vmatpush2.xpose.msra.mxu0 0.0
    %4918 = vmatprep.subr.mxu0 0.0
    %4919 = vmatpush2.xpose.msra.mxu0 0.0
    %4920 = vmatprep.subr.mxu0 0.0
    %4921 = vmatpush2.xpose.msra.mxu0 0.0
    %4922 = vmatprep.subr.mxu0 0.0
    %4923 = vmatpush2.xpose.msra.mxu0 0.0
    %4924 = vmatprep.subr.mxu0 0.0
    %4925 = vmatpush2.xpose.msra.mxu0 0.0
    %4926 = vmatprep.subr.mxu0 0.0
    %4927 = vmatpush2.xpose.msra.mxu0 0.0
    %4928 = vmatprep.subr.mxu0 0.0
    %4929 = vmatpush2.xpose.msra.mxu0 0.0
    %4930 = vmatprep.subr.mxu0 0.0
    %4931 = vmatpush2.xpose.msra.mxu0 0.0
    %4932 = vmatprep.subr.mxu0 0.0
    %4933 = vmatpush2.xpose.msra.mxu0 0.0
    %4934 = vmatprep.subr.mxu0 0.0
    %4935 = vmatpush2.xpose.msra.mxu0 0.0
    %4936 = vmatprep.subr.mxu0 0.0
    %4937 = vmatpush2.xpose.msra.mxu0 0.0
    %4938 = vmatprep.subr.mxu0 0.0
    %4939 = vmatpush2.xpose.msra.mxu0 0.0
    %4940 = vmatprep.mubr.f32.mxu0 0.0
    %4941 = vmatmul.mubr.f32.gmra.mxu0 %v4868
    %v4942 = vpop.f32.mrf.mxu0
    %v4943 = vadd.f32 %v4468, %v4942
    %v4944 = vpop.f32.mrf.mxu0
    %4945 = vmatprep.mubr.f32.mxu0 0.0
    %4946 = vmatmul.mubr.f32.gmra.mxu0 %v4870
    %v4947 = vpop.f32.mrf.mxu0
    %v4948 = vadd.f32 %v4469, %v4947
    %v4949 = vpop.f32.mrf.mxu0
    %4950 = vdwg.mxu0
    %4953 = vrot.lane.b32.xlu0 %v4453, 112
    %v4954 = vpop.permute.xlu0 %4953
    %4955 = vrot.lane.b32.xlu0 %v4454, 112
    %v4956 = vpop.permute.xlu0 %4955
    %4959 = vrot.lane.b32.xlu0 %v4435, 80
    %v4960 = vpop.permute.xlu0 %4959
    %4961 = vrot.lane.b32.xlu0 %v4436, 80
    %v4962 = vpop.permute.xlu0 %4961
    %v4963 = vsel %vm290, %v4954, 0
    %v4965 = vsel %vm290, %v4956, 0
    %v4967 = vsel %vm290, %v4960, 0
    %v4969 = vsel %vm290, %v4962, 0
    %4971 = vmatprep.subr.mxu0 0.0
    %4972 = vmatpush1.xpose.msra.mxu0 0.0
    %4973 = vmatprep.subr.mxu0 0.0
    %4974 = vmatpush1.xpose.msra.mxu0 0.0
    %4975 = vmatprep.subr.mxu0 0.0
    %4976 = vmatpush1.xpose.msra.mxu0 0.0
    %4977 = vmatprep.subr.mxu0 0.0
    %4978 = vmatpush1.xpose.msra.mxu0 0.0
    %4979 = vmatprep.subr.mxu0 0.0
    %4980 = vmatpush1.xpose.msra.mxu0 0.0
    %4981 = vmatprep.subr.mxu0 0.0
    %4982 = vmatpush1.xpose.msra.mxu0 0.0
    %4983 = vmatprep.subr.mxu0 0.0
    %4984 = vmatpush1.xpose.msra.mxu0 0.0
    %4985 = vmatprep.subr.mxu0 0.0
    %4986 = vmatpush1.xpose.msra.mxu0 0.0
    %4987 = vmatprep.subr.mxu0 0.0
    %4988 = vmatpush1.xpose.msra.mxu0 0.0
    %4989 = vmatprep.subr.mxu0 0.0
    %4990 = vmatpush1.xpose.msra.mxu0 0.0
    %4991 = vmatprep.subr.mxu0 0.0
    %4992 = vmatpush1.xpose.msra.mxu0 0.0
    %4993 = vmatprep.subr.mxu0 0.0
    %4994 = vmatpush1.xpose.msra.mxu0 0.0
    %4995 = vmatprep.subr.mxu0 0.0
    %4996 = vmatpush1.xpose.msra.mxu0 0.0
    %4997 = vmatprep.subr.mxu0 0.0
    %4998 = vmatpush1.xpose.msra.mxu0 0.0
    %4999 = vmatprep.subr.mxu0 0.0
    %5000 = vmatpush1.xpose.msra.mxu0 %v4969
    %5001 = vmatprep.subr.mxu0 0.0
    %5002 = vmatpush1.xpose.msra.mxu0 %v4967
    %5003 = vmatprep.subr.mxu0 0.0
    %5004 = vmatpush2.xpose.msra.mxu0 0.0
    %5005 = vmatprep.subr.mxu0 0.0
    %5006 = vmatpush2.xpose.msra.mxu0 0.0
    %5007 = vmatprep.subr.mxu0 0.0
    %5008 = vmatpush2.xpose.msra.mxu0 0.0
    %5009 = vmatprep.subr.mxu0 0.0
    %5010 = vmatpush2.xpose.msra.mxu0 0.0
    %5011 = vmatprep.subr.mxu0 0.0
    %5012 = vmatpush2.xpose.msra.mxu0 0.0
    %5013 = vmatprep.subr.mxu0 0.0
    %5014 = vmatpush2.xpose.msra.mxu0 0.0
    %5015 = vmatprep.subr.mxu0 0.0
    %5016 = vmatpush2.xpose.msra.mxu0 0.0
    %5017 = vmatprep.subr.mxu0 0.0
    %5018 = vmatpush2.xpose.msra.mxu0 0.0
    %5019 = vmatprep.subr.mxu0 0.0
    %5020 = vmatpush2.xpose.msra.mxu0 0.0
    %5021 = vmatprep.subr.mxu0 0.0
    %5022 = vmatpush2.xpose.msra.mxu0 0.0
    %5023 = vmatprep.subr.mxu0 0.0
    %5024 = vmatpush2.xpose.msra.mxu0 0.0
    %5025 = vmatprep.subr.mxu0 0.0
    %5026 = vmatpush2.xpose.msra.mxu0 0.0
    %5027 = vmatprep.subr.mxu0 0.0
    %5028 = vmatpush2.xpose.msra.mxu0 0.0
    %5029 = vmatprep.subr.mxu0 0.0
    %5030 = vmatpush2.xpose.msra.mxu0 0.0
    %5031 = vmatprep.subr.mxu0 0.0
    %5032 = vmatpush2.xpose.msra.mxu0 0.0
    %5033 = vmatprep.subr.mxu0 0.0
    %5034 = vmatpush2.xpose.msra.mxu0 0.0
    %5035 = vmatprep.mubr.f32.mxu0 0.0
    %5036 = vmatmul.mubr.f32.gmra.mxu0 %v4963
    %v5037 = vpop.f32.mrf.mxu0
    %v5038 = vadd.f32 %v4470, %v5037
    %v5039 = vpop.f32.mrf.mxu0
    %5040 = vmatprep.mubr.f32.mxu0 0.0
    %5041 = vmatmul.mubr.f32.gmra.mxu0 %v4965
    %v5042 = vpop.f32.mrf.mxu0
    %v5043 = vadd.f32 %v4471, %v5042
    %v5044 = vpop.f32.mrf.mxu0
    %5045 = vdwg.mxu0
    %5048 = vrot.lane.b32.xlu0 %v4455, 112
    %v5049 = vpop.permute.xlu0 %5048
    %5050 = vrot.lane.b32.xlu0 %v4456, 112
    %v5051 = vpop.permute.xlu0 %5050
    %5054 = vrot.lane.b32.xlu0 %v4437, 80
    %v5055 = vpop.permute.xlu0 %5054
    %5056 = vrot.lane.b32.xlu0 %v4438, 80
    %v5057 = vpop.permute.xlu0 %5056
    %v5058 = vsel %vm290, %v5049, 0
    %v5060 = vsel %vm290, %v5051, 0
    %v5062 = vsel %vm290, %v5055, 0
    %v5064 = vsel %vm290, %v5057, 0
    %5066 = vmatprep.subr.mxu0 0.0
    %5067 = vmatpush1.xpose.msra.mxu0 0.0
    %5068 = vmatprep.subr.mxu0 0.0
    %5069 = vmatpush1.xpose.msra.mxu0 0.0
    %5070 = vmatprep.subr.mxu0 0.0
    %5071 = vmatpush1.xpose.msra.mxu0 0.0
    %5072 = vmatprep.subr.mxu0 0.0
    %5073 = vmatpush1.xpose.msra.mxu0 0.0
    %5074 = vmatprep.subr.mxu0 0.0
    %5075 = vmatpush1.xpose.msra.mxu0 0.0
    %5076 = vmatprep.subr.mxu0 0.0
    %5077 = vmatpush1.xpose.msra.mxu0 0.0
    %5078 = vmatprep.subr.mxu0 0.0
    %5079 = vmatpush1.xpose.msra.mxu0 0.0
    %5080 = vmatprep.subr.mxu0 0.0
    %5081 = vmatpush1.xpose.msra.mxu0 0.0
    %5082 = vmatprep.subr.mxu0 0.0
    %5083 = vmatpush1.xpose.msra.mxu0 0.0
    %5084 = vmatprep.subr.mxu0 0.0
    %5085 = vmatpush1.xpose.msra.mxu0 0.0
    %5086 = vmatprep.subr.mxu0 0.0
    %5087 = vmatpush1.xpose.msra.mxu0 0.0
    %5088 = vmatprep.subr.mxu0 0.0
    %5089 = vmatpush1.xpose.msra.mxu0 0.0
    %5090 = vmatprep.subr.mxu0 0.0
    %5091 = vmatpush1.xpose.msra.mxu0 0.0
    %5092 = vmatprep.subr.mxu0 0.0
    %5093 = vmatpush1.xpose.msra.mxu0 0.0
    %5094 = vmatprep.subr.mxu0 0.0
    %5095 = vmatpush1.xpose.msra.mxu0 %v5064
    %5096 = vmatprep.subr.mxu0 0.0
    %5097 = vmatpush1.xpose.msra.mxu0 %v5062
    %5098 = vmatprep.subr.mxu0 0.0
    %5099 = vmatpush2.xpose.msra.mxu0 0.0
    %5100 = vmatprep.subr.mxu0 0.0
    %5101 = vmatpush2.xpose.msra.mxu0 0.0
    %5102 = vmatprep.subr.mxu0 0.0
    %5103 = vmatpush2.xpose.msra.mxu0 0.0
    %5104 = vmatprep.subr.mxu0 0.0
    %5105 = vmatpush2.xpose.msra.mxu0 0.0
    %5106 = vmatprep.subr.mxu0 0.0
    %5107 = vmatpush2.xpose.msra.mxu0 0.0
    %5108 = vmatprep.subr.mxu0 0.0
    %5109 = vmatpush2.xpose.msra.mxu0 0.0
    %5110 = vmatprep.subr.mxu0 0.0
    %5111 = vmatpush2.xpose.msra.mxu0 0.0
    %5112 = vmatprep.subr.mxu0 0.0
    %5113 = vmatpush2.xpose.msra.mxu0 0.0
    %5114 = vmatprep.subr.mxu0 0.0
    %5115 = vmatpush2.xpose.msra.mxu0 0.0
    %5116 = vmatprep.subr.mxu0 0.0
    %5117 = vmatpush2.xpose.msra.mxu0 0.0
    %5118 = vmatprep.subr.mxu0 0.0
    %5119 = vmatpush2.xpose.msra.mxu0 0.0
    %5120 = vmatprep.subr.mxu0 0.0
    %5121 = vmatpush2.xpose.msra.mxu0 0.0
    %5122 = vmatprep.subr.mxu0 0.0
    %5123 = vmatpush2.xpose.msra.mxu0 0.0
    %5124 = vmatprep.subr.mxu0 0.0
    %5125 = vmatpush2.xpose.msra.mxu0 0.0
    %5126 = vmatprep.subr.mxu0 0.0
    %5127 = vmatpush2.xpose.msra.mxu0 0.0
    %5128 = vmatprep.subr.mxu0 0.0
    %5129 = vmatpush2.xpose.msra.mxu0 0.0
    %5130 = vmatprep.mubr.f32.mxu0 0.0
    %5131 = vmatmul.mubr.f32.gmra.mxu0 %v5058
    %v5132 = vpop.f32.mrf.mxu0
    %v5133 = vadd.f32 %v4472, %v5132
    %v5134 = vpop.f32.mrf.mxu0
    %5135 = vmatprep.mubr.f32.mxu0 0.0
    %5136 = vmatmul.mubr.f32.gmra.mxu0 %v5060
    %v5137 = vpop.f32.mrf.mxu0
    %v5138 = vadd.f32 %v4473, %v5137
    %v5139 = vpop.f32.mrf.mxu0
    %5140 = vdwg.mxu0
    %5143 = vrot.lane.b32.xlu0 %v4457, 112
    %v5144 = vpop.permute.xlu0 %5143
    %5145 = vrot.lane.b32.xlu0 %v4458, 112
    %v5146 = vpop.permute.xlu0 %5145
    %5149 = vrot.lane.b32.xlu0 %v4439, 80
    %v5150 = vpop.permute.xlu0 %5149
    %5151 = vrot.lane.b32.xlu0 %v4440, 80
    %v5152 = vpop.permute.xlu0 %5151
    %v5153 = vsel %vm290, %v5144, 0
    %v5155 = vsel %vm290, %v5146, 0
    %v5157 = vsel %vm290, %v5150, 0
    %v5159 = vsel %vm290, %v5152, 0
    %5161 = vmatprep.subr.mxu0 0.0
    %5162 = vmatpush1.xpose.msra.mxu0 0.0
    %5163 = vmatprep.subr.mxu0 0.0
    %5164 = vmatpush1.xpose.msra.mxu0 0.0
    %5165 = vmatprep.subr.mxu0 0.0
    %5166 = vmatpush1.xpose.msra.mxu0 0.0
    %5167 = vmatprep.subr.mxu0 0.0
    %5168 = vmatpush1.xpose.msra.mxu0 0.0
    %5169 = vmatprep.subr.mxu0 0.0
    %5170 = vmatpush1.xpose.msra.mxu0 0.0
    %5171 = vmatprep.subr.mxu0 0.0
    %5172 = vmatpush1.xpose.msra.mxu0 0.0
    %5173 = vmatprep.subr.mxu0 0.0
    %5174 = vmatpush1.xpose.msra.mxu0 0.0
    %5175 = vmatprep.subr.mxu0 0.0
    %5176 = vmatpush1.xpose.msra.mxu0 0.0
    %5177 = vmatprep.subr.mxu0 0.0
    %5178 = vmatpush1.xpose.msra.mxu0 0.0
    %5179 = vmatprep.subr.mxu0 0.0
    %5180 = vmatpush1.xpose.msra.mxu0 0.0
    %5181 = vmatprep.subr.mxu0 0.0
    %5182 = vmatpush1.xpose.msra.mxu0 0.0
    %5183 = vmatprep.subr.mxu0 0.0
    %5184 = vmatpush1.xpose.msra.mxu0 0.0
    %5185 = vmatprep.subr.mxu0 0.0
    %5186 = vmatpush1.xpose.msra.mxu0 0.0
    %5187 = vmatprep.subr.mxu0 0.0
    %5188 = vmatpush1.xpose.msra.mxu0 0.0
    %5189 = vmatprep.subr.mxu0 0.0
    %5190 = vmatpush1.xpose.msra.mxu0 %v5159
    %5191 = vmatprep.subr.mxu0 0.0
    %5192 = vmatpush1.xpose.msra.mxu0 %v5157
    %5193 = vmatprep.subr.mxu0 0.0
    %5194 = vmatpush2.xpose.msra.mxu0 0.0
    %5195 = vmatprep.subr.mxu0 0.0
    %5196 = vmatpush2.xpose.msra.mxu0 0.0
    %5197 = vmatprep.subr.mxu0 0.0
    %5198 = vmatpush2.xpose.msra.mxu0 0.0
    %5199 = vmatprep.subr.mxu0 0.0
    %5200 = vmatpush2.xpose.msra.mxu0 0.0
    %5201 = vmatprep.subr.mxu0 0.0
    %5202 = vmatpush2.xpose.msra.mxu0 0.0
    %5203 = vmatprep.subr.mxu0 0.0
    %5204 = vmatpush2.xpose.msra.mxu0 0.0
    %5205 = vmatprep.subr.mxu0 0.0
    %5206 = vmatpush2.xpose.msra.mxu0 0.0
    %5207 = vmatprep.subr.mxu0 0.0
    %5208 = vmatpush2.xpose.msra.mxu0 0.0
    %5209 = vmatprep.subr.mxu0 0.0
    %5210 = vmatpush2.xpose.msra.mxu0 0.0
    %5211 = vmatprep.subr.mxu0 0.0
    %5212 = vmatpush2.xpose.msra.mxu0 0.0
    %5213 = vmatprep.subr.mxu0 0.0
    %5214 = vmatpush2.xpose.msra.mxu0 0.0
    %5215 = vmatprep.subr.mxu0 0.0
    %5216 = vmatpush2.xpose.msra.mxu0 0.0
    %5217 = vmatprep.subr.mxu0 0.0
    %5218 = vmatpush2.xpose.msra.mxu0 0.0
    %5219 = vmatprep.subr.mxu0 0.0
    %5220 = vmatpush2.xpose.msra.mxu0 0.0
    %5221 = vmatprep.subr.mxu0 0.0
    %5222 = vmatpush2.xpose.msra.mxu0 0.0
    %5223 = vmatprep.subr.mxu0 0.0
    %5224 = vmatpush2.xpose.msra.mxu0 0.0
    %5225 = vmatprep.mubr.f32.mxu0 0.0
    %5226 = vmatmul.mubr.f32.gmra.mxu0 %v5153
    %v5227 = vpop.f32.mrf.mxu0
    %v5228 = vadd.f32 %v4474, %v5227
    %v5229 = vpop.f32.mrf.mxu0
    %5230 = vmatprep.mubr.f32.mxu0 0.0
    %5231 = vmatmul.mubr.f32.gmra.mxu0 %v5155
    %v5232 = vpop.f32.mrf.mxu0
    %v5233 = vadd.f32 %v4475, %v5232
    %v5234 = vpop.f32.mrf.mxu0
    %5235 = vdwg.mxu0
    %v5236 = vsel %vm1309, %v4563, -inf
    %5237 = vmax.xlane.f32.xlu0 %v5236
    %v5238 = vpop.xlane.xlu0 %5237
    %v5239 = vsel %vm1309, %v4568, -inf
    %5240 = vmax.xlane.f32.xlu0 %v5239
    %v5241 = vpop.xlane.xlu0 %5240
    %v5242 = vsel %vm1309, %v4658, -inf
    %5243 = vmax.xlane.f32.xlu0 %v5242
    %v5244 = vpop.xlane.xlu0 %5243
    %v5245 = vsel %vm1309, %v4663, -inf
    %5246 = vmax.xlane.f32.xlu0 %v5245
    %v5247 = vpop.xlane.xlu0 %5246
    %v5248 = vsel %vm1309, %v4753, -inf
    %5249 = vmax.xlane.f32.xlu0 %v5248
    %v5250 = vpop.xlane.xlu0 %5249
    %v5251 = vsel %vm1309, %v4758, -inf
    %5252 = vmax.xlane.f32.xlu0 %v5251
    %v5253 = vpop.xlane.xlu0 %5252
    %v5254 = vsel %vm1309, %v4848, -inf
    %5255 = vmax.xlane.f32.xlu0 %v5254
    %v5256 = vpop.xlane.xlu0 %5255
    %v5257 = vsel %vm1309, %v4853, -inf
    %5258 = vmax.xlane.f32.xlu0 %v5257
    %v5259 = vpop.xlane.xlu0 %5258
    %v5260 = vsel %vm1309, %v4943, -inf
    %5261 = vmax.xlane.f32.xlu0 %v5260
    %v5262 = vpop.xlane.xlu0 %5261
    %v5263 = vsel %vm1309, %v4948, -inf
    %5264 = vmax.xlane.f32.xlu0 %v5263
    %v5265 = vpop.xlane.xlu0 %5264
    %v5266 = vsel %vm1309, %v5038, -inf
    %5267 = vmax.xlane.f32.xlu0 %v5266
    %v5268 = vpop.xlane.xlu0 %5267
    %v5269 = vsel %vm1309, %v5043, -inf
    %5270 = vmax.xlane.f32.xlu0 %v5269
    %v5271 = vpop.xlane.xlu0 %5270
    %v5272 = vsel %vm1309, %v5133, -inf
    %5273 = vmax.xlane.f32.xlu0 %v5272
    %v5274 = vpop.xlane.xlu0 %5273
    %v5275 = vsel %vm1309, %v5138, -inf
    %5276 = vmax.xlane.f32.xlu0 %v5275
    %v5277 = vpop.xlane.xlu0 %5276
    %v5278 = vsel %vm1309, %v5228, -inf
    %5279 = vmax.xlane.f32.xlu0 %v5278
    %v5280 = vpop.xlane.xlu0 %5279
    %v5281 = vsel %vm1309, %v5233, -inf
    %5282 = vmax.xlane.f32.xlu0 %v5281
    %v5283 = vpop.xlane.xlu0 %5282
    %v5284 = vsub.f32 %v4563, %v5238
    %v5285 = vsub.f32 %v4568, %v5241
    %v5286 = vsub.f32 %v4658, %v5244
    %v5287 = vsub.f32 %v4663, %v5247
    %v5288 = vsub.f32 %v4753, %v5250
    %v5289 = vsub.f32 %v4758, %v5253
    %v5290 = vsub.f32 %v4848, %v5256
    %v5291 = vsub.f32 %v4853, %v5259
    %v5292 = vsub.f32 %v4943, %v5262
    %v5293 = vsub.f32 %v4948, %v5265
    %v5294 = vsub.f32 %v5038, %v5268
    %v5295 = vsub.f32 %v5043, %v5271
    %v5296 = vsub.f32 %v5133, %v5274
    %v5297 = vsub.f32 %v5138, %v5277
    %v5298 = vsub.f32 %v5228, %v5280
    %v5299 = vsub.f32 %v5233, %v5283
    %v5300 = vmul.f32 %v5284, 1.442695
    %v5301 = vpow.pop %v5300
    %v5302 = vmul.f32 %v5285, 1.442695
    %v5303 = vpow.pop %v5302
    %v5304 = vmul.f32 %v5286, 1.442695
    %v5305 = vpow.pop %v5304
    %v5306 = vmul.f32 %v5287, 1.442695
    %v5307 = vpow.pop %v5306
    %v5308 = vmul.f32 %v5288, 1.442695
    %v5309 = vpow.pop %v5308
    %v5310 = vmul.f32 %v5289, 1.442695
    %v5311 = vpow.pop %v5310
    %v5312 = vmul.f32 %v5290, 1.442695
    %v5313 = vpow.pop %v5312
    %v5314 = vmul.f32 %v5291, 1.442695
    %v5315 = vpow.pop %v5314
    %v5316 = vmul.f32 %v5292, 1.442695
    %v5317 = vpow.pop %v5316
    %v5318 = vmul.f32 %v5293, 1.442695
    %v5319 = vpow.pop %v5318
    %v5320 = vmul.f32 %v5294, 1.442695
    %v5321 = vpow.pop %v5320
    %v5322 = vmul.f32 %v5295, 1.442695
    %v5323 = vpow.pop %v5322
    %v5324 = vmul.f32 %v5296, 1.442695
    %v5325 = vpow.pop %v5324
    %v5326 = vmul.f32 %v5297, 1.442695
    %v5327 = vpow.pop %v5326
    %v5328 = vmul.f32 %v5298, 1.442695
    %v5329 = vpow.pop %v5328
    %v5330 = vmul.f32 %v5299, 1.442695
    %v5331 = vpow.pop %v5330
    %v5332 = vsel %vm1309, %v5301, 0.0
    %5333 = vadd.xlane.f32.xlu0 %v5332
    %v5334 = vpop.xlane.xlu0 %5333
    %v5335 = vsel %vm1309, %v5303, 0.0
    %5336 = vadd.xlane.f32.xlu0 %v5335
    %v5337 = vpop.xlane.xlu0 %5336
    %v5338 = vsel %vm1309, %v5305, 0.0
    %5339 = vadd.xlane.f32.xlu0 %v5338
    %v5340 = vpop.xlane.xlu0 %5339
    %v5341 = vsel %vm1309, %v5307, 0.0
    %5342 = vadd.xlane.f32.xlu0 %v5341
    %v5343 = vpop.xlane.xlu0 %5342
    %v5344 = vsel %vm1309, %v5309, 0.0
    %5345 = vadd.xlane.f32.xlu0 %v5344
    %v5346 = vpop.xlane.xlu0 %5345
    %v5347 = vsel %vm1309, %v5311, 0.0
    %5348 = vadd.xlane.f32.xlu0 %v5347
    %v5349 = vpop.xlane.xlu0 %5348
    %v5350 = vsel %vm1309, %v5313, 0.0
    %5351 = vadd.xlane.f32.xlu0 %v5350
    %v5352 = vpop.xlane.xlu0 %5351
    %v5353 = vsel %vm1309, %v5315, 0.0
    %5354 = vadd.xlane.f32.xlu0 %v5353
    %v5355 = vpop.xlane.xlu0 %5354
    %v5356 = vsel %vm1309, %v5317, 0.0
    %5357 = vadd.xlane.f32.xlu0 %v5356
    %v5358 = vpop.xlane.xlu0 %5357
    %v5359 = vsel %vm1309, %v5319, 0.0
    %5360 = vadd.xlane.f32.xlu0 %v5359
    %v5361 = vpop.xlane.xlu0 %5360
    %v5362 = vsel %vm1309, %v5321, 0.0
    %5363 = vadd.xlane.f32.xlu0 %v5362
    %v5364 = vpop.xlane.xlu0 %5363
    %v5365 = vsel %vm1309, %v5323, 0.0
    %5366 = vadd.xlane.f32.xlu0 %v5365
    %v5367 = vpop.xlane.xlu0 %5366
    %v5368 = vsel %vm1309, %v5325, 0.0
    %5369 = vadd.xlane.f32.xlu0 %v5368
    %v5370 = vpop.xlane.xlu0 %5369
    %v5371 = vsel %vm1309, %v5327, 0.0
    %5372 = vadd.xlane.f32.xlu0 %v5371
    %v5373 = vpop.xlane.xlu0 %5372
    %v5374 = vsel %vm1309, %v5329, 0.0
    %5375 = vadd.xlane.f32.xlu0 %v5374
    %v5376 = vpop.xlane.xlu0 %5375
    %v5377 = vsel %vm1309, %v5331, 0.0
    %5378 = vadd.xlane.f32.xlu0 %v5377
    %v5379 = vpop.xlane.xlu0 %5378
    %v5380 = vrcp.pop %v5334
    %v5381 = vrcp.pop %v5337
    %v5382 = vrcp.pop %v5340
    %v5383 = vrcp.pop %v5343
    %v5384 = vrcp.pop %v5346
    %v5385 = vrcp.pop %v5349
    %v5386 = vrcp.pop %v5352
    %v5387 = vrcp.pop %v5355
    %v5388 = vrcp.pop %v5358
    %v5389 = vrcp.pop %v5361
    %v5390 = vrcp.pop %v5364
    %v5391 = vrcp.pop %v5367
    %v5392 = vrcp.pop %v5370
    %v5393 = vrcp.pop %v5373
    %v5394 = vrcp.pop %v5376
    %v5395 = vrcp.pop %v5379
    %v5396 = vmul.f32 %v5301, %v5380
    %v5397 = vmul.f32 %v5303, %v5381
    %v5398 = vmul.f32 %v5305, %v5382
    %v5399 = vmul.f32 %v5307, %v5383
    %v5400 = vmul.f32 %v5309, %v5384
    %v5401 = vmul.f32 %v5311, %v5385
    %v5402 = vmul.f32 %v5313, %v5386
    %v5403 = vmul.f32 %v5315, %v5387
    %v5404 = vmul.f32 %v5317, %v5388
    %v5405 = vmul.f32 %v5319, %v5389
    %v5406 = vmul.f32 %v5321, %v5390
    %v5407 = vmul.f32 %v5323, %v5391
    %v5408 = vmul.f32 %v5325, %v5392
    %v5409 = vmul.f32 %v5327, %v5393
    %v5410 = vmul.f32 %v5329, %v5394
    %v5411 = vmul.f32 %v5331, %v5395
    %5412 = vrot.lane.b32.xlu0 %v196, 48
    %v5413 = vpop.permute.xlu0 %5412
    %5414 = vrot.lane.b32.xlu0 %v201, 48
    %v5415 = vpop.permute.xlu0 %5414
    %v5419 = vsel %vm1309, %v5396, 0
    %v5422 = vsel %vm1309, %v5397, 0
    %5424 = vmatprep.subr.mxu0 0.0
    %5425 = vmatpush1.msra.mxu0 0.0
    %5426 = vmatprep.subr.mxu0 0.0
    %5427 = vmatpush1.msra.mxu0 0.0
    %5428 = vmatprep.subr.mxu0 0.0
    %5429 = vmatpush1.msra.mxu0 0.0
    %5430 = vmatprep.subr.mxu0 0.0
    %5431 = vmatpush1.msra.mxu0 0.0
    %5432 = vmatprep.subr.mxu0 0.0
    %5433 = vmatpush1.msra.mxu0 0.0
    %5434 = vmatprep.subr.mxu0 0.0
    %5435 = vmatpush1.msra.mxu0 0.0
    %5436 = vmatprep.subr.mxu0 0.0
    %5437 = vmatpush1.msra.mxu0 0.0
    %5438 = vmatprep.subr.mxu0 0.0
    %5439 = vmatpush1.msra.mxu0 0.0
    %5440 = vmatprep.subr.mxu0 0.0
    %5441 = vmatpush1.msra.mxu0 0.0
    %5442 = vmatprep.subr.mxu0 0.0
    %5443 = vmatpush1.msra.mxu0 0.0
    %5444 = vmatprep.subr.mxu0 0.0
    %5445 = vmatpush1.msra.mxu0 0.0
    %5446 = vmatprep.subr.mxu0 0.0
    %5447 = vmatpush1.msra.mxu0 0.0
    %5448 = vmatprep.subr.mxu0 0.0
    %5449 = vmatpush1.msra.mxu0 0.0
    %5450 = vmatprep.subr.mxu0 0.0
    %5451 = vmatpush1.msra.mxu0 0.0
    %5452 = vmatprep.subr.mxu0 0.0
    %5453 = vmatpush1.msra.mxu0 %v5415
    %5454 = vmatprep.subr.mxu0 0.0
    %5455 = vmatpush1.msra.mxu0 %v5413
    %5456 = vmatprep.subr.mxu0 0.0
    %5457 = vmatpush2.msra.mxu0 0.0
    %5458 = vmatprep.subr.mxu0 0.0
    %5459 = vmatpush2.msra.mxu0 0.0
    %5460 = vmatprep.subr.mxu0 0.0
    %5461 = vmatpush2.msra.mxu0 0.0
    %5462 = vmatprep.subr.mxu0 0.0
    %5463 = vmatpush2.msra.mxu0 0.0
    %5464 = vmatprep.subr.mxu0 0.0
    %5465 = vmatpush2.msra.mxu0 0.0
    %5466 = vmatprep.subr.mxu0 0.0
    %5467 = vmatpush2.msra.mxu0 0.0
    %5468 = vmatprep.subr.mxu0 0.0
    %5469 = vmatpush2.msra.mxu0 0.0
    %5470 = vmatprep.subr.mxu0 0.0
    %5471 = vmatpush2.msra.mxu0 0.0
    %5472 = vmatprep.subr.mxu0 0.0
    %5473 = vmatpush2.msra.mxu0 0.0
    %5474 = vmatprep.subr.mxu0 0.0
    %5475 = vmatpush2.msra.mxu0 0.0
    %5476 = vmatprep.subr.mxu0 0.0
    %5477 = vmatpush2.msra.mxu0 0.0
    %5478 = vmatprep.subr.mxu0 0.0
    %5479 = vmatpush2.msra.mxu0 0.0
    %5480 = vmatprep.subr.mxu0 0.0
    %5481 = vmatpush2.msra.mxu0 0.0
    %5482 = vmatprep.subr.mxu0 0.0
    %5483 = vmatpush2.msra.mxu0 0.0
    %5484 = vmatprep.subr.mxu0 0.0
    %5485 = vmatpush2.msra.mxu0 0.0
    %5486 = vmatprep.subr.mxu0 0.0
    %5487 = vmatpush2.msra.mxu0 0.0
    %5488 = vmatprep.mubr.f32.mxu0 0.0
    %5489 = vmatmul.mubr.f32.gmra.mxu0 %v5419
    %v5490 = vpop.f32.mrf.mxu0
    %v5491 = vadd.f32 0.0, %v5490
    %v5492 = vpop.f32.mrf.mxu0
    %5493 = vmatprep.mubr.f32.mxu0 0.0
    %5494 = vmatmul.mubr.f32.gmra.mxu0 %v5422
    %v5495 = vpop.f32.mrf.mxu0
    %v5496 = vadd.f32 0.0, %v5495
    %v5497 = vpop.f32.mrf.mxu0
    %5498 = vdwg.mxu0
    %5499 = vrot.lane.b32.xlu0 %v206, 48
    %v5500 = vpop.permute.xlu0 %5499
    %5501 = vrot.lane.b32.xlu0 %v211, 48
    %v5502 = vpop.permute.xlu0 %5501
    %v5506 = vsel %vm1309, %v5398, 0
    %v5509 = vsel %vm1309, %v5399, 0
    %5511 = vmatprep.subr.mxu0 0.0
    %5512 = vmatpush1.msra.mxu0 0.0
    %5513 = vmatprep.subr.mxu0 0.0
    %5514 = vmatpush1.msra.mxu0 0.0
    %5515 = vmatprep.subr.mxu0 0.0
    %5516 = vmatpush1.msra.mxu0 0.0
    %5517 = vmatprep.subr.mxu0 0.0
    %5518 = vmatpush1.msra.mxu0 0.0
    %5519 = vmatprep.subr.mxu0 0.0
    %5520 = vmatpush1.msra.mxu0 0.0
    %5521 = vmatprep.subr.mxu0 0.0
    %5522 = vmatpush1.msra.mxu0 0.0
    %5523 = vmatprep.subr.mxu0 0.0
    %5524 = vmatpush1.msra.mxu0 0.0
    %5525 = vmatprep.subr.mxu0 0.0
    %5526 = vmatpush1.msra.mxu0 0.0
    %5527 = vmatprep.subr.mxu0 0.0
    %5528 = vmatpush1.msra.mxu0 0.0
    %5529 = vmatprep.subr.mxu0 0.0
    %5530 = vmatpush1.msra.mxu0 0.0
    %5531 = vmatprep.subr.mxu0 0.0
    %5532 = vmatpush1.msra.mxu0 0.0
    %5533 = vmatprep.subr.mxu0 0.0
    %5534 = vmatpush1.msra.mxu0 0.0
    %5535 = vmatprep.subr.mxu0 0.0
    %5536 = vmatpush1.msra.mxu0 0.0
    %5537 = vmatprep.subr.mxu0 0.0
    %5538 = vmatpush1.msra.mxu0 0.0
    %5539 = vmatprep.subr.mxu0 0.0
    %5540 = vmatpush1.msra.mxu0 %v5502
    %5541 = vmatprep.subr.mxu0 0.0
    %5542 = vmatpush1.msra.mxu0 %v5500
    %5543 = vmatprep.subr.mxu0 0.0
    %5544 = vmatpush2.msra.mxu0 0.0
    %5545 = vmatprep.subr.mxu0 0.0
    %5546 = vmatpush2.msra.mxu0 0.0
    %5547 = vmatprep.subr.mxu0 0.0
    %5548 = vmatpush2.msra.mxu0 0.0
    %5549 = vmatprep.subr.mxu0 0.0
    %5550 = vmatpush2.msra.mxu0 0.0
    %5551 = vmatprep.subr.mxu0 0.0
    %5552 = vmatpush2.msra.mxu0 0.0
    %5553 = vmatprep.subr.mxu0 0.0
    %5554 = vmatpush2.msra.mxu0 0.0
    %5555 = vmatprep.subr.mxu0 0.0
    %5556 = vmatpush2.msra.mxu0 0.0
    %5557 = vmatprep.subr.mxu0 0.0
    %5558 = vmatpush2.msra.mxu0 0.0
    %5559 = vmatprep.subr.mxu0 0.0
    %5560 = vmatpush2.msra.mxu0 0.0
    %5561 = vmatprep.subr.mxu0 0.0
    %5562 = vmatpush2.msra.mxu0 0.0
    %5563 = vmatprep.subr.mxu0 0.0
    %5564 = vmatpush2.msra.mxu0 0.0
    %5565 = vmatprep.subr.mxu0 0.0
    %5566 = vmatpush2.msra.mxu0 0.0
    %5567 = vmatprep.subr.mxu0 0.0
    %5568 = vmatpush2.msra.mxu0 0.0
    %5569 = vmatprep.subr.mxu0 0.0
    %5570 = vmatpush2.msra.mxu0 0.0
    %5571 = vmatprep.subr.mxu0 0.0
    %5572 = vmatpush2.msra.mxu0 0.0
    %5573 = vmatprep.subr.mxu0 0.0
    %5574 = vmatpush2.msra.mxu0 0.0
    %5575 = vmatprep.mubr.f32.mxu0 0.0
    %5576 = vmatmul.mubr.f32.gmra.mxu0 %v5506
    %v5577 = vpop.f32.mrf.mxu0
    %v5578 = vadd.f32 0.0, %v5577
    %v5579 = vpop.f32.mrf.mxu0
    %5580 = vmatprep.mubr.f32.mxu0 0.0
    %5581 = vmatmul.mubr.f32.gmra.mxu0 %v5509
    %v5582 = vpop.f32.mrf.mxu0
    %v5583 = vadd.f32 0.0, %v5582
    %v5584 = vpop.f32.mrf.mxu0
    %5585 = vdwg.mxu0
    %5586 = vrot.lane.b32.xlu0 %v216, 48
    %v5587 = vpop.permute.xlu0 %5586
    %5588 = vrot.lane.b32.xlu0 %v221, 48
    %v5589 = vpop.permute.xlu0 %5588
    %v5593 = vsel %vm1309, %v5400, 0
    %v5596 = vsel %vm1309, %v5401, 0
    %5598 = vmatprep.subr.mxu0 0.0
    %5599 = vmatpush1.msra.mxu0 0.0
    %5600 = vmatprep.subr.mxu0 0.0
    %5601 = vmatpush1.msra.mxu0 0.0
    %5602 = vmatprep.subr.mxu0 0.0
    %5603 = vmatpush1.msra.mxu0 0.0
    %5604 = vmatprep.subr.mxu0 0.0
    %5605 = vmatpush1.msra.mxu0 0.0
    %5606 = vmatprep.subr.mxu0 0.0
    %5607 = vmatpush1.msra.mxu0 0.0
    %5608 = vmatprep.subr.mxu0 0.0
    %5609 = vmatpush1.msra.mxu0 0.0
    %5610 = vmatprep.subr.mxu0 0.0
    %5611 = vmatpush1.msra.mxu0 0.0
    %5612 = vmatprep.subr.mxu0 0.0
    %5613 = vmatpush1.msra.mxu0 0.0
    %5614 = vmatprep.subr.mxu0 0.0
    %5615 = vmatpush1.msra.mxu0 0.0
    %5616 = vmatprep.subr.mxu0 0.0
    %5617 = vmatpush1.msra.mxu0 0.0
    %5618 = vmatprep.subr.mxu0 0.0
    %5619 = vmatpush1.msra.mxu0 0.0
    %5620 = vmatprep.subr.mxu0 0.0
    %5621 = vmatpush1.msra.mxu0 0.0
    %5622 = vmatprep.subr.mxu0 0.0
    %5623 = vmatpush1.msra.mxu0 0.0
    %5624 = vmatprep.subr.mxu0 0.0
    %5625 = vmatpush1.msra.mxu0 0.0
    %5626 = vmatprep.subr.mxu0 0.0
    %5627 = vmatpush1.msra.mxu0 %v5589
    %5628 = vmatprep.subr.mxu0 0.0
    %5629 = vmatpush1.msra.mxu0 %v5587
    %5630 = vmatprep.subr.mxu0 0.0
    %5631 = vmatpush2.msra.mxu0 0.0
    %5632 = vmatprep.subr.mxu0 0.0
    %5633 = vmatpush2.msra.mxu0 0.0
    %5634 = vmatprep.subr.mxu0 0.0
    %5635 = vmatpush2.msra.mxu0 0.0
    %5636 = vmatprep.subr.mxu0 0.0
    %5637 = vmatpush2.msra.mxu0 0.0
    %5638 = vmatprep.subr.mxu0 0.0
    %5639 = vmatpush2.msra.mxu0 0.0
    %5640 = vmatprep.subr.mxu0 0.0
    %5641 = vmatpush2.msra.mxu0 0.0
    %5642 = vmatprep.subr.mxu0 0.0
    %5643 = vmatpush2.msra.mxu0 0.0
    %5644 = vmatprep.subr.mxu0 0.0
    %5645 = vmatpush2.msra.mxu0 0.0
    %5646 = vmatprep.subr.mxu0 0.0
    %5647 = vmatpush2.msra.mxu0 0.0
    %5648 = vmatprep.subr.mxu0 0.0
    %5649 = vmatpush2.msra.mxu0 0.0
    %5650 = vmatprep.subr.mxu0 0.0
    %5651 = vmatpush2.msra.mxu0 0.0
    %5652 = vmatprep.subr.mxu0 0.0
    %5653 = vmatpush2.msra.mxu0 0.0
    %5654 = vmatprep.subr.mxu0 0.0
    %5655 = vmatpush2.msra.mxu0 0.0
    %5656 = vmatprep.subr.mxu0 0.0
    %5657 = vmatpush2.msra.mxu0 0.0
    %5658 = vmatprep.subr.mxu0 0.0
    %5659 = vmatpush2.msra.mxu0 0.0
    %5660 = vmatprep.subr.mxu0 0.0
    %5661 = vmatpush2.msra.mxu0 0.0
    %5662 = vmatprep.mubr.f32.mxu0 0.0
    %5663 = vmatmul.mubr.f32.gmra.mxu0 %v5593
    %v5664 = vpop.f32.mrf.mxu0
    %v5665 = vadd.f32 0.0, %v5664
    %v5666 = vpop.f32.mrf.mxu0
    %5667 = vmatprep.mubr.f32.mxu0 0.0
    %5668 = vmatmul.mubr.f32.gmra.mxu0 %v5596
    %v5669 = vpop.f32.mrf.mxu0
    %v5670 = vadd.f32 0.0, %v5669
    %v5671 = vpop.f32.mrf.mxu0
    %5672 = vdwg.mxu0
    %5673 = vrot.lane.b32.xlu0 %v226, 48
    %v5674 = vpop.permute.xlu0 %5673
    %5675 = vrot.lane.b32.xlu0 %v231, 48
    %v5676 = vpop.permute.xlu0 %5675
    %v5680 = vsel %vm1309, %v5402, 0
    %v5683 = vsel %vm1309, %v5403, 0
    %5685 = vmatprep.subr.mxu0 0.0
    %5686 = vmatpush1.msra.mxu0 0.0
    %5687 = vmatprep.subr.mxu0 0.0
    %5688 = vmatpush1.msra.mxu0 0.0
    %5689 = vmatprep.subr.mxu0 0.0
    %5690 = vmatpush1.msra.mxu0 0.0
    %5691 = vmatprep.subr.mxu0 0.0
    %5692 = vmatpush1.msra.mxu0 0.0
    %5693 = vmatprep.subr.mxu0 0.0
    %5694 = vmatpush1.msra.mxu0 0.0
    %5695 = vmatprep.subr.mxu0 0.0
    %5696 = vmatpush1.msra.mxu0 0.0
    %5697 = vmatprep.subr.mxu0 0.0
    %5698 = vmatpush1.msra.mxu0 0.0
    %5699 = vmatprep.subr.mxu0 0.0
    %5700 = vmatpush1.msra.mxu0 0.0
    %5701 = vmatprep.subr.mxu0 0.0
    %5702 = vmatpush1.msra.mxu0 0.0
    %5703 = vmatprep.subr.mxu0 0.0
    %5704 = vmatpush1.msra.mxu0 0.0
    %5705 = vmatprep.subr.mxu0 0.0
    %5706 = vmatpush1.msra.mxu0 0.0
    %5707 = vmatprep.subr.mxu0 0.0
    %5708 = vmatpush1.msra.mxu0 0.0
    %5709 = vmatprep.subr.mxu0 0.0
    %5710 = vmatpush1.msra.mxu0 0.0
    %5711 = vmatprep.subr.mxu0 0.0
    %5712 = vmatpush1.msra.mxu0 0.0
    %5713 = vmatprep.subr.mxu0 0.0
    %5714 = vmatpush1.msra.mxu0 %v5676
    %5715 = vmatprep.subr.mxu0 0.0
    %5716 = vmatpush1.msra.mxu0 %v5674
    %5717 = vmatprep.subr.mxu0 0.0
    %5718 = vmatpush2.msra.mxu0 0.0
    %5719 = vmatprep.subr.mxu0 0.0
    %5720 = vmatpush2.msra.mxu0 0.0
    %5721 = vmatprep.subr.mxu0 0.0
    %5722 = vmatpush2.msra.mxu0 0.0
    %5723 = vmatprep.subr.mxu0 0.0
    %5724 = vmatpush2.msra.mxu0 0.0
    %5725 = vmatprep.subr.mxu0 0.0
    %5726 = vmatpush2.msra.mxu0 0.0
    %5727 = vmatprep.subr.mxu0 0.0
    %5728 = vmatpush2.msra.mxu0 0.0
    %5729 = vmatprep.subr.mxu0 0.0
    %5730 = vmatpush2.msra.mxu0 0.0
    %5731 = vmatprep.subr.mxu0 0.0
    %5732 = vmatpush2.msra.mxu0 0.0
    %5733 = vmatprep.subr.mxu0 0.0
    %5734 = vmatpush2.msra.mxu0 0.0
    %5735 = vmatprep.subr.mxu0 0.0
    %5736 = vmatpush2.msra.mxu0 0.0
    %5737 = vmatprep.subr.mxu0 0.0
    %5738 = vmatpush2.msra.mxu0 0.0
    %5739 = vmatprep.subr.mxu0 0.0
    %5740 = vmatpush2.msra.mxu0 0.0
    %5741 = vmatprep.subr.mxu0 0.0
    %5742 = vmatpush2.msra.mxu0 0.0
    %5743 = vmatprep.subr.mxu0 0.0
    %5744 = vmatpush2.msra.mxu0 0.0
    %5745 = vmatprep.subr.mxu0 0.0
    %5746 = vmatpush2.msra.mxu0 0.0
    %5747 = vmatprep.subr.mxu0 0.0
    %5748 = vmatpush2.msra.mxu0 0.0
    %5749 = vmatprep.mubr.f32.mxu0 0.0
    %5750 = vmatmul.mubr.f32.gmra.mxu0 %v5680
    %v5751 = vpop.f32.mrf.mxu0
    %v5752 = vadd.f32 0.0, %v5751
    %v5753 = vpop.f32.mrf.mxu0
    %5754 = vmatprep.mubr.f32.mxu0 0.0
    %5755 = vmatmul.mubr.f32.gmra.mxu0 %v5683
    %v5756 = vpop.f32.mrf.mxu0
    %v5757 = vadd.f32 0.0, %v5756
    %v5758 = vpop.f32.mrf.mxu0
    %5759 = vdwg.mxu0
    %5760 = vrot.lane.b32.xlu0 %v236, 48
    %v5761 = vpop.permute.xlu0 %5760
    %5762 = vrot.lane.b32.xlu0 %v241, 48
    %v5763 = vpop.permute.xlu0 %5762
    %v5767 = vsel %vm1309, %v5404, 0
    %v5770 = vsel %vm1309, %v5405, 0
    %5772 = vmatprep.subr.mxu0 0.0
    %5773 = vmatpush1.msra.mxu0 0.0
    %5774 = vmatprep.subr.mxu0 0.0
    %5775 = vmatpush1.msra.mxu0 0.0
    %5776 = vmatprep.subr.mxu0 0.0
    %5777 = vmatpush1.msra.mxu0 0.0
    %5778 = vmatprep.subr.mxu0 0.0
    %5779 = vmatpush1.msra.mxu0 0.0
    %5780 = vmatprep.subr.mxu0 0.0
    %5781 = vmatpush1.msra.mxu0 0.0
    %5782 = vmatprep.subr.mxu0 0.0
    %5783 = vmatpush1.msra.mxu0 0.0
    %5784 = vmatprep.subr.mxu0 0.0
    %5785 = vmatpush1.msra.mxu0 0.0
    %5786 = vmatprep.subr.mxu0 0.0
    %5787 = vmatpush1.msra.mxu0 0.0
    %5788 = vmatprep.subr.mxu0 0.0
    %5789 = vmatpush1.msra.mxu0 0.0
    %5790 = vmatprep.subr.mxu0 0.0
    %5791 = vmatpush1.msra.mxu0 0.0
    %5792 = vmatprep.subr.mxu0 0.0
    %5793 = vmatpush1.msra.mxu0 0.0
    %5794 = vmatprep.subr.mxu0 0.0
    %5795 = vmatpush1.msra.mxu0 0.0
    %5796 = vmatprep.subr.mxu0 0.0
    %5797 = vmatpush1.msra.mxu0 0.0
    %5798 = vmatprep.subr.mxu0 0.0
    %5799 = vmatpush1.msra.mxu0 0.0
    %5800 = vmatprep.subr.mxu0 0.0
    %5801 = vmatpush1.msra.mxu0 %v5763
    %5802 = vmatprep.subr.mxu0 0.0
    %5803 = vmatpush1.msra.mxu0 %v5761
    %5804 = vmatprep.subr.mxu0 0.0
    %5805 = vmatpush2.msra.mxu0 0.0
    %5806 = vmatprep.subr.mxu0 0.0
    %5807 = vmatpush2.msra.mxu0 0.0
    %5808 = vmatprep.subr.mxu0 0.0
    %5809 = vmatpush2.msra.mxu0 0.0
    %5810 = vmatprep.subr.mxu0 0.0
    %5811 = vmatpush2.msra.mxu0 0.0
    %5812 = vmatprep.subr.mxu0 0.0
    %5813 = vmatpush2.msra.mxu0 0.0
    %5814 = vmatprep.subr.mxu0 0.0
    %5815 = vmatpush2.msra.mxu0 0.0
    %5816 = vmatprep.subr.mxu0 0.0
    %5817 = vmatpush2.msra.mxu0 0.0
    %5818 = vmatprep.subr.mxu0 0.0
    %5819 = vmatpush2.msra.mxu0 0.0
    %5820 = vmatprep.subr.mxu0 0.0
    %5821 = vmatpush2.msra.mxu0 0.0
    %5822 = vmatprep.subr.mxu0 0.0
    %5823 = vmatpush2.msra.mxu0 0.0
    %5824 = vmatprep.subr.mxu0 0.0
    %5825 = vmatpush2.msra.mxu0 0.0
    %5826 = vmatprep.subr.mxu0 0.0
    %5827 = vmatpush2.msra.mxu0 0.0
    %5828 = vmatprep.subr.mxu0 0.0
    %5829 = vmatpush2.msra.mxu0 0.0
    %5830 = vmatprep.subr.mxu0 0.0
    %5831 = vmatpush2.msra.mxu0 0.0
    %5832 = vmatprep.subr.mxu0 0.0
    %5833 = vmatpush2.msra.mxu0 0.0
    %5834 = vmatprep.subr.mxu0 0.0
    %5835 = vmatpush2.msra.mxu0 0.0
    %5836 = vmatprep.mubr.f32.mxu0 0.0
    %5837 = vmatmul.mubr.f32.gmra.mxu0 %v5767
    %v5838 = vpop.f32.mrf.mxu0
    %v5839 = vadd.f32 0.0, %v5838
    %v5840 = vpop.f32.mrf.mxu0
    %5841 = vmatprep.mubr.f32.mxu0 0.0
    %5842 = vmatmul.mubr.f32.gmra.mxu0 %v5770
    %v5843 = vpop.f32.mrf.mxu0
    %v5844 = vadd.f32 0.0, %v5843
    %v5845 = vpop.f32.mrf.mxu0
    %5846 = vdwg.mxu0
    %5847 = vrot.lane.b32.xlu0 %v246, 48
    %v5848 = vpop.permute.xlu0 %5847
    %5849 = vrot.lane.b32.xlu0 %v251, 48
    %v5850 = vpop.permute.xlu0 %5849
    %v5854 = vsel %vm1309, %v5406, 0
    %v5857 = vsel %vm1309, %v5407, 0
    %5859 = vmatprep.subr.mxu0 0.0
    %5860 = vmatpush1.msra.mxu0 0.0
    %5861 = vmatprep.subr.mxu0 0.0
    %5862 = vmatpush1.msra.mxu0 0.0
    %5863 = vmatprep.subr.mxu0 0.0
    %5864 = vmatpush1.msra.mxu0 0.0
    %5865 = vmatprep.subr.mxu0 0.0
    %5866 = vmatpush1.msra.mxu0 0.0
    %5867 = vmatprep.subr.mxu0 0.0
    %5868 = vmatpush1.msra.mxu0 0.0
    %5869 = vmatprep.subr.mxu0 0.0
    %5870 = vmatpush1.msra.mxu0 0.0
    %5871 = vmatprep.subr.mxu0 0.0
    %5872 = vmatpush1.msra.mxu0 0.0
    %5873 = vmatprep.subr.mxu0 0.0
    %5874 = vmatpush1.msra.mxu0 0.0
    %5875 = vmatprep.subr.mxu0 0.0
    %5876 = vmatpush1.msra.mxu0 0.0
    %5877 = vmatprep.subr.mxu0 0.0
    %5878 = vmatpush1.msra.mxu0 0.0
    %5879 = vmatprep.subr.mxu0 0.0
    %5880 = vmatpush1.msra.mxu0 0.0
    %5881 = vmatprep.subr.mxu0 0.0
    %5882 = vmatpush1.msra.mxu0 0.0
    %5883 = vmatprep.subr.mxu0 0.0
    %5884 = vmatpush1.msra.mxu0 0.0
    %5885 = vmatprep.subr.mxu0 0.0
    %5886 = vmatpush1.msra.mxu0 0.0
    %5887 = vmatprep.subr.mxu0 0.0
    %5888 = vmatpush1.msra.mxu0 %v5850
    %5889 = vmatprep.subr.mxu0 0.0
    %5890 = vmatpush1.msra.mxu0 %v5848
    %5891 = vmatprep.subr.mxu0 0.0
    %5892 = vmatpush2.msra.mxu0 0.0
    %5893 = vmatprep.subr.mxu0 0.0
    %5894 = vmatpush2.msra.mxu0 0.0
    %5895 = vmatprep.subr.mxu0 0.0
    %5896 = vmatpush2.msra.mxu0 0.0
    %5897 = vmatprep.subr.mxu0 0.0
    %5898 = vmatpush2.msra.mxu0 0.0
    %5899 = vmatprep.subr.mxu0 0.0
    %5900 = vmatpush2.msra.mxu0 0.0
    %5901 = vmatprep.subr.mxu0 0.0
    %5902 = vmatpush2.msra.mxu0 0.0
    %5903 = vmatprep.subr.mxu0 0.0
    %5904 = vmatpush2.msra.mxu0 0.0
    %5905 = vmatprep.subr.mxu0 0.0
    %5906 = vmatpush2.msra.mxu0 0.0
    %5907 = vmatprep.subr.mxu0 0.0
    %5908 = vmatpush2.msra.mxu0 0.0
    %5909 = vmatprep.subr.mxu0 0.0
    %5910 = vmatpush2.msra.mxu0 0.0
    %5911 = vmatprep.subr.mxu0 0.0
    %5912 = vmatpush2.msra.mxu0 0.0
    %5913 = vmatprep.subr.mxu0 0.0
    %5914 = vmatpush2.msra.mxu0 0.0
    %5915 = vmatprep.subr.mxu0 0.0
    %5916 = vmatpush2.msra.mxu0 0.0
    %5917 = vmatprep.subr.mxu0 0.0
    %5918 = vmatpush2.msra.mxu0 0.0
    %5919 = vmatprep.subr.mxu0 0.0
    %5920 = vmatpush2.msra.mxu0 0.0
    %5921 = vmatprep.subr.mxu0 0.0
    %5922 = vmatpush2.msra.mxu0 0.0
    %5923 = vmatprep.mubr.f32.mxu0 0.0
    %5924 = vmatmul.mubr.f32.gmra.mxu0 %v5854
    %v5925 = vpop.f32.mrf.mxu0
    %v5926 = vadd.f32 0.0, %v5925
    %v5927 = vpop.f32.mrf.mxu0
    %5928 = vmatprep.mubr.f32.mxu0 0.0
    %5929 = vmatmul.mubr.f32.gmra.mxu0 %v5857
    %v5930 = vpop.f32.mrf.mxu0
    %v5931 = vadd.f32 0.0, %v5930
    %v5932 = vpop.f32.mrf.mxu0
    %5933 = vdwg.mxu0
    %5934 = vrot.lane.b32.xlu0 %v256, 48
    %v5935 = vpop.permute.xlu0 %5934
    %5936 = vrot.lane.b32.xlu0 %v261, 48
    %v5937 = vpop.permute.xlu0 %5936
    %v5941 = vsel %vm1309, %v5408, 0
    %v5944 = vsel %vm1309, %v5409, 0
    %5946 = vmatprep.subr.mxu0 0.0
    %5947 = vmatpush1.msra.mxu0 0.0
    %5948 = vmatprep.subr.mxu0 0.0
    %5949 = vmatpush1.msra.mxu0 0.0
    %5950 = vmatprep.subr.mxu0 0.0
    %5951 = vmatpush1.msra.mxu0 0.0
    %5952 = vmatprep.subr.mxu0 0.0
    %5953 = vmatpush1.msra.mxu0 0.0
    %5954 = vmatprep.subr.mxu0 0.0
    %5955 = vmatpush1.msra.mxu0 0.0
    %5956 = vmatprep.subr.mxu0 0.0
    %5957 = vmatpush1.msra.mxu0 0.0
    %5958 = vmatprep.subr.mxu0 0.0
    %5959 = vmatpush1.msra.mxu0 0.0
    %5960 = vmatprep.subr.mxu0 0.0
    %5961 = vmatpush1.msra.mxu0 0.0
    %5962 = vmatprep.subr.mxu0 0.0
    %5963 = vmatpush1.msra.mxu0 0.0
    %5964 = vmatprep.subr.mxu0 0.0
    %5965 = vmatpush1.msra.mxu0 0.0
    %5966 = vmatprep.subr.mxu0 0.0
    %5967 = vmatpush1.msra.mxu0 0.0
    %5968 = vmatprep.subr.mxu0 0.0
    %5969 = vmatpush1.msra.mxu0 0.0
    %5970 = vmatprep.subr.mxu0 0.0
    %5971 = vmatpush1.msra.mxu0 0.0
    %5972 = vmatprep.subr.mxu0 0.0
    %5973 = vmatpush1.msra.mxu0 0.0
    %5974 = vmatprep.subr.mxu0 0.0
    %5975 = vmatpush1.msra.mxu0 %v5937
    %5976 = vmatprep.subr.mxu0 0.0
    %5977 = vmatpush1.msra.mxu0 %v5935
    %5978 = vmatprep.subr.mxu0 0.0
    %5979 = vmatpush2.msra.mxu0 0.0
    %5980 = vmatprep.subr.mxu0 0.0
    %5981 = vmatpush2.msra.mxu0 0.0
    %5982 = vmatprep.subr.mxu0 0.0
    %5983 = vmatpush2.msra.mxu0 0.0
    %5984 = vmatprep.subr.mxu0 0.0
    %5985 = vmatpush2.msra.mxu0 0.0
    %5986 = vmatprep.subr.mxu0 0.0
    %5987 = vmatpush2.msra.mxu0 0.0
    %5988 = vmatprep.subr.mxu0 0.0
    %5989 = vmatpush2.msra.mxu0 0.0
    %5990 = vmatprep.subr.mxu0 0.0
    %5991 = vmatpush2.msra.mxu0 0.0
    %5992 = vmatprep.subr.mxu0 0.0
    %5993 = vmatpush2.msra.mxu0 0.0
    %5994 = vmatprep.subr.mxu0 0.0
    %5995 = vmatpush2.msra.mxu0 0.0
    %5996 = vmatprep.subr.mxu0 0.0
    %5997 = vmatpush2.msra.mxu0 0.0
    %5998 = vmatprep.subr.mxu0 0.0
    %5999 = vmatpush2.msra.mxu0 0.0
    %6000 = vmatprep.subr.mxu0 0.0
    %6001 = vmatpush2.msra.mxu0 0.0
    %6002 = vmatprep.subr.mxu0 0.0
    %6003 = vmatpush2.msra.mxu0 0.0
    %6004 = vmatprep.subr.mxu0 0.0
    %6005 = vmatpush2.msra.mxu0 0.0
    %6006 = vmatprep.subr.mxu0 0.0
    %6007 = vmatpush2.msra.mxu0 0.0
    %6008 = vmatprep.subr.mxu0 0.0
    %6009 = vmatpush2.msra.mxu0 0.0
    %6010 = vmatprep.mubr.f32.mxu0 0.0
    %6011 = vmatmul.mubr.f32.gmra.mxu0 %v5941
    %v6012 = vpop.f32.mrf.mxu0
    %v6013 = vadd.f32 0.0, %v6012
    %v6014 = vpop.f32.mrf.mxu0
    %6015 = vmatprep.mubr.f32.mxu0 0.0
    %6016 = vmatmul.mubr.f32.gmra.mxu0 %v5944
    %v6017 = vpop.f32.mrf.mxu0
    %v6018 = vadd.f32 0.0, %v6017
    %v6019 = vpop.f32.mrf.mxu0
    %6020 = vdwg.mxu0
    %6021 = vrot.lane.b32.xlu0 %v266, 48
    %v6022 = vpop.permute.xlu0 %6021
    %6023 = vrot.lane.b32.xlu0 %v271, 48
    %v6024 = vpop.permute.xlu0 %6023
    %v6028 = vsel %vm1309, %v5410, 0
    %v6031 = vsel %vm1309, %v5411, 0
    %6033 = vmatprep.subr.mxu0 0.0
    %6034 = vmatpush1.msra.mxu0 0.0
    %6035 = vmatprep.subr.mxu0 0.0
    %6036 = vmatpush1.msra.mxu0 0.0
    %6037 = vmatprep.subr.mxu0 0.0
    %6038 = vmatpush1.msra.mxu0 0.0
    %6039 = vmatprep.subr.mxu0 0.0
    %6040 = vmatpush1.msra.mxu0 0.0
    %6041 = vmatprep.subr.mxu0 0.0
    %6042 = vmatpush1.msra.mxu0 0.0
    %6043 = vmatprep.subr.mxu0 0.0
    %6044 = vmatpush1.msra.mxu0 0.0
    %6045 = vmatprep.subr.mxu0 0.0
    %6046 = vmatpush1.msra.mxu0 0.0
    %6047 = vmatprep.subr.mxu0 0.0
    %6048 = vmatpush1.msra.mxu0 0.0
    %6049 = vmatprep.subr.mxu0 0.0
    %6050 = vmatpush1.msra.mxu0 0.0
    %6051 = vmatprep.subr.mxu0 0.0
    %6052 = vmatpush1.msra.mxu0 0.0
    %6053 = vmatprep.subr.mxu0 0.0
    %6054 = vmatpush1.msra.mxu0 0.0
    %6055 = vmatprep.subr.mxu0 0.0
    %6056 = vmatpush1.msra.mxu0 0.0
    %6057 = vmatprep.subr.mxu0 0.0
    %6058 = vmatpush1.msra.mxu0 0.0
    %6059 = vmatprep.subr.mxu0 0.0
    %6060 = vmatpush1.msra.mxu0 0.0
    %6061 = vmatprep.subr.mxu0 0.0
    %6062 = vmatpush1.msra.mxu0 %v6024
    %6063 = vmatprep.subr.mxu0 0.0
    %6064 = vmatpush1.msra.mxu0 %v6022
    %6065 = vmatprep.subr.mxu0 0.0
    %6066 = vmatpush2.msra.mxu0 0.0
    %6067 = vmatprep.subr.mxu0 0.0
    %6068 = vmatpush2.msra.mxu0 0.0
    %6069 = vmatprep.subr.mxu0 0.0
    %6070 = vmatpush2.msra.mxu0 0.0
    %6071 = vmatprep.subr.mxu0 0.0
    %6072 = vmatpush2.msra.mxu0 0.0
    %6073 = vmatprep.subr.mxu0 0.0
    %6074 = vmatpush2.msra.mxu0 0.0
    %6075 = vmatprep.subr.mxu0 0.0
    %6076 = vmatpush2.msra.mxu0 0.0
    %6077 = vmatprep.subr.mxu0 0.0
    %6078 = vmatpush2.msra.mxu0 0.0
    %6079 = vmatprep.subr.mxu0 0.0
    %6080 = vmatpush2.msra.mxu0 0.0
    %6081 = vmatprep.subr.mxu0 0.0
    %6082 = vmatpush2.msra.mxu0 0.0
    %6083 = vmatprep.subr.mxu0 0.0
    %6084 = vmatpush2.msra.mxu0 0.0
    %6085 = vmatprep.subr.mxu0 0.0
    %6086 = vmatpush2.msra.mxu0 0.0
    %6087 = vmatprep.subr.mxu0 0.0
    %6088 = vmatpush2.msra.mxu0 0.0
    %6089 = vmatprep.subr.mxu0 0.0
    %6090 = vmatpush2.msra.mxu0 0.0
    %6091 = vmatprep.subr.mxu0 0.0
    %6092 = vmatpush2.msra.mxu0 0.0
    %6093 = vmatprep.subr.mxu0 0.0
    %6094 = vmatpush2.msra.mxu0 0.0
    %6095 = vmatprep.subr.mxu0 0.0
    %6096 = vmatpush2.msra.mxu0 0.0
    %6097 = vmatprep.mubr.f32.mxu0 0.0
    %6098 = vmatmul.mubr.f32.gmra.mxu0 %v6028
    %v6099 = vpop.f32.mrf.mxu0
    %v6100 = vadd.f32 0.0, %v6099
    %v6101 = vpop.f32.mrf.mxu0
    %6102 = vmatprep.mubr.f32.mxu0 0.0
    %6103 = vmatmul.mubr.f32.gmra.mxu0 %v6031
    %v6104 = vpop.f32.mrf.mxu0
    %v6105 = vadd.f32 0.0, %v6104
    %v6106 = vpop.f32.mrf.mxu0
    %6107 = vdwg.mxu0
    %6108 = vrot.lane.b32.xlu0 %v274, 104
    %v6109 = vpop.permute.xlu0 %6108
    %6110 = vrot.lane.b32.xlu0 %v275, 104
    %v6111 = vpop.permute.xlu0 %6110
    %6112 = vrot.lane.b32.xlu0 %v276, 104
    %v6113 = vpop.permute.xlu0 %6112
    %6114 = vrot.lane.b32.xlu0 %v277, 104
    %v6115 = vpop.permute.xlu0 %6114
    %6116 = vrot.lane.b32.xlu0 %v278, 104
    %v6117 = vpop.permute.xlu0 %6116
    %6118 = vrot.lane.b32.xlu0 %v279, 104
    %v6119 = vpop.permute.xlu0 %6118
    %6120 = vrot.lane.b32.xlu0 %v280, 104
    %v6121 = vpop.permute.xlu0 %6120
    %6122 = vrot.lane.b32.xlu0 %v281, 104
    %v6123 = vpop.permute.xlu0 %6122
    %6124 = vrot.lane.b32.xlu0 %v282, 104
    %v6125 = vpop.permute.xlu0 %6124
    %6126 = vrot.lane.b32.xlu0 %v283, 104
    %v6127 = vpop.permute.xlu0 %6126
    %6128 = vrot.lane.b32.xlu0 %v284, 104
    %v6129 = vpop.permute.xlu0 %6128
    %6130 = vrot.lane.b32.xlu0 %v285, 104
    %v6131 = vpop.permute.xlu0 %6130
    %6132 = vrot.lane.b32.xlu0 %v286, 104
    %v6133 = vpop.permute.xlu0 %6132
    %6134 = vrot.lane.b32.xlu0 %v287, 104
    %v6135 = vpop.permute.xlu0 %6134
    %6136 = vrot.lane.b32.xlu0 %v288, 104
    %v6137 = vpop.permute.xlu0 %6136
    %6138 = vrot.lane.b32.xlu0 %v289, 104
    %v6139 = vpop.permute.xlu0 %6138
    %v6156 = vsel %vm290, %v6109, 0.0
    %6157 = vadd.xlane.f32.xlu0 %v6156
    %v6158 = vpop.xlane.xlu0 %6157
    %v6159 = vsel %vm290, %v6111, 0.0
    %6160 = vadd.xlane.f32.xlu0 %v6159
    %v6161 = vpop.xlane.xlu0 %6160
    %v6162 = vsel %vm290, %v6113, 0.0
    %6163 = vadd.xlane.f32.xlu0 %v6162
    %v6164 = vpop.xlane.xlu0 %6163
    %v6165 = vsel %vm290, %v6115, 0.0
    %6166 = vadd.xlane.f32.xlu0 %v6165
    %v6167 = vpop.xlane.xlu0 %6166
    %v6168 = vsel %vm290, %v6117, 0.0
    %6169 = vadd.xlane.f32.xlu0 %v6168
    %v6170 = vpop.xlane.xlu0 %6169
    %v6171 = vsel %vm290, %v6119, 0.0
    %6172 = vadd.xlane.f32.xlu0 %v6171
    %v6173 = vpop.xlane.xlu0 %6172
    %v6174 = vsel %vm290, %v6121, 0.0
    %6175 = vadd.xlane.f32.xlu0 %v6174
    %v6176 = vpop.xlane.xlu0 %6175
    %v6177 = vsel %vm290, %v6123, 0.0
    %6178 = vadd.xlane.f32.xlu0 %v6177
    %v6179 = vpop.xlane.xlu0 %6178
    %v6180 = vsel %vm290, %v6125, 0.0
    %6181 = vadd.xlane.f32.xlu0 %v6180
    %v6182 = vpop.xlane.xlu0 %6181
    %v6183 = vsel %vm290, %v6127, 0.0
    %6184 = vadd.xlane.f32.xlu0 %v6183
    %v6185 = vpop.xlane.xlu0 %6184
    %v6186 = vsel %vm290, %v6129, 0.0
    %6187 = vadd.xlane.f32.xlu0 %v6186
    %v6188 = vpop.xlane.xlu0 %6187
    %v6189 = vsel %vm290, %v6131, 0.0
    %6190 = vadd.xlane.f32.xlu0 %v6189
    %v6191 = vpop.xlane.xlu0 %6190
    %v6192 = vsel %vm290, %v6133, 0.0
    %6193 = vadd.xlane.f32.xlu0 %v6192
    %v6194 = vpop.xlane.xlu0 %6193
    %v6195 = vsel %vm290, %v6135, 0.0
    %6196 = vadd.xlane.f32.xlu0 %v6195
    %v6197 = vpop.xlane.xlu0 %6196
    %v6198 = vsel %vm290, %v6137, 0.0
    %6199 = vadd.xlane.f32.xlu0 %v6198
    %v6200 = vpop.xlane.xlu0 %6199
    %v6201 = vsel %vm290, %v6139, 0.0
    %6202 = vadd.xlane.f32.xlu0 %v6201
    %v6203 = vpop.xlane.xlu0 %6202
    %v6204 = vmax.f32 %v6158, 1e-24
    %v6205 = vmax.f32 %v6161, 1e-24
    %v6206 = vmax.f32 %v6164, 1e-24
    %v6207 = vmax.f32 %v6167, 1e-24
    %v6208 = vmax.f32 %v6170, 1e-24
    %v6209 = vmax.f32 %v6173, 1e-24
    %v6210 = vmax.f32 %v6176, 1e-24
    %v6211 = vmax.f32 %v6179, 1e-24
    %v6212 = vmax.f32 %v6182, 1e-24
    %v6213 = vmax.f32 %v6185, 1e-24
    %v6214 = vmax.f32 %v6188, 1e-24
    %v6215 = vmax.f32 %v6191, 1e-24
    %v6216 = vmax.f32 %v6194, 1e-24
    %v6217 = vmax.f32 %v6197, 1e-24
    %v6218 = vmax.f32 %v6200, 1e-24
    %v6219 = vmax.f32 %v6203, 1e-24
    %v6220 = vrsqrt.pop %v6204
    %v6221 = vrsqrt.pop %v6205
    %v6222 = vrsqrt.pop %v6206
    %v6223 = vrsqrt.pop %v6207
    %v6224 = vrsqrt.pop %v6208
    %v6225 = vrsqrt.pop %v6209
    %v6226 = vrsqrt.pop %v6210
    %v6227 = vrsqrt.pop %v6211
    %v6228 = vrsqrt.pop %v6212
    %v6229 = vrsqrt.pop %v6213
    %v6230 = vrsqrt.pop %v6214
    %v6231 = vrsqrt.pop %v6215
    %v6232 = vrsqrt.pop %v6216
    %v6233 = vrsqrt.pop %v6217
    %v6234 = vrsqrt.pop %v6218
    %v6235 = vrsqrt.pop %v6219
    %v6236 = vmul.f32 %v196, %v6220
    %v6237 = vmul.f32 %v201, %v6221
    %v6238 = vmul.f32 %v206, %v6222
    %v6239 = vmul.f32 %v211, %v6223
    %v6240 = vmul.f32 %v216, %v6224
    %v6241 = vmul.f32 %v221, %v6225
    %v6242 = vmul.f32 %v226, %v6226
    %v6243 = vmul.f32 %v231, %v6227
    %v6244 = vmul.f32 %v236, %v6228
    %v6245 = vmul.f32 %v241, %v6229
    %v6246 = vmul.f32 %v246, %v6230
    %v6247 = vmul.f32 %v251, %v6231
    %v6248 = vmul.f32 %v256, %v6232
    %v6249 = vmul.f32 %v261, %v6233
    %v6250 = vmul.f32 %v266, %v6234
    %v6251 = vmul.f32 %v271, %v6235
    %6252 = vrot.lane.b32.xlu0 %v274, 72
    %v6253 = vpop.permute.xlu0 %6252
    %6254 = vrot.lane.b32.xlu0 %v275, 72
    %v6255 = vpop.permute.xlu0 %6254
    %6256 = vrot.lane.b32.xlu0 %v276, 72
    %v6257 = vpop.permute.xlu0 %6256
    %6258 = vrot.lane.b32.xlu0 %v277, 72
    %v6259 = vpop.permute.xlu0 %6258
    %6260 = vrot.lane.b32.xlu0 %v278, 72
    %v6261 = vpop.permute.xlu0 %6260
    %6262 = vrot.lane.b32.xlu0 %v279, 72
    %v6263 = vpop.permute.xlu0 %6262
    %6264 = vrot.lane.b32.xlu0 %v280, 72
    %v6265 = vpop.permute.xlu0 %6264
    %6266 = vrot.lane.b32.xlu0 %v281, 72
    %v6267 = vpop.permute.xlu0 %6266
    %6268 = vrot.lane.b32.xlu0 %v282, 72
    %v6269 = vpop.permute.xlu0 %6268
    %6270 = vrot.lane.b32.xlu0 %v283, 72
    %v6271 = vpop.permute.xlu0 %6270
    %6272 = vrot.lane.b32.xlu0 %v284, 72
    %v6273 = vpop.permute.xlu0 %6272
    %6274 = vrot.lane.b32.xlu0 %v285, 72
    %v6275 = vpop.permute.xlu0 %6274
    %6276 = vrot.lane.b32.xlu0 %v286, 72
    %v6277 = vpop.permute.xlu0 %6276
    %6278 = vrot.lane.b32.xlu0 %v287, 72
    %v6279 = vpop.permute.xlu0 %6278
    %6280 = vrot.lane.b32.xlu0 %v288, 72
    %v6281 = vpop.permute.xlu0 %6280
    %6282 = vrot.lane.b32.xlu0 %v289, 72
    %v6283 = vpop.permute.xlu0 %6282
    %v6300 = vsel %vm290, %v6253, 0.0
    %6301 = vadd.xlane.f32.xlu0 %v6300
    %v6302 = vpop.xlane.xlu0 %6301
    %v6303 = vsel %vm290, %v6255, 0.0
    %6304 = vadd.xlane.f32.xlu0 %v6303
    %v6305 = vpop.xlane.xlu0 %6304
    %v6306 = vsel %vm290, %v6257, 0.0
    %6307 = vadd.xlane.f32.xlu0 %v6306
    %v6308 = vpop.xlane.xlu0 %6307
    %v6309 = vsel %vm290, %v6259, 0.0
    %6310 = vadd.xlane.f32.xlu0 %v6309
    %v6311 = vpop.xlane.xlu0 %6310
    %v6312 = vsel %vm290, %v6261, 0.0
    %6313 = vadd.xlane.f32.xlu0 %v6312
    %v6314 = vpop.xlane.xlu0 %6313
    %v6315 = vsel %vm290, %v6263, 0.0
    %6316 = vadd.xlane.f32.xlu0 %v6315
    %v6317 = vpop.xlane.xlu0 %6316
    %v6318 = vsel %vm290, %v6265, 0.0
    %6319 = vadd.xlane.f32.xlu0 %v6318
    %v6320 = vpop.xlane.xlu0 %6319
    %v6321 = vsel %vm290, %v6267, 0.0
    %6322 = vadd.xlane.f32.xlu0 %v6321
    %v6323 = vpop.xlane.xlu0 %6322
    %v6324 = vsel %vm290, %v6269, 0.0
    %6325 = vadd.xlane.f32.xlu0 %v6324
    %v6326 = vpop.xlane.xlu0 %6325
    %v6327 = vsel %vm290, %v6271, 0.0
    %6328 = vadd.xlane.f32.xlu0 %v6327
    %v6329 = vpop.xlane.xlu0 %6328
    %v6330 = vsel %vm290, %v6273, 0.0
    %6331 = vadd.xlane.f32.xlu0 %v6330
    %v6332 = vpop.xlane.xlu0 %6331
    %v6333 = vsel %vm290, %v6275, 0.0
    %6334 = vadd.xlane.f32.xlu0 %v6333
    %v6335 = vpop.xlane.xlu0 %6334
    %v6336 = vsel %vm290, %v6277, 0.0
    %6337 = vadd.xlane.f32.xlu0 %v6336
    %v6338 = vpop.xlane.xlu0 %6337
    %v6339 = vsel %vm290, %v6279, 0.0
    %6340 = vadd.xlane.f32.xlu0 %v6339
    %v6341 = vpop.xlane.xlu0 %6340
    %v6342 = vsel %vm290, %v6281, 0.0
    %6343 = vadd.xlane.f32.xlu0 %v6342
    %v6344 = vpop.xlane.xlu0 %6343
    %v6345 = vsel %vm290, %v6283, 0.0
    %6346 = vadd.xlane.f32.xlu0 %v6345
    %v6347 = vpop.xlane.xlu0 %6346
    %v6348 = vmax.f32 %v6302, 1e-24
    %v6349 = vmax.f32 %v6305, 1e-24
    %v6350 = vmax.f32 %v6308, 1e-24
    %v6351 = vmax.f32 %v6311, 1e-24
    %v6352 = vmax.f32 %v6314, 1e-24
    %v6353 = vmax.f32 %v6317, 1e-24
    %v6354 = vmax.f32 %v6320, 1e-24
    %v6355 = vmax.f32 %v6323, 1e-24
    %v6356 = vmax.f32 %v6326, 1e-24
    %v6357 = vmax.f32 %v6329, 1e-24
    %v6358 = vmax.f32 %v6332, 1e-24
    %v6359 = vmax.f32 %v6335, 1e-24
    %v6360 = vmax.f32 %v6338, 1e-24
    %v6361 = vmax.f32 %v6341, 1e-24
    %v6362 = vmax.f32 %v6344, 1e-24
    %v6363 = vmax.f32 %v6347, 1e-24
    %v6364 = vrsqrt.pop %v6348
    %v6365 = vrsqrt.pop %v6349
    %v6366 = vrsqrt.pop %v6350
    %v6367 = vrsqrt.pop %v6351
    %v6368 = vrsqrt.pop %v6352
    %v6369 = vrsqrt.pop %v6353
    %v6370 = vrsqrt.pop %v6354
    %v6371 = vrsqrt.pop %v6355
    %v6372 = vrsqrt.pop %v6356
    %v6373 = vrsqrt.pop %v6357
    %v6374 = vrsqrt.pop %v6358
    %v6375 = vrsqrt.pop %v6359
    %v6376 = vrsqrt.pop %v6360
    %v6377 = vrsqrt.pop %v6361
    %v6378 = vrsqrt.pop %v6362
    %v6379 = vrsqrt.pop %v6363
    %v6380 = vmul.f32 %v196, %v6364
    %v6381 = vmul.f32 %v201, %v6365
    %v6382 = vmul.f32 %v206, %v6366
    %v6383 = vmul.f32 %v211, %v6367
    %v6384 = vmul.f32 %v216, %v6368
    %v6385 = vmul.f32 %v221, %v6369
    %v6386 = vmul.f32 %v226, %v6370
    %v6387 = vmul.f32 %v231, %v6371
    %v6388 = vmul.f32 %v236, %v6372
    %v6389 = vmul.f32 %v241, %v6373
    %v6390 = vmul.f32 %v246, %v6374
    %v6391 = vmul.f32 %v251, %v6375
    %v6392 = vmul.f32 %v256, %v6376
    %v6393 = vmul.f32 %v261, %v6377
    %v6394 = vmul.f32 %v266, %v6378
    %v6395 = vmul.f32 %v271, %v6379
    %s6396 = sld [smem:[#allocation2 + $0x3]]
    %v6397 = vstv %s6396
    %v6398 = vmul.f32 %v6236, %v6397
    %v6399 = vmul.f32 %v6237, %v6397
    %v6400 = vmul.f32 %v6238, %v6397
    %v6401 = vmul.f32 %v6239, %v6397
    %v6402 = vmul.f32 %v6240, %v6397
    %v6403 = vmul.f32 %v6241, %v6397
    %v6404 = vmul.f32 %v6242, %v6397
    %v6405 = vmul.f32 %v6243, %v6397
    %v6406 = vmul.f32 %v6244, %v6397
    %v6407 = vmul.f32 %v6245, %v6397
    %v6408 = vmul.f32 %v6246, %v6397
    %v6409 = vmul.f32 %v6247, %v6397
    %v6410 = vmul.f32 %v6248, %v6397
    %v6411 = vmul.f32 %v6249, %v6397
    %v6412 = vmul.f32 %v6250, %v6397
    %v6413 = vmul.f32 %v6251, %v6397
    %s6414 = scalar_lea.vmem [#allocation5], 384
    %v6415 = vld [vmem:[%s6414] sm:$0xff]
    %v6416 = vld [vmem:[%s6414 + $0x8] sm:$0xff]
    %v6417 = vld [vmem:[%s6414 + $0x10] sm:$0xff]
    %v6418 = vld [vmem:[%s6414 + $0x18] sm:$0xff]
    %v6419 = vld [vmem:[%s6414 + $0x20] sm:$0xff]
    %v6420 = vld [vmem:[%s6414 + $0x28] sm:$0xff]
    %v6421 = vld [vmem:[%s6414 + $0x30] sm:$0xff]
    %v6422 = vld [vmem:[%s6414 + $0x38] sm:$0xff]
    %v6423 = vld [vmem:[%s6414 + $0x40] sm:$0xff]
    %v6424 = vld [vmem:[%s6414 + $0x48] sm:$0xff]
    %v6425 = vld [vmem:[%s6414 + $0x50] sm:$0xff]
    %v6426 = vld [vmem:[%s6414 + $0x58] sm:$0xff]
    %v6427 = vld [vmem:[%s6414 + $0x60] sm:$0xff]
    %v6428 = vld [vmem:[%s6414 + $0x68] sm:$0xff]
    %v6429 = vld [vmem:[%s6414 + $0x70] sm:$0xff]
    %v6430 = vld [vmem:[%s6414 + $0x78] sm:$0xff]
    %6433 = vrot.lane.b32.xlu0 %v6398, 104
    %v6434 = vpop.permute.xlu0 %6433
    %6435 = vrot.lane.b32.xlu0 %v6399, 104
    %v6436 = vpop.permute.xlu0 %6435
    %6439 = vrot.lane.b32.xlu0 %v6380, 72
    %v6440 = vpop.permute.xlu0 %6439
    %6441 = vrot.lane.b32.xlu0 %v6381, 72
    %v6442 = vpop.permute.xlu0 %6441
    %v6443 = vsel %vm290, %v6434, 0
    %v6445 = vsel %vm290, %v6436, 0
    %v6447 = vsel %vm290, %v6440, 0
    %v6449 = vsel %vm290, %v6442, 0
    %6451 = vmatprep.subr.mxu0 0.0
    %6452 = vmatpush1.xpose.msra.mxu0 0.0
    %6453 = vmatprep.subr.mxu0 0.0
    %6454 = vmatpush1.xpose.msra.mxu0 0.0
    %6455 = vmatprep.subr.mxu0 0.0
    %6456 = vmatpush1.xpose.msra.mxu0 0.0
    %6457 = vmatprep.subr.mxu0 0.0
    %6458 = vmatpush1.xpose.msra.mxu0 0.0
    %6459 = vmatprep.subr.mxu0 0.0
    %6460 = vmatpush1.xpose.msra.mxu0 0.0
    %6461 = vmatprep.subr.mxu0 0.0
    %6462 = vmatpush1.xpose.msra.mxu0 0.0
    %6463 = vmatprep.subr.mxu0 0.0
    %6464 = vmatpush1.xpose.msra.mxu0 0.0
    %6465 = vmatprep.subr.mxu0 0.0
    %6466 = vmatpush1.xpose.msra.mxu0 0.0
    %6467 = vmatprep.subr.mxu0 0.0
    %6468 = vmatpush1.xpose.msra.mxu0 0.0
    %6469 = vmatprep.subr.mxu0 0.0
    %6470 = vmatpush1.xpose.msra.mxu0 0.0
    %6471 = vmatprep.subr.mxu0 0.0
    %6472 = vmatpush1.xpose.msra.mxu0 0.0
    %6473 = vmatprep.subr.mxu0 0.0
    %6474 = vmatpush1.xpose.msra.mxu0 0.0
    %6475 = vmatprep.subr.mxu0 0.0
    %6476 = vmatpush1.xpose.msra.mxu0 0.0
    %6477 = vmatprep.subr.mxu0 0.0
    %6478 = vmatpush1.xpose.msra.mxu0 0.0
    %6479 = vmatprep.subr.mxu0 0.0
    %6480 = vmatpush1.xpose.msra.mxu0 %v6449
    %6481 = vmatprep.subr.mxu0 0.0
    %6482 = vmatpush1.xpose.msra.mxu0 %v6447
    %6483 = vmatprep.subr.mxu0 0.0
    %6484 = vmatpush2.xpose.msra.mxu0 0.0
    %6485 = vmatprep.subr.mxu0 0.0
    %6486 = vmatpush2.xpose.msra.mxu0 0.0
    %6487 = vmatprep.subr.mxu0 0.0
    %6488 = vmatpush2.xpose.msra.mxu0 0.0
    %6489 = vmatprep.subr.mxu0 0.0
    %6490 = vmatpush2.xpose.msra.mxu0 0.0
    %6491 = vmatprep.subr.mxu0 0.0
    %6492 = vmatpush2.xpose.msra.mxu0 0.0
    %6493 = vmatprep.subr.mxu0 0.0
    %6494 = vmatpush2.xpose.msra.mxu0 0.0
    %6495 = vmatprep.subr.mxu0 0.0
    %6496 = vmatpush2.xpose.msra.mxu0 0.0
    %6497 = vmatprep.subr.mxu0 0.0
    %6498 = vmatpush2.xpose.msra.mxu0 0.0
    %6499 = vmatprep.subr.mxu0 0.0
    %6500 = vmatpush2.xpose.msra.mxu0 0.0
    %6501 = vmatprep.subr.mxu0 0.0
    %6502 = vmatpush2.xpose.msra.mxu0 0.0
    %6503 = vmatprep.subr.mxu0 0.0
    %6504 = vmatpush2.xpose.msra.mxu0 0.0
    %6505 = vmatprep.subr.mxu0 0.0
    %6506 = vmatpush2.xpose.msra.mxu0 0.0
    %6507 = vmatprep.subr.mxu0 0.0
    %6508 = vmatpush2.xpose.msra.mxu0 0.0
    %6509 = vmatprep.subr.mxu0 0.0
    %6510 = vmatpush2.xpose.msra.mxu0 0.0
    %6511 = vmatprep.subr.mxu0 0.0
    %6512 = vmatpush2.xpose.msra.mxu0 0.0
    %6513 = vmatprep.subr.mxu0 0.0
    %6514 = vmatpush2.xpose.msra.mxu0 0.0
    %6515 = vmatprep.mubr.f32.mxu0 0.0
    %6516 = vmatmul.mubr.f32.gmra.mxu0 %v6443
    %v6517 = vpop.f32.mrf.mxu0
    %v6518 = vadd.f32 %v6415, %v6517
    %v6519 = vpop.f32.mrf.mxu0
    %6520 = vmatprep.mubr.f32.mxu0 0.0
    %6521 = vmatmul.mubr.f32.gmra.mxu0 %v6445
    %v6522 = vpop.f32.mrf.mxu0
    %v6523 = vadd.f32 %v6416, %v6522
    %v6524 = vpop.f32.mrf.mxu0
    %6525 = vdwg.mxu0
    %6528 = vrot.lane.b32.xlu0 %v6400, 104
    %v6529 = vpop.permute.xlu0 %6528
    %6530 = vrot.lane.b32.xlu0 %v6401, 104
    %v6531 = vpop.permute.xlu0 %6530
    %6534 = vrot.lane.b32.xlu0 %v6382, 72
    %v6535 = vpop.permute.xlu0 %6534
    %6536 = vrot.lane.b32.xlu0 %v6383, 72
    %v6537 = vpop.permute.xlu0 %6536
    %v6538 = vsel %vm290, %v6529, 0
    %v6540 = vsel %vm290, %v6531, 0
    %v6542 = vsel %vm290, %v6535, 0
    %v6544 = vsel %vm290, %v6537, 0
    %6546 = vmatprep.subr.mxu0 0.0
    %6547 = vmatpush1.xpose.msra.mxu0 0.0
    %6548 = vmatprep.subr.mxu0 0.0
    %6549 = vmatpush1.xpose.msra.mxu0 0.0
    %6550 = vmatprep.subr.mxu0 0.0
    %6551 = vmatpush1.xpose.msra.mxu0 0.0
    %6552 = vmatprep.subr.mxu0 0.0
    %6553 = vmatpush1.xpose.msra.mxu0 0.0
    %6554 = vmatprep.subr.mxu0 0.0
    %6555 = vmatpush1.xpose.msra.mxu0 0.0
    %6556 = vmatprep.subr.mxu0 0.0
    %6557 = vmatpush1.xpose.msra.mxu0 0.0
    %6558 = vmatprep.subr.mxu0 0.0
    %6559 = vmatpush1.xpose.msra.mxu0 0.0
    %6560 = vmatprep.subr.mxu0 0.0
    %6561 = vmatpush1.xpose.msra.mxu0 0.0
    %6562 = vmatprep.subr.mxu0 0.0
    %6563 = vmatpush1.xpose.msra.mxu0 0.0
    %6564 = vmatprep.subr.mxu0 0.0
    %6565 = vmatpush1.xpose.msra.mxu0 0.0
    %6566 = vmatprep.subr.mxu0 0.0
    %6567 = vmatpush1.xpose.msra.mxu0 0.0
    %6568 = vmatprep.subr.mxu0 0.0
    %6569 = vmatpush1.xpose.msra.mxu0 0.0
    %6570 = vmatprep.subr.mxu0 0.0
    %6571 = vmatpush1.xpose.msra.mxu0 0.0
    %6572 = vmatprep.subr.mxu0 0.0
    %6573 = vmatpush1.xpose.msra.mxu0 0.0
    %6574 = vmatprep.subr.mxu0 0.0
    %6575 = vmatpush1.xpose.msra.mxu0 %v6544
    %6576 = vmatprep.subr.mxu0 0.0
    %6577 = vmatpush1.xpose.msra.mxu0 %v6542
    %6578 = vmatprep.subr.mxu0 0.0
    %6579 = vmatpush2.xpose.msra.mxu0 0.0
    %6580 = vmatprep.subr.mxu0 0.0
    %6581 = vmatpush2.xpose.msra.mxu0 0.0
    %6582 = vmatprep.subr.mxu0 0.0
    %6583 = vmatpush2.xpose.msra.mxu0 0.0
    %6584 = vmatprep.subr.mxu0 0.0
    %6585 = vmatpush2.xpose.msra.mxu0 0.0
    %6586 = vmatprep.subr.mxu0 0.0
    %6587 = vmatpush2.xpose.msra.mxu0 0.0
    %6588 = vmatprep.subr.mxu0 0.0
    %6589 = vmatpush2.xpose.msra.mxu0 0.0
    %6590 = vmatprep.subr.mxu0 0.0
    %6591 = vmatpush2.xpose.msra.mxu0 0.0
    %6592 = vmatprep.subr.mxu0 0.0
    %6593 = vmatpush2.xpose.msra.mxu0 0.0
    %6594 = vmatprep.subr.mxu0 0.0
    %6595 = vmatpush2.xpose.msra.mxu0 0.0
    %6596 = vmatprep.subr.mxu0 0.0
    %6597 = vmatpush2.xpose.msra.mxu0 0.0
    %6598 = vmatprep.subr.mxu0 0.0
    %6599 = vmatpush2.xpose.msra.mxu0 0.0
    %6600 = vmatprep.subr.mxu0 0.0
    %6601 = vmatpush2.xpose.msra.mxu0 0.0
    %6602 = vmatprep.subr.mxu0 0.0
    %6603 = vmatpush2.xpose.msra.mxu0 0.0
    %6604 = vmatprep.subr.mxu0 0.0
    %6605 = vmatpush2.xpose.msra.mxu0 0.0
    %6606 = vmatprep.subr.mxu0 0.0
    %6607 = vmatpush2.xpose.msra.mxu0 0.0
    %6608 = vmatprep.subr.mxu0 0.0
    %6609 = vmatpush2.xpose.msra.mxu0 0.0
    %6610 = vmatprep.mubr.f32.mxu0 0.0
    %6611 = vmatmul.mubr.f32.gmra.mxu0 %v6538
    %v6612 = vpop.f32.mrf.mxu0
    %v6613 = vadd.f32 %v6417, %v6612
    %v6614 = vpop.f32.mrf.mxu0
    %6615 = vmatprep.mubr.f32.mxu0 0.0
    %6616 = vmatmul.mubr.f32.gmra.mxu0 %v6540
    %v6617 = vpop.f32.mrf.mxu0
    %v6618 = vadd.f32 %v6418, %v6617
    %v6619 = vpop.f32.mrf.mxu0
    %6620 = vdwg.mxu0
    %6623 = vrot.lane.b32.xlu0 %v6402, 104
    %v6624 = vpop.permute.xlu0 %6623
    %6625 = vrot.lane.b32.xlu0 %v6403, 104
    %v6626 = vpop.permute.xlu0 %6625
    %6629 = vrot.lane.b32.xlu0 %v6384, 72
    %v6630 = vpop.permute.xlu0 %6629
    %6631 = vrot.lane.b32.xlu0 %v6385, 72
    %v6632 = vpop.permute.xlu0 %6631
    %v6633 = vsel %vm290, %v6624, 0
    %v6635 = vsel %vm290, %v6626, 0
    %v6637 = vsel %vm290, %v6630, 0
    %v6639 = vsel %vm290, %v6632, 0
    %6641 = vmatprep.subr.mxu0 0.0
    %6642 = vmatpush1.xpose.msra.mxu0 0.0
    %6643 = vmatprep.subr.mxu0 0.0
    %6644 = vmatpush1.xpose.msra.mxu0 0.0
    %6645 = vmatprep.subr.mxu0 0.0
    %6646 = vmatpush1.xpose.msra.mxu0 0.0
    %6647 = vmatprep.subr.mxu0 0.0
    %6648 = vmatpush1.xpose.msra.mxu0 0.0
    %6649 = vmatprep.subr.mxu0 0.0
    %6650 = vmatpush1.xpose.msra.mxu0 0.0
    %6651 = vmatprep.subr.mxu0 0.0
    %6652 = vmatpush1.xpose.msra.mxu0 0.0
    %6653 = vmatprep.subr.mxu0 0.0
    %6654 = vmatpush1.xpose.msra.mxu0 0.0
    %6655 = vmatprep.subr.mxu0 0.0
    %6656 = vmatpush1.xpose.msra.mxu0 0.0
    %6657 = vmatprep.subr.mxu0 0.0
    %6658 = vmatpush1.xpose.msra.mxu0 0.0
    %6659 = vmatprep.subr.mxu0 0.0
    %6660 = vmatpush1.xpose.msra.mxu0 0.0
    %6661 = vmatprep.subr.mxu0 0.0
    %6662 = vmatpush1.xpose.msra.mxu0 0.0
    %6663 = vmatprep.subr.mxu0 0.0
    %6664 = vmatpush1.xpose.msra.mxu0 0.0
    %6665 = vmatprep.subr.mxu0 0.0
    %6666 = vmatpush1.xpose.msra.mxu0 0.0
    %6667 = vmatprep.subr.mxu0 0.0
    %6668 = vmatpush1.xpose.msra.mxu0 0.0
    %6669 = vmatprep.subr.mxu0 0.0
    %6670 = vmatpush1.xpose.msra.mxu0 %v6639
    %6671 = vmatprep.subr.mxu0 0.0
    %6672 = vmatpush1.xpose.msra.mxu0 %v6637
    %6673 = vmatprep.subr.mxu0 0.0
    %6674 = vmatpush2.xpose.msra.mxu0 0.0
    %6675 = vmatprep.subr.mxu0 0.0
    %6676 = vmatpush2.xpose.msra.mxu0 0.0
    %6677 = vmatprep.subr.mxu0 0.0
    %6678 = vmatpush2.xpose.msra.mxu0 0.0
    %6679 = vmatprep.subr.mxu0 0.0
    %6680 = vmatpush2.xpose.msra.mxu0 0.0
    %6681 = vmatprep.subr.mxu0 0.0
    %6682 = vmatpush2.xpose.msra.mxu0 0.0
    %6683 = vmatprep.subr.mxu0 0.0
    %6684 = vmatpush2.xpose.msra.mxu0 0.0
    %6685 = vmatprep.subr.mxu0 0.0
    %6686 = vmatpush2.xpose.msra.mxu0 0.0
    %6687 = vmatprep.subr.mxu0 0.0
    %6688 = vmatpush2.xpose.msra.mxu0 0.0
    %6689 = vmatprep.subr.mxu0 0.0
    %6690 = vmatpush2.xpose.msra.mxu0 0.0
    %6691 = vmatprep.subr.mxu0 0.0
    %6692 = vmatpush2.xpose.msra.mxu0 0.0
    %6693 = vmatprep.subr.mxu0 0.0
    %6694 = vmatpush2.xpose.msra.mxu0 0.0
    %6695 = vmatprep.subr.mxu0 0.0
    %6696 = vmatpush2.xpose.msra.mxu0 0.0
    %6697 = vmatprep.subr.mxu0 0.0
    %6698 = vmatpush2.xpose.msra.mxu0 0.0
    %6699 = vmatprep.subr.mxu0 0.0
    %6700 = vmatpush2.xpose.msra.mxu0 0.0
    %6701 = vmatprep.subr.mxu0 0.0
    %6702 = vmatpush2.xpose.msra.mxu0 0.0
    %6703 = vmatprep.subr.mxu0 0.0
    %6704 = vmatpush2.xpose.msra.mxu0 0.0
    %6705 = vmatprep.mubr.f32.mxu0 0.0
    %6706 = vmatmul.mubr.f32.gmra.mxu0 %v6633
    %v6707 = vpop.f32.mrf.mxu0
    %v6708 = vadd.f32 %v6419, %v6707
    %v6709 = vpop.f32.mrf.mxu0
    %6710 = vmatprep.mubr.f32.mxu0 0.0
    %6711 = vmatmul.mubr.f32.gmra.mxu0 %v6635
    %v6712 = vpop.f32.mrf.mxu0
    %v6713 = vadd.f32 %v6420, %v6712
    %v6714 = vpop.f32.mrf.mxu0
    %6715 = vdwg.mxu0
    %6718 = vrot.lane.b32.xlu0 %v6404, 104
    %v6719 = vpop.permute.xlu0 %6718
    %6720 = vrot.lane.b32.xlu0 %v6405, 104
    %v6721 = vpop.permute.xlu0 %6720
    %6724 = vrot.lane.b32.xlu0 %v6386, 72
    %v6725 = vpop.permute.xlu0 %6724
    %6726 = vrot.lane.b32.xlu0 %v6387, 72
    %v6727 = vpop.permute.xlu0 %6726
    %v6728 = vsel %vm290, %v6719, 0
    %v6730 = vsel %vm290, %v6721, 0
    %v6732 = vsel %vm290, %v6725, 0
    %v6734 = vsel %vm290, %v6727, 0
    %6736 = vmatprep.subr.mxu0 0.0
    %6737 = vmatpush1.xpose.msra.mxu0 0.0
    %6738 = vmatprep.subr.mxu0 0.0
    %6739 = vmatpush1.xpose.msra.mxu0 0.0
    %6740 = vmatprep.subr.mxu0 0.0
    %6741 = vmatpush1.xpose.msra.mxu0 0.0
    %6742 = vmatprep.subr.mxu0 0.0
    %6743 = vmatpush1.xpose.msra.mxu0 0.0
    %6744 = vmatprep.subr.mxu0 0.0
    %6745 = vmatpush1.xpose.msra.mxu0 0.0
    %6746 = vmatprep.subr.mxu0 0.0
    %6747 = vmatpush1.xpose.msra.mxu0 0.0
    %6748 = vmatprep.subr.mxu0 0.0
    %6749 = vmatpush1.xpose.msra.mxu0 0.0
    %6750 = vmatprep.subr.mxu0 0.0
    %6751 = vmatpush1.xpose.msra.mxu0 0.0
    %6752 = vmatprep.subr.mxu0 0.0
    %6753 = vmatpush1.xpose.msra.mxu0 0.0
    %6754 = vmatprep.subr.mxu0 0.0
    %6755 = vmatpush1.xpose.msra.mxu0 0.0
    %6756 = vmatprep.subr.mxu0 0.0
    %6757 = vmatpush1.xpose.msra.mxu0 0.0
    %6758 = vmatprep.subr.mxu0 0.0
    %6759 = vmatpush1.xpose.msra.mxu0 0.0
    %6760 = vmatprep.subr.mxu0 0.0
    %6761 = vmatpush1.xpose.msra.mxu0 0.0
    %6762 = vmatprep.subr.mxu0 0.0
    %6763 = vmatpush1.xpose.msra.mxu0 0.0
    %6764 = vmatprep.subr.mxu0 0.0
    %6765 = vmatpush1.xpose.msra.mxu0 %v6734
    %6766 = vmatprep.subr.mxu0 0.0
    %6767 = vmatpush1.xpose.msra.mxu0 %v6732
    %6768 = vmatprep.subr.mxu0 0.0
    %6769 = vmatpush2.xpose.msra.mxu0 0.0
    %6770 = vmatprep.subr.mxu0 0.0
    %6771 = vmatpush2.xpose.msra.mxu0 0.0
    %6772 = vmatprep.subr.mxu0 0.0
    %6773 = vmatpush2.xpose.msra.mxu0 0.0
    %6774 = vmatprep.subr.mxu0 0.0
    %6775 = vmatpush2.xpose.msra.mxu0 0.0
    %6776 = vmatprep.subr.mxu0 0.0
    %6777 = vmatpush2.xpose.msra.mxu0 0.0
    %6778 = vmatprep.subr.mxu0 0.0
    %6779 = vmatpush2.xpose.msra.mxu0 0.0
    %6780 = vmatprep.subr.mxu0 0.0
    %6781 = vmatpush2.xpose.msra.mxu0 0.0
    %6782 = vmatprep.subr.mxu0 0.0
    %6783 = vmatpush2.xpose.msra.mxu0 0.0
    %6784 = vmatprep.subr.mxu0 0.0
    %6785 = vmatpush2.xpose.msra.mxu0 0.0
    %6786 = vmatprep.subr.mxu0 0.0
    %6787 = vmatpush2.xpose.msra.mxu0 0.0
    %6788 = vmatprep.subr.mxu0 0.0
    %6789 = vmatpush2.xpose.msra.mxu0 0.0
    %6790 = vmatprep.subr.mxu0 0.0
    %6791 = vmatpush2.xpose.msra.mxu0 0.0
    %6792 = vmatprep.subr.mxu0 0.0
    %6793 = vmatpush2.xpose.msra.mxu0 0.0
    %6794 = vmatprep.subr.mxu0 0.0
    %6795 = vmatpush2.xpose.msra.mxu0 0.0
    %6796 = vmatprep.subr.mxu0 0.0
    %6797 = vmatpush2.xpose.msra.mxu0 0.0
    %6798 = vmatprep.subr.mxu0 0.0
    %6799 = vmatpush2.xpose.msra.mxu0 0.0
    %6800 = vmatprep.mubr.f32.mxu0 0.0
    %6801 = vmatmul.mubr.f32.gmra.mxu0 %v6728
    %v6802 = vpop.f32.mrf.mxu0
    %v6803 = vadd.f32 %v6421, %v6802
    %v6804 = vpop.f32.mrf.mxu0
    %6805 = vmatprep.mubr.f32.mxu0 0.0
    %6806 = vmatmul.mubr.f32.gmra.mxu0 %v6730
    %v6807 = vpop.f32.mrf.mxu0
    %v6808 = vadd.f32 %v6422, %v6807
    %v6809 = vpop.f32.mrf.mxu0
    %6810 = vdwg.mxu0
    %6813 = vrot.lane.b32.xlu0 %v6406, 104
    %v6814 = vpop.permute.xlu0 %6813
    %6815 = vrot.lane.b32.xlu0 %v6407, 104
    %v6816 = vpop.permute.xlu0 %6815
    %6819 = vrot.lane.b32.xlu0 %v6388, 72
    %v6820 = vpop.permute.xlu0 %6819
    %6821 = vrot.lane.b32.xlu0 %v6389, 72
    %v6822 = vpop.permute.xlu0 %6821
    %v6823 = vsel %vm290, %v6814, 0
    %v6825 = vsel %vm290, %v6816, 0
    %v6827 = vsel %vm290, %v6820, 0
    %v6829 = vsel %vm290, %v6822, 0
    %6831 = vmatprep.subr.mxu0 0.0
    %6832 = vmatpush1.xpose.msra.mxu0 0.0
    %6833 = vmatprep.subr.mxu0 0.0
    %6834 = vmatpush1.xpose.msra.mxu0 0.0
    %6835 = vmatprep.subr.mxu0 0.0
    %6836 = vmatpush1.xpose.msra.mxu0 0.0
    %6837 = vmatprep.subr.mxu0 0.0
    %6838 = vmatpush1.xpose.msra.mxu0 0.0
    %6839 = vmatprep.subr.mxu0 0.0
    %6840 = vmatpush1.xpose.msra.mxu0 0.0
    %6841 = vmatprep.subr.mxu0 0.0
    %6842 = vmatpush1.xpose.msra.mxu0 0.0
    %6843 = vmatprep.subr.mxu0 0.0
    %6844 = vmatpush1.xpose.msra.mxu0 0.0
    %6845 = vmatprep.subr.mxu0 0.0
    %6846 = vmatpush1.xpose.msra.mxu0 0.0
    %6847 = vmatprep.subr.mxu0 0.0
    %6848 = vmatpush1.xpose.msra.mxu0 0.0
    %6849 = vmatprep.subr.mxu0 0.0
    %6850 = vmatpush1.xpose.msra.mxu0 0.0
    %6851 = vmatprep.subr.mxu0 0.0
    %6852 = vmatpush1.xpose.msra.mxu0 0.0
    %6853 = vmatprep.subr.mxu0 0.0
    %6854 = vmatpush1.xpose.msra.mxu0 0.0
    %6855 = vmatprep.subr.mxu0 0.0
    %6856 = vmatpush1.xpose.msra.mxu0 0.0
    %6857 = vmatprep.subr.mxu0 0.0
    %6858 = vmatpush1.xpose.msra.mxu0 0.0
    %6859 = vmatprep.subr.mxu0 0.0
    %6860 = vmatpush1.xpose.msra.mxu0 %v6829
    %6861 = vmatprep.subr.mxu0 0.0
    %6862 = vmatpush1.xpose.msra.mxu0 %v6827
    %6863 = vmatprep.subr.mxu0 0.0
    %6864 = vmatpush2.xpose.msra.mxu0 0.0
    %6865 = vmatprep.subr.mxu0 0.0
    %6866 = vmatpush2.xpose.msra.mxu0 0.0
    %6867 = vmatprep.subr.mxu0 0.0
    %6868 = vmatpush2.xpose.msra.mxu0 0.0
    %6869 = vmatprep.subr.mxu0 0.0
    %6870 = vmatpush2.xpose.msra.mxu0 0.0
    %6871 = vmatprep.subr.mxu0 0.0
    %6872 = vmatpush2.xpose.msra.mxu0 0.0
    %6873 = vmatprep.subr.mxu0 0.0
    %6874 = vmatpush2.xpose.msra.mxu0 0.0
    %6875 = vmatprep.subr.mxu0 0.0
    %6876 = vmatpush2.xpose.msra.mxu0 0.0
    %6877 = vmatprep.subr.mxu0 0.0
    %6878 = vmatpush2.xpose.msra.mxu0 0.0
    %6879 = vmatprep.subr.mxu0 0.0
    %6880 = vmatpush2.xpose.msra.mxu0 0.0
    %6881 = vmatprep.subr.mxu0 0.0
    %6882 = vmatpush2.xpose.msra.mxu0 0.0
    %6883 = vmatprep.subr.mxu0 0.0
    %6884 = vmatpush2.xpose.msra.mxu0 0.0
    %6885 = vmatprep.subr.mxu0 0.0
    %6886 = vmatpush2.xpose.msra.mxu0 0.0
    %6887 = vmatprep.subr.mxu0 0.0
    %6888 = vmatpush2.xpose.msra.mxu0 0.0
    %6889 = vmatprep.subr.mxu0 0.0
    %6890 = vmatpush2.xpose.msra.mxu0 0.0
    %6891 = vmatprep.subr.mxu0 0.0
    %6892 = vmatpush2.xpose.msra.mxu0 0.0
    %6893 = vmatprep.subr.mxu0 0.0
    %6894 = vmatpush2.xpose.msra.mxu0 0.0
    %6895 = vmatprep.mubr.f32.mxu0 0.0
    %6896 = vmatmul.mubr.f32.gmra.mxu0 %v6823
    %v6897 = vpop.f32.mrf.mxu0
    %v6898 = vadd.f32 %v6423, %v6897
    %v6899 = vpop.f32.mrf.mxu0
    %6900 = vmatprep.mubr.f32.mxu0 0.0
    %6901 = vmatmul.mubr.f32.gmra.mxu0 %v6825
    %v6902 = vpop.f32.mrf.mxu0
    %v6903 = vadd.f32 %v6424, %v6902
    %v6904 = vpop.f32.mrf.mxu0
    %6905 = vdwg.mxu0
    %6908 = vrot.lane.b32.xlu0 %v6408, 104
    %v6909 = vpop.permute.xlu0 %6908
    %6910 = vrot.lane.b32.xlu0 %v6409, 104
    %v6911 = vpop.permute.xlu0 %6910
    %6914 = vrot.lane.b32.xlu0 %v6390, 72
    %v6915 = vpop.permute.xlu0 %6914
    %6916 = vrot.lane.b32.xlu0 %v6391, 72
    %v6917 = vpop.permute.xlu0 %6916
    %v6918 = vsel %vm290, %v6909, 0
    %v6920 = vsel %vm290, %v6911, 0
    %v6922 = vsel %vm290, %v6915, 0
    %v6924 = vsel %vm290, %v6917, 0
    %6926 = vmatprep.subr.mxu0 0.0
    %6927 = vmatpush1.xpose.msra.mxu0 0.0
    %6928 = vmatprep.subr.mxu0 0.0
    %6929 = vmatpush1.xpose.msra.mxu0 0.0
    %6930 = vmatprep.subr.mxu0 0.0
    %6931 = vmatpush1.xpose.msra.mxu0 0.0
    %6932 = vmatprep.subr.mxu0 0.0
    %6933 = vmatpush1.xpose.msra.mxu0 0.0
    %6934 = vmatprep.subr.mxu0 0.0
    %6935 = vmatpush1.xpose.msra.mxu0 0.0
    %6936 = vmatprep.subr.mxu0 0.0
    %6937 = vmatpush1.xpose.msra.mxu0 0.0
    %6938 = vmatprep.subr.mxu0 0.0
    %6939 = vmatpush1.xpose.msra.mxu0 0.0
    %6940 = vmatprep.subr.mxu0 0.0
    %6941 = vmatpush1.xpose.msra.mxu0 0.0
    %6942 = vmatprep.subr.mxu0 0.0
    %6943 = vmatpush1.xpose.msra.mxu0 0.0
    %6944 = vmatprep.subr.mxu0 0.0
    %6945 = vmatpush1.xpose.msra.mxu0 0.0
    %6946 = vmatprep.subr.mxu0 0.0
    %6947 = vmatpush1.xpose.msra.mxu0 0.0
    %6948 = vmatprep.subr.mxu0 0.0
    %6949 = vmatpush1.xpose.msra.mxu0 0.0
    %6950 = vmatprep.subr.mxu0 0.0
    %6951 = vmatpush1.xpose.msra.mxu0 0.0
    %6952 = vmatprep.subr.mxu0 0.0
    %6953 = vmatpush1.xpose.msra.mxu0 0.0
    %6954 = vmatprep.subr.mxu0 0.0
    %6955 = vmatpush1.xpose.msra.mxu0 %v6924
    %6956 = vmatprep.subr.mxu0 0.0
    %6957 = vmatpush1.xpose.msra.mxu0 %v6922
    %6958 = vmatprep.subr.mxu0 0.0
    %6959 = vmatpush2.xpose.msra.mxu0 0.0
    %6960 = vmatprep.subr.mxu0 0.0
    %6961 = vmatpush2.xpose.msra.mxu0 0.0
    %6962 = vmatprep.subr.mxu0 0.0
    %6963 = vmatpush2.xpose.msra.mxu0 0.0
    %6964 = vmatprep.subr.mxu0 0.0
    %6965 = vmatpush2.xpose.msra.mxu0 0.0
    %6966 = vmatprep.subr.mxu0 0.0
    %6967 = vmatpush2.xpose.msra.mxu0 0.0
    %6968 = vmatprep.subr.mxu0 0.0
    %6969 = vmatpush2.xpose.msra.mxu0 0.0
    %6970 = vmatprep.subr.mxu0 0.0
    %6971 = vmatpush2.xpose.msra.mxu0 0.0
    %6972 = vmatprep.subr.mxu0 0.0
    %6973 = vmatpush2.xpose.msra.mxu0 0.0
    %6974 = vmatprep.subr.mxu0 0.0
    %6975 = vmatpush2.xpose.msra.mxu0 0.0
    %6976 = vmatprep.subr.mxu0 0.0
    %6977 = vmatpush2.xpose.msra.mxu0 0.0
    %6978 = vmatprep.subr.mxu0 0.0
    %6979 = vmatpush2.xpose.msra.mxu0 0.0
    %6980 = vmatprep.subr.mxu0 0.0
    %6981 = vmatpush2.xpose.msra.mxu0 0.0
    %6982 = vmatprep.subr.mxu0 0.0
    %6983 = vmatpush2.xpose.msra.mxu0 0.0
    %6984 = vmatprep.subr.mxu0 0.0
    %6985 = vmatpush2.xpose.msra.mxu0 0.0
    %6986 = vmatprep.subr.mxu0 0.0
    %6987 = vmatpush2.xpose.msra.mxu0 0.0
    %6988 = vmatprep.subr.mxu0 0.0
    %6989 = vmatpush2.xpose.msra.mxu0 0.0
    %6990 = vmatprep.mubr.f32.mxu0 0.0
    %6991 = vmatmul.mubr.f32.gmra.mxu0 %v6918
    %v6992 = vpop.f32.mrf.mxu0
    %v6993 = vadd.f32 %v6425, %v6992
    %v6994 = vpop.f32.mrf.mxu0
    %6995 = vmatprep.mubr.f32.mxu0 0.0
    %6996 = vmatmul.mubr.f32.gmra.mxu0 %v6920
    %v6997 = vpop.f32.mrf.mxu0
    %v6998 = vadd.f32 %v6426, %v6997
    %v6999 = vpop.f32.mrf.mxu0
    %7000 = vdwg.mxu0
    %7003 = vrot.lane.b32.xlu0 %v6410, 104
    %v7004 = vpop.permute.xlu0 %7003
    %7005 = vrot.lane.b32.xlu0 %v6411, 104
    %v7006 = vpop.permute.xlu0 %7005
    %7009 = vrot.lane.b32.xlu0 %v6392, 72
    %v7010 = vpop.permute.xlu0 %7009
    %7011 = vrot.lane.b32.xlu0 %v6393, 72
    %v7012 = vpop.permute.xlu0 %7011
    %v7013 = vsel %vm290, %v7004, 0
    %v7015 = vsel %vm290, %v7006, 0
    %v7017 = vsel %vm290, %v7010, 0
    %v7019 = vsel %vm290, %v7012, 0
    %7021 = vmatprep.subr.mxu0 0.0
    %7022 = vmatpush1.xpose.msra.mxu0 0.0
    %7023 = vmatprep.subr.mxu0 0.0
    %7024 = vmatpush1.xpose.msra.mxu0 0.0
    %7025 = vmatprep.subr.mxu0 0.0
    %7026 = vmatpush1.xpose.msra.mxu0 0.0
    %7027 = vmatprep.subr.mxu0 0.0
    %7028 = vmatpush1.xpose.msra.mxu0 0.0
    %7029 = vmatprep.subr.mxu0 0.0
    %7030 = vmatpush1.xpose.msra.mxu0 0.0
    %7031 = vmatprep.subr.mxu0 0.0
    %7032 = vmatpush1.xpose.msra.mxu0 0.0
    %7033 = vmatprep.subr.mxu0 0.0
    %7034 = vmatpush1.xpose.msra.mxu0 0.0
    %7035 = vmatprep.subr.mxu0 0.0
    %7036 = vmatpush1.xpose.msra.mxu0 0.0
    %7037 = vmatprep.subr.mxu0 0.0
    %7038 = vmatpush1.xpose.msra.mxu0 0.0
    %7039 = vmatprep.subr.mxu0 0.0
    %7040 = vmatpush1.xpose.msra.mxu0 0.0
    %7041 = vmatprep.subr.mxu0 0.0
    %7042 = vmatpush1.xpose.msra.mxu0 0.0
    %7043 = vmatprep.subr.mxu0 0.0
    %7044 = vmatpush1.xpose.msra.mxu0 0.0
    %7045 = vmatprep.subr.mxu0 0.0
    %7046 = vmatpush1.xpose.msra.mxu0 0.0
    %7047 = vmatprep.subr.mxu0 0.0
    %7048 = vmatpush1.xpose.msra.mxu0 0.0
    %7049 = vmatprep.subr.mxu0 0.0
    %7050 = vmatpush1.xpose.msra.mxu0 %v7019
    %7051 = vmatprep.subr.mxu0 0.0
    %7052 = vmatpush1.xpose.msra.mxu0 %v7017
    %7053 = vmatprep.subr.mxu0 0.0
    %7054 = vmatpush2.xpose.msra.mxu0 0.0
    %7055 = vmatprep.subr.mxu0 0.0
    %7056 = vmatpush2.xpose.msra.mxu0 0.0
    %7057 = vmatprep.subr.mxu0 0.0
    %7058 = vmatpush2.xpose.msra.mxu0 0.0
    %7059 = vmatprep.subr.mxu0 0.0
    %7060 = vmatpush2.xpose.msra.mxu0 0.0
    %7061 = vmatprep.subr.mxu0 0.0
    %7062 = vmatpush2.xpose.msra.mxu0 0.0
    %7063 = vmatprep.subr.mxu0 0.0
    %7064 = vmatpush2.xpose.msra.mxu0 0.0
    %7065 = vmatprep.subr.mxu0 0.0
    %7066 = vmatpush2.xpose.msra.mxu0 0.0
    %7067 = vmatprep.subr.mxu0 0.0
    %7068 = vmatpush2.xpose.msra.mxu0 0.0
    %7069 = vmatprep.subr.mxu0 0.0
    %7070 = vmatpush2.xpose.msra.mxu0 0.0
    %7071 = vmatprep.subr.mxu0 0.0
    %7072 = vmatpush2.xpose.msra.mxu0 0.0
    %7073 = vmatprep.subr.mxu0 0.0
    %7074 = vmatpush2.xpose.msra.mxu0 0.0
    %7075 = vmatprep.subr.mxu0 0.0
    %7076 = vmatpush2.xpose.msra.mxu0 0.0
    %7077 = vmatprep.subr.mxu0 0.0
    %7078 = vmatpush2.xpose.msra.mxu0 0.0
    %7079 = vmatprep.subr.mxu0 0.0
    %7080 = vmatpush2.xpose.msra.mxu0 0.0
    %7081 = vmatprep.subr.mxu0 0.0
    %7082 = vmatpush2.xpose.msra.mxu0 0.0
    %7083 = vmatprep.subr.mxu0 0.0
    %7084 = vmatpush2.xpose.msra.mxu0 0.0
    %7085 = vmatprep.mubr.f32.mxu0 0.0
    %7086 = vmatmul.mubr.f32.gmra.mxu0 %v7013
    %v7087 = vpop.f32.mrf.mxu0
    %v7088 = vadd.f32 %v6427, %v7087
    %v7089 = vpop.f32.mrf.mxu0
    %7090 = vmatprep.mubr.f32.mxu0 0.0
    %7091 = vmatmul.mubr.f32.gmra.mxu0 %v7015
    %v7092 = vpop.f32.mrf.mxu0
    %v7093 = vadd.f32 %v6428, %v7092
    %v7094 = vpop.f32.mrf.mxu0
    %7095 = vdwg.mxu0
    %7098 = vrot.lane.b32.xlu0 %v6412, 104
    %v7099 = vpop.permute.xlu0 %7098
    %7100 = vrot.lane.b32.xlu0 %v6413, 104
    %v7101 = vpop.permute.xlu0 %7100
    %7104 = vrot.lane.b32.xlu0 %v6394, 72
    %v7105 = vpop.permute.xlu0 %7104
    %7106 = vrot.lane.b32.xlu0 %v6395, 72
    %v7107 = vpop.permute.xlu0 %7106
    %v7108 = vsel %vm290, %v7099, 0
    %v7110 = vsel %vm290, %v7101, 0
    %v7112 = vsel %vm290, %v7105, 0
    %v7114 = vsel %vm290, %v7107, 0
    %7116 = vmatprep.subr.mxu0 0.0
    %7117 = vmatpush1.xpose.msra.mxu0 0.0
    %7118 = vmatprep.subr.mxu0 0.0
    %7119 = vmatpush1.xpose.msra.mxu0 0.0
    %7120 = vmatprep.subr.mxu0 0.0
    %7121 = vmatpush1.xpose.msra.mxu0 0.0
    %7122 = vmatprep.subr.mxu0 0.0
    %7123 = vmatpush1.xpose.msra.mxu0 0.0
    %7124 = vmatprep.subr.mxu0 0.0
    %7125 = vmatpush1.xpose.msra.mxu0 0.0
    %7126 = vmatprep.subr.mxu0 0.0
    %7127 = vmatpush1.xpose.msra.mxu0 0.0
    %7128 = vmatprep.subr.mxu0 0.0
    %7129 = vmatpush1.xpose.msra.mxu0 0.0
    %7130 = vmatprep.subr.mxu0 0.0
    %7131 = vmatpush1.xpose.msra.mxu0 0.0
    %7132 = vmatprep.subr.mxu0 0.0
    %7133 = vmatpush1.xpose.msra.mxu0 0.0
    %7134 = vmatprep.subr.mxu0 0.0
    %7135 = vmatpush1.xpose.msra.mxu0 0.0
    %7136 = vmatprep.subr.mxu0 0.0
    %7137 = vmatpush1.xpose.msra.mxu0 0.0
    %7138 = vmatprep.subr.mxu0 0.0
    %7139 = vmatpush1.xpose.msra.mxu0 0.0
    %7140 = vmatprep.subr.mxu0 0.0
    %7141 = vmatpush1.xpose.msra.mxu0 0.0
    %7142 = vmatprep.subr.mxu0 0.0
    %7143 = vmatpush1.xpose.msra.mxu0 0.0
    %7144 = vmatprep.subr.mxu0 0.0
    %7145 = vmatpush1.xpose.msra.mxu0 %v7114
    %7146 = vmatprep.subr.mxu0 0.0
    %7147 = vmatpush1.xpose.msra.mxu0 %v7112
    %7148 = vmatprep.subr.mxu0 0.0
    %7149 = vmatpush2.xpose.msra.mxu0 0.0
    %7150 = vmatprep.subr.mxu0 0.0
    %7151 = vmatpush2.xpose.msra.mxu0 0.0
    %7152 = vmatprep.subr.mxu0 0.0
    %7153 = vmatpush2.xpose.msra.mxu0 0.0
    %7154 = vmatprep.subr.mxu0 0.0
    %7155 = vmatpush2.xpose.msra.mxu0 0.0
    %7156 = vmatprep.subr.mxu0 0.0
    %7157 = vmatpush2.xpose.msra.mxu0 0.0
    %7158 = vmatprep.subr.mxu0 0.0
    %7159 = vmatpush2.xpose.msra.mxu0 0.0
    %7160 = vmatprep.subr.mxu0 0.0
    %7161 = vmatpush2.xpose.msra.mxu0 0.0
    %7162 = vmatprep.subr.mxu0 0.0
    %7163 = vmatpush2.xpose.msra.mxu0 0.0
    %7164 = vmatprep.subr.mxu0 0.0
    %7165 = vmatpush2.xpose.msra.mxu0 0.0
    %7166 = vmatprep.subr.mxu0 0.0
    %7167 = vmatpush2.xpose.msra.mxu0 0.0
    %7168 = vmatprep.subr.mxu0 0.0
    %7169 = vmatpush2.xpose.msra.mxu0 0.0
    %7170 = vmatprep.subr.mxu0 0.0
    %7171 = vmatpush2.xpose.msra.mxu0 0.0
    %7172 = vmatprep.subr.mxu0 0.0
    %7173 = vmatpush2.xpose.msra.mxu0 0.0
    %7174 = vmatprep.subr.mxu0 0.0
    %7175 = vmatpush2.xpose.msra.mxu0 0.0
    %7176 = vmatprep.subr.mxu0 0.0
    %7177 = vmatpush2.xpose.msra.mxu0 0.0
    %7178 = vmatprep.subr.mxu0 0.0
    %7179 = vmatpush2.xpose.msra.mxu0 0.0
    %7180 = vmatprep.mubr.f32.mxu0 0.0
    %7181 = vmatmul.mubr.f32.gmra.mxu0 %v7108
    %v7182 = vpop.f32.mrf.mxu0
    %v7183 = vadd.f32 %v6429, %v7182
    %v7184 = vpop.f32.mrf.mxu0
    %7185 = vmatprep.mubr.f32.mxu0 0.0
    %7186 = vmatmul.mubr.f32.gmra.mxu0 %v7110
    %v7187 = vpop.f32.mrf.mxu0
    %v7188 = vadd.f32 %v6430, %v7187
    %v7189 = vpop.f32.mrf.mxu0
    %7190 = vdwg.mxu0
    %v7191 = vsel %vm1309, %v6518, -inf
    %7192 = vmax.xlane.f32.xlu0 %v7191
    %v7193 = vpop.xlane.xlu0 %7192
    %v7194 = vsel %vm1309, %v6523, -inf
    %7195 = vmax.xlane.f32.xlu0 %v7194
    %v7196 = vpop.xlane.xlu0 %7195
    %v7197 = vsel %vm1309, %v6613, -inf
    %7198 = vmax.xlane.f32.xlu0 %v7197
    %v7199 = vpop.xlane.xlu0 %7198
    %v7200 = vsel %vm1309, %v6618, -inf
    %7201 = vmax.xlane.f32.xlu0 %v7200
    %v7202 = vpop.xlane.xlu0 %7201
    %v7203 = vsel %vm1309, %v6708, -inf
    %7204 = vmax.xlane.f32.xlu0 %v7203
    %v7205 = vpop.xlane.xlu0 %7204
    %v7206 = vsel %vm1309, %v6713, -inf
    %7207 = vmax.xlane.f32.xlu0 %v7206
    %v7208 = vpop.xlane.xlu0 %7207
    %v7209 = vsel %vm1309, %v6803, -inf
    %7210 = vmax.xlane.f32.xlu0 %v7209
    %v7211 = vpop.xlane.xlu0 %7210
    %v7212 = vsel %vm1309, %v6808, -inf
    %7213 = vmax.xlane.f32.xlu0 %v7212
    %v7214 = vpop.xlane.xlu0 %7213
    %v7215 = vsel %vm1309, %v6898, -inf
    %7216 = vmax.xlane.f32.xlu0 %v7215
    %v7217 = vpop.xlane.xlu0 %7216
    %v7218 = vsel %vm1309, %v6903, -inf
    %7219 = vmax.xlane.f32.xlu0 %v7218
    %v7220 = vpop.xlane.xlu0 %7219
    %v7221 = vsel %vm1309, %v6993, -inf
    %7222 = vmax.xlane.f32.xlu0 %v7221
    %v7223 = vpop.xlane.xlu0 %7222
    %v7224 = vsel %vm1309, %v6998, -inf
    %7225 = vmax.xlane.f32.xlu0 %v7224
    %v7226 = vpop.xlane.xlu0 %7225
    %v7227 = vsel %vm1309, %v7088, -inf
    %7228 = vmax.xlane.f32.xlu0 %v7227
    %v7229 = vpop.xlane.xlu0 %7228
    %v7230 = vsel %vm1309, %v7093, -inf
    %7231 = vmax.xlane.f32.xlu0 %v7230
    %v7232 = vpop.xlane.xlu0 %7231
    %v7233 = vsel %vm1309, %v7183, -inf
    %7234 = vmax.xlane.f32.xlu0 %v7233
    %v7235 = vpop.xlane.xlu0 %7234
    %v7236 = vsel %vm1309, %v7188, -inf
    %7237 = vmax.xlane.f32.xlu0 %v7236
    %v7238 = vpop.xlane.xlu0 %7237
    %v7239 = vsub.f32 %v6518, %v7193
    %v7240 = vsub.f32 %v6523, %v7196
    %v7241 = vsub.f32 %v6613, %v7199
    %v7242 = vsub.f32 %v6618, %v7202
    %v7243 = vsub.f32 %v6708, %v7205
    %v7244 = vsub.f32 %v6713, %v7208
    %v7245 = vsub.f32 %v6803, %v7211
    %v7246 = vsub.f32 %v6808, %v7214
    %v7247 = vsub.f32 %v6898, %v7217
    %v7248 = vsub.f32 %v6903, %v7220
    %v7249 = vsub.f32 %v6993, %v7223
    %v7250 = vsub.f32 %v6998, %v7226
    %v7251 = vsub.f32 %v7088, %v7229
    %v7252 = vsub.f32 %v7093, %v7232
    %v7253 = vsub.f32 %v7183, %v7235
    %v7254 = vsub.f32 %v7188, %v7238
    %v7255 = vmul.f32 %v7239, 1.442695
    %v7256 = vpow.pop %v7255
    %v7257 = vmul.f32 %v7240, 1.442695
    %v7258 = vpow.pop %v7257
    %v7259 = vmul.f32 %v7241, 1.442695
    %v7260 = vpow.pop %v7259
    %v7261 = vmul.f32 %v7242, 1.442695
    %v7262 = vpow.pop %v7261
    %v7263 = vmul.f32 %v7243, 1.442695
    %v7264 = vpow.pop %v7263
    %v7265 = vmul.f32 %v7244, 1.442695
    %v7266 = vpow.pop %v7265
    %v7267 = vmul.f32 %v7245, 1.442695
    %v7268 = vpow.pop %v7267
    %v7269 = vmul.f32 %v7246, 1.442695
    %v7270 = vpow.pop %v7269
    %v7271 = vmul.f32 %v7247, 1.442695
    %v7272 = vpow.pop %v7271
    %v7273 = vmul.f32 %v7248, 1.442695
    %v7274 = vpow.pop %v7273
    %v7275 = vmul.f32 %v7249, 1.442695
    %v7276 = vpow.pop %v7275
    %v7277 = vmul.f32 %v7250, 1.442695
    %v7278 = vpow.pop %v7277
    %v7279 = vmul.f32 %v7251, 1.442695
    %v7280 = vpow.pop %v7279
    %v7281 = vmul.f32 %v7252, 1.442695
    %v7282 = vpow.pop %v7281
    %v7283 = vmul.f32 %v7253, 1.442695
    %v7284 = vpow.pop %v7283
    %v7285 = vmul.f32 %v7254, 1.442695
    %v7286 = vpow.pop %v7285
    %v7287 = vsel %vm1309, %v7256, 0.0
    %7288 = vadd.xlane.f32.xlu0 %v7287
    %v7289 = vpop.xlane.xlu0 %7288
    %v7290 = vsel %vm1309, %v7258, 0.0
    %7291 = vadd.xlane.f32.xlu0 %v7290
    %v7292 = vpop.xlane.xlu0 %7291
    %v7293 = vsel %vm1309, %v7260, 0.0
    %7294 = vadd.xlane.f32.xlu0 %v7293
    %v7295 = vpop.xlane.xlu0 %7294
    %v7296 = vsel %vm1309, %v7262, 0.0
    %7297 = vadd.xlane.f32.xlu0 %v7296
    %v7298 = vpop.xlane.xlu0 %7297
    %v7299 = vsel %vm1309, %v7264, 0.0
    %7300 = vadd.xlane.f32.xlu0 %v7299
    %v7301 = vpop.xlane.xlu0 %7300
    %v7302 = vsel %vm1309, %v7266, 0.0
    %7303 = vadd.xlane.f32.xlu0 %v7302
    %v7304 = vpop.xlane.xlu0 %7303
    %v7305 = vsel %vm1309, %v7268, 0.0
    %7306 = vadd.xlane.f32.xlu0 %v7305
    %v7307 = vpop.xlane.xlu0 %7306
    %v7308 = vsel %vm1309, %v7270, 0.0
    %7309 = vadd.xlane.f32.xlu0 %v7308
    %v7310 = vpop.xlane.xlu0 %7309
    %v7311 = vsel %vm1309, %v7272, 0.0
    %7312 = vadd.xlane.f32.xlu0 %v7311
    %v7313 = vpop.xlane.xlu0 %7312
    %v7314 = vsel %vm1309, %v7274, 0.0
    %7315 = vadd.xlane.f32.xlu0 %v7314
    %v7316 = vpop.xlane.xlu0 %7315
    %v7317 = vsel %vm1309, %v7276, 0.0
    %7318 = vadd.xlane.f32.xlu0 %v7317
    %v7319 = vpop.xlane.xlu0 %7318
    %v7320 = vsel %vm1309, %v7278, 0.0
    %7321 = vadd.xlane.f32.xlu0 %v7320
    %v7322 = vpop.xlane.xlu0 %7321
    %v7323 = vsel %vm1309, %v7280, 0.0
    %7324 = vadd.xlane.f32.xlu0 %v7323
    %v7325 = vpop.xlane.xlu0 %7324
    %v7326 = vsel %vm1309, %v7282, 0.0
    %7327 = vadd.xlane.f32.xlu0 %v7326
    %v7328 = vpop.xlane.xlu0 %7327
    %v7329 = vsel %vm1309, %v7284, 0.0
    %7330 = vadd.xlane.f32.xlu0 %v7329
    %v7331 = vpop.xlane.xlu0 %7330
    %v7332 = vsel %vm1309, %v7286, 0.0
    %7333 = vadd.xlane.f32.xlu0 %v7332
    %v7334 = vpop.xlane.xlu0 %7333
    %v7335 = vrcp.pop %v7289
    %v7336 = vrcp.pop %v7292
    %v7337 = vrcp.pop %v7295
    %v7338 = vrcp.pop %v7298
    %v7339 = vrcp.pop %v7301
    %v7340 = vrcp.pop %v7304
    %v7341 = vrcp.pop %v7307
    %v7342 = vrcp.pop %v7310
    %v7343 = vrcp.pop %v7313
    %v7344 = vrcp.pop %v7316
    %v7345 = vrcp.pop %v7319
    %v7346 = vrcp.pop %v7322
    %v7347 = vrcp.pop %v7325
    %v7348 = vrcp.pop %v7328
    %v7349 = vrcp.pop %v7331
    %v7350 = vrcp.pop %v7334
    %v7351 = vmul.f32 %v7256, %v7335
    %v7352 = vmul.f32 %v7258, %v7336
    %v7353 = vmul.f32 %v7260, %v7337
    %v7354 = vmul.f32 %v7262, %v7338
    %v7355 = vmul.f32 %v7264, %v7339
    %v7356 = vmul.f32 %v7266, %v7340
    %v7357 = vmul.f32 %v7268, %v7341
    %v7358 = vmul.f32 %v7270, %v7342
    %v7359 = vmul.f32 %v7272, %v7343
    %v7360 = vmul.f32 %v7274, %v7344
    %v7361 = vmul.f32 %v7276, %v7345
    %v7362 = vmul.f32 %v7278, %v7346
    %v7363 = vmul.f32 %v7280, %v7347
    %v7364 = vmul.f32 %v7282, %v7348
    %v7365 = vmul.f32 %v7284, %v7349
    %v7366 = vmul.f32 %v7286, %v7350
    %7367 = vrot.lane.b32.xlu0 %v196, 40
    %v7368 = vpop.permute.xlu0 %7367
    %7369 = vrot.lane.b32.xlu0 %v201, 40
    %v7370 = vpop.permute.xlu0 %7369
    %v7374 = vsel %vm1309, %v7351, 0
    %v7377 = vsel %vm1309, %v7352, 0
    %7379 = vmatprep.subr.mxu0 0.0
    %7380 = vmatpush1.msra.mxu0 0.0
    %7381 = vmatprep.subr.mxu0 0.0
    %7382 = vmatpush1.msra.mxu0 0.0
    %7383 = vmatprep.subr.mxu0 0.0
    %7384 = vmatpush1.msra.mxu0 0.0
    %7385 = vmatprep.subr.mxu0 0.0
    %7386 = vmatpush1.msra.mxu0 0.0
    %7387 = vmatprep.subr.mxu0 0.0
    %7388 = vmatpush1.msra.mxu0 0.0
    %7389 = vmatprep.subr.mxu0 0.0
    %7390 = vmatpush1.msra.mxu0 0.0
    %7391 = vmatprep.subr.mxu0 0.0
    %7392 = vmatpush1.msra.mxu0 0.0
    %7393 = vmatprep.subr.mxu0 0.0
    %7394 = vmatpush1.msra.mxu0 0.0
    %7395 = vmatprep.subr.mxu0 0.0
    %7396 = vmatpush1.msra.mxu0 0.0
    %7397 = vmatprep.subr.mxu0 0.0
    %7398 = vmatpush1.msra.mxu0 0.0
    %7399 = vmatprep.subr.mxu0 0.0
    %7400 = vmatpush1.msra.mxu0 0.0
    %7401 = vmatprep.subr.mxu0 0.0
    %7402 = vmatpush1.msra.mxu0 0.0
    %7403 = vmatprep.subr.mxu0 0.0
    %7404 = vmatpush1.msra.mxu0 0.0
    %7405 = vmatprep.subr.mxu0 0.0
    %7406 = vmatpush1.msra.mxu0 0.0
    %7407 = vmatprep.subr.mxu0 0.0
    %7408 = vmatpush1.msra.mxu0 %v7370
    %7409 = vmatprep.subr.mxu0 0.0
    %7410 = vmatpush1.msra.mxu0 %v7368
    %7411 = vmatprep.subr.mxu0 0.0
    %7412 = vmatpush2.msra.mxu0 0.0
    %7413 = vmatprep.subr.mxu0 0.0
    %7414 = vmatpush2.msra.mxu0 0.0
    %7415 = vmatprep.subr.mxu0 0.0
    %7416 = vmatpush2.msra.mxu0 0.0
    %7417 = vmatprep.subr.mxu0 0.0
    %7418 = vmatpush2.msra.mxu0 0.0
    %7419 = vmatprep.subr.mxu0 0.0
    %7420 = vmatpush2.msra.mxu0 0.0
    %7421 = vmatprep.subr.mxu0 0.0
    %7422 = vmatpush2.msra.mxu0 0.0
    %7423 = vmatprep.subr.mxu0 0.0
    %7424 = vmatpush2.msra.mxu0 0.0
    %7425 = vmatprep.subr.mxu0 0.0
    %7426 = vmatpush2.msra.mxu0 0.0
    %7427 = vmatprep.subr.mxu0 0.0
    %7428 = vmatpush2.msra.mxu0 0.0
    %7429 = vmatprep.subr.mxu0 0.0
    %7430 = vmatpush2.msra.mxu0 0.0
    %7431 = vmatprep.subr.mxu0 0.0
    %7432 = vmatpush2.msra.mxu0 0.0
    %7433 = vmatprep.subr.mxu0 0.0
    %7434 = vmatpush2.msra.mxu0 0.0
    %7435 = vmatprep.subr.mxu0 0.0
    %7436 = vmatpush2.msra.mxu0 0.0
    %7437 = vmatprep.subr.mxu0 0.0
    %7438 = vmatpush2.msra.mxu0 0.0
    %7439 = vmatprep.subr.mxu0 0.0
    %7440 = vmatpush2.msra.mxu0 0.0
    %7441 = vmatprep.subr.mxu0 0.0
    %7442 = vmatpush2.msra.mxu0 0.0
    %7443 = vmatprep.mubr.f32.mxu0 0.0
    %7444 = vmatmul.mubr.f32.gmra.mxu0 %v7374
    %v7445 = vpop.f32.mrf.mxu0
    %v7446 = vadd.f32 0.0, %v7445
    %v7447 = vpop.f32.mrf.mxu0
    %7448 = vmatprep.mubr.f32.mxu0 0.0
    %7449 = vmatmul.mubr.f32.gmra.mxu0 %v7377
    %v7450 = vpop.f32.mrf.mxu0
    %v7451 = vadd.f32 0.0, %v7450
    %v7452 = vpop.f32.mrf.mxu0
    %7453 = vdwg.mxu0
    %7454 = vrot.lane.b32.xlu0 %v206, 40
    %v7455 = vpop.permute.xlu0 %7454
    %7456 = vrot.lane.b32.xlu0 %v211, 40
    %v7457 = vpop.permute.xlu0 %7456
    %v7461 = vsel %vm1309, %v7353, 0
    %v7464 = vsel %vm1309, %v7354, 0
    %7466 = vmatprep.subr.mxu0 0.0
    %7467 = vmatpush1.msra.mxu0 0.0
    %7468 = vmatprep.subr.mxu0 0.0
    %7469 = vmatpush1.msra.mxu0 0.0
    %7470 = vmatprep.subr.mxu0 0.0
    %7471 = vmatpush1.msra.mxu0 0.0
    %7472 = vmatprep.subr.mxu0 0.0
    %7473 = vmatpush1.msra.mxu0 0.0
    %7474 = vmatprep.subr.mxu0 0.0
    %7475 = vmatpush1.msra.mxu0 0.0
    %7476 = vmatprep.subr.mxu0 0.0
    %7477 = vmatpush1.msra.mxu0 0.0
    %7478 = vmatprep.subr.mxu0 0.0
    %7479 = vmatpush1.msra.mxu0 0.0
    %7480 = vmatprep.subr.mxu0 0.0
    %7481 = vmatpush1.msra.mxu0 0.0
    %7482 = vmatprep.subr.mxu0 0.0
    %7483 = vmatpush1.msra.mxu0 0.0
    %7484 = vmatprep.subr.mxu0 0.0
    %7485 = vmatpush1.msra.mxu0 0.0
    %7486 = vmatprep.subr.mxu0 0.0
    %7487 = vmatpush1.msra.mxu0 0.0
    %7488 = vmatprep.subr.mxu0 0.0
    %7489 = vmatpush1.msra.mxu0 0.0
    %7490 = vmatprep.subr.mxu0 0.0
    %7491 = vmatpush1.msra.mxu0 0.0
    %7492 = vmatprep.subr.mxu0 0.0
    %7493 = vmatpush1.msra.mxu0 0.0
    %7494 = vmatprep.subr.mxu0 0.0
    %7495 = vmatpush1.msra.mxu0 %v7457
    %7496 = vmatprep.subr.mxu0 0.0
    %7497 = vmatpush1.msra.mxu0 %v7455
    %7498 = vmatprep.subr.mxu0 0.0
    %7499 = vmatpush2.msra.mxu0 0.0
    %7500 = vmatprep.subr.mxu0 0.0
    %7501 = vmatpush2.msra.mxu0 0.0
    %7502 = vmatprep.subr.mxu0 0.0
    %7503 = vmatpush2.msra.mxu0 0.0
    %7504 = vmatprep.subr.mxu0 0.0
    %7505 = vmatpush2.msra.mxu0 0.0
    %7506 = vmatprep.subr.mxu0 0.0
    %7507 = vmatpush2.msra.mxu0 0.0
    %7508 = vmatprep.subr.mxu0 0.0
    %7509 = vmatpush2.msra.mxu0 0.0
    %7510 = vmatprep.subr.mxu0 0.0
    %7511 = vmatpush2.msra.mxu0 0.0
    %7512 = vmatprep.subr.mxu0 0.0
    %7513 = vmatpush2.msra.mxu0 0.0
    %7514 = vmatprep.subr.mxu0 0.0
    %7515 = vmatpush2.msra.mxu0 0.0
    %7516 = vmatprep.subr.mxu0 0.0
    %7517 = vmatpush2.msra.mxu0 0.0
    %7518 = vmatprep.subr.mxu0 0.0
    %7519 = vmatpush2.msra.mxu0 0.0
    %7520 = vmatprep.subr.mxu0 0.0
    %7521 = vmatpush2.msra.mxu0 0.0
    %7522 = vmatprep.subr.mxu0 0.0
    %7523 = vmatpush2.msra.mxu0 0.0
    %7524 = vmatprep.subr.mxu0 0.0
    %7525 = vmatpush2.msra.mxu0 0.0
    %7526 = vmatprep.subr.mxu0 0.0
    %7527 = vmatpush2.msra.mxu0 0.0
    %7528 = vmatprep.subr.mxu0 0.0
    %7529 = vmatpush2.msra.mxu0 0.0
    %7530 = vmatprep.mubr.f32.mxu0 0.0
    %7531 = vmatmul.mubr.f32.gmra.mxu0 %v7461
    %v7532 = vpop.f32.mrf.mxu0
    %v7533 = vadd.f32 0.0, %v7532
    %v7534 = vpop.f32.mrf.mxu0
    %7535 = vmatprep.mubr.f32.mxu0 0.0
    %7536 = vmatmul.mubr.f32.gmra.mxu0 %v7464
    %v7537 = vpop.f32.mrf.mxu0
    %v7538 = vadd.f32 0.0, %v7537
    %v7539 = vpop.f32.mrf.mxu0
    %7540 = vdwg.mxu0
    %7541 = vrot.lane.b32.xlu0 %v216, 40
    %v7542 = vpop.permute.xlu0 %7541
    %7543 = vrot.lane.b32.xlu0 %v221, 40
    %v7544 = vpop.permute.xlu0 %7543
    %v7548 = vsel %vm1309, %v7355, 0
    %v7551 = vsel %vm1309, %v7356, 0
    %7553 = vmatprep.subr.mxu0 0.0
    %7554 = vmatpush1.msra.mxu0 0.0
    %7555 = vmatprep.subr.mxu0 0.0
    %7556 = vmatpush1.msra.mxu0 0.0
    %7557 = vmatprep.subr.mxu0 0.0
    %7558 = vmatpush1.msra.mxu0 0.0
    %7559 = vmatprep.subr.mxu0 0.0
    %7560 = vmatpush1.msra.mxu0 0.0
    %7561 = vmatprep.subr.mxu0 0.0
    %7562 = vmatpush1.msra.mxu0 0.0
    %7563 = vmatprep.subr.mxu0 0.0
    %7564 = vmatpush1.msra.mxu0 0.0
    %7565 = vmatprep.subr.mxu0 0.0
    %7566 = vmatpush1.msra.mxu0 0.0
    %7567 = vmatprep.subr.mxu0 0.0
    %7568 = vmatpush1.msra.mxu0 0.0
    %7569 = vmatprep.subr.mxu0 0.0
    %7570 = vmatpush1.msra.mxu0 0.0
    %7571 = vmatprep.subr.mxu0 0.0
    %7572 = vmatpush1.msra.mxu0 0.0
    %7573 = vmatprep.subr.mxu0 0.0
    %7574 = vmatpush1.msra.mxu0 0.0
    %7575 = vmatprep.subr.mxu0 0.0
    %7576 = vmatpush1.msra.mxu0 0.0
    %7577 = vmatprep.subr.mxu0 0.0
    %7578 = vmatpush1.msra.mxu0 0.0
    %7579 = vmatprep.subr.mxu0 0.0
    %7580 = vmatpush1.msra.mxu0 0.0
    %7581 = vmatprep.subr.mxu0 0.0
    %7582 = vmatpush1.msra.mxu0 %v7544
    %7583 = vmatprep.subr.mxu0 0.0
    %7584 = vmatpush1.msra.mxu0 %v7542
    %7585 = vmatprep.subr.mxu0 0.0
    %7586 = vmatpush2.msra.mxu0 0.0
    %7587 = vmatprep.subr.mxu0 0.0
    %7588 = vmatpush2.msra.mxu0 0.0
    %7589 = vmatprep.subr.mxu0 0.0
    %7590 = vmatpush2.msra.mxu0 0.0
    %7591 = vmatprep.subr.mxu0 0.0
    %7592 = vmatpush2.msra.mxu0 0.0
    %7593 = vmatprep.subr.mxu0 0.0
    %7594 = vmatpush2.msra.mxu0 0.0
    %7595 = vmatprep.subr.mxu0 0.0
    %7596 = vmatpush2.msra.mxu0 0.0
    %7597 = vmatprep.subr.mxu0 0.0
    %7598 = vmatpush2.msra.mxu0 0.0
    %7599 = vmatprep.subr.mxu0 0.0
    %7600 = vmatpush2.msra.mxu0 0.0
    %7601 = vmatprep.subr.mxu0 0.0
    %7602 = vmatpush2.msra.mxu0 0.0
    %7603 = vmatprep.subr.mxu0 0.0
    %7604 = vmatpush2.msra.mxu0 0.0
    %7605 = vmatprep.subr.mxu0 0.0
    %7606 = vmatpush2.msra.mxu0 0.0
    %7607 = vmatprep.subr.mxu0 0.0
    %7608 = vmatpush2.msra.mxu0 0.0
    %7609 = vmatprep.subr.mxu0 0.0
    %7610 = vmatpush2.msra.mxu0 0.0
    %7611 = vmatprep.subr.mxu0 0.0
    %7612 = vmatpush2.msra.mxu0 0.0
    %7613 = vmatprep.subr.mxu0 0.0
    %7614 = vmatpush2.msra.mxu0 0.0
    %7615 = vmatprep.subr.mxu0 0.0
    %7616 = vmatpush2.msra.mxu0 0.0
    %7617 = vmatprep.mubr.f32.mxu0 0.0
    %7618 = vmatmul.mubr.f32.gmra.mxu0 %v7548
    %v7619 = vpop.f32.mrf.mxu0
    %v7620 = vadd.f32 0.0, %v7619
    %v7621 = vpop.f32.mrf.mxu0
    %7622 = vmatprep.mubr.f32.mxu0 0.0
    %7623 = vmatmul.mubr.f32.gmra.mxu0 %v7551
    %v7624 = vpop.f32.mrf.mxu0
    %v7625 = vadd.f32 0.0, %v7624
    %v7626 = vpop.f32.mrf.mxu0
    %7627 = vdwg.mxu0
    %7628 = vrot.lane.b32.xlu0 %v226, 40
    %v7629 = vpop.permute.xlu0 %7628
    %7630 = vrot.lane.b32.xlu0 %v231, 40
    %v7631 = vpop.permute.xlu0 %7630
    %v7635 = vsel %vm1309, %v7357, 0
    %v7638 = vsel %vm1309, %v7358, 0
    %7640 = vmatprep.subr.mxu0 0.0
    %7641 = vmatpush1.msra.mxu0 0.0
    %7642 = vmatprep.subr.mxu0 0.0
    %7643 = vmatpush1.msra.mxu0 0.0
    %7644 = vmatprep.subr.mxu0 0.0
    %7645 = vmatpush1.msra.mxu0 0.0
    %7646 = vmatprep.subr.mxu0 0.0
    %7647 = vmatpush1.msra.mxu0 0.0
    %7648 = vmatprep.subr.mxu0 0.0
    %7649 = vmatpush1.msra.mxu0 0.0
    %7650 = vmatprep.subr.mxu0 0.0
    %7651 = vmatpush1.msra.mxu0 0.0
    %7652 = vmatprep.subr.mxu0 0.0
    %7653 = vmatpush1.msra.mxu0 0.0
    %7654 = vmatprep.subr.mxu0 0.0
    %7655 = vmatpush1.msra.mxu0 0.0
    %7656 = vmatprep.subr.mxu0 0.0
    %7657 = vmatpush1.msra.mxu0 0.0
    %7658 = vmatprep.subr.mxu0 0.0
    %7659 = vmatpush1.msra.mxu0 0.0
    %7660 = vmatprep.subr.mxu0 0.0
    %7661 = vmatpush1.msra.mxu0 0.0
    %7662 = vmatprep.subr.mxu0 0.0
    %7663 = vmatpush1.msra.mxu0 0.0
    %7664 = vmatprep.subr.mxu0 0.0
    %7665 = vmatpush1.msra.mxu0 0.0
    %7666 = vmatprep.subr.mxu0 0.0
    %7667 = vmatpush1.msra.mxu0 0.0
    %7668 = vmatprep.subr.mxu0 0.0
    %7669 = vmatpush1.msra.mxu0 %v7631
    %7670 = vmatprep.subr.mxu0 0.0
    %7671 = vmatpush1.msra.mxu0 %v7629
    %7672 = vmatprep.subr.mxu0 0.0
    %7673 = vmatpush2.msra.mxu0 0.0
    %7674 = vmatprep.subr.mxu0 0.0
    %7675 = vmatpush2.msra.mxu0 0.0
    %7676 = vmatprep.subr.mxu0 0.0
    %7677 = vmatpush2.msra.mxu0 0.0
    %7678 = vmatprep.subr.mxu0 0.0
    %7679 = vmatpush2.msra.mxu0 0.0
    %7680 = vmatprep.subr.mxu0 0.0
    %7681 = vmatpush2.msra.mxu0 0.0
    %7682 = vmatprep.subr.mxu0 0.0
    %7683 = vmatpush2.msra.mxu0 0.0
    %7684 = vmatprep.subr.mxu0 0.0
    %7685 = vmatpush2.msra.mxu0 0.0
    %7686 = vmatprep.subr.mxu0 0.0
    %7687 = vmatpush2.msra.mxu0 0.0
    %7688 = vmatprep.subr.mxu0 0.0
    %7689 = vmatpush2.msra.mxu0 0.0
    %7690 = vmatprep.subr.mxu0 0.0
    %7691 = vmatpush2.msra.mxu0 0.0
    %7692 = vmatprep.subr.mxu0 0.0
    %7693 = vmatpush2.msra.mxu0 0.0
    %7694 = vmatprep.subr.mxu0 0.0
    %7695 = vmatpush2.msra.mxu0 0.0
    %7696 = vmatprep.subr.mxu0 0.0
    %7697 = vmatpush2.msra.mxu0 0.0
    %7698 = vmatprep.subr.mxu0 0.0
    %7699 = vmatpush2.msra.mxu0 0.0
    %7700 = vmatprep.subr.mxu0 0.0
    %7701 = vmatpush2.msra.mxu0 0.0
    %7702 = vmatprep.subr.mxu0 0.0
    %7703 = vmatpush2.msra.mxu0 0.0
    %7704 = vmatprep.mubr.f32.mxu0 0.0
    %7705 = vmatmul.mubr.f32.gmra.mxu0 %v7635
    %v7706 = vpop.f32.mrf.mxu0
    %v7707 = vadd.f32 0.0, %v7706
    %v7708 = vpop.f32.mrf.mxu0
    %7709 = vmatprep.mubr.f32.mxu0 0.0
    %7710 = vmatmul.mubr.f32.gmra.mxu0 %v7638
    %v7711 = vpop.f32.mrf.mxu0
    %v7712 = vadd.f32 0.0, %v7711
    %v7713 = vpop.f32.mrf.mxu0
    %7714 = vdwg.mxu0
    %7715 = vrot.lane.b32.xlu0 %v236, 40
    %v7716 = vpop.permute.xlu0 %7715
    %7717 = vrot.lane.b32.xlu0 %v241, 40
    %v7718 = vpop.permute.xlu0 %7717
    %v7722 = vsel %vm1309, %v7359, 0
    %v7725 = vsel %vm1309, %v7360, 0
    %7727 = vmatprep.subr.mxu0 0.0
    %7728 = vmatpush1.msra.mxu0 0.0
    %7729 = vmatprep.subr.mxu0 0.0
    %7730 = vmatpush1.msra.mxu0 0.0
    %7731 = vmatprep.subr.mxu0 0.0
    %7732 = vmatpush1.msra.mxu0 0.0
    %7733 = vmatprep.subr.mxu0 0.0
    %7734 = vmatpush1.msra.mxu0 0.0
    %7735 = vmatprep.subr.mxu0 0.0
    %7736 = vmatpush1.msra.mxu0 0.0
    %7737 = vmatprep.subr.mxu0 0.0
    %7738 = vmatpush1.msra.mxu0 0.0
    %7739 = vmatprep.subr.mxu0 0.0
    %7740 = vmatpush1.msra.mxu0 0.0
    %7741 = vmatprep.subr.mxu0 0.0
    %7742 = vmatpush1.msra.mxu0 0.0
    %7743 = vmatprep.subr.mxu0 0.0
    %7744 = vmatpush1.msra.mxu0 0.0
    %7745 = vmatprep.subr.mxu0 0.0
    %7746 = vmatpush1.msra.mxu0 0.0
    %7747 = vmatprep.subr.mxu0 0.0
    %7748 = vmatpush1.msra.mxu0 0.0
    %7749 = vmatprep.subr.mxu0 0.0
    %7750 = vmatpush1.msra.mxu0 0.0
    %7751 = vmatprep.subr.mxu0 0.0
    %7752 = vmatpush1.msra.mxu0 0.0
    %7753 = vmatprep.subr.mxu0 0.0
    %7754 = vmatpush1.msra.mxu0 0.0
    %7755 = vmatprep.subr.mxu0 0.0
    %7756 = vmatpush1.msra.mxu0 %v7718
    %7757 = vmatprep.subr.mxu0 0.0
    %7758 = vmatpush1.msra.mxu0 %v7716
    %7759 = vmatprep.subr.mxu0 0.0
    %7760 = vmatpush2.msra.mxu0 0.0
    %7761 = vmatprep.subr.mxu0 0.0
    %7762 = vmatpush2.msra.mxu0 0.0
    %7763 = vmatprep.subr.mxu0 0.0
    %7764 = vmatpush2.msra.mxu0 0.0
    %7765 = vmatprep.subr.mxu0 0.0
    %7766 = vmatpush2.msra.mxu0 0.0
    %7767 = vmatprep.subr.mxu0 0.0
    %7768 = vmatpush2.msra.mxu0 0.0
    %7769 = vmatprep.subr.mxu0 0.0
    %7770 = vmatpush2.msra.mxu0 0.0
    %7771 = vmatprep.subr.mxu0 0.0
    %7772 = vmatpush2.msra.mxu0 0.0
    %7773 = vmatprep.subr.mxu0 0.0
    %7774 = vmatpush2.msra.mxu0 0.0
    %7775 = vmatprep.subr.mxu0 0.0
    %7776 = vmatpush2.msra.mxu0 0.0
    %7777 = vmatprep.subr.mxu0 0.0
    %7778 = vmatpush2.msra.mxu0 0.0
    %7779 = vmatprep.subr.mxu0 0.0
    %7780 = vmatpush2.msra.mxu0 0.0
    %7781 = vmatprep.subr.mxu0 0.0
    %7782 = vmatpush2.msra.mxu0 0.0
    %7783 = vmatprep.subr.mxu0 0.0
    %7784 = vmatpush2.msra.mxu0 0.0
    %7785 = vmatprep.subr.mxu0 0.0
    %7786 = vmatpush2.msra.mxu0 0.0
    %7787 = vmatprep.subr.mxu0 0.0
    %7788 = vmatpush2.msra.mxu0 0.0
    %7789 = vmatprep.subr.mxu0 0.0
    %7790 = vmatpush2.msra.mxu0 0.0
    %7791 = vmatprep.mubr.f32.mxu0 0.0
    %7792 = vmatmul.mubr.f32.gmra.mxu0 %v7722
    %v7793 = vpop.f32.mrf.mxu0
    %v7794 = vadd.f32 0.0, %v7793
    %v7795 = vpop.f32.mrf.mxu0
    %7796 = vmatprep.mubr.f32.mxu0 0.0
    %7797 = vmatmul.mubr.f32.gmra.mxu0 %v7725
    %v7798 = vpop.f32.mrf.mxu0
    %v7799 = vadd.f32 0.0, %v7798
    %v7800 = vpop.f32.mrf.mxu0
    %7801 = vdwg.mxu0
    %7802 = vrot.lane.b32.xlu0 %v246, 40
    %v7803 = vpop.permute.xlu0 %7802
    %7804 = vrot.lane.b32.xlu0 %v251, 40
    %v7805 = vpop.permute.xlu0 %7804
    %v7809 = vsel %vm1309, %v7361, 0
    %v7812 = vsel %vm1309, %v7362, 0
    %7814 = vmatprep.subr.mxu0 0.0
    %7815 = vmatpush1.msra.mxu0 0.0
    %7816 = vmatprep.subr.mxu0 0.0
    %7817 = vmatpush1.msra.mxu0 0.0
    %7818 = vmatprep.subr.mxu0 0.0
    %7819 = vmatpush1.msra.mxu0 0.0
    %7820 = vmatprep.subr.mxu0 0.0
    %7821 = vmatpush1.msra.mxu0 0.0
    %7822 = vmatprep.subr.mxu0 0.0
    %7823 = vmatpush1.msra.mxu0 0.0
    %7824 = vmatprep.subr.mxu0 0.0
    %7825 = vmatpush1.msra.mxu0 0.0
    %7826 = vmatprep.subr.mxu0 0.0
    %7827 = vmatpush1.msra.mxu0 0.0
    %7828 = vmatprep.subr.mxu0 0.0
    %7829 = vmatpush1.msra.mxu0 0.0
    %7830 = vmatprep.subr.mxu0 0.0
    %7831 = vmatpush1.msra.mxu0 0.0
    %7832 = vmatprep.subr.mxu0 0.0
    %7833 = vmatpush1.msra.mxu0 0.0
    %7834 = vmatprep.subr.mxu0 0.0
    %7835 = vmatpush1.msra.mxu0 0.0
    %7836 = vmatprep.subr.mxu0 0.0
    %7837 = vmatpush1.msra.mxu0 0.0
    %7838 = vmatprep.subr.mxu0 0.0
    %7839 = vmatpush1.msra.mxu0 0.0
    %7840 = vmatprep.subr.mxu0 0.0
    %7841 = vmatpush1.msra.mxu0 0.0
    %7842 = vmatprep.subr.mxu0 0.0
    %7843 = vmatpush1.msra.mxu0 %v7805
    %7844 = vmatprep.subr.mxu0 0.0
    %7845 = vmatpush1.msra.mxu0 %v7803
    %7846 = vmatprep.subr.mxu0 0.0
    %7847 = vmatpush2.msra.mxu0 0.0
    %7848 = vmatprep.subr.mxu0 0.0
    %7849 = vmatpush2.msra.mxu0 0.0
    %7850 = vmatprep.subr.mxu0 0.0
    %7851 = vmatpush2.msra.mxu0 0.0
    %7852 = vmatprep.subr.mxu0 0.0
    %7853 = vmatpush2.msra.mxu0 0.0
    %7854 = vmatprep.subr.mxu0 0.0
    %7855 = vmatpush2.msra.mxu0 0.0
    %7856 = vmatprep.subr.mxu0 0.0
    %7857 = vmatpush2.msra.mxu0 0.0
    %7858 = vmatprep.subr.mxu0 0.0
    %7859 = vmatpush2.msra.mxu0 0.0
    %7860 = vmatprep.subr.mxu0 0.0
    %7861 = vmatpush2.msra.mxu0 0.0
    %7862 = vmatprep.subr.mxu0 0.0
    %7863 = vmatpush2.msra.mxu0 0.0
    %7864 = vmatprep.subr.mxu0 0.0
    %7865 = vmatpush2.msra.mxu0 0.0
    %7866 = vmatprep.subr.mxu0 0.0
    %7867 = vmatpush2.msra.mxu0 0.0
    %7868 = vmatprep.subr.mxu0 0.0
    %7869 = vmatpush2.msra.mxu0 0.0
    %7870 = vmatprep.subr.mxu0 0.0
    %7871 = vmatpush2.msra.mxu0 0.0
    %7872 = vmatprep.subr.mxu0 0.0
    %7873 = vmatpush2.msra.mxu0 0.0
    %7874 = vmatprep.subr.mxu0 0.0
    %7875 = vmatpush2.msra.mxu0 0.0
    %7876 = vmatprep.subr.mxu0 0.0
    %7877 = vmatpush2.msra.mxu0 0.0
    %7878 = vmatprep.mubr.f32.mxu0 0.0
    %7879 = vmatmul.mubr.f32.gmra.mxu0 %v7809
    %v7880 = vpop.f32.mrf.mxu0
    %v7881 = vadd.f32 0.0, %v7880
    %v7882 = vpop.f32.mrf.mxu0
    %7883 = vmatprep.mubr.f32.mxu0 0.0
    %7884 = vmatmul.mubr.f32.gmra.mxu0 %v7812
    %v7885 = vpop.f32.mrf.mxu0
    %v7886 = vadd.f32 0.0, %v7885
    %v7887 = vpop.f32.mrf.mxu0
    %7888 = vdwg.mxu0
    %7889 = vrot.lane.b32.xlu0 %v256, 40
    %v7890 = vpop.permute.xlu0 %7889
    %7891 = vrot.lane.b32.xlu0 %v261, 40
    %v7892 = vpop.permute.xlu0 %7891
    %v7896 = vsel %vm1309, %v7363, 0
    %v7899 = vsel %vm1309, %v7364, 0
    %7901 = vmatprep.subr.mxu0 0.0
    %7902 = vmatpush1.msra.mxu0 0.0
    %7903 = vmatprep.subr.mxu0 0.0
    %7904 = vmatpush1.msra.mxu0 0.0
    %7905 = vmatprep.subr.mxu0 0.0
    %7906 = vmatpush1.msra.mxu0 0.0
    %7907 = vmatprep.subr.mxu0 0.0
    %7908 = vmatpush1.msra.mxu0 0.0
    %7909 = vmatprep.subr.mxu0 0.0
    %7910 = vmatpush1.msra.mxu0 0.0
    %7911 = vmatprep.subr.mxu0 0.0
    %7912 = vmatpush1.msra.mxu0 0.0
    %7913 = vmatprep.subr.mxu0 0.0
    %7914 = vmatpush1.msra.mxu0 0.0
    %7915 = vmatprep.subr.mxu0 0.0
    %7916 = vmatpush1.msra.mxu0 0.0
    %7917 = vmatprep.subr.mxu0 0.0
    %7918 = vmatpush1.msra.mxu0 0.0
    %7919 = vmatprep.subr.mxu0 0.0
    %7920 = vmatpush1.msra.mxu0 0.0
    %7921 = vmatprep.subr.mxu0 0.0
    %7922 = vmatpush1.msra.mxu0 0.0
    %7923 = vmatprep.subr.mxu0 0.0
    %7924 = vmatpush1.msra.mxu0 0.0
    %7925 = vmatprep.subr.mxu0 0.0
    %7926 = vmatpush1.msra.mxu0 0.0
    %7927 = vmatprep.subr.mxu0 0.0
    %7928 = vmatpush1.msra.mxu0 0.0
    %7929 = vmatprep.subr.mxu0 0.0
    %7930 = vmatpush1.msra.mxu0 %v7892
    %7931 = vmatprep.subr.mxu0 0.0
    %7932 = vmatpush1.msra.mxu0 %v7890
    %7933 = vmatprep.subr.mxu0 0.0
    %7934 = vmatpush2.msra.mxu0 0.0
    %7935 = vmatprep.subr.mxu0 0.0
    %7936 = vmatpush2.msra.mxu0 0.0
    %7937 = vmatprep.subr.mxu0 0.0
    %7938 = vmatpush2.msra.mxu0 0.0
    %7939 = vmatprep.subr.mxu0 0.0
    %7940 = vmatpush2.msra.mxu0 0.0
    %7941 = vmatprep.subr.mxu0 0.0
    %7942 = vmatpush2.msra.mxu0 0.0
    %7943 = vmatprep.subr.mxu0 0.0
    %7944 = vmatpush2.msra.mxu0 0.0
    %7945 = vmatprep.subr.mxu0 0.0
    %7946 = vmatpush2.msra.mxu0 0.0
    %7947 = vmatprep.subr.mxu0 0.0
    %7948 = vmatpush2.msra.mxu0 0.0
    %7949 = vmatprep.subr.mxu0 0.0
    %7950 = vmatpush2.msra.mxu0 0.0
    %7951 = vmatprep.subr.mxu0 0.0
    %7952 = vmatpush2.msra.mxu0 0.0
    %7953 = vmatprep.subr.mxu0 0.0
    %7954 = vmatpush2.msra.mxu0 0.0
    %7955 = vmatprep.subr.mxu0 0.0
    %7956 = vmatpush2.msra.mxu0 0.0
    %7957 = vmatprep.subr.mxu0 0.0
    %7958 = vmatpush2.msra.mxu0 0.0
    %7959 = vmatprep.subr.mxu0 0.0
    %7960 = vmatpush2.msra.mxu0 0.0
    %7961 = vmatprep.subr.mxu0 0.0
    %7962 = vmatpush2.msra.mxu0 0.0
    %7963 = vmatprep.subr.mxu0 0.0
    %7964 = vmatpush2.msra.mxu0 0.0
    %7965 = vmatprep.mubr.f32.mxu0 0.0
    %7966 = vmatmul.mubr.f32.gmra.mxu0 %v7896
    %v7967 = vpop.f32.mrf.mxu0
    %v7968 = vadd.f32 0.0, %v7967
    %v7969 = vpop.f32.mrf.mxu0
    %7970 = vmatprep.mubr.f32.mxu0 0.0
    %7971 = vmatmul.mubr.f32.gmra.mxu0 %v7899
    %v7972 = vpop.f32.mrf.mxu0
    %v7973 = vadd.f32 0.0, %v7972
    %v7974 = vpop.f32.mrf.mxu0
    %7975 = vdwg.mxu0
    %7976 = vrot.lane.b32.xlu0 %v266, 40
    %v7977 = vpop.permute.xlu0 %7976
    %7978 = vrot.lane.b32.xlu0 %v271, 40
    %v7979 = vpop.permute.xlu0 %7978
    %v7983 = vsel %vm1309, %v7365, 0
    %v7986 = vsel %vm1309, %v7366, 0
    %7988 = vmatprep.subr.mxu0 0.0
    %7989 = vmatpush1.msra.mxu0 0.0
    %7990 = vmatprep.subr.mxu0 0.0
    %7991 = vmatpush1.msra.mxu0 0.0
    %7992 = vmatprep.subr.mxu0 0.0
    %7993 = vmatpush1.msra.mxu0 0.0
    %7994 = vmatprep.subr.mxu0 0.0
    %7995 = vmatpush1.msra.mxu0 0.0
    %7996 = vmatprep.subr.mxu0 0.0
    %7997 = vmatpush1.msra.mxu0 0.0
    %7998 = vmatprep.subr.mxu0 0.0
    %7999 = vmatpush1.msra.mxu0 0.0
    %8000 = vmatprep.subr.mxu0 0.0
    %8001 = vmatpush1.msra.mxu0 0.0
    %8002 = vmatprep.subr.mxu0 0.0
    %8003 = vmatpush1.msra.mxu0 0.0
    %8004 = vmatprep.subr.mxu0 0.0
    %8005 = vmatpush1.msra.mxu0 0.0
    %8006 = vmatprep.subr.mxu0 0.0
    %8007 = vmatpush1.msra.mxu0 0.0
    %8008 = vmatprep.subr.mxu0 0.0
    %8009 = vmatpush1.msra.mxu0 0.0
    %8010 = vmatprep.subr.mxu0 0.0
    %8011 = vmatpush1.msra.mxu0 0.0
    %8012 = vmatprep.subr.mxu0 0.0
    %8013 = vmatpush1.msra.mxu0 0.0
    %8014 = vmatprep.subr.mxu0 0.0
    %8015 = vmatpush1.msra.mxu0 0.0
    %8016 = vmatprep.subr.mxu0 0.0
    %8017 = vmatpush1.msra.mxu0 %v7979
    %8018 = vmatprep.subr.mxu0 0.0
    %8019 = vmatpush1.msra.mxu0 %v7977
    %8020 = vmatprep.subr.mxu0 0.0
    %8021 = vmatpush2.msra.mxu0 0.0
    %8022 = vmatprep.subr.mxu0 0.0
    %8023 = vmatpush2.msra.mxu0 0.0
    %8024 = vmatprep.subr.mxu0 0.0
    %8025 = vmatpush2.msra.mxu0 0.0
    %8026 = vmatprep.subr.mxu0 0.0
    %8027 = vmatpush2.msra.mxu0 0.0
    %8028 = vmatprep.subr.mxu0 0.0
    %8029 = vmatpush2.msra.mxu0 0.0
    %8030 = vmatprep.subr.mxu0 0.0
    %8031 = vmatpush2.msra.mxu0 0.0
    %8032 = vmatprep.subr.mxu0 0.0
    %8033 = vmatpush2.msra.mxu0 0.0
    %8034 = vmatprep.subr.mxu0 0.0
    %8035 = vmatpush2.msra.mxu0 0.0
    %8036 = vmatprep.subr.mxu0 0.0
    %8037 = vmatpush2.msra.mxu0 0.0
    %8038 = vmatprep.subr.mxu0 0.0
    %8039 = vmatpush2.msra.mxu0 0.0
    %8040 = vmatprep.subr.mxu0 0.0
    %8041 = vmatpush2.msra.mxu0 0.0
    %8042 = vmatprep.subr.mxu0 0.0
    %8043 = vmatpush2.msra.mxu0 0.0
    %8044 = vmatprep.subr.mxu0 0.0
    %8045 = vmatpush2.msra.mxu0 0.0
    %8046 = vmatprep.subr.mxu0 0.0
    %8047 = vmatpush2.msra.mxu0 0.0
    %8048 = vmatprep.subr.mxu0 0.0
    %8049 = vmatpush2.msra.mxu0 0.0
    %8050 = vmatprep.subr.mxu0 0.0
    %8051 = vmatpush2.msra.mxu0 0.0
    %8052 = vmatprep.mubr.f32.mxu0 0.0
    %8053 = vmatmul.mubr.f32.gmra.mxu0 %v7983
    %v8054 = vpop.f32.mrf.mxu0
    %v8055 = vadd.f32 0.0, %v8054
    %v8056 = vpop.f32.mrf.mxu0
    %8057 = vmatprep.mubr.f32.mxu0 0.0
    %8058 = vmatmul.mubr.f32.gmra.mxu0 %v7986
    %v8059 = vpop.f32.mrf.mxu0
    %v8060 = vadd.f32 0.0, %v8059
    %v8061 = vpop.f32.mrf.mxu0
    %8062 = vdwg.mxu0
    %8079 = vrot.lane.b32.xlu0 %v3536, 8
    %v8080 = vpop.permute.xlu0 %8079
    %8081 = vrot.lane.b32.xlu0 %v3541, 8
    %v8082 = vpop.permute.xlu0 %8081
    %8083 = vrot.lane.b32.xlu0 %v3623, 8
    %v8084 = vpop.permute.xlu0 %8083
    %8085 = vrot.lane.b32.xlu0 %v3628, 8
    %v8086 = vpop.permute.xlu0 %8085
    %8087 = vrot.lane.b32.xlu0 %v3710, 8
    %v8088 = vpop.permute.xlu0 %8087
    %8089 = vrot.lane.b32.xlu0 %v3715, 8
    %v8090 = vpop.permute.xlu0 %8089
    %8091 = vrot.lane.b32.xlu0 %v3797, 8
    %v8092 = vpop.permute.xlu0 %8091
    %8093 = vrot.lane.b32.xlu0 %v3802, 8
    %v8094 = vpop.permute.xlu0 %8093
    %8095 = vrot.lane.b32.xlu0 %v3884, 8
    %v8096 = vpop.permute.xlu0 %8095
    %8097 = vrot.lane.b32.xlu0 %v3889, 8
    %v8098 = vpop.permute.xlu0 %8097
    %8099 = vrot.lane.b32.xlu0 %v3971, 8
    %v8100 = vpop.permute.xlu0 %8099
    %8101 = vrot.lane.b32.xlu0 %v3976, 8
    %v8102 = vpop.permute.xlu0 %8101
    %8103 = vrot.lane.b32.xlu0 %v4058, 8
    %v8104 = vpop.permute.xlu0 %8103
    %8105 = vrot.lane.b32.xlu0 %v4063, 8
    %v8106 = vpop.permute.xlu0 %8105
    %8107 = vrot.lane.b32.xlu0 %v4145, 8
    %v8108 = vpop.permute.xlu0 %8107
    %8109 = vrot.lane.b32.xlu0 %v4150, 8
    %v8110 = vpop.permute.xlu0 %8109
    %8143 = vrot.lane.b32.xlu0 %v5491, 16
    %v8144 = vpop.permute.xlu0 %8143
    %8145 = vrot.lane.b32.xlu0 %v5496, 16
    %v8146 = vpop.permute.xlu0 %8145
    %8147 = vrot.lane.b32.xlu0 %v5578, 16
    %v8148 = vpop.permute.xlu0 %8147
    %8149 = vrot.lane.b32.xlu0 %v5583, 16
    %v8150 = vpop.permute.xlu0 %8149
    %8151 = vrot.lane.b32.xlu0 %v5665, 16
    %v8152 = vpop.permute.xlu0 %8151
    %8153 = vrot.lane.b32.xlu0 %v5670, 16
    %v8154 = vpop.permute.xlu0 %8153
    %8155 = vrot.lane.b32.xlu0 %v5752, 16
    %v8156 = vpop.permute.xlu0 %8155
    %8157 = vrot.lane.b32.xlu0 %v5757, 16
    %v8158 = vpop.permute.xlu0 %8157
    %8159 = vrot.lane.b32.xlu0 %v5839, 16
    %v8160 = vpop.permute.xlu0 %8159
    %8161 = vrot.lane.b32.xlu0 %v5844, 16
    %v8162 = vpop.permute.xlu0 %8161
    %8163 = vrot.lane.b32.xlu0 %v5926, 16
    %v8164 = vpop.permute.xlu0 %8163
    %8165 = vrot.lane.b32.xlu0 %v5931, 16
    %v8166 = vpop.permute.xlu0 %8165
    %8167 = vrot.lane.b32.xlu0 %v6013, 16
    %v8168 = vpop.permute.xlu0 %8167
    %8169 = vrot.lane.b32.xlu0 %v6018, 16
    %v8170 = vpop.permute.xlu0 %8169
    %8171 = vrot.lane.b32.xlu0 %v6100, 16
    %v8172 = vpop.permute.xlu0 %8171
    %8173 = vrot.lane.b32.xlu0 %v6105, 16
    %v8174 = vpop.permute.xlu0 %8173
    %8207 = vrot.lane.b32.xlu0 %v7446, 24
    %v8208 = vpop.permute.xlu0 %8207
    %8209 = vrot.lane.b32.xlu0 %v7451, 24
    %v8210 = vpop.permute.xlu0 %8209
    %8211 = vrot.lane.b32.xlu0 %v7533, 24
    %v8212 = vpop.permute.xlu0 %8211
    %8213 = vrot.lane.b32.xlu0 %v7538, 24
    %v8214 = vpop.permute.xlu0 %8213
    %8215 = vrot.lane.b32.xlu0 %v7620, 24
    %v8216 = vpop.permute.xlu0 %8215
    %8217 = vrot.lane.b32.xlu0 %v7625, 24
    %v8218 = vpop.permute.xlu0 %8217
    %8219 = vrot.lane.b32.xlu0 %v7707, 24
    %v8220 = vpop.permute.xlu0 %8219
    %8221 = vrot.lane.b32.xlu0 %v7712, 24
    %v8222 = vpop.permute.xlu0 %8221
    %8223 = vrot.lane.b32.xlu0 %v7794, 24
    %v8224 = vpop.permute.xlu0 %8223
    %8225 = vrot.lane.b32.xlu0 %v7799, 24
    %v8226 = vpop.permute.xlu0 %8225
    %8227 = vrot.lane.b32.xlu0 %v7881, 24
    %v8228 = vpop.permute.xlu0 %8227
    %8229 = vrot.lane.b32.xlu0 %v7886, 24
    %v8230 = vpop.permute.xlu0 %8229
    %8231 = vrot.lane.b32.xlu0 %v7968, 24
    %v8232 = vpop.permute.xlu0 %8231
    %8233 = vrot.lane.b32.xlu0 %v7973, 24
    %v8234 = vpop.permute.xlu0 %8233
    %8235 = vrot.lane.b32.xlu0 %v8055, 24
    %v8236 = vpop.permute.xlu0 %8235
    %8237 = vrot.lane.b32.xlu0 %v8060, 24
    %v8238 = vpop.permute.xlu0 %8237
    %v8255 = vsel %vm290, %v1567, %v8080
    %v8256 = vsel %vm290, %v1572, %v8082
    %v8257 = vsel %vm290, %v1656, %v8084
    %v8258 = vsel %vm290, %v1661, %v8086
    %v8259 = vsel %vm290, %v1745, %v8088
    %v8260 = vsel %vm290, %v1750, %v8090
    %v8261 = vsel %vm290, %v1834, %v8092
    %v8262 = vsel %vm290, %v1839, %v8094
    %v8263 = vsel %vm290, %v1923, %v8096
    %v8264 = vsel %vm290, %v1928, %v8098
    %v8265 = vsel %vm290, %v2012, %v8100
    %v8266 = vsel %vm290, %v2017, %v8102
    %v8267 = vsel %vm290, %v2101, %v8104
    %v8268 = vsel %vm290, %v2106, %v8106
    %v8269 = vsel %vm290, %v2190, %v8108
    %v8270 = vsel %vm290, %v2195, %v8110
    %v8271 = vsel %vm1309, %v8255, %v8144
    %v8272 = vsel %vm1309, %v8256, %v8146
    %v8273 = vsel %vm1309, %v8257, %v8148
    %v8274 = vsel %vm1309, %v8258, %v8150
    %v8275 = vsel %vm1309, %v8259, %v8152
    %v8276 = vsel %vm1309, %v8260, %v8154
    %v8277 = vsel %vm1309, %v8261, %v8156
    %v8278 = vsel %vm1309, %v8262, %v8158
    %v8279 = vsel %vm1309, %v8263, %v8160
    %v8280 = vsel %vm1309, %v8264, %v8162
    %v8281 = vsel %vm1309, %v8265, %v8164
    %v8282 = vsel %vm1309, %v8266, %v8166
    %v8283 = vsel %vm1309, %v8267, %v8168
    %v8284 = vsel %vm1309, %v8268, %v8170
    %v8285 = vsel %vm1309, %v8269, %v8172
    %v8286 = vsel %vm1309, %v8270, %v8174
    %vm8287 = vcmask 195584
    %v8288 = vsel %vm8287, %v8271, %v8208
    %v8289 = vsel %vm8287, %v8272, %v8210
    %v8290 = vsel %vm8287, %v8273, %v8212
    %v8291 = vsel %vm8287, %v8274, %v8214
    %v8292 = vsel %vm8287, %v8275, %v8216
    %v8293 = vsel %vm8287, %v8276, %v8218
    %v8294 = vsel %vm8287, %v8277, %v8220
    %v8295 = vsel %vm8287, %v8278, %v8222
    %v8296 = vsel %vm8287, %v8279, %v8224
    %v8297 = vsel %vm8287, %v8280, %v8226
    %v8298 = vsel %vm8287, %v8281, %v8228
    %v8299 = vsel %vm8287, %v8282, %v8230
    %v8300 = vsel %vm8287, %v8283, %v8232
    %v8301 = vsel %vm8287, %v8284, %v8234
    %v8302 = vsel %vm8287, %v8285, %v8236
    %v8303 = vsel %vm8287, %v8286, %v8238
    %v8304 = vld [vmem:[%s5] sm:$0xff]
    %v8305 = vld [vmem:[%s5 + $0x8] sm:$0xff]
    %v8306 = vld [vmem:[%s5 + $0x10] sm:$0xff]
    %v8307 = vld [vmem:[%s5 + $0x18] sm:$0xff]
    %v8308 = vld [vmem:[%s6] sm:$0x1]
    %v8310 = vlaneseq
    %v8311 = vshrl.u32 %v8310, 7
    %v8312 = vsub.s32 0, %v8311
    %v8313 = vrot.slane %v8308, %v8312
    %v8316 = vsel %vm80, %v8288, 0
    %v8319 = vsel %vm80, %v8289, 0
    %v8322 = vsel %vm80, %v8290, 0
    %v8325 = vsel %vm80, %v8291, 0
    %v8328 = vsel %vm80, %v8292, 0
    %v8331 = vsel %vm80, %v8293, 0
    %v8334 = vsel %vm80, %v8294, 0
    %v8337 = vsel %vm80, %v8295, 0
    %v8340 = vsel %vm80, %v8296, 0
    %v8343 = vsel %vm80, %v8297, 0
    %v8346 = vsel %vm80, %v8298, 0
    %v8349 = vsel %vm80, %v8299, 0
    %v8352 = vsel %vm80, %v8300, 0
    %v8355 = vsel %vm80, %v8301, 0
    %v8358 = vsel %vm80, %v8302, 0
    %v8361 = vsel %vm80, %v8303, 0
    %8363 = vmatprep.subr.mxu0 0.0
    %8364 = vmatpush1.msra.mxu0 0.0
    %8365 = vmatprep.subr.mxu0 0.0
    %8366 = vmatpush1.msra.mxu0 0.0
    %8367 = vmatprep.subr.mxu0 0.0
    %8368 = vmatpush1.msra.mxu0 0.0
    %8369 = vmatprep.subr.mxu0 0.0
    %8370 = vmatpush1.msra.mxu0 0.0
    %8371 = vmatprep.subr.mxu0 0.0
    %8372 = vmatpush1.msra.mxu0 0.0
    %8373 = vmatprep.subr.mxu0 0.0
    %8374 = vmatpush1.msra.mxu0 0.0
    %8375 = vmatprep.subr.mxu0 0.0
    %8376 = vmatpush1.msra.mxu0 0.0
    %8377 = vmatprep.subr.mxu0 0.0
    %8378 = vmatpush1.msra.mxu0 0.0
    %8379 = vmatprep.subr.mxu0 0.0
    %8380 = vmatpush1.msra.mxu0 0.0
    %8381 = vmatprep.subr.mxu0 0.0
    %8382 = vmatpush1.msra.mxu0 0.0
    %8383 = vmatprep.subr.mxu0 0.0
    %8384 = vmatpush1.msra.mxu0 0.0
    %8385 = vmatprep.subr.mxu0 0.0
    %8386 = vmatpush1.msra.mxu0 0.0
    %8387 = vmatprep.subr.mxu0 0.0
    %8388 = vmatpush1.msra.mxu0 %v8307
    %8389 = vmatprep.subr.mxu0 0.0
    %8390 = vmatpush1.msra.mxu0 %v8306
    %8391 = vmatprep.subr.mxu0 0.0
    %8392 = vmatpush1.msra.mxu0 %v8305
    %8393 = vmatprep.subr.mxu0 0.0
    %8394 = vmatpush1.msra.mxu0 %v8304
    %8395 = vmatprep.subr.mxu0 0.0
    %8396 = vmatpush2.msra.mxu0 0.0
    %8397 = vmatprep.subr.mxu0 0.0
    %8398 = vmatpush2.msra.mxu0 0.0
    %8399 = vmatprep.subr.mxu0 0.0
    %8400 = vmatpush2.msra.mxu0 0.0
    %8401 = vmatprep.subr.mxu0 0.0
    %8402 = vmatpush2.msra.mxu0 0.0
    %8403 = vmatprep.subr.mxu0 0.0
    %8404 = vmatpush2.msra.mxu0 0.0
    %8405 = vmatprep.subr.mxu0 0.0
    %8406 = vmatpush2.msra.mxu0 0.0
    %8407 = vmatprep.subr.mxu0 0.0
    %8408 = vmatpush2.msra.mxu0 0.0
    %8409 = vmatprep.subr.mxu0 0.0
    %8410 = vmatpush2.msra.mxu0 0.0
    %8411 = vmatprep.subr.mxu0 0.0
    %8412 = vmatpush2.msra.mxu0 0.0
    %8413 = vmatprep.subr.mxu0 0.0
    %8414 = vmatpush2.msra.mxu0 0.0
    %8415 = vmatprep.subr.mxu0 0.0
    %8416 = vmatpush2.msra.mxu0 0.0
    %8417 = vmatprep.subr.mxu0 0.0
    %8418 = vmatpush2.msra.mxu0 0.0
    %8419 = vmatprep.subr.mxu0 0.0
    %8420 = vmatpush2.msra.mxu0 0.0
    %8421 = vmatprep.subr.mxu0 0.0
    %8422 = vmatpush2.msra.mxu0 0.0
    %8423 = vmatprep.subr.mxu0 0.0
    %8424 = vmatpush2.msra.mxu0 0.0
    %8425 = vmatprep.subr.mxu0 0.0
    %8426 = vmatpush2.msra.mxu0 0.0
    %8427 = vmatprep.mubr.f32.mxu0 0.0
    %8428 = vmatmul.mubr.f32.gmra.mxu0 %v8316
    %v8429 = vpop.f32.mrf.mxu0
    %v8430 = vadd.f32 %v8313, %v8429
    %v8431 = vpop.f32.mrf.mxu0
    %8432 = vmatprep.mubr.f32.mxu0 0.0
    %8433 = vmatmul.mubr.f32.gmra.mxu0 %v8319
    %v8434 = vpop.f32.mrf.mxu0
    %v8435 = vadd.f32 %v8313, %v8434
    %v8436 = vpop.f32.mrf.mxu0
    %8437 = vmatprep.mubr.f32.mxu0 0.0
    %8438 = vmatmul.mubr.f32.gmra.mxu0 %v8322
    %v8439 = vpop.f32.mrf.mxu0
    %v8440 = vadd.f32 %v8313, %v8439
    %v8441 = vpop.f32.mrf.mxu0
    %8442 = vmatprep.mubr.f32.mxu0 0.0
    %8443 = vmatmul.mubr.f32.gmra.mxu0 %v8325
    %v8444 = vpop.f32.mrf.mxu0
    %v8445 = vadd.f32 %v8313, %v8444
    %v8446 = vpop.f32.mrf.mxu0
    %8447 = vmatprep.mubr.f32.mxu0 0.0
    %8448 = vmatmul.mubr.f32.gmra.mxu0 %v8328
    %v8449 = vpop.f32.mrf.mxu0
    %v8450 = vadd.f32 %v8313, %v8449
    %v8451 = vpop.f32.mrf.mxu0
    %8452 = vmatprep.mubr.f32.mxu0 0.0
    %8453 = vmatmul.mubr.f32.gmra.mxu0 %v8331
    %v8454 = vpop.f32.mrf.mxu0
    %v8455 = vadd.f32 %v8313, %v8454
    %v8456 = vpop.f32.mrf.mxu0
    %8457 = vmatprep.mubr.f32.mxu0 0.0
    %8458 = vmatmul.mubr.f32.gmra.mxu0 %v8334
    %v8459 = vpop.f32.mrf.mxu0
    %v8460 = vadd.f32 %v8313, %v8459
    %v8461 = vpop.f32.mrf.mxu0
    %8462 = vmatprep.mubr.f32.mxu0 0.0
    %8463 = vmatmul.mubr.f32.gmra.mxu0 %v8337
    %v8464 = vpop.f32.mrf.mxu0
    %v8465 = vadd.f32 %v8313, %v8464
    %v8466 = vpop.f32.mrf.mxu0
    %8467 = vmatprep.mubr.f32.mxu0 0.0
    %8468 = vmatmul.mubr.f32.gmra.mxu0 %v8340
    %v8469 = vpop.f32.mrf.mxu0
    %v8470 = vadd.f32 %v8313, %v8469
    %v8471 = vpop.f32.mrf.mxu0
    %8472 = vmatprep.mubr.f32.mxu0 0.0
    %8473 = vmatmul.mubr.f32.gmra.mxu0 %v8343
    %v8474 = vpop.f32.mrf.mxu0
    %v8475 = vadd.f32 %v8313, %v8474
    %v8476 = vpop.f32.mrf.mxu0
    %8477 = vmatprep.mubr.f32.mxu0 0.0
    %8478 = vmatmul.mubr.f32.gmra.mxu0 %v8346
    %v8479 = vpop.f32.mrf.mxu0
    %v8480 = vadd.f32 %v8313, %v8479
    %v8481 = vpop.f32.mrf.mxu0
    %8482 = vmatprep.mubr.f32.mxu0 0.0
    %8483 = vmatmul.mubr.f32.gmra.mxu0 %v8349
    %v8484 = vpop.f32.mrf.mxu0
    %v8485 = vadd.f32 %v8313, %v8484
    %v8486 = vpop.f32.mrf.mxu0
    %8487 = vmatprep.mubr.f32.mxu0 0.0
    %8488 = vmatmul.mubr.f32.gmra.mxu0 %v8352
    %v8489 = vpop.f32.mrf.mxu0
    %v8490 = vadd.f32 %v8313, %v8489
    %v8491 = vpop.f32.mrf.mxu0
    %8492 = vmatprep.mubr.f32.mxu0 0.0
    %8493 = vmatmul.mubr.f32.gmra.mxu0 %v8355
    %v8494 = vpop.f32.mrf.mxu0
    %v8495 = vadd.f32 %v8313, %v8494
    %v8496 = vpop.f32.mrf.mxu0
    %8497 = vmatprep.mubr.f32.mxu0 0.0
    %8498 = vmatmul.mubr.f32.gmra.mxu0 %v8358
    %v8499 = vpop.f32.mrf.mxu0
    %v8500 = vadd.f32 %v8313, %v8499
    %v8501 = vpop.f32.mrf.mxu0
    %8502 = vmatprep.mubr.f32.mxu0 0.0
    %8503 = vmatmul.mubr.f32.gmra.mxu0 %v8361
    %v8504 = vpop.f32.mrf.mxu0
    %v8505 = vadd.f32 %v8313, %v8504
    %v8506 = vpop.f32.mrf.mxu0
    %8507 = vdwg.mxu0
    %8508 = vst.msk [vmem:[%s7] sm:$0xff] %vm80, %v8430
    %8509 = vst.msk [vmem:[%s7 + $0x8] sm:$0xff] %vm80, %v8435
    %8510 = vst.msk [vmem:[%s7 + $0x10] sm:$0xff] %vm80, %v8440
    %8511 = vst.msk [vmem:[%s7 + $0x18] sm:$0xff] %vm80, %v8445
    %8512 = vst.msk [vmem:[%s7 + $0x20] sm:$0xff] %vm80, %v8450
    %8513 = vst.msk [vmem:[%s7 + $0x28] sm:$0xff] %vm80, %v8455
    %8514 = vst.msk [vmem:[%s7 + $0x30] sm:$0xff] %vm80, %v8460
    %8515 = vst.msk [vmem:[%s7 + $0x38] sm:$0xff] %vm80, %v8465
    %8516 = vst.msk [vmem:[%s7 + $0x40] sm:$0xff] %vm80, %v8470
    %8517 = vst.msk [vmem:[%s7 + $0x48] sm:$0xff] %vm80, %v8475
    %8518 = vst.msk [vmem:[%s7 + $0x50] sm:$0xff] %vm80, %v8480
    %8519 = vst.msk [vmem:[%s7 + $0x58] sm:$0xff] %vm80, %v8485
    %8520 = vst.msk [vmem:[%s7 + $0x60] sm:$0xff] %vm80, %v8490
    %8521 = vst.msk [vmem:[%s7 + $0x68] sm:$0xff] %vm80, %v8495
    %8522 = vst.msk [vmem:[%s7 + $0x70] sm:$0xff] %vm80, %v8500
    %8523 = vst.msk [vmem:[%s7 + $0x78] sm:$0xff] %vm80, %v8505
    // Predicated region
    $region38: #{tpu_custom_call.1} parent=1 // pred_check
      _
    $region39: #{tpu_custom_call.1} parent=1 // pred_check_branch
      %8525 = sbr.rel (0) target = $region41
    $region40: #{tpu_custom_call.1} parent=1 // pred_region
      _
    $region41: #{tpu_custom_call.1} parent=1 // pred_fallthru
      _
    // Predicated region
    $region42: #{tpu_custom_call.1} parent=1 // pred_check
      _
    $region43: #{tpu_custom_call.1} parent=1 // pred_check_branch
      %8527 = sbr.rel (0) target = $region45
    $region44: #{tpu_custom_call.1} parent=1 // pred_region
      _
    $region45: #{tpu_custom_call.1} parent=1 // pred_fallthru
      _
    %8528 = vsyncpa [#allocation3], 1
    %8529 = vsyncpa [#allocation4], 1

</llo_original>
